<compile_context>
chip_gen: v6e
topology: v6e:2x2x1
jax: 0.10.0
libtpu: 0.0.40
codegen_flags: <defaults>
</compile_context>

<pallas_src>
import functools

import jax
import jax.numpy as jnp
from jax.experimental import pallas as pl
from jax.experimental.pallas import tpu as pltpu

# Make XLA-side matmuls/convs (reference + patch extraction) f32-exact so the
# numeric check against the Pallas path is tight.
jax.config.update("jax_default_matmul_precision", "highest")

_DEF_BLOCK_M = 512


def _row_block(m):
    return m if m <= _DEF_BLOCK_M else _DEF_BLOCK_M


# ---------------------------------------------------------------------------
# Pallas kernels
# ---------------------------------------------------------------------------
def _linear_kernel(x_ref, w_ref, b_ref, o_ref, *, relu):
    y = jnp.dot(x_ref[...], w_ref[...], preferred_element_type=jnp.float32)
    y = y + b_ref[...]
    if relu:
        y = jnp.maximum(y, 0.0)
    o_ref[...] = y.astype(o_ref.dtype)


def pallas_linear(x, w, b, relu=False):
    """x: (M, K), w: (K, N), b: (1, N) -> (M, N), optional fused ReLU."""
    M, K = x.shape
    N = w.shape[1]
    bm = _row_block(M)
    return pl.pallas_call(
        functools.partial(_linear_kernel, relu=relu),
        grid=(pl.cdiv(M, bm),),
        in_specs=[
            pl.BlockSpec((bm, K), lambda i: (i, 0)),
            pl.BlockSpec((K, N), lambda i: (0, 0)),
            pl.BlockSpec((1, N), lambda i: (0, 0)),
        ],
        out_specs=pl.BlockSpec((bm, N), lambda i: (i, 0)),
        out_shape=jax.ShapeDtypeStruct((M, N), jnp.float32),
        compiler_params=pltpu.CompilerParams(dimension_semantics=("parallel",)),
    )(x, w, b)


def _fc_gate_kernel(x_ref, fcw_ref, fcb_ref, ex_ref, wfc_ref, wex_ref, b_ref,
                    o_ref):
    fc = jnp.dot(x_ref[...], fcw_ref[...], preferred_element_type=jnp.float32)
    fc = jnp.maximum(fc + fcb_ref[...], 0.0)
    xg = (jnp.dot(fc, wfc_ref[...], preferred_element_type=jnp.float32)
          + jnp.dot(ex_ref[...], wex_ref[...], preferred_element_type=jnp.float32)
          + b_ref[...])
    o_ref[...] = xg.astype(o_ref.dtype)


def pallas_fc_gate(x, fc_w, fc_b, ex, w_ih_fc, w_ih_ex, b):
    """Fused Conv2dHeadModel fc layer + LSTM input-to-gate projection.

    x:  (M, Kc) flattened conv features
    ex: (M, A+1) = [prev_action, prev_reward]
    Returns xg = relu(x@fc_w+fc_b) @ w_ih_fc + ex @ w_ih_ex + b, shape (M, 4H).
    (b is the combined PyTorch LSTM bias b_ih + b_hh.)
    """
    M, Kc = x.shape
    F = fc_w.shape[1]
    E = ex.shape[1]
    G = w_ih_fc.shape[1]
    bm = _row_block(M)
    return pl.pallas_call(
        _fc_gate_kernel,
        grid=(pl.cdiv(M, bm),),
        in_specs=[
            pl.BlockSpec((bm, Kc), lambda i: (i, 0)),
            pl.BlockSpec((Kc, F), lambda i: (0, 0)),
            pl.BlockSpec((1, F), lambda i: (0, 0)),
            pl.BlockSpec((bm, E), lambda i: (i, 0)),
            pl.BlockSpec((F, G), lambda i: (0, 0)),
            pl.BlockSpec((E, G), lambda i: (0, 0)),
            pl.BlockSpec((1, G), lambda i: (0, 0)),
        ],
        out_specs=pl.BlockSpec((bm, G), lambda i: (i, 0)),
        out_shape=jax.ShapeDtypeStruct((M, G), jnp.float32),
        compiler_params=pltpu.CompilerParams(dimension_semantics=("parallel",)),
    )(x, fc_w, fc_b, ex, w_ih_fc, w_ih_ex, b)


def _mlp_kernel(x_ref, w1_ref, b1_ref, w2_ref, b2_ref, w3_ref, b3_ref, o_ref):
    h = jnp.dot(x_ref[...], w1_ref[...], preferred_element_type=jnp.float32)
    h = jnp.maximum(h + b1_ref[...], 0.0)
    h = jnp.dot(h, w2_ref[...], preferred_element_type=jnp.float32)
    h = jnp.maximum(h + b2_ref[...], 0.0)
    y = jnp.dot(h, w3_ref[...], preferred_element_type=jnp.float32) + b3_ref[...]
    o_ref[...] = y.astype(o_ref.dtype)


def pallas_mlp(x, w1, b1, w2, b2, w3, b3):
    """Fused 3-layer MLP head: relu(xW1+b1) -> relu(.W2+b2) -> .W3+b3."""
    M, K = x.shape
    N1, N2, N3 = w1.shape[1], w2.shape[1], w3.shape[1]
    bm = _row_block(M)
    return pl.pallas_call(
        _mlp_kernel,
        grid=(pl.cdiv(M, bm),),
        in_specs=[
            pl.BlockSpec((bm, K), lambda i: (i, 0)),
            pl.BlockSpec((K, N1), lambda i: (0, 0)),
            pl.BlockSpec((1, N1), lambda i: (0, 0)),
            pl.BlockSpec((N1, N2), lambda i: (0, 0)),
            pl.BlockSpec((1, N2), lambda i: (0, 0)),
            pl.BlockSpec((N2, N3), lambda i: (0, 0)),
            pl.BlockSpec((1, N3), lambda i: (0, 0)),
        ],
        out_specs=pl.BlockSpec((bm, N3), lambda i: (i, 0)),
        out_shape=jax.ShapeDtypeStruct((M, N3), jnp.float32),
        compiler_params=pltpu.CompilerParams(dimension_semantics=("parallel",)),
    )(x, w1, b1, w2, b2, w3, b3)


def _lstm_kernel(xg_ref, whh_ref, h0_ref, c0_ref,
                 out_ref, hn_ref, cn_ref, h_scr, c_scr):
    t = pl.program_id(0)

    @pl.when(t == 0)
    def _():
        h_scr[...] = h0_ref[...]
        c_scr[...] = c0_ref[...]

    h = h_scr[...]            # (B, H)
    c = c_scr[...]            # (B, H)
    # x @ W_ih + (b_ih + b_hh) is precomputed outside the time loop (xg);
    # only the small recurrent matmul sits on the serial critical path.
    gates = xg_ref[t] + jnp.dot(h, whh_ref[...],
                                preferred_element_type=jnp.float32)  # (B, 4H)
    H = h_scr.shape[-1]
    i_g = jax.nn.sigmoid(gates[:, 0 * H:1 * H])   # PyTorch gate order i,f,g,o
    f_g = jax.nn.sigmoid(gates[:, 1 * H:2 * H])
    g_g = jnp.tanh(gates[:, 2 * H:3 * H])
    o_g = jax.nn.sigmoid(gates[:, 3 * H:4 * H])
    c_new = f_g * c + i_g * g_g
    h_new = o_g * jnp.tanh(c_new)
    h_scr[...] = h_new
    c_scr[...] = c_new
    out_ref[t] = h_new
    # Unconditional writes; constant-index output blocks stay VMEM-resident so
    # HBM gets exactly the last step's value (= final state).
    hn_ref[...] = h_new
    cn_ref[...] = c_new


def pallas_lstm(xg, w_hh, h0, c0):
    """xg: (T, B, 4H) precomputed x@W_ih + bias; w_hh: (H, 4H); h0/c0: (B, H)."""
    T, B, G = xg.shape
    H = h0.shape[-1]
    out, hn, cn = pl.pallas_call(
        _lstm_kernel,
        grid=(T,),
        in_specs=[
            pl.BlockSpec((T, B, G), lambda t: (0, 0, 0)),   # VMEM-resident
            pl.BlockSpec((H, G), lambda t: (0, 0)),
            pl.BlockSpec((B, H), lambda t: (0, 0)),
            pl.BlockSpec((B, H), lambda t: (0, 0)),
        ],
        out_specs=[
            pl.BlockSpec((T, B, H), lambda t: (0, 0, 0)),   # one writeback
            pl.BlockSpec((B, H), lambda t: (0, 0)),
            pl.BlockSpec((B, H), lambda t: (0, 0)),
        ],
        out_shape=[
            jax.ShapeDtypeStruct((T, B, H), jnp.float32),
            jax.ShapeDtypeStruct((B, H), jnp.float32),
            jax.ShapeDtypeStruct((B, H), jnp.float32),
        ],
        scratch_shapes=[pltpu.VMEM((B, H), jnp.float32),
                        pltpu.VMEM((B, H), jnp.float32)],
        compiler_params=pltpu.CompilerParams(dimension_semantics=("arbitrary",)),
    )(xg, w_hh, h0, c0)
    return out, hn, cn


# ---------------------------------------------------------------------------
# Conv via im2col (patch extraction is a single XLA op; matmul is Pallas)
# ---------------------------------------------------------------------------
def conv2d_im2col(x, w, b, stride, padding, relu=True):
    """x: (N, C, H, W), w: (O, C, kh, kw), b: (O,) -> (N, O, OH, OW)."""
    N = x.shape[0]
    O, _, kh, kw = w.shape
    patches = jax.lax.conv_general_dilated_patches(
        x, (kh, kw), (stride, stride),
        [(padding, padding), (padding, padding)])
    # patches: (N, C*kh*kw, OH, OW); feature order (C, kh, kw) matches
    # w.reshape(O, C*kh*kw).
    K, OH, OW = patches.shape[1:]
    pat = patches.transpose(0, 2, 3, 1).reshape(N * OH * OW, K)
    wmat = w.reshape(O, K).T
    y = pallas_linear(pat, wmat, b.reshape(1, O), relu=relu)
    return y.reshape(N, OH, OW, O).transpose(0, 3, 1, 2)  # back to NCHW


def _conv_out_hw(hw, k, s, p):
    return (hw + 2 * p - k) // s + 1


# ---------------------------------------------------------------------------
# Model: parameters + forward
# ---------------------------------------------------------------------------
def init_params(key, obs_shape, action_size,
                channels=(8, 16), kernel_sizes=(8, 4), strides=(4, 2),
                paddings=(0, 1), fc_sizes=128, lstm_size=64,
                hidden_sizes=(64, 64)):
    C, H, W = obs_shape
    ks = jax.random.split(key, 13)
    s = 0.1

    def rnd(k, shape):
        return s * jax.random.normal(k, shape, dtype=jnp.float32)

    c1_w = rnd(ks[0], (channels[0], C, kernel_sizes[0], kernel_sizes[0]))
    c1_b = rnd(ks[1], (channels[0],))
    c2_w = rnd(ks[2], (channels[1], channels[0], kernel_sizes[1], kernel_sizes[1]))
    c2_b = rnd(ks[3], (channels[1],))
    h1 = _conv_out_hw(H, kernel_sizes[0], strides[0], paddings[0])
    w1 = _conv_out_hw(W, kernel_sizes[0], strides[0], paddings[0])
    h2 = _conv_out_hw(h1, kernel_sizes[1], strides[1], paddings[1])
    w2 = _conv_out_hw(w1, kernel_sizes[1], strides[1], paddings[1])
    conv_flat = channels[1] * h2 * w2
    # fc head of Conv2dHeadModel (Linear + ReLU)
    fc_w = rnd(ks[4], (conv_flat, fc_sizes))
    fc_b = rnd(ks[5], (1, fc_sizes))
    # LSTM input = [fc_out, prev_action, prev_reward]; W_ih split accordingly.
    # lstm_b is the combined PyTorch bias (b_ih + b_hh) — sum them when
    # porting real torch weights.
    lstm_wih_fc = rnd(ks[6], (fc_sizes, 4 * lstm_size))
    lstm_wih_ex = rnd(ks[7], (action_size + 1, 4 * lstm_size))
    lstm_whh = rnd(ks[8], (lstm_size, 4 * lstm_size))
    lstm_b = rnd(ks[9], (1, 4 * lstm_size))
    # MLP head: lstm_size -> 64 -> 64 -> 2*action_size
    m1_w = rnd(ks[10], (lstm_size, hidden_sizes[0]))
    m1_b = jnp.zeros((1, hidden_sizes[0]), jnp.float32)
    m2_w = rnd(ks[11], (hidden_sizes[0], hidden_sizes[1]))
    m2_b = jnp.zeros((1, hidden_sizes[1]), jnp.float32)
    m3_w = rnd(ks[12], (hidden_sizes[1], 2 * action_size))
    m3_b = jnp.zeros((1, 2 * action_size), jnp.float32)
    return dict(c1_w=c1_w, c1_b=c1_b, c2_w=c2_w, c2_b=c2_b,
                fc_w=fc_w, fc_b=fc_b,
                lstm_wih_fc=lstm_wih_fc, lstm_wih_ex=lstm_wih_ex,
                lstm_whh=lstm_whh, lstm_b=lstm_b,
                m1_w=m1_w, m1_b=m1_b, m2_w=m2_w, m2_b=m2_b,
                m3_w=m3_w, m3_b=m3_b)


def pi_conv_lstm_forward(params, image, prev_action, prev_reward, init_h, init_c,
                         *, action_size, strides, paddings):
    """image: (T, B, C, H, W); prev_action: (T, B, A); prev_reward: (T, B);
    init_h/init_c: (B, lstm_size).  Returns (mu, log_std, (hn, cn)).
    action_size/strides/paddings are static Python values (not traced)."""
    T, B = image.shape[:2]
    img = image.reshape(T * B, *image.shape[2:])

    x = conv2d_im2col(img, params["c1_w"], params["c1_b"],
                      stride=strides[0], padding=paddings[0], relu=True)
    x = conv2d_im2col(x, params["c2_w"], params["c2_b"],
                      stride=strides[1], padding=paddings[1], relu=True)
    x = x.reshape(T * B, -1)

    ex = jnp.concatenate([prev_action.reshape(T * B, -1),
                          prev_reward.reshape(T * B, 1)], axis=1)
    # Fused fc head + LSTM input-to-gate projection (hoisted out of time loop).
    xg = pallas_fc_gate(x, params["fc_w"], params["fc_b"], ex,
                        params["lstm_wih_fc"], params["lstm_wih_ex"],
                        params["lstm_b"])

    H = init_h.shape[-1]
    lstm_out, hn, cn = pallas_lstm(xg.reshape(T, B, 4 * H),
                                   params["lstm_whh"], init_h, init_c)

    out = pallas_mlp(lstm_out.reshape(T * B, H),
                     params["m1_w"], params["m1_b"],
                     params["m2_w"], params["m2_b"],
                     params["m3_w"], params["m3_b"])
    mu = out[:, :action_size].reshape(T, B, action_size)
    log_std = out[:, action_size:].reshape(T, B, action_size)
    # PyTorch LSTM returns (num_layers=1, B, H) states.
    return mu, log_std, (hn[None, ...], cn[None, ...])


# ---------------------------------------------------------------------------
# Pure-JAX reference (for numerical validation)
# ---------------------------------------------------------------------------
def _ref_forward(params, image, prev_action, prev_reward, init_h, init_c,
                 action_size, strides, paddings):
    T, B = image.shape[:2]
    x = image.reshape(T * B, *image.shape[2:])

    def conv(x, w, b, s, p):
        y = jax.lax.conv_general_dilated(
            x, w, (s, s), [(p, p), (p, p)],
            dimension_numbers=("NCHW", "OIHW", "NCHW"))
        return jax.nn.relu(y + b[None, :, None, None])

    x = conv(x, params["c1_w"], params["c1_b"], strides[0], paddings[0])
    x = conv(x, params["c2_w"], params["c2_b"], strides[1], paddings[1])
    x = x.reshape(T * B, -1)
    fc = jax.nn.relu(x @ params["fc_w"] + params["fc_b"])
    lstm_in = jnp.concatenate([fc.reshape(T, B, -1),
                               prev_action.reshape(T, B, -1),
                               prev_reward.reshape(T, B, 1)], axis=2)
    w_ih = jnp.concatenate([params["lstm_wih_fc"], params["lstm_wih_ex"]], axis=0)
    H = init_h.shape[-1]

    def step(carry, xt):
        h, c = carry
        g = xt @ w_ih + h @ params["lstm_whh"] + params["lstm_b"]
        i = jax.nn.sigmoid(g[:, :H])
        f = jax.nn.sigmoid(g[:, H:2 * H])
        gg = jnp.tanh(g[:, 2 * H:3 * H])
        o = jax.nn.sigmoid(g[:, 3 * H:])
        c = f * c + i * gg
        h = o * jnp.tanh(c)
        return (h, c), h

    (hn, cn), outs = jax.lax.scan(step, (init_h, init_c), lstm_in)
    h = outs.reshape(T * B, -1)
    h = jax.nn.relu(h @ params["m1_w"] + params["m1_b"])
    h = jax.nn.relu(h @ params["m2_w"] + params["m2_b"])
    out = h @ params["m3_w"] + params["m3_b"]
    mu = out[:, :action_size].reshape(T, B, action_size)
    log_std = out[:, action_size:].reshape(T, B, action_size)
    return mu, log_std, hn, cn


if __name__ == "__main__":
    T, B = 8, 2
    obs_shape = (4, 16, 16)        # (C, H, W)
    action_size = 4
    lstm_size = 64
    strides = (4, 2)
    paddings = (0, 1)

    key = jax.random.PRNGKey(0)
    k_img, k_act, k_rew, k_par = jax.random.split(key, 4)

    image = jax.random.normal(k_img, (T, B) + obs_shape, dtype=jnp.float32)
    prev_action = jax.random.normal(k_act, (T, B, action_size), dtype=jnp.float32)
    prev_reward = jax.random.normal(k_rew, (T, B), dtype=jnp.float32)
    init_h = jnp.zeros((B, lstm_size), jnp.float32)
    init_c = jnp.zeros((B, lstm_size), jnp.float32)

    params = init_params(k_par, obs_shape, action_size, strides=strides,
                         paddings=paddings, lstm_size=lstm_size)

    fwd = jax.jit(functools.partial(pi_conv_lstm_forward,
                                    action_size=action_size,
                                    strides=strides, paddings=paddings))
    mu, log_std, (hn, cn) = fwd(params, image, prev_action, prev_reward,
                                init_h, init_c)
    jax.block_until_ready((mu, log_std, hn, cn))

    assert mu.shape == (T, B, action_size)
    assert log_std.shape == (T, B, action_size)
    assert hn.shape == (1, B, lstm_size) and cn.shape == (1, B, lstm_size)

    # Numerical check against a pure-JAX reference of the same module.
    r_mu, r_ls, r_hn, r_cn = _ref_forward(params, image, prev_action,
                                          prev_reward, init_h, init_c,
                                          action_size, strides, paddings)
    assert jnp.allclose(mu, r_mu, atol=1e-3, rtol=1e-3)
    assert jnp.allclose(log_std, r_ls, atol=1e-3, rtol=1e-3)
    assert jnp.allclose(hn[0], r_hn, atol=1e-3, rtol=1e-3)
    assert jnp.allclose(cn[0], r_cn, atol=1e-3, rtol=1e-3)

    print("KERNEL_OK")
</pallas_src>

<mosaic_0001>
module attributes {stable_mosaic.version = 11 : i64} {
  func.func @_linear_kernel(%arg0: i32, %arg1: memref<144x256xf32, #tpu.memory_space<vmem>>, %arg2: memref<256x8xf32, #tpu.memory_space<vmem>>, %arg3: memref<1x8xf32, #tpu.memory_space<vmem>>, %arg4: memref<144x8xf32, #tpu.memory_space<vmem>>) attributes {dimension_semantics = [#tpu.dimension_semantics<parallel>], iteration_bounds = array<i64: 1>, scalar_prefetch = 0 : i64, scratch_operands = 0 : i64, tpu.core_type = #tpu.core_type<tc>, window_params = [{transform_indices = @transform_0, window_bounds = array<i64: 144, 256>}, {pipeline_mode = #tpu.pipeline_mode<synchronous>, transform_indices = @transform_1, window_bounds = array<i64: 256, 8>}, {pipeline_mode = #tpu.pipeline_mode<synchronous>, transform_indices = @transform_2, window_bounds = array<i64: 1, 8>}, {transform_indices = @transform_3, window_bounds = array<i64: 144, 8>}]} {
    %c0 = arith.constant 0 : index
    %c0_0 = arith.constant 0 : index
    %0 = vector.load %arg1[%c0, %c0_0] : memref<144x256xf32, #tpu.memory_space<vmem>>, vector<144x256xf32>
    %c0_1 = arith.constant 0 : index
    %c0_2 = arith.constant 0 : index
    %1 = vector.load %arg2[%c0_1, %c0_2] : memref<256x8xf32, #tpu.memory_space<vmem>>, vector<256x8xf32>
    %cst = arith.constant dense<0.000000e+00> : vector<144x8xf32>
    %2 = tpu.matmul %0, %1, %cst {dimension_numbers = #tpu.dot_dimension_numbers<[1], [0], [0], [1], [0, 0, 1, 1], [], []>, precision = #tpu.contract_precision<fp32>} : vector<144x256xf32>, vector<256x8xf32>, vector<144x8xf32> -> vector<144x8xf32>
    %c0_3 = arith.constant 0 : index
    %c0_4 = arith.constant 0 : index
    %3 = vector.load %arg3[%c0_3, %c0_4] : memref<1x8xf32, #tpu.memory_space<vmem>>, vector<1x8xf32>
    %4 = vector.broadcast %3 : vector<1x8xf32> to vector<144x8xf32>
    %5 = arith.addf %2, %4 : vector<144x8xf32>
    %cst_5 = arith.constant 0.000000e+00 : f32
    %6 = vector.broadcast %cst_5 : f32 to vector<144x8xf32>
    %7 = arith.maximumf %5, %6 : vector<144x8xf32>
    %c0_6 = arith.constant 0 : index
    %c0_7 = arith.constant 0 : index
    %8 = vector.load %arg4[%c0_6, %c0_7] : memref<144x8xf32, #tpu.memory_space<vmem>>, vector<144x8xf32>
    tpu.vector_store %arg4[%c0_6, %c0_7], %7 {strides = array<i32>} : memref<144x8xf32, #tpu.memory_space<vmem>>, vector<144x8xf32>,
    return
  }
  func.func @transform_0(%arg0: i32) -> (i32, i32) {
    %c0_i32 = arith.constant 0 : i32
    %c0_i32_0 = arith.constant 0 : i32
    return %arg0, %c0_i32 : i32, i32
  }
  func.func @transform_1(%arg0: i32) -> (i32, i32) {
    %c0_i32 = arith.constant 0 : i32
    %c0_i32_0 = arith.constant 0 : i32
    %c0_i32_1 = arith.constant 0 : i32
    return %c0_i32, %c0_i32_0 : i32, i32
  }
  func.func @transform_2(%arg0: i32) -> (i32, i32) {
    %c0_i32 = arith.constant 0 : i32
    %c0_i32_0 = arith.constant 0 : i32
    %c0_i32_1 = arith.constant 0 : i32
    return %c0_i32, %c0_i32_0 : i32, i32
  }
  func.func @transform_3(%arg0: i32) -> (i32, i32) {
    %c0_i32 = arith.constant 0 : i32
    %c0_i32_0 = arith.constant 0 : i32
    return %arg0, %c0_i32 : i32, i32
  }
}

module attributes {stable_mosaic.version = 11 : i64} {
  func.func @_linear_kernel(%arg0: i32, %arg1: memref<16x128xf32, #tpu.memory_space<vmem>>, %arg2: memref<128x16xf32, #tpu.memory_space<vmem>>, %arg3: memref<1x16xf32, #tpu.memory_space<vmem>>, %arg4: memref<16x16xf32, #tpu.memory_space<vmem>>) attributes {dimension_semantics = [#tpu.dimension_semantics<parallel>], iteration_bounds = array<i64: 1>, scalar_prefetch = 0 : i64, scratch_operands = 0 : i64, tpu.core_type = #tpu.core_type<tc>, window_params = [{transform_indices = @transform_0, window_bounds = array<i64: 16, 128>}, {pipeline_mode = #tpu.pipeline_mode<synchronous>, transform_indices = @transform_1, window_bounds = array<i64: 128, 16>}, {pipeline_mode = #tpu.pipeline_mode<synchronous>, transform_indices = @transform_2, window_bounds = array<i64: 1, 16>}, {transform_indices = @transform_3, window_bounds = array<i64: 16, 16>}]} {
    %c0 = arith.constant 0 : index
    %c0_0 = arith.constant 0 : index
    %0 = vector.load %arg1[%c0, %c0_0] : memref<16x128xf32, #tpu.memory_space<vmem>>, vector<16x128xf32>
    %c0_1 = arith.constant 0 : index
    %c0_2 = arith.constant 0 : index
    %1 = vector.load %arg2[%c0_1, %c0_2] : memref<128x16xf32, #tpu.memory_space<vmem>>, vector<128x16xf32>
    %cst = arith.constant dense<0.000000e+00> : vector<16x16xf32>
    %2 = tpu.matmul %0, %1, %cst {dimension_numbers = #tpu.dot_dimension_numbers<[1], [0], [0], [1], [0, 0, 1, 1], [], []>, precision = #tpu.contract_precision<fp32>} : vector<16x128xf32>, vector<128x16xf32>, vector<16x16xf32> -> vector<16x16xf32>
    %c0_3 = arith.constant 0 : index
    %c0_4 = arith.constant 0 : index
    %3 = vector.load %arg3[%c0_3, %c0_4] : memref<1x16xf32, #tpu.memory_space<vmem>>, vector<1x16xf32>
    %4 = vector.broadcast %3 : vector<1x16xf32> to vector<16x16xf32>
    %5 = arith.addf %2, %4 : vector<16x16xf32>
    %cst_5 = arith.constant 0.000000e+00 : f32
    %6 = vector.broadcast %cst_5 : f32 to vector<16x16xf32>
    %7 = arith.maximumf %5, %6 : vector<16x16xf32>
    %c0_6 = arith.constant 0 : index
    %c0_7 = arith.constant 0 : index
    %8 = vector.load %arg4[%c0_6, %c0_7] : memref<16x16xf32, #tpu.memory_space<vmem>>, vector<16x16xf32>
    tpu.vector_store %arg4[%c0_6, %c0_7], %7 {strides = array<i32>} : memref<16x16xf32, #tpu.memory_space<vmem>>, vector<16x16xf32>,
    return
  }
  func.func @transform_0(%arg0: i32) -> (i32, i32) {
    %c0_i32 = arith.constant 0 : i32
    %c0_i32_0 = arith.constant 0 : i32
    return %arg0, %c0_i32 : i32, i32
  }
  func.func @transform_1(%arg0: i32) -> (i32, i32) {
    %c0_i32 = arith.constant 0 : i32
    %c0_i32_0 = arith.constant 0 : i32
    %c0_i32_1 = arith.constant 0 : i32
    return %c0_i32, %c0_i32_0 : i32, i32
  }
  func.func @transform_2(%arg0: i32) -> (i32, i32) {
    %c0_i32 = arith.constant 0 : i32
    %c0_i32_0 = arith.constant 0 : i32
    %c0_i32_1 = arith.constant 0 : i32
    return %c0_i32, %c0_i32_0 : i32, i32
  }
  func.func @transform_3(%arg0: i32) -> (i32, i32) {
    %c0_i32 = arith.constant 0 : i32
    %c0_i32_0 = arith.constant 0 : i32
    return %arg0, %c0_i32 : i32, i32
  }
}

module attributes {stable_mosaic.version = 11 : i64} {
  func.func @_fc_gate_kernel(%arg0: i32, %arg1: memref<16x16xf32, #tpu.memory_space<vmem>>, %arg2: memref<16x128xf32, #tpu.memory_space<vmem>>, %arg3: memref<1x128xf32, #tpu.memory_space<vmem>>, %arg4: memref<16x5xf32, #tpu.memory_space<vmem>>, %arg5: memref<128x256xf32, #tpu.memory_space<vmem>>, %arg6: memref<5x256xf32, #tpu.memory_space<vmem>>, %arg7: memref<1x256xf32, #tpu.memory_space<vmem>>, %arg8: memref<16x256xf32, #tpu.memory_space<vmem>>) attributes {dimension_semantics = [#tpu.dimension_semantics<parallel>], iteration_bounds = array<i64: 1>, scalar_prefetch = 0 : i64, scratch_operands = 0 : i64, tpu.core_type = #tpu.core_type<tc>, window_params = [{transform_indices = @transform_0, window_bounds = array<i64: 16, 16>}, {pipeline_mode = #tpu.pipeline_mode<synchronous>, transform_indices = @transform_1, window_bounds = array<i64: 16, 128>}, {pipeline_mode = #tpu.pipeline_mode<synchronous>, transform_indices = @transform_2, window_bounds = array<i64: 1, 128>}, {transform_indices = @transform_3, window_bounds = array<i64: 16, 5>}, {pipeline_mode = #tpu.pipeline_mode<synchronous>, transform_indices = @transform_4, window_bounds = array<i64: 128, 256>}, {pipeline_mode = #tpu.pipeline_mode<synchronous>, transform_indices = @transform_5, window_bounds = array<i64: 5, 256>}, {pipeline_mode = #tpu.pipeline_mode<synchronous>, transform_indices = @transform_6, window_bounds = array<i64: 1, 256>}, {transform_indices = @transform_7, window_bounds = array<i64: 16, 256>}]} {
    %c0 = arith.constant 0 : index
    %c0_0 = arith.constant 0 : index
    %0 = vector.load %arg1[%c0, %c0_0] : memref<16x16xf32, #tpu.memory_space<vmem>>, vector<16x16xf32>
    %c0_1 = arith.constant 0 : index
    %c0_2 = arith.constant 0 : index
    %1 = vector.load %arg2[%c0_1, %c0_2] : memref<16x128xf32, #tpu.memory_space<vmem>>, vector<16x128xf32>
    %cst = arith.constant dense<0.000000e+00> : vector<16x128xf32>
    %2 = tpu.matmul %0, %1, %cst {dimension_numbers = #tpu.dot_dimension_numbers<[1], [0], [0], [1], [0, 0, 1, 1], [], []>, precision = #tpu.contract_precision<fp32>} : vector<16x16xf32>, vector<16x128xf32>, vector<16x128xf32> -> vector<16x128xf32>
    %c0_3 = arith.constant 0 : index
    %c0_4 = arith.constant 0 : index
    %3 = vector.load %arg3[%c0_3, %c0_4] : memref<1x128xf32, #tpu.memory_space<vmem>>, vector<1x128xf32>
    %4 = vector.broadcast %3 : vector<1x128xf32> to vector<16x128xf32>
    %5 = arith.addf %2, %4 : vector<16x128xf32>
    %cst_5 = arith.constant 0.000000e+00 : f32
    %6 = vector.broadcast %cst_5 : f32 to vector<16x128xf32>
    %7 = arith.maximumf %5, %6 : vector<16x128xf32>
    %c0_6 = arith.constant 0 : index
    %c0_7 = arith.constant 0 : index
    %8 = vector.load %arg5[%c0_6, %c0_7] : memref<128x256xf32, #tpu.memory_space<vmem>>, vector<128x256xf32>
    %cst_8 = arith.constant dense<0.000000e+00> : vector<16x256xf32>
    %9 = tpu.matmul %7, %8, %cst_8 {dimension_numbers = #tpu.dot_dimension_numbers<[1], [0], [0], [1], [0, 0, 1, 1], [], []>, precision = #tpu.contract_precision<fp32>} : vector<16x128xf32>, vector<128x256xf32>, vector<16x256xf32> -> vector<16x256xf32>
    %c0_9 = arith.constant 0 : index
    %c0_10 = arith.constant 0 : index
    %10 = vector.load %arg4[%c0_9, %c0_10] : memref<16x5xf32, #tpu.memory_space<vmem>>, vector<16x5xf32>
    %c0_11 = arith.constant 0 : index
    %c0_12 = arith.constant 0 : index
    %11 = vector.load %arg6[%c0_11, %c0_12] : memref<5x256xf32, #tpu.memory_space<vmem>>, vector<5x256xf32>
    %cst_13 = arith.constant dense<0.000000e+00> : vector<16x256xf32>
    %12 = tpu.matmul %10, %11, %cst_13 {dimension_numbers = #tpu.dot_dimension_numbers<[1], [0], [0], [1], [0, 0, 1, 1], [], []>, precision = #tpu.contract_precision<fp32>} : vector<16x5xf32>, vector<5x256xf32>, vector<16x256xf32> -> vector<16x256xf32>
    %13 = arith.addf %9, %12 : vector<16x256xf32>
    %c0_14 = arith.constant 0 : index
    %c0_15 = arith.constant 0 : index
    %14 = vector.load %arg7[%c0_14, %c0_15] : memref<1x256xf32, #tpu.memory_space<vmem>>, vector<1x256xf32>
    %15 = vector.broadcast %14 : vector<1x256xf32> to vector<16x256xf32>
    %16 = arith.addf %13, %15 : vector<16x256xf32>
    %c0_16 = arith.constant 0 : index
    %c0_17 = arith.constant 0 : index
    %17 = vector.load %arg8[%c0_16, %c0_17] : memref<16x256xf32, #tpu.memory_space<vmem>>, vector<16x256xf32>
    tpu.vector_store %arg8[%c0_16, %c0_17], %16 {strides = array<i32>} : memref<16x256xf32, #tpu.memory_space<vmem>>, vector<16x256xf32>,
    return
  }
  func.func @transform_0(%arg0: i32) -> (i32, i32) {
    %c0_i32 = arith.constant 0 : i32
    %c0_i32_0 = arith.constant 0 : i32
    return %arg0, %c0_i32 : i32, i32
  }
  func.func @transform_1(%arg0: i32) -> (i32, i32) {
    %c0_i32 = arith.constant 0 : i32
    %c0_i32_0 = arith.constant 0 : i32
    %c0_i32_1 = arith.constant 0 : i32
    return %c0_i32, %c0_i32_0 : i32, i32
  }
  func.func @transform_2(%arg0: i32) -> (i32, i32) {
    %c0_i32 = arith.constant 0 : i32
    %c0_i32_0 = arith.constant 0 : i32
    %c0_i32_1 = arith.constant 0 : i32
    return %c0_i32, %c0_i32_0 : i32, i32
  }
  func.func @transform_3(%arg0: i32) -> (i32, i32) {
    %c0_i32 = arith.constant 0 : i32
    %c0_i32_0 = arith.constant 0 : i32
    return %arg0, %c0_i32 : i32, i32
  }
  func.func @transform_4(%arg0: i32) -> (i32, i32) {
    %c0_i32 = arith.constant 0 : i32
    %c0_i32_0 = arith.constant 0 : i32
    %c0_i32_1 = arith.constant 0 : i32
    return %c0_i32, %c0_i32_0 : i32, i32
  }
  func.func @transform_5(%arg0: i32) -> (i32, i32) {
    %c0_i32 = arith.constant 0 : i32
    %c0_i32_0 = arith.constant 0 : i32
    %c0_i32_1 = arith.constant 0 : i32
    return %c0_i32, %c0_i32_0 : i32, i32
  }
  func.func @transform_6(%arg0: i32) -> (i32, i32) {
    %c0_i32 = arith.constant 0 : i32
    %c0_i32_0 = arith.constant 0 : i32
    %c0_i32_1 = arith.constant 0 : i32
    return %c0_i32, %c0_i32_0 : i32, i32
  }
  func.func @transform_7(%arg0: i32) -> (i32, i32) {
    %c0_i32 = arith.constant 0 : i32
    %c0_i32_0 = arith.constant 0 : i32
    return %arg0, %c0_i32 : i32, i32
  }
}

module attributes {stable_mosaic.version = 11 : i64} {
  func.func @_lstm_kernel(%arg0: i32, %arg1: memref<8x2x256xf32, #tpu.memory_space<vmem>>, %arg2: memref<64x256xf32, #tpu.memory_space<vmem>>, %arg3: memref<2x64xf32, #tpu.memory_space<vmem>>, %arg4: memref<2x64xf32, #tpu.memory_space<vmem>>, %arg5: memref<8x2x64xf32, #tpu.memory_space<vmem>>, %arg6: memref<2x64xf32, #tpu.memory_space<vmem>>, %arg7: memref<2x64xf32, #tpu.memory_space<vmem>>, %arg8: memref<2x64xf32, #tpu.memory_space<vmem>>, %arg9: memref<2x64xf32, #tpu.memory_space<vmem>>) attributes {dimension_semantics = [#tpu.dimension_semantics<arbitrary>], iteration_bounds = array<i64: 8>, scalar_prefetch = 0 : i64, scratch_operands = 2 : i64, tpu.core_type = #tpu.core_type<tc>, window_params = [{pipeline_mode = #tpu.pipeline_mode<synchronous>, transform_indices = @transform_0, window_bounds = array<i64: 8, 2, 256>}, {pipeline_mode = #tpu.pipeline_mode<synchronous>, transform_indices = @transform_1, window_bounds = array<i64: 64, 256>}, {pipeline_mode = #tpu.pipeline_mode<synchronous>, transform_indices = @transform_2, window_bounds = array<i64: 2, 64>}, {pipeline_mode = #tpu.pipeline_mode<synchronous>, transform_indices = @transform_3, window_bounds = array<i64: 2, 64>}, {pipeline_mode = #tpu.pipeline_mode<synchronous>, transform_indices = @transform_4, window_bounds = array<i64: 8, 2, 64>}, {pipeline_mode = #tpu.pipeline_mode<synchronous>, transform_indices = @transform_5, window_bounds = array<i64: 2, 64>}, {pipeline_mode = #tpu.pipeline_mode<synchronous>, transform_indices = @transform_6, window_bounds = array<i64: 2, 64>}]} {
    %c0_i32 = arith.constant 0 : i32
    %0 = arith.cmpi eq, %arg0, %c0_i32 : i32
    %1 = arith.extui %0 : i1 to i32
    %c0_i32_0 = arith.constant 0 : i32
    %2 = arith.cmpi ne, %1, %c0_i32_0 : i32
    scf.if %2 {
      %c0_21 = arith.constant 0 : index
      %c0_22 = arith.constant 0 : index
      %44 = vector.load %arg3[%c0_21, %c0_22] : memref<2x64xf32, #tpu.memory_space<vmem>>, vector<2x64xf32>
      %c0_23 = arith.constant 0 : index
      %c0_24 = arith.constant 0 : index
      %45 = vector.load %arg8[%c0_23, %c0_24] : memref<2x64xf32, #tpu.memory_space<vmem>>, vector<2x64xf32>
      tpu.vector_store %arg8[%c0_23, %c0_24], %44 {strides = array<i32>} : memref<2x64xf32, #tpu.memory_space<vmem>>, vector<2x64xf32>,
      %c0_25 = arith.constant 0 : index
      %c0_26 = arith.constant 0 : index
      %46 = vector.load %arg4[%c0_25, %c0_26] : memref<2x64xf32, #tpu.memory_space<vmem>>, vector<2x64xf32>
      %c0_27 = arith.constant 0 : index
      %c0_28 = arith.constant 0 : index
      %47 = vector.load %arg9[%c0_27, %c0_28] : memref<2x64xf32, #tpu.memory_space<vmem>>, vector<2x64xf32>
      tpu.vector_store %arg9[%c0_27, %c0_28], %46 {strides = array<i32>} : memref<2x64xf32, #tpu.memory_space<vmem>>, vector<2x64xf32>,
    } else {
    }
    %c0 = arith.constant 0 : index
    %c0_1 = arith.constant 0 : index
    %3 = vector.load %arg8[%c0, %c0_1] : memref<2x64xf32, #tpu.memory_space<vmem>>, vector<2x64xf32>
    %c0_2 = arith.constant 0 : index
    %c0_3 = arith.constant 0 : index
    %4 = vector.load %arg9[%c0_2, %c0_3] : memref<2x64xf32, #tpu.memory_space<vmem>>, vector<2x64xf32>
    %5 = arith.index_cast %arg0 : i32 to index
    %c0_4 = arith.constant 0 : index
    %c0_5 = arith.constant 0 : index
    %6 = vector.load %arg1[%5, %c0_4, %c0_5] : memref<8x2x256xf32, #tpu.memory_space<vmem>>, vector<1x2x256xf32>
    %7 = vector.shape_cast %6 : vector<1x2x256xf32> to vector<2x256xf32>
    %c0_6 = arith.constant 0 : index
    %c0_7 = arith.constant 0 : index
    %8 = vector.load %arg2[%c0_6, %c0_7] : memref<64x256xf32, #tpu.memory_space<vmem>>, vector<64x256xf32>
    %cst = arith.constant dense<0.000000e+00> : vector<2x256xf32>
    %9 = tpu.matmul %3, %8, %cst {dimension_numbers = #tpu.dot_dimension_numbers<[1], [0], [0], [1], [0, 0, 1, 1], [], []>, precision = #tpu.contract_precision<fp32>} : vector<2x64xf32>, vector<64x256xf32>, vector<2x256xf32> -> vector<2x256xf32>
    %10 = arith.addf %7, %9 : vector<2x256xf32>
    %11 = vector.extract_strided_slice %10 {offsets = [0, 0], sizes = [2, 64], strides = [1, 1]} : vector<2x256xf32> to vector<2x64xf32>
    %12 = arith.negf %11 : vector<2x64xf32>
    %13 = math.exp %12 : vector<2x64xf32>
    %cst_8 = arith.constant 1.000000e+00 : f32
    %14 = vector.broadcast %cst_8 : f32 to vector<2x64xf32>
    %15 = arith.addf %14, %13 : vector<2x64xf32>
    %16 = arith.divf %14, %15 : vector<2x64xf32>
    %17 = vector.extract_strided_slice %10 {offsets = [0, 64], sizes = [2, 64], strides = [1, 1]} : vector<2x256xf32> to vector<2x64xf32>
    %18 = arith.negf %17 : vector<2x64xf32>
    %19 = math.exp %18 : vector<2x64xf32>
    %cst_9 = arith.constant 1.000000e+00 : f32
    %20 = vector.broadcast %cst_9 : f32 to vector<2x64xf32>
    %21 = arith.addf %20, %19 : vector<2x64xf32>
    %22 = arith.divf %20, %21 : vector<2x64xf32>
    %23 = vector.extract_strided_slice %10 {offsets = [0, 128], sizes = [2, 64], strides = [1, 1]} : vector<2x256xf32> to vector<2x64xf32>
    %24 = math.tanh %23 : vector<2x64xf32>
    %25 = vector.extract_strided_slice %10 {offsets = [0, 192], sizes = [2, 64], strides = [1, 1]} : vector<2x256xf32> to vector<2x64xf32>
    %26 = arith.negf %25 : vector<2x64xf32>
    %27 = math.exp %26 : vector<2x64xf32>
    %cst_10 = arith.constant 1.000000e+00 : f32
    %28 = vector.broadcast %cst_10 : f32 to vector<2x64xf32>
    %29 = arith.addf %28, %27 : vector<2x64xf32>
    %30 = arith.divf %28, %29 : vector<2x64xf32>
    %31 = arith.mulf %22, %4 : vector<2x64xf32>
    %32 = arith.mulf %16, %24 : vector<2x64xf32>
    %33 = arith.addf %31, %32 : vector<2x64xf32>
    %34 = math.tanh %33 : vector<2x64xf32>
    %35 = arith.mulf %30, %34 : vector<2x64xf32>
    %c0_11 = arith.constant 0 : index
    %c0_12 = arith.constant 0 : index
    %36 = vector.load %arg8[%c0_11, %c0_12] : memref<2x64xf32, #tpu.memory_space<vmem>>, vector<2x64xf32>
    tpu.vector_store %arg8[%c0_11, %c0_12], %35 {strides = array<i32>} : memref<2x64xf32, #tpu.memory_space<vmem>>, vector<2x64xf32>,
    %c0_13 = arith.constant 0 : index
    %c0_14 = arith.constant 0 : index
    %37 = vector.load %arg9[%c0_13, %c0_14] : memref<2x64xf32, #tpu.memory_space<vmem>>, vector<2x64xf32>
    tpu.vector_store %arg9[%c0_13, %c0_14], %33 {strides = array<i32>} : memref<2x64xf32, #tpu.memory_space<vmem>>, vector<2x64xf32>,
    %38 = arith.index_cast %arg0 : i32 to index
    %c0_15 = arith.constant 0 : index
    %c0_16 = arith.constant 0 : index
    %39 = vector.load %arg5[%38, %c0_15, %c0_16] : memref<8x2x64xf32, #tpu.memory_space<vmem>>, vector<1x2x64xf32>
    %40 = vector.shape_cast %39 : vector<1x2x64xf32> to vector<2x64xf32>
    %41 = vector.shape_cast %35 : vector<2x64xf32> to vector<1x2x64xf32>
    tpu.vector_store %arg5[%38, %c0_15, %c0_16], %41 {strides = array<i32>} : memref<8x2x64xf32, #tpu.memory_space<vmem>>, vector<1x2x64xf32>,
    %c0_17 = arith.constant 0 : index
    %c0_18 = arith.constant 0 : index
    %42 = vector.load %arg6[%c0_17, %c0_18] : memref<2x64xf32, #tpu.memory_space<vmem>>, vector<2x64xf32>
    tpu.vector_store %arg6[%c0_17, %c0_18], %35 {strides = array<i32>} : memref<2x64xf32, #tpu.memory_space<vmem>>, vector<2x64xf32>,
    %c0_19 = arith.constant 0 : index
    %c0_20 = arith.constant 0 : index
    %43 = vector.load %arg7[%c0_19, %c0_20] : memref<2x64xf32, #tpu.memory_space<vmem>>, vector<2x64xf32>
    tpu.vector_store %arg7[%c0_19, %c0_20], %33 {strides = array<i32>} : memref<2x64xf32, #tpu.memory_space<vmem>>, vector<2x64xf32>,
    return
  }
  func.func @transform_0(%arg0: i32) -> (i32, i32, i32) {
    %c0_i32 = arith.constant 0 : i32
    %c0_i32_0 = arith.constant 0 : i32
    %c0_i32_1 = arith.constant 0 : i32
    %c0_i32_2 = arith.constant 0 : i32
    return %c0_i32, %c0_i32_0, %c0_i32_1 : i32, i32, i32
  }
  func.func @transform_1(%arg0: i32) -> (i32, i32) {
    %c0_i32 = arith.constant 0 : i32
    %c0_i32_0 = arith.constant 0 : i32
    %c0_i32_1 = arith.constant 0 : i32
    return %c0_i32, %c0_i32_0 : i32, i32
  }
  func.func @transform_2(%arg0: i32) -> (i32, i32) {
    %c0_i32 = arith.constant 0 : i32
    %c0_i32_0 = arith.constant 0 : i32
    %c0_i32_1 = arith.constant 0 : i32
    return %c0_i32, %c0_i32_0 : i32, i32
  }
  func.func @transform_3(%arg0: i32) -> (i32, i32) {
    %c0_i32 = arith.constant 0 : i32
    %c0_i32_0 = arith.constant 0 : i32
    %c0_i32_1 = arith.constant 0 : i32
    return %c0_i32, %c0_i32_0 : i32, i32
  }
  func.func @transform_4(%arg0: i32) -> (i32, i32, i32) {
    %c0_i32 = arith.constant 0 : i32
    %c0_i32_0 = arith.constant 0 : i32
    %c0_i32_1 = arith.constant 0 : i32
    %c0_i32_2 = arith.constant 0 : i32
    return %c0_i32, %c0_i32_0, %c0_i32_1 : i32, i32, i32
  }
  func.func @transform_5(%arg0: i32) -> (i32, i32) {
    %c0_i32 = arith.constant 0 : i32
    %c0_i32_0 = arith.constant 0 : i32
    %c0_i32_1 = arith.constant 0 : i32
    return %c0_i32, %c0_i32_0 : i32, i32
  }
  func.func @transform_6(%arg0: i32) -> (i32, i32) {
    %c0_i32 = arith.constant 0 : i32
    %c0_i32_0 = arith.constant 0 : i32
    %c0_i32_1 = arith.constant 0 : i32
    return %c0_i32, %c0_i32_0 : i32, i32
  }
}

module attributes {stable_mosaic.version = 11 : i64} {
  func.func @_mlp_kernel(%arg0: i32, %arg1: memref<16x64xf32, #tpu.memory_space<vmem>>, %arg2: memref<64x64xf32, #tpu.memory_space<vmem>>, %arg3: memref<1x64xf32, #tpu.memory_space<vmem>>, %arg4: memref<64x64xf32, #tpu.memory_space<vmem>>, %arg5: memref<1x64xf32, #tpu.memory_space<vmem>>, %arg6: memref<64x8xf32, #tpu.memory_space<vmem>>, %arg7: memref<1x8xf32, #tpu.memory_space<vmem>>, %arg8: memref<16x8xf32, #tpu.memory_space<vmem>>) attributes {dimension_semantics = [#tpu.dimension_semantics<parallel>], iteration_bounds = array<i64: 1>, scalar_prefetch = 0 : i64, scratch_operands = 0 : i64, tpu.core_type = #tpu.core_type<tc>, window_params = [{transform_indices = @transform_0, window_bounds = array<i64: 16, 64>}, {pipeline_mode = #tpu.pipeline_mode<synchronous>, transform_indices = @transform_1, window_bounds = array<i64: 64, 64>}, {pipeline_mode = #tpu.pipeline_mode<synchronous>, transform_indices = @transform_2, window_bounds = array<i64: 1, 64>}, {pipeline_mode = #tpu.pipeline_mode<synchronous>, transform_indices = @transform_3, window_bounds = array<i64: 64, 64>}, {pipeline_mode = #tpu.pipeline_mode<synchronous>, transform_indices = @transform_4, window_bounds = array<i64: 1, 64>}, {pipeline_mode = #tpu.pipeline_mode<synchronous>, transform_indices = @transform_5, window_bounds = array<i64: 64, 8>}, {pipeline_mode = #tpu.pipeline_mode<synchronous>, transform_indices = @transform_6, window_bounds = array<i64: 1, 8>}, {transform_indices = @transform_7, window_bounds = array<i64: 16, 8>}]} {
    %c0 = arith.constant 0 : index
    %c0_0 = arith.constant 0 : index
    %0 = vector.load %arg1[%c0, %c0_0] : memref<16x64xf32, #tpu.memory_space<vmem>>, vector<16x64xf32>
    %c0_1 = arith.constant 0 : index
    %c0_2 = arith.constant 0 : index
    %1 = vector.load %arg2[%c0_1, %c0_2] : memref<64x64xf32, #tpu.memory_space<vmem>>, vector<64x64xf32>
    %cst = arith.constant dense<0.000000e+00> : vector<16x64xf32>
    %2 = tpu.matmul %0, %1, %cst {dimension_numbers = #tpu.dot_dimension_numbers<[1], [0], [0], [1], [0, 0, 1, 1], [], []>, precision = #tpu.contract_precision<fp32>} : vector<16x64xf32>, vector<64x64xf32>, vector<16x64xf32> -> vector<16x64xf32>
    %c0_3 = arith.constant 0 : index
    %c0_4 = arith.constant 0 : index
    %3 = vector.load %arg3[%c0_3, %c0_4] : memref<1x64xf32, #tpu.memory_space<vmem>>, vector<1x64xf32>
    %4 = vector.broadcast %3 : vector<1x64xf32> to vector<16x64xf32>
    %5 = arith.addf %2, %4 : vector<16x64xf32>
    %cst_5 = arith.constant 0.000000e+00 : f32
    %6 = vector.broadcast %cst_5 : f32 to vector<16x64xf32>
    %7 = arith.maximumf %5, %6 : vector<16x64xf32>
    %c0_6 = arith.constant 0 : index
    %c0_7 = arith.constant 0 : index
    %8 = vector.load %arg4[%c0_6, %c0_7] : memref<64x64xf32, #tpu.memory_space<vmem>>, vector<64x64xf32>
    %cst_8 = arith.constant dense<0.000000e+00> : vector<16x64xf32>
    %9 = tpu.matmul %7, %8, %cst_8 {dimension_numbers = #tpu.dot_dimension_numbers<[1], [0], [0], [1], [0, 0, 1, 1], [], []>, precision = #tpu.contract_precision<fp32>} : vector<16x64xf32>, vector<64x64xf32>, vector<16x64xf32> -> vector<16x64xf32>
    %c0_9 = arith.constant 0 : index
    %c0_10 = arith.constant 0 : index
    %10 = vector.load %arg5[%c0_9, %c0_10] : memref<1x64xf32, #tpu.memory_space<vmem>>, vector<1x64xf32>
    %11 = vector.broadcast %10 : vector<1x64xf32> to vector<16x64xf32>
    %12 = arith.addf %9, %11 : vector<16x64xf32>
    %cst_11 = arith.constant 0.000000e+00 : f32
    %13 = vector.broadcast %cst_11 : f32 to vector<16x64xf32>
    %14 = arith.maximumf %12, %13 : vector<16x64xf32>
    %c0_12 = arith.constant 0 : index
    %c0_13 = arith.constant 0 : index
    %15 = vector.load %arg6[%c0_12, %c0_13] : memref<64x8xf32, #tpu.memory_space<vmem>>, vector<64x8xf32>
    %cst_14 = arith.constant dense<0.000000e+00> : vector<16x8xf32>
    %16 = tpu.matmul %14, %15, %cst_14 {dimension_numbers = #tpu.dot_dimension_numbers<[1], [0], [0], [1], [0, 0, 1, 1], [], []>, precision = #tpu.contract_precision<fp32>} : vector<16x64xf32>, vector<64x8xf32>, vector<16x8xf32> -> vector<16x8xf32>
    %c0_15 = arith.constant 0 : index
    %c0_16 = arith.constant 0 : index
    %17 = vector.load %arg7[%c0_15, %c0_16] : memref<1x8xf32, #tpu.memory_space<vmem>>, vector<1x8xf32>
    %18 = vector.broadcast %17 : vector<1x8xf32> to vector<16x8xf32>
    %19 = arith.addf %16, %18 : vector<16x8xf32>
    %c0_17 = arith.constant 0 : index
    %c0_18 = arith.constant 0 : index
    %20 = vector.load %arg8[%c0_17, %c0_18] : memref<16x8xf32, #tpu.memory_space<vmem>>, vector<16x8xf32>
    tpu.vector_store %arg8[%c0_17, %c0_18], %19 {strides = array<i32>} : memref<16x8xf32, #tpu.memory_space<vmem>>, vector<16x8xf32>,
    return
  }
  func.func @transform_0(%arg0: i32) -> (i32, i32) {
    %c0_i32 = arith.constant 0 : i32
    %c0_i32_0 = arith.constant 0 : i32
    return %arg0, %c0_i32 : i32, i32
  }
  func.func @transform_1(%arg0: i32) -> (i32, i32) {
    %c0_i32 = arith.constant 0 : i32
    %c0_i32_0 = arith.constant 0 : i32
    %c0_i32_1 = arith.constant 0 : i32
    return %c0_i32, %c0_i32_0 : i32, i32
  }
  func.func @transform_2(%arg0: i32) -> (i32, i32) {
    %c0_i32 = arith.constant 0 : i32
    %c0_i32_0 = arith.constant 0 : i32
    %c0_i32_1 = arith.constant 0 : i32
    return %c0_i32, %c0_i32_0 : i32, i32
  }
  func.func @transform_3(%arg0: i32) -> (i32, i32) {
    %c0_i32 = arith.constant 0 : i32
    %c0_i32_0 = arith.constant 0 : i32
    %c0_i32_1 = arith.constant 0 : i32
    return %c0_i32, %c0_i32_0 : i32, i32
  }
  func.func @transform_4(%arg0: i32) -> (i32, i32) {
    %c0_i32 = arith.constant 0 : i32
    %c0_i32_0 = arith.constant 0 : i32
    %c0_i32_1 = arith.constant 0 : i32
    return %c0_i32, %c0_i32_0 : i32, i32
  }
  func.func @transform_5(%arg0: i32) -> (i32, i32) {
    %c0_i32 = arith.constant 0 : i32
    %c0_i32_0 = arith.constant 0 : i32
    %c0_i32_1 = arith.constant 0 : i32
    return %c0_i32, %c0_i32_0 : i32, i32
  }
  func.func @transform_6(%arg0: i32) -> (i32, i32) {
    %c0_i32 = arith.constant 0 : i32
    %c0_i32_0 = arith.constant 0 : i32
    %c0_i32_1 = arith.constant 0 : i32
    return %c0_i32, %c0_i32_0 : i32, i32
  }
  func.func @transform_7(%arg0: i32) -> (i32, i32) {
    %c0_i32 = arith.constant 0 : i32
    %c0_i32_0 = arith.constant 0 : i32
    return %arg0, %c0_i32 : i32, i32
  }
}

</mosaic_0001>

<llo_original>
// kernel: reverse
$region0: #{reverse}
  #allocation0 [shape = 's32[1]{0}', space=sflag, size = 0x4, scoped, tag = 'scoped memory for reverse']
  %s0 = inlined_call_operand.vmem [shape: f32[128,8,4,4], index: 0, kind: input, shape index: {}]
  %s1 = inlined_call_operand.vmem [shape: f32[128,8,4,4], index: 1, kind: output, shape index: {}]
  %s2 = scalar_lea.vmem %s0, 120
  %v3 = vld [vmem:[%s2] sm:$0xff]
  %4 = vst [vmem:[%s1] sm:$0xff] %v3
  %s5 = scalar_lea.vmem %s0, 88
  %v6 = vld [vmem:[%s5] sm:$0xff]
  %s7 = scalar_lea.vmem %s1, 32
  %8 = vst [vmem:[%s7] sm:$0xff] %v6
  %s9 = scalar_lea.vmem %s0, 56
  %v10 = vld [vmem:[%s9] sm:$0xff]
  %s11 = scalar_lea.vmem %s1, 64
  %12 = vst [vmem:[%s11] sm:$0xff] %v10
  %s13 = scalar_lea.vmem %s0, 24
  %v14 = vld [vmem:[%s13] sm:$0xff]
  %s15 = scalar_lea.vmem %s1, 96
  %16 = vst [vmem:[%s15] sm:$0xff] %v14
  %s17 = scalar_lea.vmem %s0, 112
  %v18 = vld [vmem:[%s17] sm:$0xff]
  %s19 = scalar_lea.vmem %s1, 8
  %20 = vst [vmem:[%s19] sm:$0xff] %v18
  %s21 = scalar_lea.vmem %s0, 80
  %v22 = vld [vmem:[%s21] sm:$0xff]
  %s23 = scalar_lea.vmem %s1, 40
  %24 = vst [vmem:[%s23] sm:$0xff] %v22
  %s25 = scalar_lea.vmem %s0, 48
  %v26 = vld [vmem:[%s25] sm:$0xff]
  %s27 = scalar_lea.vmem %s1, 72
  %28 = vst [vmem:[%s27] sm:$0xff] %v26
  %s29 = scalar_lea.vmem %s0, 16
  %v30 = vld [vmem:[%s29] sm:$0xff]
  %s31 = scalar_lea.vmem %s1, 104
  %32 = vst [vmem:[%s31] sm:$0xff] %v30
  %s33 = scalar_lea.vmem %s0, 104
  %v34 = vld [vmem:[%s33] sm:$0xff]
  %s35 = scalar_lea.vmem %s1, 16
  %36 = vst [vmem:[%s35] sm:$0xff] %v34
  %s37 = scalar_lea.vmem %s0, 72
  %v38 = vld [vmem:[%s37] sm:$0xff]
  %s39 = scalar_lea.vmem %s1, 48
  %40 = vst [vmem:[%s39] sm:$0xff] %v38
  %s41 = scalar_lea.vmem %s0, 40
  %v42 = vld [vmem:[%s41] sm:$0xff]
  %s43 = scalar_lea.vmem %s1, 80
  %44 = vst [vmem:[%s43] sm:$0xff] %v42
  %s45 = scalar_lea.vmem %s0, 8
  %v46 = vld [vmem:[%s45] sm:$0xff]
  %s47 = scalar_lea.vmem %s1, 112
  %48 = vst [vmem:[%s47] sm:$0xff] %v46
  %s49 = scalar_lea.vmem %s0, 96
  %v50 = vld [vmem:[%s49] sm:$0xff]
  %s51 = scalar_lea.vmem %s1, 24
  %52 = vst [vmem:[%s51] sm:$0xff] %v50
  %s53 = scalar_lea.vmem %s0, 64
  %v54 = vld [vmem:[%s53] sm:$0xff]
  %s55 = scalar_lea.vmem %s1, 56
  %56 = vst [vmem:[%s55] sm:$0xff] %v54
  %s57 = scalar_lea.vmem %s0, 32
  %v58 = vld [vmem:[%s57] sm:$0xff]
  %s59 = scalar_lea.vmem %s1, 88
  %60 = vst [vmem:[%s59] sm:$0xff] %v58
  %v61 = vld [vmem:[%s0] sm:$0xff]
  %s62 = scalar_lea.vmem %s1, 120
  %63 = vst [vmem:[%s62] sm:$0xff] %v61

// kernel: pi_conv_lstm_forward.6
$region0: #{pi_conv_lstm_forward.6}
  #allocation0 [shape = 'u32[]', space=smem, size = 0x4, offset = 0x4, fixed_abs, tag = 'smem constant byte address 0x4 - core index']
  #allocation1 [shape = 'u32[144,128]{1,0:T(1,128)}', space=vmem, size = 0x12000, scoped, tag = 'internal scratch']
  %s0 = inlined_call_operand.vmem [shape: f32[16,128], index: 0, kind: input, shape index: {}]
  %s1 = inlined_call_operand.vmem [shape: f32[128,16], index: 1, kind: input, shape index: {}]
  %s2 = inlined_call_operand.vmem [shape: f32[1,16], index: 2, kind: input, shape index: {}]
  %s3 = inlined_call_operand.vmem [shape: f32[16,16], index: 3, kind: output, shape index: {}]
  %s4 = sld [smem:[#allocation0]]
  $region22: #{pi_conv_lstm_forward.6} parent=0
    _
  %s6 = ssub.s32 1, %s4
  %s7 = scalar_select 0, %s6, %s4
  // Predicated region
  $region2: #{pi_conv_lstm_forward.6} parent=0 // pred_check
    _
  $region3: #{pi_conv_lstm_forward.6} parent=0 // pred_check_branch
    %9 = sbr.rel (0) target = $region5
  $region4: #{pi_conv_lstm_forward.6} parent=0 // pred_region
    _
  $region5: #{pi_conv_lstm_forward.6} parent=0 // pred_fallthru
    _
  // Predicated region
  $region6: #{pi_conv_lstm_forward.6} parent=0 // pred_check
    _
  $region7: #{pi_conv_lstm_forward.6} parent=0 // pred_check_branch
    %11 = sbr.rel (0) target = $region9
  $region8: #{pi_conv_lstm_forward.6} parent=0 // pred_region
    _
  $region9: #{pi_conv_lstm_forward.6} parent=0 // pred_fallthru
    _
  // Predicated region
  $region10: #{pi_conv_lstm_forward.6} parent=0 // pred_check
    _
  $region11: #{pi_conv_lstm_forward.6} parent=0 // pred_check_branch
    %13 = sbr.rel (0) target = $region13
  $region12: #{pi_conv_lstm_forward.6} parent=0 // pred_region
    _
  $region13: #{pi_conv_lstm_forward.6} parent=0 // pred_fallthru
    _
  %v14 = vld [vmem:[%s0] sm:$0xff]
  %v15 = vld [vmem:[%s0 + $0x8] sm:$0xff]
  %v16 = vld [vmem:[%s1] sm:$0xff]
  %v17 = vld [vmem:[%s1 + $0x8] sm:$0xff]
  %v18 = vld [vmem:[%s1 + $0x10] sm:$0xff]
  %v19 = vld [vmem:[%s1 + $0x18] sm:$0xff]
  %v20 = vld [vmem:[%s1 + $0x20] sm:$0xff]
  %v21 = vld [vmem:[%s1 + $0x28] sm:$0xff]
  %v22 = vld [vmem:[%s1 + $0x30] sm:$0xff]
  %v23 = vld [vmem:[%s1 + $0x38] sm:$0xff]
  %v24 = vld [vmem:[%s1 + $0x40] sm:$0xff]
  %v25 = vld [vmem:[%s1 + $0x48] sm:$0xff]
  %v26 = vld [vmem:[%s1 + $0x50] sm:$0xff]
  %v27 = vld [vmem:[%s1 + $0x58] sm:$0xff]
  %v28 = vld [vmem:[%s1 + $0x60] sm:$0xff]
  %v29 = vld [vmem:[%s1 + $0x68] sm:$0xff]
  %v30 = vld [vmem:[%s1 + $0x70] sm:$0xff]
  %v31 = vld [vmem:[%s1 + $0x78] sm:$0xff]
  %v32 = vld [vmem:[%s2] sm:$0x1]
  %v34 = vlaneseq
  %v35 = vshrl.u32 %v34, 7
  %v36 = vsub.s32 0, %v35
  %v37 = vrot.slane %v32, %v36
  %39 = vmatprep.subr.mxu0 0.0
  %v40 = vand.u32 %v31, 4294901760
  %41 = vmatpush1.msra.mxu0 %v40
  %42 = vmatprep.subr.mxu0 0.0
  %v43 = vand.u32 %v30, 4294901760
  %44 = vmatpush1.msra.mxu0 %v43
  %45 = vmatprep.subr.mxu0 0.0
  %v46 = vand.u32 %v29, 4294901760
  %47 = vmatpush1.msra.mxu0 %v46
  %48 = vmatprep.subr.mxu0 0.0
  %v49 = vand.u32 %v28, 4294901760
  %50 = vmatpush1.msra.mxu0 %v49
  %51 = vmatprep.subr.mxu0 0.0
  %v52 = vand.u32 %v27, 4294901760
  %53 = vmatpush1.msra.mxu0 %v52
  %54 = vmatprep.subr.mxu0 0.0
  %v55 = vand.u32 %v26, 4294901760
  %56 = vmatpush1.msra.mxu0 %v55
  %57 = vmatprep.subr.mxu0 0.0
  %v58 = vand.u32 %v25, 4294901760
  %59 = vmatpush1.msra.mxu0 %v58
  %60 = vmatprep.subr.mxu0 0.0
  %v61 = vand.u32 %v24, 4294901760
  %62 = vmatpush1.msra.mxu0 %v61
  %63 = vmatprep.subr.mxu0 0.0
  %v64 = vand.u32 %v23, 4294901760
  %65 = vmatpush1.msra.mxu0 %v64
  %66 = vmatprep.subr.mxu0 0.0
  %v67 = vand.u32 %v22, 4294901760
  %68 = vmatpush1.msra.mxu0 %v67
  %69 = vmatprep.subr.mxu0 0.0
  %v70 = vand.u32 %v21, 4294901760
  %71 = vmatpush1.msra.mxu0 %v70
  %72 = vmatprep.subr.mxu0 0.0
  %v73 = vand.u32 %v20, 4294901760
  %74 = vmatpush1.msra.mxu0 %v73
  %75 = vmatprep.subr.mxu0 0.0
  %v76 = vand.u32 %v19, 4294901760
  %77 = vmatpush1.msra.mxu0 %v76
  %78 = vmatprep.subr.mxu0 0.0
  %v79 = vand.u32 %v18, 4294901760
  %80 = vmatpush1.msra.mxu0 %v79
  %81 = vmatprep.subr.mxu0 0.0
  %v82 = vand.u32 %v17, 4294901760
  %83 = vmatpush1.msra.mxu0 %v82
  %84 = vmatprep.subr.mxu0 0.0
  %v85 = vand.u32 %v16, 4294901760
  %86 = vmatpush1.msra.mxu0 %v85
  %87 = vmatprep.subr.mxu0 0.0
  %88 = vmatpush2.msra.mxu0 0.0
  %89 = vmatprep.subr.mxu0 0.0
  %90 = vmatpush2.msra.mxu0 0.0
  %91 = vmatprep.subr.mxu0 0.0
  %92 = vmatpush2.msra.mxu0 0.0
  %93 = vmatprep.subr.mxu0 0.0
  %94 = vmatpush2.msra.mxu0 0.0
  %95 = vmatprep.subr.mxu0 0.0
  %96 = vmatpush2.msra.mxu0 0.0
  %97 = vmatprep.subr.mxu0 0.0
  %98 = vmatpush2.msra.mxu0 0.0
  %99 = vmatprep.subr.mxu0 0.0
  %100 = vmatpush2.msra.mxu0 0.0
  %101 = vmatprep.subr.mxu0 0.0
  %102 = vmatpush2.msra.mxu0 0.0
  %103 = vmatprep.subr.mxu0 0.0
  %104 = vmatpush2.msra.mxu0 0.0
  %105 = vmatprep.subr.mxu0 0.0
  %106 = vmatpush2.msra.mxu0 0.0
  %107 = vmatprep.subr.mxu0 0.0
  %108 = vmatpush2.msra.mxu0 0.0
  %109 = vmatprep.subr.mxu0 0.0
  %110 = vmatpush2.msra.mxu0 0.0
  %111 = vmatprep.subr.mxu0 0.0
  %112 = vmatpush2.msra.mxu0 0.0
  %113 = vmatprep.subr.mxu0 0.0
  %114 = vmatpush2.msra.mxu0 0.0
  %115 = vmatprep.subr.mxu0 0.0
  %116 = vmatpush2.msra.mxu0 0.0
  %117 = vmatprep.subr.mxu0 0.0
  %118 = vmatpush2.msra.mxu0 0.0
  %119 = vmatprep.mubr.f32.mxu0 0.0
  %v120 = vand.u32 %v14, 4294901760
  %v121 = vsub.f32 %v14, %v120
  %v122 = vand.u32 %v121, 4294901760
  %v123 = vsub.f32 %v121, %v122
  %v124 = vand.u32 %v123, 4294901760
  %125 = vmatmul.mubr.f32.gmra.mxu0 %v124
  %v126 = vpop.f32.mrf.mxu0
  %v127 = vadd.f32 %v37, %v126
  %v128 = vpop.f32.mrf.mxu0
  %129 = vmatprep.mubr.f32.mxu0 0.0
  %v130 = vand.u32 %v15, 4294901760
  %v131 = vsub.f32 %v15, %v130
  %v132 = vand.u32 %v131, 4294901760
  %v133 = vsub.f32 %v131, %v132
  %v134 = vand.u32 %v133, 4294901760
  %135 = vmatmul.mubr.f32.gmra.mxu0 %v134
  %v136 = vpop.f32.mrf.mxu0
  %v137 = vadd.f32 %v37, %v136
  %v138 = vpop.f32.mrf.mxu0
  %139 = vdwg.mxu0
  %140 = vmatprep.subr.mxu0 0.0
  %v141 = vand.u32 %v31, 4294901760
  %v142 = vsub.f32 %v31, %v141
  %v143 = vand.u32 %v142, 4294901760
  %v144 = vsub.f32 %v142, %v143
  %v145 = vand.u32 %v144, 4294901760
  %146 = vmatpush1.msra.mxu0 %v145
  %147 = vmatprep.subr.mxu0 0.0
  %v148 = vand.u32 %v30, 4294901760
  %v149 = vsub.f32 %v30, %v148
  %v150 = vand.u32 %v149, 4294901760
  %v151 = vsub.f32 %v149, %v150
  %v152 = vand.u32 %v151, 4294901760
  %153 = vmatpush1.msra.mxu0 %v152
  %154 = vmatprep.subr.mxu0 0.0
  %v155 = vand.u32 %v29, 4294901760
  %v156 = vsub.f32 %v29, %v155
  %v157 = vand.u32 %v156, 4294901760
  %v158 = vsub.f32 %v156, %v157
  %v159 = vand.u32 %v158, 4294901760
  %160 = vmatpush1.msra.mxu0 %v159
  %161 = vmatprep.subr.mxu0 0.0
  %v162 = vand.u32 %v28, 4294901760
  %v163 = vsub.f32 %v28, %v162
  %v164 = vand.u32 %v163, 4294901760
  %v165 = vsub.f32 %v163, %v164
  %v166 = vand.u32 %v165, 4294901760
  %167 = vmatpush1.msra.mxu0 %v166
  %168 = vmatprep.subr.mxu0 0.0
  %v169 = vand.u32 %v27, 4294901760
  %v170 = vsub.f32 %v27, %v169
  %v171 = vand.u32 %v170, 4294901760
  %v172 = vsub.f32 %v170, %v171
  %v173 = vand.u32 %v172, 4294901760
  %174 = vmatpush1.msra.mxu0 %v173
  %175 = vmatprep.subr.mxu0 0.0
  %v176 = vand.u32 %v26, 4294901760
  %v177 = vsub.f32 %v26, %v176
  %v178 = vand.u32 %v177, 4294901760
  %v179 = vsub.f32 %v177, %v178
  %v180 = vand.u32 %v179, 4294901760
  %181 = vmatpush1.msra.mxu0 %v180
  %182 = vmatprep.subr.mxu0 0.0
  %v183 = vand.u32 %v25, 4294901760
  %v184 = vsub.f32 %v25, %v183
  %v185 = vand.u32 %v184, 4294901760
  %v186 = vsub.f32 %v184, %v185
  %v187 = vand.u32 %v186, 4294901760
  %188 = vmatpush1.msra.mxu0 %v187
  %189 = vmatprep.subr.mxu0 0.0
  %v190 = vand.u32 %v24, 4294901760
  %v191 = vsub.f32 %v24, %v190
  %v192 = vand.u32 %v191, 4294901760
  %v193 = vsub.f32 %v191, %v192
  %v194 = vand.u32 %v193, 4294901760
  %195 = vmatpush1.msra.mxu0 %v194
  %196 = vmatprep.subr.mxu0 0.0
  %v197 = vand.u32 %v23, 4294901760
  %v198 = vsub.f32 %v23, %v197
  %v199 = vand.u32 %v198, 4294901760
  %v200 = vsub.f32 %v198, %v199
  %v201 = vand.u32 %v200, 4294901760
  %202 = vmatpush1.msra.mxu0 %v201
  %203 = vmatprep.subr.mxu0 0.0
  %v204 = vand.u32 %v22, 4294901760
  %v205 = vsub.f32 %v22, %v204
  %v206 = vand.u32 %v205, 4294901760
  %v207 = vsub.f32 %v205, %v206
  %v208 = vand.u32 %v207, 4294901760
  %209 = vmatpush1.msra.mxu0 %v208
  %210 = vmatprep.subr.mxu0 0.0
  %v211 = vand.u32 %v21, 4294901760
  %v212 = vsub.f32 %v21, %v211
  %v213 = vand.u32 %v212, 4294901760
  %v214 = vsub.f32 %v212, %v213
  %v215 = vand.u32 %v214, 4294901760
  %216 = vmatpush1.msra.mxu0 %v215
  %217 = vmatprep.subr.mxu0 0.0
  %v218 = vand.u32 %v20, 4294901760
  %v219 = vsub.f32 %v20, %v218
  %v220 = vand.u32 %v219, 4294901760
  %v221 = vsub.f32 %v219, %v220
  %v222 = vand.u32 %v221, 4294901760
  %223 = vmatpush1.msra.mxu0 %v222
  %224 = vmatprep.subr.mxu0 0.0
  %v225 = vand.u32 %v19, 4294901760
  %v226 = vsub.f32 %v19, %v225
  %v227 = vand.u32 %v226, 4294901760
  %v228 = vsub.f32 %v226, %v227
  %v229 = vand.u32 %v228, 4294901760
  %230 = vmatpush1.msra.mxu0 %v229
  %231 = vmatprep.subr.mxu0 0.0
  %v232 = vand.u32 %v18, 4294901760
  %v233 = vsub.f32 %v18, %v232
  %v234 = vand.u32 %v233, 4294901760
  %v235 = vsub.f32 %v233, %v234
  %v236 = vand.u32 %v235, 4294901760
  %237 = vmatpush1.msra.mxu0 %v236
  %238 = vmatprep.subr.mxu0 0.0
  %v239 = vand.u32 %v17, 4294901760
  %v240 = vsub.f32 %v17, %v239
  %v241 = vand.u32 %v240, 4294901760
  %v242 = vsub.f32 %v240, %v241
  %v243 = vand.u32 %v242, 4294901760
  %244 = vmatpush1.msra.mxu0 %v243
  %245 = vmatprep.subr.mxu0 0.0
  %v246 = vand.u32 %v16, 4294901760
  %v247 = vsub.f32 %v16, %v246
  %v248 = vand.u32 %v247, 4294901760
  %v249 = vsub.f32 %v247, %v248
  %v250 = vand.u32 %v249, 4294901760
  %251 = vmatpush1.msra.mxu0 %v250
  %252 = vmatprep.subr.mxu0 0.0
  %253 = vmatpush2.msra.mxu0 0.0
  %254 = vmatprep.subr.mxu0 0.0
  %255 = vmatpush2.msra.mxu0 0.0
  %256 = vmatprep.subr.mxu0 0.0
  %257 = vmatpush2.msra.mxu0 0.0
  %258 = vmatprep.subr.mxu0 0.0
  %259 = vmatpush2.msra.mxu0 0.0
  %260 = vmatprep.subr.mxu0 0.0
  %261 = vmatpush2.msra.mxu0 0.0
  %262 = vmatprep.subr.mxu0 0.0
  %263 = vmatpush2.msra.mxu0 0.0
  %264 = vmatprep.subr.mxu0 0.0
  %265 = vmatpush2.msra.mxu0 0.0
  %266 = vmatprep.subr.mxu0 0.0
  %267 = vmatpush2.msra.mxu0 0.0
  %268 = vmatprep.subr.mxu0 0.0
  %269 = vmatpush2.msra.mxu0 0.0
  %270 = vmatprep.subr.mxu0 0.0
  %271 = vmatpush2.msra.mxu0 0.0
  %272 = vmatprep.subr.mxu0 0.0
  %273 = vmatpush2.msra.mxu0 0.0
  %274 = vmatprep.subr.mxu0 0.0
  %275 = vmatpush2.msra.mxu0 0.0
  %276 = vmatprep.subr.mxu0 0.0
  %277 = vmatpush2.msra.mxu0 0.0
  %278 = vmatprep.subr.mxu0 0.0
  %279 = vmatpush2.msra.mxu0 0.0
  %280 = vmatprep.subr.mxu0 0.0
  %281 = vmatpush2.msra.mxu0 0.0
  %282 = vmatprep.subr.mxu0 0.0
  %283 = vmatpush2.msra.mxu0 0.0
  %284 = vmatprep.mubr.f32.mxu0 0.0
  %v285 = vand.u32 %v14, 4294901760
  %286 = vmatmul.mubr.f32.gmra.mxu0 %v285
  %v287 = vpop.f32.mrf.mxu0
  %v288 = vadd.f32 %v127, %v287
  %v289 = vpop.f32.mrf.mxu0
  %290 = vmatprep.mubr.f32.mxu0 0.0
  %v291 = vand.u32 %v15, 4294901760
  %292 = vmatmul.mubr.f32.gmra.mxu0 %v291
  %v293 = vpop.f32.mrf.mxu0
  %v294 = vadd.f32 %v137, %v293
  %v295 = vpop.f32.mrf.mxu0
  %296 = vdwg.mxu0
  %297 = vmatprep.subr.mxu0 0.0
  %v298 = vand.u32 %v31, 4294901760
  %v299 = vsub.f32 %v31, %v298
  %300 = vmatpush1.msra.mxu0 %v299
  %301 = vmatprep.subr.mxu0 0.0
  %v302 = vand.u32 %v30, 4294901760
  %v303 = vsub.f32 %v30, %v302
  %304 = vmatpush1.msra.mxu0 %v303
  %305 = vmatprep.subr.mxu0 0.0
  %v306 = vand.u32 %v29, 4294901760
  %v307 = vsub.f32 %v29, %v306
  %308 = vmatpush1.msra.mxu0 %v307
  %309 = vmatprep.subr.mxu0 0.0
  %v310 = vand.u32 %v28, 4294901760
  %v311 = vsub.f32 %v28, %v310
  %312 = vmatpush1.msra.mxu0 %v311
  %313 = vmatprep.subr.mxu0 0.0
  %v314 = vand.u32 %v27, 4294901760
  %v315 = vsub.f32 %v27, %v314
  %316 = vmatpush1.msra.mxu0 %v315
  %317 = vmatprep.subr.mxu0 0.0
  %v318 = vand.u32 %v26, 4294901760
  %v319 = vsub.f32 %v26, %v318
  %320 = vmatpush1.msra.mxu0 %v319
  %321 = vmatprep.subr.mxu0 0.0
  %v322 = vand.u32 %v25, 4294901760
  %v323 = vsub.f32 %v25, %v322
  %324 = vmatpush1.msra.mxu0 %v323
  %325 = vmatprep.subr.mxu0 0.0
  %v326 = vand.u32 %v24, 4294901760
  %v327 = vsub.f32 %v24, %v326
  %328 = vmatpush1.msra.mxu0 %v327
  %329 = vmatprep.subr.mxu0 0.0
  %v330 = vand.u32 %v23, 4294901760
  %v331 = vsub.f32 %v23, %v330
  %332 = vmatpush1.msra.mxu0 %v331
  %333 = vmatprep.subr.mxu0 0.0
  %v334 = vand.u32 %v22, 4294901760
  %v335 = vsub.f32 %v22, %v334
  %336 = vmatpush1.msra.mxu0 %v335
  %337 = vmatprep.subr.mxu0 0.0
  %v338 = vand.u32 %v21, 4294901760
  %v339 = vsub.f32 %v21, %v338
  %340 = vmatpush1.msra.mxu0 %v339
  %341 = vmatprep.subr.mxu0 0.0
  %v342 = vand.u32 %v20, 4294901760
  %v343 = vsub.f32 %v20, %v342
  %344 = vmatpush1.msra.mxu0 %v343
  %345 = vmatprep.subr.mxu0 0.0
  %v346 = vand.u32 %v19, 4294901760
  %v347 = vsub.f32 %v19, %v346
  %348 = vmatpush1.msra.mxu0 %v347
  %349 = vmatprep.subr.mxu0 0.0
  %v350 = vand.u32 %v18, 4294901760
  %v351 = vsub.f32 %v18, %v350
  %352 = vmatpush1.msra.mxu0 %v351
  %353 = vmatprep.subr.mxu0 0.0
  %v354 = vand.u32 %v17, 4294901760
  %v355 = vsub.f32 %v17, %v354
  %356 = vmatpush1.msra.mxu0 %v355
  %357 = vmatprep.subr.mxu0 0.0
  %v358 = vand.u32 %v16, 4294901760
  %v359 = vsub.f32 %v16, %v358
  %360 = vmatpush1.msra.mxu0 %v359
  %361 = vmatprep.subr.mxu0 0.0
  %362 = vmatpush2.msra.mxu0 0.0
  %363 = vmatprep.subr.mxu0 0.0
  %364 = vmatpush2.msra.mxu0 0.0
  %365 = vmatprep.subr.mxu0 0.0
  %366 = vmatpush2.msra.mxu0 0.0
  %367 = vmatprep.subr.mxu0 0.0
  %368 = vmatpush2.msra.mxu0 0.0
  %369 = vmatprep.subr.mxu0 0.0
  %370 = vmatpush2.msra.mxu0 0.0
  %371 = vmatprep.subr.mxu0 0.0
  %372 = vmatpush2.msra.mxu0 0.0
  %373 = vmatprep.subr.mxu0 0.0
  %374 = vmatpush2.msra.mxu0 0.0
  %375 = vmatprep.subr.mxu0 0.0
  %376 = vmatpush2.msra.mxu0 0.0
  %377 = vmatprep.subr.mxu0 0.0
  %378 = vmatpush2.msra.mxu0 0.0
  %379 = vmatprep.subr.mxu0 0.0
  %380 = vmatpush2.msra.mxu0 0.0
  %381 = vmatprep.subr.mxu0 0.0
  %382 = vmatpush2.msra.mxu0 0.0
  %383 = vmatprep.subr.mxu0 0.0
  %384 = vmatpush2.msra.mxu0 0.0
  %385 = vmatprep.subr.mxu0 0.0
  %386 = vmatpush2.msra.mxu0 0.0
  %387 = vmatprep.subr.mxu0 0.0
  %388 = vmatpush2.msra.mxu0 0.0
  %389 = vmatprep.subr.mxu0 0.0
  %390 = vmatpush2.msra.mxu0 0.0
  %391 = vmatprep.subr.mxu0 0.0
  %392 = vmatpush2.msra.mxu0 0.0
  %393 = vmatprep.mubr.f32.mxu0 0.0
  %v394 = vand.u32 %v14, 4294901760
  %v395 = vsub.f32 %v14, %v394
  %396 = vmatmul.mubr.f32.gmra.mxu0 %v395
  %v397 = vpop.f32.mrf.mxu0
  %v398 = vadd.f32 %v288, %v397
  %v399 = vpop.f32.mrf.mxu0
  %400 = vmatprep.mubr.f32.mxu0 0.0
  %v401 = vand.u32 %v15, 4294901760
  %v402 = vsub.f32 %v15, %v401
  %403 = vmatmul.mubr.f32.gmra.mxu0 %v402
  %v404 = vpop.f32.mrf.mxu0
  %v405 = vadd.f32 %v294, %v404
  %v406 = vpop.f32.mrf.mxu0
  %407 = vdwg.mxu0
  %408 = vmatprep.subr.mxu0 0.0
  %v409 = vand.u32 %v31, 4294901760
  %410 = vmatpush1.msra.mxu0 %v409
  %411 = vmatprep.subr.mxu0 0.0
  %v412 = vand.u32 %v30, 4294901760
  %413 = vmatpush1.msra.mxu0 %v412
  %414 = vmatprep.subr.mxu0 0.0
  %v415 = vand.u32 %v29, 4294901760
  %416 = vmatpush1.msra.mxu0 %v415
  %417 = vmatprep.subr.mxu0 0.0
  %v418 = vand.u32 %v28, 4294901760
  %419 = vmatpush1.msra.mxu0 %v418
  %420 = vmatprep.subr.mxu0 0.0
  %v421 = vand.u32 %v27, 4294901760
  %422 = vmatpush1.msra.mxu0 %v421
  %423 = vmatprep.subr.mxu0 0.0
  %v424 = vand.u32 %v26, 4294901760
  %425 = vmatpush1.msra.mxu0 %v424
  %426 = vmatprep.subr.mxu0 0.0
  %v427 = vand.u32 %v25, 4294901760
  %428 = vmatpush1.msra.mxu0 %v427
  %429 = vmatprep.subr.mxu0 0.0
  %v430 = vand.u32 %v24, 4294901760
  %431 = vmatpush1.msra.mxu0 %v430
  %432 = vmatprep.subr.mxu0 0.0
  %v433 = vand.u32 %v23, 4294901760
  %434 = vmatpush1.msra.mxu0 %v433
  %435 = vmatprep.subr.mxu0 0.0
  %v436 = vand.u32 %v22, 4294901760
  %437 = vmatpush1.msra.mxu0 %v436
  %438 = vmatprep.subr.mxu0 0.0
  %v439 = vand.u32 %v21, 4294901760
  %440 = vmatpush1.msra.mxu0 %v439
  %441 = vmatprep.subr.mxu0 0.0
  %v442 = vand.u32 %v20, 4294901760
  %443 = vmatpush1.msra.mxu0 %v442
  %444 = vmatprep.subr.mxu0 0.0
  %v445 = vand.u32 %v19, 4294901760
  %446 = vmatpush1.msra.mxu0 %v445
  %447 = vmatprep.subr.mxu0 0.0
  %v448 = vand.u32 %v18, 4294901760
  %449 = vmatpush1.msra.mxu0 %v448
  %450 = vmatprep.subr.mxu0 0.0
  %v451 = vand.u32 %v17, 4294901760
  %452 = vmatpush1.msra.mxu0 %v451
  %453 = vmatprep.subr.mxu0 0.0
  %v454 = vand.u32 %v16, 4294901760
  %455 = vmatpush1.msra.mxu0 %v454
  %456 = vmatprep.subr.mxu0 0.0
  %457 = vmatpush2.msra.mxu0 0.0
  %458 = vmatprep.subr.mxu0 0.0
  %459 = vmatpush2.msra.mxu0 0.0
  %460 = vmatprep.subr.mxu0 0.0
  %461 = vmatpush2.msra.mxu0 0.0
  %462 = vmatprep.subr.mxu0 0.0
  %463 = vmatpush2.msra.mxu0 0.0
  %464 = vmatprep.subr.mxu0 0.0
  %465 = vmatpush2.msra.mxu0 0.0
  %466 = vmatprep.subr.mxu0 0.0
  %467 = vmatpush2.msra.mxu0 0.0
  %468 = vmatprep.subr.mxu0 0.0
  %469 = vmatpush2.msra.mxu0 0.0
  %470 = vmatprep.subr.mxu0 0.0
  %471 = vmatpush2.msra.mxu0 0.0
  %472 = vmatprep.subr.mxu0 0.0
  %473 = vmatpush2.msra.mxu0 0.0
  %474 = vmatprep.subr.mxu0 0.0
  %475 = vmatpush2.msra.mxu0 0.0
  %476 = vmatprep.subr.mxu0 0.0
  %477 = vmatpush2.msra.mxu0 0.0
  %478 = vmatprep.subr.mxu0 0.0
  %479 = vmatpush2.msra.mxu0 0.0
  %480 = vmatprep.subr.mxu0 0.0
  %481 = vmatpush2.msra.mxu0 0.0
  %482 = vmatprep.subr.mxu0 0.0
  %483 = vmatpush2.msra.mxu0 0.0
  %484 = vmatprep.subr.mxu0 0.0
  %485 = vmatpush2.msra.mxu0 0.0
  %486 = vmatprep.subr.mxu0 0.0
  %487 = vmatpush2.msra.mxu0 0.0
  %488 = vmatprep.mubr.f32.mxu0 0.0
  %v489 = vand.u32 %v14, 4294901760
  %v490 = vsub.f32 %v14, %v489
  %v491 = vand.u32 %v490, 4294901760
  %492 = vmatmul.mubr.f32.gmra.mxu0 %v491
  %v493 = vpop.f32.mrf.mxu0
  %v494 = vadd.f32 %v398, %v493
  %v495 = vpop.f32.mrf.mxu0
  %496 = vmatprep.mubr.f32.mxu0 0.0
  %v497 = vand.u32 %v15, 4294901760
  %v498 = vsub.f32 %v15, %v497
  %v499 = vand.u32 %v498, 4294901760
  %500 = vmatmul.mubr.f32.gmra.mxu0 %v499
  %v501 = vpop.f32.mrf.mxu0
  %v502 = vadd.f32 %v405, %v501
  %v503 = vpop.f32.mrf.mxu0
  %504 = vdwg.mxu0
  %505 = vmatprep.subr.mxu0 0.0
  %v506 = vand.u32 %v31, 4294901760
  %v507 = vsub.f32 %v31, %v506
  %v508 = vand.u32 %v507, 4294901760
  %509 = vmatpush1.msra.mxu0 %v508
  %510 = vmatprep.subr.mxu0 0.0
  %v511 = vand.u32 %v30, 4294901760
  %v512 = vsub.f32 %v30, %v511
  %v513 = vand.u32 %v512, 4294901760
  %514 = vmatpush1.msra.mxu0 %v513
  %515 = vmatprep.subr.mxu0 0.0
  %v516 = vand.u32 %v29, 4294901760
  %v517 = vsub.f32 %v29, %v516
  %v518 = vand.u32 %v517, 4294901760
  %519 = vmatpush1.msra.mxu0 %v518
  %520 = vmatprep.subr.mxu0 0.0
  %v521 = vand.u32 %v28, 4294901760
  %v522 = vsub.f32 %v28, %v521
  %v523 = vand.u32 %v522, 4294901760
  %524 = vmatpush1.msra.mxu0 %v523
  %525 = vmatprep.subr.mxu0 0.0
  %v526 = vand.u32 %v27, 4294901760
  %v527 = vsub.f32 %v27, %v526
  %v528 = vand.u32 %v527, 4294901760
  %529 = vmatpush1.msra.mxu0 %v528
  %530 = vmatprep.subr.mxu0 0.0
  %v531 = vand.u32 %v26, 4294901760
  %v532 = vsub.f32 %v26, %v531
  %v533 = vand.u32 %v532, 4294901760
  %534 = vmatpush1.msra.mxu0 %v533
  %535 = vmatprep.subr.mxu0 0.0
  %v536 = vand.u32 %v25, 4294901760
  %v537 = vsub.f32 %v25, %v536
  %v538 = vand.u32 %v537, 4294901760
  %539 = vmatpush1.msra.mxu0 %v538
  %540 = vmatprep.subr.mxu0 0.0
  %v541 = vand.u32 %v24, 4294901760
  %v542 = vsub.f32 %v24, %v541
  %v543 = vand.u32 %v542, 4294901760
  %544 = vmatpush1.msra.mxu0 %v543
  %545 = vmatprep.subr.mxu0 0.0
  %v546 = vand.u32 %v23, 4294901760
  %v547 = vsub.f32 %v23, %v546
  %v548 = vand.u32 %v547, 4294901760
  %549 = vmatpush1.msra.mxu0 %v548
  %550 = vmatprep.subr.mxu0 0.0
  %v551 = vand.u32 %v22, 4294901760
  %v552 = vsub.f32 %v22, %v551
  %v553 = vand.u32 %v552, 4294901760
  %554 = vmatpush1.msra.mxu0 %v553
  %555 = vmatprep.subr.mxu0 0.0
  %v556 = vand.u32 %v21, 4294901760
  %v557 = vsub.f32 %v21, %v556
  %v558 = vand.u32 %v557, 4294901760
  %559 = vmatpush1.msra.mxu0 %v558
  %560 = vmatprep.subr.mxu0 0.0
  %v561 = vand.u32 %v20, 4294901760
  %v562 = vsub.f32 %v20, %v561
  %v563 = vand.u32 %v562, 4294901760
  %564 = vmatpush1.msra.mxu0 %v563
  %565 = vmatprep.subr.mxu0 0.0
  %v566 = vand.u32 %v19, 4294901760
  %v567 = vsub.f32 %v19, %v566
  %v568 = vand.u32 %v567, 4294901760
  %569 = vmatpush1.msra.mxu0 %v568
  %570 = vmatprep.subr.mxu0 0.0
  %v571 = vand.u32 %v18, 4294901760
  %v572 = vsub.f32 %v18, %v571
  %v573 = vand.u32 %v572, 4294901760
  %574 = vmatpush1.msra.mxu0 %v573
  %575 = vmatprep.subr.mxu0 0.0
  %v576 = vand.u32 %v17, 4294901760
  %v577 = vsub.f32 %v17, %v576
  %v578 = vand.u32 %v577, 4294901760
  %579 = vmatpush1.msra.mxu0 %v578
  %580 = vmatprep.subr.mxu0 0.0
  %v581 = vand.u32 %v16, 4294901760
  %v582 = vsub.f32 %v16, %v581
  %v583 = vand.u32 %v582, 4294901760
  %584 = vmatpush1.msra.mxu0 %v583
  %585 = vmatprep.subr.mxu0 0.0
  %586 = vmatpush2.msra.mxu0 0.0
  %587 = vmatprep.subr.mxu0 0.0
  %588 = vmatpush2.msra.mxu0 0.0
  %589 = vmatprep.subr.mxu0 0.0
  %590 = vmatpush2.msra.mxu0 0.0
  %591 = vmatprep.subr.mxu0 0.0
  %592 = vmatpush2.msra.mxu0 0.0
  %593 = vmatprep.subr.mxu0 0.0
  %594 = vmatpush2.msra.mxu0 0.0
  %595 = vmatprep.subr.mxu0 0.0
  %596 = vmatpush2.msra.mxu0 0.0
  %597 = vmatprep.subr.mxu0 0.0
  %598 = vmatpush2.msra.mxu0 0.0
  %599 = vmatprep.subr.mxu0 0.0
  %600 = vmatpush2.msra.mxu0 0.0
  %601 = vmatprep.subr.mxu0 0.0
  %602 = vmatpush2.msra.mxu0 0.0
  %603 = vmatprep.subr.mxu0 0.0
  %604 = vmatpush2.msra.mxu0 0.0
  %605 = vmatprep.subr.mxu0 0.0
  %606 = vmatpush2.msra.mxu0 0.0
  %607 = vmatprep.subr.mxu0 0.0
  %608 = vmatpush2.msra.mxu0 0.0
  %609 = vmatprep.subr.mxu0 0.0
  %610 = vmatpush2.msra.mxu0 0.0
  %611 = vmatprep.subr.mxu0 0.0
  %612 = vmatpush2.msra.mxu0 0.0
  %613 = vmatprep.subr.mxu0 0.0
  %614 = vmatpush2.msra.mxu0 0.0
  %615 = vmatprep.subr.mxu0 0.0
  %616 = vmatpush2.msra.mxu0 0.0
  %617 = vmatprep.mubr.f32.mxu0 0.0
  %v618 = vand.u32 %v14, 4294901760
  %619 = vmatmul.mubr.f32.gmra.mxu0 %v618
  %v620 = vpop.f32.mrf.mxu0
  %v621 = vadd.f32 %v494, %v620
  %v622 = vpop.f32.mrf.mxu0
  %623 = vmatprep.mubr.f32.mxu0 0.0
  %v624 = vand.u32 %v15, 4294901760
  %625 = vmatmul.mubr.f32.gmra.mxu0 %v624
  %v626 = vpop.f32.mrf.mxu0
  %v627 = vadd.f32 %v502, %v626
  %v628 = vpop.f32.mrf.mxu0
  %629 = vdwg.mxu0
  %630 = vmatprep.subr.mxu0 0.0
  %v631 = vand.u32 %v31, 4294901760
  %632 = vmatpush1.msra.mxu0 %v631
  %633 = vmatprep.subr.mxu0 0.0
  %v634 = vand.u32 %v30, 4294901760
  %635 = vmatpush1.msra.mxu0 %v634
  %636 = vmatprep.subr.mxu0 0.0
  %v637 = vand.u32 %v29, 4294901760
  %638 = vmatpush1.msra.mxu0 %v637
  %639 = vmatprep.subr.mxu0 0.0
  %v640 = vand.u32 %v28, 4294901760
  %641 = vmatpush1.msra.mxu0 %v640
  %642 = vmatprep.subr.mxu0 0.0
  %v643 = vand.u32 %v27, 4294901760
  %644 = vmatpush1.msra.mxu0 %v643
  %645 = vmatprep.subr.mxu0 0.0
  %v646 = vand.u32 %v26, 4294901760
  %647 = vmatpush1.msra.mxu0 %v646
  %648 = vmatprep.subr.mxu0 0.0
  %v649 = vand.u32 %v25, 4294901760
  %650 = vmatpush1.msra.mxu0 %v649
  %651 = vmatprep.subr.mxu0 0.0
  %v652 = vand.u32 %v24, 4294901760
  %653 = vmatpush1.msra.mxu0 %v652
  %654 = vmatprep.subr.mxu0 0.0
  %v655 = vand.u32 %v23, 4294901760
  %656 = vmatpush1.msra.mxu0 %v655
  %657 = vmatprep.subr.mxu0 0.0
  %v658 = vand.u32 %v22, 4294901760
  %659 = vmatpush1.msra.mxu0 %v658
  %660 = vmatprep.subr.mxu0 0.0
  %v661 = vand.u32 %v21, 4294901760
  %662 = vmatpush1.msra.mxu0 %v661
  %663 = vmatprep.subr.mxu0 0.0
  %v664 = vand.u32 %v20, 4294901760
  %665 = vmatpush1.msra.mxu0 %v664
  %666 = vmatprep.subr.mxu0 0.0
  %v667 = vand.u32 %v19, 4294901760
  %668 = vmatpush1.msra.mxu0 %v667
  %669 = vmatprep.subr.mxu0 0.0
  %v670 = vand.u32 %v18, 4294901760
  %671 = vmatpush1.msra.mxu0 %v670
  %672 = vmatprep.subr.mxu0 0.0
  %v673 = vand.u32 %v17, 4294901760
  %674 = vmatpush1.msra.mxu0 %v673
  %675 = vmatprep.subr.mxu0 0.0
  %v676 = vand.u32 %v16, 4294901760
  %677 = vmatpush1.msra.mxu0 %v676
  %678 = vmatprep.subr.mxu0 0.0
  %679 = vmatpush2.msra.mxu0 0.0
  %680 = vmatprep.subr.mxu0 0.0
  %681 = vmatpush2.msra.mxu0 0.0
  %682 = vmatprep.subr.mxu0 0.0
  %683 = vmatpush2.msra.mxu0 0.0
  %684 = vmatprep.subr.mxu0 0.0
  %685 = vmatpush2.msra.mxu0 0.0
  %686 = vmatprep.subr.mxu0 0.0
  %687 = vmatpush2.msra.mxu0 0.0
  %688 = vmatprep.subr.mxu0 0.0
  %689 = vmatpush2.msra.mxu0 0.0
  %690 = vmatprep.subr.mxu0 0.0
  %691 = vmatpush2.msra.mxu0 0.0
  %692 = vmatprep.subr.mxu0 0.0
  %693 = vmatpush2.msra.mxu0 0.0
  %694 = vmatprep.subr.mxu0 0.0
  %695 = vmatpush2.msra.mxu0 0.0
  %696 = vmatprep.subr.mxu0 0.0
  %697 = vmatpush2.msra.mxu0 0.0
  %698 = vmatprep.subr.mxu0 0.0
  %699 = vmatpush2.msra.mxu0 0.0
  %700 = vmatprep.subr.mxu0 0.0
  %701 = vmatpush2.msra.mxu0 0.0
  %702 = vmatprep.subr.mxu0 0.0
  %703 = vmatpush2.msra.mxu0 0.0
  %704 = vmatprep.subr.mxu0 0.0
  %705 = vmatpush2.msra.mxu0 0.0
  %706 = vmatprep.subr.mxu0 0.0
  %707 = vmatpush2.msra.mxu0 0.0
  %708 = vmatprep.subr.mxu0 0.0
  %709 = vmatpush2.msra.mxu0 0.0
  %710 = vmatprep.mubr.f32.mxu0 0.0
  %v711 = vand.u32 %v14, 4294901760
  %712 = vmatmul.mubr.f32.gmra.mxu0 %v711
  %v713 = vpop.f32.mrf.mxu0
  %v714 = vadd.f32 %v621, %v713
  %v715 = vpop.f32.mrf.mxu0
  %716 = vmatprep.mubr.f32.mxu0 0.0
  %v717 = vand.u32 %v15, 4294901760
  %718 = vmatmul.mubr.f32.gmra.mxu0 %v717
  %v719 = vpop.f32.mrf.mxu0
  %v720 = vadd.f32 %v627, %v719
  %v721 = vpop.f32.mrf.mxu0
  %722 = vdwg.mxu0
  %v723 = vmax.f32 %v714, 0.0
  %v724 = vmax.f32 %v720, 0.0
  %vm725 = vcmask 130048
  %726 = vst.msk [vmem:[%s3] sm:$0xff] %vm725, %v723
  %727 = vst.msk [vmem:[%s3 + $0x8] sm:$0xff] %vm725, %v724
  // Predicated region
  $region14: #{pi_conv_lstm_forward.6} parent=0 // pred_check
    _
  $region15: #{pi_conv_lstm_forward.6} parent=0 // pred_check_branch
    %729 = sbr.rel (0) target = $region17
  $region16: #{pi_conv_lstm_forward.6} parent=0 // pred_region
    _
  $region17: #{pi_conv_lstm_forward.6} parent=0 // pred_fallthru
    _
  // Predicated region
  $region18: #{pi_conv_lstm_forward.6} parent=0 // pred_check
    _
  $region19: #{pi_conv_lstm_forward.6} parent=0 // pred_check_branch
    %731 = sbr.rel (0) target = $region21
  $region20: #{pi_conv_lstm_forward.6} parent=0 // pred_region
    _
  $region21: #{pi_conv_lstm_forward.6} parent=0 // pred_fallthru
    _

// kernel: pi_conv_lstm_forward.5
$region0: #{pi_conv_lstm_forward.5}
  #allocation0 [shape = 'u32[]', space=smem, size = 0x4, offset = 0x4, fixed_abs, tag = 'smem constant byte address 0x4 - core index']
  #allocation1 [shape = 'u32[144,128]{1,0:T(1,128)}', space=vmem, size = 0x12000, scoped, tag = 'internal scratch']
  %s0 = inlined_call_operand.vmem [shape: f32[144,256], index: 0, kind: input, shape index: {}]
  %s1 = inlined_call_operand.vmem [shape: f32[256,8], index: 1, kind: input, shape index: {}]
  %s2 = inlined_call_operand.vmem [shape: f32[1,8], index: 2, kind: input, shape index: {}]
  %s3 = inlined_call_operand.vmem [shape: f32[144,8], index: 3, kind: output, shape index: {}]
  %s4 = sld [smem:[#allocation0]]
  $region22: #{pi_conv_lstm_forward.5} parent=0
    _
  %s6 = ssub.s32 1, %s4
  %s7 = scalar_select 0, %s6, %s4
  // Predicated region
  $region2: #{pi_conv_lstm_forward.5} parent=0 // pred_check
    _
  $region3: #{pi_conv_lstm_forward.5} parent=0 // pred_check_branch
    %9 = sbr.rel (0) target = $region5
  $region4: #{pi_conv_lstm_forward.5} parent=0 // pred_region
    _
  $region5: #{pi_conv_lstm_forward.5} parent=0 // pred_fallthru
    _
  // Predicated region
  $region6: #{pi_conv_lstm_forward.5} parent=0 // pred_check
    _
  $region7: #{pi_conv_lstm_forward.5} parent=0 // pred_check_branch
    %11 = sbr.rel (0) target = $region9
  $region8: #{pi_conv_lstm_forward.5} parent=0 // pred_region
    _
  $region9: #{pi_conv_lstm_forward.5} parent=0 // pred_fallthru
    _
  // Predicated region
  $region10: #{pi_conv_lstm_forward.5} parent=0 // pred_check
    _
  $region11: #{pi_conv_lstm_forward.5} parent=0 // pred_check_branch
    %13 = sbr.rel (0) target = $region13
  $region12: #{pi_conv_lstm_forward.5} parent=0 // pred_region
    _
  $region13: #{pi_conv_lstm_forward.5} parent=0 // pred_fallthru
    _
  %v14 = vld [vmem:[%s0] sm:$0xff]
  %v15 = vld [vmem:[%s0 + $0x8] sm:$0xff]
  %v16 = vld [vmem:[%s0 + $0x10] sm:$0xff]
  %v17 = vld [vmem:[%s0 + $0x18] sm:$0xff]
  %v18 = vld [vmem:[%s0 + $0x20] sm:$0xff]
  %v19 = vld [vmem:[%s0 + $0x28] sm:$0xff]
  %v20 = vld [vmem:[%s0 + $0x30] sm:$0xff]
  %v21 = vld [vmem:[%s0 + $0x38] sm:$0xff]
  %v22 = vld [vmem:[%s0 + $0x40] sm:$0xff]
  %v23 = vld [vmem:[%s0 + $0x48] sm:$0xff]
  %v24 = vld [vmem:[%s0 + $0x50] sm:$0xff]
  %v25 = vld [vmem:[%s0 + $0x58] sm:$0xff]
  %v26 = vld [vmem:[%s0 + $0x60] sm:$0xff]
  %v27 = vld [vmem:[%s0 + $0x68] sm:$0xff]
  %v28 = vld [vmem:[%s0 + $0x70] sm:$0xff]
  %v29 = vld [vmem:[%s0 + $0x78] sm:$0xff]
  %v30 = vld [vmem:[%s0 + $0x80] sm:$0xff]
  %v31 = vld [vmem:[%s0 + $0x88] sm:$0xff]
  %v32 = vld [vmem:[%s0 + $0x90] sm:$0xff]
  %v33 = vld [vmem:[%s0 + $0x98] sm:$0xff]
  %v34 = vld [vmem:[%s0 + $0xa0] sm:$0xff]
  %v35 = vld [vmem:[%s0 + $0xa8] sm:$0xff]
  %v36 = vld [vmem:[%s0 + $0xb0] sm:$0xff]
  %v37 = vld [vmem:[%s0 + $0xb8] sm:$0xff]
  %v38 = vld [vmem:[%s0 + $0xc0] sm:$0xff]
  %v39 = vld [vmem:[%s0 + $0xc8] sm:$0xff]
  %v40 = vld [vmem:[%s0 + $0xd0] sm:$0xff]
  %v41 = vld [vmem:[%s0 + $0xd8] sm:$0xff]
  %v42 = vld [vmem:[%s0 + $0xe0] sm:$0xff]
  %v43 = vld [vmem:[%s0 + $0xe8] sm:$0xff]
  %v44 = vld [vmem:[%s0 + $0xf0] sm:$0xff]
  %v45 = vld [vmem:[%s0 + $0xf8] sm:$0xff]
  %v46 = vld [vmem:[%s0 + $0x100] sm:$0xff]
  %v47 = vld [vmem:[%s0 + $0x108] sm:$0xff]
  %v48 = vld [vmem:[%s0 + $0x110] sm:$0xff]
  %v49 = vld [vmem:[%s0 + $0x118] sm:$0xff]
  %v50 = vld [vmem:[%s1] sm:$0xff]
  %v51 = vld [vmem:[%s1 + $0x8] sm:$0xff]
  %v52 = vld [vmem:[%s1 + $0x10] sm:$0xff]
  %v53 = vld [vmem:[%s1 + $0x18] sm:$0xff]
  %v54 = vld [vmem:[%s1 + $0x20] sm:$0xff]
  %v55 = vld [vmem:[%s1 + $0x28] sm:$0xff]
  %v56 = vld [vmem:[%s1 + $0x30] sm:$0xff]
  %v57 = vld [vmem:[%s1 + $0x38] sm:$0xff]
  %v58 = vld [vmem:[%s1 + $0x40] sm:$0xff]
  %v59 = vld [vmem:[%s1 + $0x48] sm:$0xff]
  %v60 = vld [vmem:[%s1 + $0x50] sm:$0xff]
  %v61 = vld [vmem:[%s1 + $0x58] sm:$0xff]
  %v62 = vld [vmem:[%s1 + $0x60] sm:$0xff]
  %v63 = vld [vmem:[%s1 + $0x68] sm:$0xff]
  %v64 = vld [vmem:[%s1 + $0x70] sm:$0xff]
  %v65 = vld [vmem:[%s1 + $0x78] sm:$0xff]
  %v66 = vld [vmem:[%s1 + $0x80] sm:$0xff]
  %v67 = vld [vmem:[%s1 + $0x88] sm:$0xff]
  %v68 = vld [vmem:[%s1 + $0x90] sm:$0xff]
  %v69 = vld [vmem:[%s1 + $0x98] sm:$0xff]
  %v70 = vld [vmem:[%s1 + $0xa0] sm:$0xff]
  %v71 = vld [vmem:[%s1 + $0xa8] sm:$0xff]
  %v72 = vld [vmem:[%s1 + $0xb0] sm:$0xff]
  %v73 = vld [vmem:[%s1 + $0xb8] sm:$0xff]
  %v74 = vld [vmem:[%s1 + $0xc0] sm:$0xff]
  %v75 = vld [vmem:[%s1 + $0xc8] sm:$0xff]
  %v76 = vld [vmem:[%s1 + $0xd0] sm:$0xff]
  %v77 = vld [vmem:[%s1 + $0xd8] sm:$0xff]
  %v78 = vld [vmem:[%s1 + $0xe0] sm:$0xff]
  %v79 = vld [vmem:[%s1 + $0xe8] sm:$0xff]
  %v80 = vld [vmem:[%s1 + $0xf0] sm:$0xff]
  %v81 = vld [vmem:[%s1 + $0xf8] sm:$0xff]
  %v82 = vld [vmem:[%s2] sm:$0x1]
  %v84 = vlaneseq
  %v85 = vshrl.u32 %v84, 7
  %v86 = vsub.s32 0, %v85
  %v87 = vrot.slane %v82, %v86
  %89 = vmatprep.subr.mxu0 0.0
  %v90 = vand.u32 %v65, 4294901760
  %91 = vmatpush1.msra.mxu0 %v90
  %92 = vmatprep.subr.mxu0 0.0
  %v93 = vand.u32 %v64, 4294901760
  %94 = vmatpush1.msra.mxu0 %v93
  %95 = vmatprep.subr.mxu0 0.0
  %v96 = vand.u32 %v63, 4294901760
  %97 = vmatpush1.msra.mxu0 %v96
  %98 = vmatprep.subr.mxu0 0.0
  %v99 = vand.u32 %v62, 4294901760
  %100 = vmatpush1.msra.mxu0 %v99
  %101 = vmatprep.subr.mxu0 0.0
  %v102 = vand.u32 %v61, 4294901760
  %103 = vmatpush1.msra.mxu0 %v102
  %104 = vmatprep.subr.mxu0 0.0
  %v105 = vand.u32 %v60, 4294901760
  %106 = vmatpush1.msra.mxu0 %v105
  %107 = vmatprep.subr.mxu0 0.0
  %v108 = vand.u32 %v59, 4294901760
  %109 = vmatpush1.msra.mxu0 %v108
  %110 = vmatprep.subr.mxu0 0.0
  %v111 = vand.u32 %v58, 4294901760
  %112 = vmatpush1.msra.mxu0 %v111
  %113 = vmatprep.subr.mxu0 0.0
  %v114 = vand.u32 %v57, 4294901760
  %115 = vmatpush1.msra.mxu0 %v114
  %116 = vmatprep.subr.mxu0 0.0
  %v117 = vand.u32 %v56, 4294901760
  %118 = vmatpush1.msra.mxu0 %v117
  %119 = vmatprep.subr.mxu0 0.0
  %v120 = vand.u32 %v55, 4294901760
  %121 = vmatpush1.msra.mxu0 %v120
  %122 = vmatprep.subr.mxu0 0.0
  %v123 = vand.u32 %v54, 4294901760
  %124 = vmatpush1.msra.mxu0 %v123
  %125 = vmatprep.subr.mxu0 0.0
  %v126 = vand.u32 %v53, 4294901760
  %127 = vmatpush1.msra.mxu0 %v126
  %128 = vmatprep.subr.mxu0 0.0
  %v129 = vand.u32 %v52, 4294901760
  %130 = vmatpush1.msra.mxu0 %v129
  %131 = vmatprep.subr.mxu0 0.0
  %v132 = vand.u32 %v51, 4294901760
  %133 = vmatpush1.msra.mxu0 %v132
  %134 = vmatprep.subr.mxu0 0.0
  %v135 = vand.u32 %v50, 4294901760
  %136 = vmatpush1.msra.mxu0 %v135
  %137 = vmatprep.subr.mxu0 0.0
  %v138 = vand.u32 %v81, 4294901760
  %139 = vmatpush2.msra.mxu0 %v138
  %140 = vmatprep.subr.mxu0 0.0
  %v141 = vand.u32 %v80, 4294901760
  %142 = vmatpush2.msra.mxu0 %v141
  %143 = vmatprep.subr.mxu0 0.0
  %v144 = vand.u32 %v79, 4294901760
  %145 = vmatpush2.msra.mxu0 %v144
  %146 = vmatprep.subr.mxu0 0.0
  %v147 = vand.u32 %v78, 4294901760
  %148 = vmatpush2.msra.mxu0 %v147
  %149 = vmatprep.subr.mxu0 0.0
  %v150 = vand.u32 %v77, 4294901760
  %151 = vmatpush2.msra.mxu0 %v150
  %152 = vmatprep.subr.mxu0 0.0
  %v153 = vand.u32 %v76, 4294901760
  %154 = vmatpush2.msra.mxu0 %v153
  %155 = vmatprep.subr.mxu0 0.0
  %v156 = vand.u32 %v75, 4294901760
  %157 = vmatpush2.msra.mxu0 %v156
  %158 = vmatprep.subr.mxu0 0.0
  %v159 = vand.u32 %v74, 4294901760
  %160 = vmatpush2.msra.mxu0 %v159
  %161 = vmatprep.subr.mxu0 0.0
  %v162 = vand.u32 %v73, 4294901760
  %163 = vmatpush2.msra.mxu0 %v162
  %164 = vmatprep.subr.mxu0 0.0
  %v165 = vand.u32 %v72, 4294901760
  %166 = vmatpush2.msra.mxu0 %v165
  %167 = vmatprep.subr.mxu0 0.0
  %v168 = vand.u32 %v71, 4294901760
  %169 = vmatpush2.msra.mxu0 %v168
  %170 = vmatprep.subr.mxu0 0.0
  %v171 = vand.u32 %v70, 4294901760
  %172 = vmatpush2.msra.mxu0 %v171
  %173 = vmatprep.subr.mxu0 0.0
  %v174 = vand.u32 %v69, 4294901760
  %175 = vmatpush2.msra.mxu0 %v174
  %176 = vmatprep.subr.mxu0 0.0
  %v177 = vand.u32 %v68, 4294901760
  %178 = vmatpush2.msra.mxu0 %v177
  %179 = vmatprep.subr.mxu0 0.0
  %v180 = vand.u32 %v67, 4294901760
  %181 = vmatpush2.msra.mxu0 %v180
  %182 = vmatprep.subr.mxu0 0.0
  %v183 = vand.u32 %v66, 4294901760
  %184 = vmatpush2.msra.mxu0 %v183
  %v185 = vand.u32 %v15, 4294901760
  %v186 = vsub.f32 %v15, %v185
  %v187 = vand.u32 %v186, 4294901760
  %v188 = vsub.f32 %v186, %v187
  %v189 = vand.u32 %v188, 4294901760
  %190 = vmatprep.mubr.f32.mxu0 %v189
  %v191 = vand.u32 %v14, 4294901760
  %v192 = vsub.f32 %v14, %v191
  %v193 = vand.u32 %v192, 4294901760
  %v194 = vsub.f32 %v192, %v193
  %v195 = vand.u32 %v194, 4294901760
  %196 = vmatmul.mubr.f32.gmra.mxu0 %v195
  %v197 = vpop.f32.mrf.mxu0
  %v198 = vadd.f32 %v87, %v197
  %v199 = vpop.f32.mrf.mxu0
  %v200 = vand.u32 %v17, 4294901760
  %v201 = vsub.f32 %v17, %v200
  %v202 = vand.u32 %v201, 4294901760
  %v203 = vsub.f32 %v201, %v202
  %v204 = vand.u32 %v203, 4294901760
  %205 = vmatprep.mubr.f32.mxu0 %v204
  %v206 = vand.u32 %v16, 4294901760
  %v207 = vsub.f32 %v16, %v206
  %v208 = vand.u32 %v207, 4294901760
  %v209 = vsub.f32 %v207, %v208
  %v210 = vand.u32 %v209, 4294901760
  %211 = vmatmul.mubr.f32.gmra.mxu0 %v210
  %v212 = vpop.f32.mrf.mxu0
  %v213 = vadd.f32 %v87, %v212
  %v214 = vpop.f32.mrf.mxu0
  %v215 = vand.u32 %v19, 4294901760
  %v216 = vsub.f32 %v19, %v215
  %v217 = vand.u32 %v216, 4294901760
  %v218 = vsub.f32 %v216, %v217
  %v219 = vand.u32 %v218, 4294901760
  %220 = vmatprep.mubr.f32.mxu0 %v219
  %v221 = vand.u32 %v18, 4294901760
  %v222 = vsub.f32 %v18, %v221
  %v223 = vand.u32 %v222, 4294901760
  %v224 = vsub.f32 %v222, %v223
  %v225 = vand.u32 %v224, 4294901760
  %226 = vmatmul.mubr.f32.gmra.mxu0 %v225
  %v227 = vpop.f32.mrf.mxu0
  %v228 = vadd.f32 %v87, %v227
  %v229 = vpop.f32.mrf.mxu0
  %v230 = vand.u32 %v21, 4294901760
  %v231 = vsub.f32 %v21, %v230
  %v232 = vand.u32 %v231, 4294901760
  %v233 = vsub.f32 %v231, %v232
  %v234 = vand.u32 %v233, 4294901760
  %235 = vmatprep.mubr.f32.mxu0 %v234
  %v236 = vand.u32 %v20, 4294901760
  %v237 = vsub.f32 %v20, %v236
  %v238 = vand.u32 %v237, 4294901760
  %v239 = vsub.f32 %v237, %v238
  %v240 = vand.u32 %v239, 4294901760
  %241 = vmatmul.mubr.f32.gmra.mxu0 %v240
  %v242 = vpop.f32.mrf.mxu0
  %v243 = vadd.f32 %v87, %v242
  %v244 = vpop.f32.mrf.mxu0
  %v245 = vand.u32 %v23, 4294901760
  %v246 = vsub.f32 %v23, %v245
  %v247 = vand.u32 %v246, 4294901760
  %v248 = vsub.f32 %v246, %v247
  %v249 = vand.u32 %v248, 4294901760
  %250 = vmatprep.mubr.f32.mxu0 %v249
  %v251 = vand.u32 %v22, 4294901760
  %v252 = vsub.f32 %v22, %v251
  %v253 = vand.u32 %v252, 4294901760
  %v254 = vsub.f32 %v252, %v253
  %v255 = vand.u32 %v254, 4294901760
  %256 = vmatmul.mubr.f32.gmra.mxu0 %v255
  %v257 = vpop.f32.mrf.mxu0
  %v258 = vadd.f32 %v87, %v257
  %v259 = vpop.f32.mrf.mxu0
  %v260 = vand.u32 %v25, 4294901760
  %v261 = vsub.f32 %v25, %v260
  %v262 = vand.u32 %v261, 4294901760
  %v263 = vsub.f32 %v261, %v262
  %v264 = vand.u32 %v263, 4294901760
  %265 = vmatprep.mubr.f32.mxu0 %v264
  %v266 = vand.u32 %v24, 4294901760
  %v267 = vsub.f32 %v24, %v266
  %v268 = vand.u32 %v267, 4294901760
  %v269 = vsub.f32 %v267, %v268
  %v270 = vand.u32 %v269, 4294901760
  %271 = vmatmul.mubr.f32.gmra.mxu0 %v270
  %v272 = vpop.f32.mrf.mxu0
  %v273 = vadd.f32 %v87, %v272
  %v274 = vpop.f32.mrf.mxu0
  %v275 = vand.u32 %v27, 4294901760
  %v276 = vsub.f32 %v27, %v275
  %v277 = vand.u32 %v276, 4294901760
  %v278 = vsub.f32 %v276, %v277
  %v279 = vand.u32 %v278, 4294901760
  %280 = vmatprep.mubr.f32.mxu0 %v279
  %v281 = vand.u32 %v26, 4294901760
  %v282 = vsub.f32 %v26, %v281
  %v283 = vand.u32 %v282, 4294901760
  %v284 = vsub.f32 %v282, %v283
  %v285 = vand.u32 %v284, 4294901760
  %286 = vmatmul.mubr.f32.gmra.mxu0 %v285
  %v287 = vpop.f32.mrf.mxu0
  %v288 = vadd.f32 %v87, %v287
  %v289 = vpop.f32.mrf.mxu0
  %v290 = vand.u32 %v29, 4294901760
  %v291 = vsub.f32 %v29, %v290
  %v292 = vand.u32 %v291, 4294901760
  %v293 = vsub.f32 %v291, %v292
  %v294 = vand.u32 %v293, 4294901760
  %295 = vmatprep.mubr.f32.mxu0 %v294
  %v296 = vand.u32 %v28, 4294901760
  %v297 = vsub.f32 %v28, %v296
  %v298 = vand.u32 %v297, 4294901760
  %v299 = vsub.f32 %v297, %v298
  %v300 = vand.u32 %v299, 4294901760
  %301 = vmatmul.mubr.f32.gmra.mxu0 %v300
  %v302 = vpop.f32.mrf.mxu0
  %v303 = vadd.f32 %v87, %v302
  %v304 = vpop.f32.mrf.mxu0
  %v305 = vand.u32 %v31, 4294901760
  %v306 = vsub.f32 %v31, %v305
  %v307 = vand.u32 %v306, 4294901760
  %v308 = vsub.f32 %v306, %v307
  %v309 = vand.u32 %v308, 4294901760
  %310 = vmatprep.mubr.f32.mxu0 %v309
  %v311 = vand.u32 %v30, 4294901760
  %v312 = vsub.f32 %v30, %v311
  %v313 = vand.u32 %v312, 4294901760
  %v314 = vsub.f32 %v312, %v313
  %v315 = vand.u32 %v314, 4294901760
  %316 = vmatmul.mubr.f32.gmra.mxu0 %v315
  %v317 = vpop.f32.mrf.mxu0
  %v318 = vadd.f32 %v87, %v317
  %v319 = vpop.f32.mrf.mxu0
  %v320 = vand.u32 %v33, 4294901760
  %v321 = vsub.f32 %v33, %v320
  %v322 = vand.u32 %v321, 4294901760
  %v323 = vsub.f32 %v321, %v322
  %v324 = vand.u32 %v323, 4294901760
  %325 = vmatprep.mubr.f32.mxu0 %v324
  %v326 = vand.u32 %v32, 4294901760
  %v327 = vsub.f32 %v32, %v326
  %v328 = vand.u32 %v327, 4294901760
  %v329 = vsub.f32 %v327, %v328
  %v330 = vand.u32 %v329, 4294901760
  %331 = vmatmul.mubr.f32.gmra.mxu0 %v330
  %v332 = vpop.f32.mrf.mxu0
  %v333 = vadd.f32 %v87, %v332
  %v334 = vpop.f32.mrf.mxu0
  %v335 = vand.u32 %v35, 4294901760
  %v336 = vsub.f32 %v35, %v335
  %v337 = vand.u32 %v336, 4294901760
  %v338 = vsub.f32 %v336, %v337
  %v339 = vand.u32 %v338, 4294901760
  %340 = vmatprep.mubr.f32.mxu0 %v339
  %v341 = vand.u32 %v34, 4294901760
  %v342 = vsub.f32 %v34, %v341
  %v343 = vand.u32 %v342, 4294901760
  %v344 = vsub.f32 %v342, %v343
  %v345 = vand.u32 %v344, 4294901760
  %346 = vmatmul.mubr.f32.gmra.mxu0 %v345
  %v347 = vpop.f32.mrf.mxu0
  %v348 = vadd.f32 %v87, %v347
  %v349 = vpop.f32.mrf.mxu0
  %v350 = vand.u32 %v37, 4294901760
  %v351 = vsub.f32 %v37, %v350
  %v352 = vand.u32 %v351, 4294901760
  %v353 = vsub.f32 %v351, %v352
  %v354 = vand.u32 %v353, 4294901760
  %355 = vmatprep.mubr.f32.mxu0 %v354
  %v356 = vand.u32 %v36, 4294901760
  %v357 = vsub.f32 %v36, %v356
  %v358 = vand.u32 %v357, 4294901760
  %v359 = vsub.f32 %v357, %v358
  %v360 = vand.u32 %v359, 4294901760
  %361 = vmatmul.mubr.f32.gmra.mxu0 %v360
  %v362 = vpop.f32.mrf.mxu0
  %v363 = vadd.f32 %v87, %v362
  %v364 = vpop.f32.mrf.mxu0
  %v365 = vand.u32 %v39, 4294901760
  %v366 = vsub.f32 %v39, %v365
  %v367 = vand.u32 %v366, 4294901760
  %v368 = vsub.f32 %v366, %v367
  %v369 = vand.u32 %v368, 4294901760
  %370 = vmatprep.mubr.f32.mxu0 %v369
  %v371 = vand.u32 %v38, 4294901760
  %v372 = vsub.f32 %v38, %v371
  %v373 = vand.u32 %v372, 4294901760
  %v374 = vsub.f32 %v372, %v373
  %v375 = vand.u32 %v374, 4294901760
  %376 = vmatmul.mubr.f32.gmra.mxu0 %v375
  %v377 = vpop.f32.mrf.mxu0
  %v378 = vadd.f32 %v87, %v377
  %v379 = vpop.f32.mrf.mxu0
  %v380 = vand.u32 %v41, 4294901760
  %v381 = vsub.f32 %v41, %v380
  %v382 = vand.u32 %v381, 4294901760
  %v383 = vsub.f32 %v381, %v382
  %v384 = vand.u32 %v383, 4294901760
  %385 = vmatprep.mubr.f32.mxu0 %v384
  %v386 = vand.u32 %v40, 4294901760
  %v387 = vsub.f32 %v40, %v386
  %v388 = vand.u32 %v387, 4294901760
  %v389 = vsub.f32 %v387, %v388
  %v390 = vand.u32 %v389, 4294901760
  %391 = vmatmul.mubr.f32.gmra.mxu0 %v390
  %v392 = vpop.f32.mrf.mxu0
  %v393 = vadd.f32 %v87, %v392
  %v394 = vpop.f32.mrf.mxu0
  %v395 = vand.u32 %v43, 4294901760
  %v396 = vsub.f32 %v43, %v395
  %v397 = vand.u32 %v396, 4294901760
  %v398 = vsub.f32 %v396, %v397
  %v399 = vand.u32 %v398, 4294901760
  %400 = vmatprep.mubr.f32.mxu0 %v399
  %v401 = vand.u32 %v42, 4294901760
  %v402 = vsub.f32 %v42, %v401
  %v403 = vand.u32 %v402, 4294901760
  %v404 = vsub.f32 %v402, %v403
  %v405 = vand.u32 %v404, 4294901760
  %406 = vmatmul.mubr.f32.gmra.mxu0 %v405
  %v407 = vpop.f32.mrf.mxu0
  %v408 = vadd.f32 %v87, %v407
  %v409 = vpop.f32.mrf.mxu0
  %v410 = vand.u32 %v45, 4294901760
  %v411 = vsub.f32 %v45, %v410
  %v412 = vand.u32 %v411, 4294901760
  %v413 = vsub.f32 %v411, %v412
  %v414 = vand.u32 %v413, 4294901760
  %415 = vmatprep.mubr.f32.mxu0 %v414
  %v416 = vand.u32 %v44, 4294901760
  %v417 = vsub.f32 %v44, %v416
  %v418 = vand.u32 %v417, 4294901760
  %v419 = vsub.f32 %v417, %v418
  %v420 = vand.u32 %v419, 4294901760
  %421 = vmatmul.mubr.f32.gmra.mxu0 %v420
  %v422 = vpop.f32.mrf.mxu0
  %v423 = vadd.f32 %v87, %v422
  %v424 = vpop.f32.mrf.mxu0
  %v425 = vand.u32 %v47, 4294901760
  %v426 = vsub.f32 %v47, %v425
  %v427 = vand.u32 %v426, 4294901760
  %v428 = vsub.f32 %v426, %v427
  %v429 = vand.u32 %v428, 4294901760
  %430 = vmatprep.mubr.f32.mxu0 %v429
  %v431 = vand.u32 %v46, 4294901760
  %v432 = vsub.f32 %v46, %v431
  %v433 = vand.u32 %v432, 4294901760
  %v434 = vsub.f32 %v432, %v433
  %v435 = vand.u32 %v434, 4294901760
  %436 = vmatmul.mubr.f32.gmra.mxu0 %v435
  %v437 = vpop.f32.mrf.mxu0
  %v438 = vadd.f32 %v87, %v437
  %v439 = vpop.f32.mrf.mxu0
  %v440 = vand.u32 %v49, 4294901760
  %v441 = vsub.f32 %v49, %v440
  %v442 = vand.u32 %v441, 4294901760
  %v443 = vsub.f32 %v441, %v442
  %v444 = vand.u32 %v443, 4294901760
  %445 = vmatprep.mubr.f32.mxu0 %v444
  %v446 = vand.u32 %v48, 4294901760
  %v447 = vsub.f32 %v48, %v446
  %v448 = vand.u32 %v447, 4294901760
  %v449 = vsub.f32 %v447, %v448
  %v450 = vand.u32 %v449, 4294901760
  %451 = vmatmul.mubr.f32.gmra.mxu0 %v450
  %v452 = vpop.f32.mrf.mxu0
  %v453 = vadd.f32 %v87, %v452
  %v454 = vpop.f32.mrf.mxu0
  %455 = vdwg.mxu0
  %456 = vmatprep.subr.mxu0 0.0
  %v457 = vand.u32 %v65, 4294901760
  %v458 = vsub.f32 %v65, %v457
  %v459 = vand.u32 %v458, 4294901760
  %v460 = vsub.f32 %v458, %v459
  %v461 = vand.u32 %v460, 4294901760
  %462 = vmatpush1.msra.mxu0 %v461
  %463 = vmatprep.subr.mxu0 0.0
  %v464 = vand.u32 %v64, 4294901760
  %v465 = vsub.f32 %v64, %v464
  %v466 = vand.u32 %v465, 4294901760
  %v467 = vsub.f32 %v465, %v466
  %v468 = vand.u32 %v467, 4294901760
  %469 = vmatpush1.msra.mxu0 %v468
  %470 = vmatprep.subr.mxu0 0.0
  %v471 = vand.u32 %v63, 4294901760
  %v472 = vsub.f32 %v63, %v471
  %v473 = vand.u32 %v472, 4294901760
  %v474 = vsub.f32 %v472, %v473
  %v475 = vand.u32 %v474, 4294901760
  %476 = vmatpush1.msra.mxu0 %v475
  %477 = vmatprep.subr.mxu0 0.0
  %v478 = vand.u32 %v62, 4294901760
  %v479 = vsub.f32 %v62, %v478
  %v480 = vand.u32 %v479, 4294901760
  %v481 = vsub.f32 %v479, %v480
  %v482 = vand.u32 %v481, 4294901760
  %483 = vmatpush1.msra.mxu0 %v482
  %484 = vmatprep.subr.mxu0 0.0
  %v485 = vand.u32 %v61, 4294901760
  %v486 = vsub.f32 %v61, %v485
  %v487 = vand.u32 %v486, 4294901760
  %v488 = vsub.f32 %v486, %v487
  %v489 = vand.u32 %v488, 4294901760
  %490 = vmatpush1.msra.mxu0 %v489
  %491 = vmatprep.subr.mxu0 0.0
  %v492 = vand.u32 %v60, 4294901760
  %v493 = vsub.f32 %v60, %v492
  %v494 = vand.u32 %v493, 4294901760
  %v495 = vsub.f32 %v493, %v494
  %v496 = vand.u32 %v495, 4294901760
  %497 = vmatpush1.msra.mxu0 %v496
  %498 = vmatprep.subr.mxu0 0.0
  %v499 = vand.u32 %v59, 4294901760
  %v500 = vsub.f32 %v59, %v499
  %v501 = vand.u32 %v500, 4294901760
  %v502 = vsub.f32 %v500, %v501
  %v503 = vand.u32 %v502, 4294901760
  %504 = vmatpush1.msra.mxu0 %v503
  %505 = vmatprep.subr.mxu0 0.0
  %v506 = vand.u32 %v58, 4294901760
  %v507 = vsub.f32 %v58, %v506
  %v508 = vand.u32 %v507, 4294901760
  %v509 = vsub.f32 %v507, %v508
  %v510 = vand.u32 %v509, 4294901760
  %511 = vmatpush1.msra.mxu0 %v510
  %512 = vmatprep.subr.mxu0 0.0
  %v513 = vand.u32 %v57, 4294901760
  %v514 = vsub.f32 %v57, %v513
  %v515 = vand.u32 %v514, 4294901760
  %v516 = vsub.f32 %v514, %v515
  %v517 = vand.u32 %v516, 4294901760
  %518 = vmatpush1.msra.mxu0 %v517
  %519 = vmatprep.subr.mxu0 0.0
  %v520 = vand.u32 %v56, 4294901760
  %v521 = vsub.f32 %v56, %v520
  %v522 = vand.u32 %v521, 4294901760
  %v523 = vsub.f32 %v521, %v522
  %v524 = vand.u32 %v523, 4294901760
  %525 = vmatpush1.msra.mxu0 %v524
  %526 = vmatprep.subr.mxu0 0.0
  %v527 = vand.u32 %v55, 4294901760
  %v528 = vsub.f32 %v55, %v527
  %v529 = vand.u32 %v528, 4294901760
  %v530 = vsub.f32 %v528, %v529
  %v531 = vand.u32 %v530, 4294901760
  %532 = vmatpush1.msra.mxu0 %v531
  %533 = vmatprep.subr.mxu0 0.0
  %v534 = vand.u32 %v54, 4294901760
  %v535 = vsub.f32 %v54, %v534
  %v536 = vand.u32 %v535, 4294901760
  %v537 = vsub.f32 %v535, %v536
  %v538 = vand.u32 %v537, 4294901760
  %539 = vmatpush1.msra.mxu0 %v538
  %540 = vmatprep.subr.mxu0 0.0
  %v541 = vand.u32 %v53, 4294901760
  %v542 = vsub.f32 %v53, %v541
  %v543 = vand.u32 %v542, 4294901760
  %v544 = vsub.f32 %v542, %v543
  %v545 = vand.u32 %v544, 4294901760
  %546 = vmatpush1.msra.mxu0 %v545
  %547 = vmatprep.subr.mxu0 0.0
  %v548 = vand.u32 %v52, 4294901760
  %v549 = vsub.f32 %v52, %v548
  %v550 = vand.u32 %v549, 4294901760
  %v551 = vsub.f32 %v549, %v550
  %v552 = vand.u32 %v551, 4294901760
  %553 = vmatpush1.msra.mxu0 %v552
  %554 = vmatprep.subr.mxu0 0.0
  %v555 = vand.u32 %v51, 4294901760
  %v556 = vsub.f32 %v51, %v555
  %v557 = vand.u32 %v556, 4294901760
  %v558 = vsub.f32 %v556, %v557
  %v559 = vand.u32 %v558, 4294901760
  %560 = vmatpush1.msra.mxu0 %v559
  %561 = vmatprep.subr.mxu0 0.0
  %v562 = vand.u32 %v50, 4294901760
  %v563 = vsub.f32 %v50, %v562
  %v564 = vand.u32 %v563, 4294901760
  %v565 = vsub.f32 %v563, %v564
  %v566 = vand.u32 %v565, 4294901760
  %567 = vmatpush1.msra.mxu0 %v566
  %568 = vmatprep.subr.mxu0 0.0
  %v569 = vand.u32 %v81, 4294901760
  %v570 = vsub.f32 %v81, %v569
  %v571 = vand.u32 %v570, 4294901760
  %v572 = vsub.f32 %v570, %v571
  %v573 = vand.u32 %v572, 4294901760
  %574 = vmatpush2.msra.mxu0 %v573
  %575 = vmatprep.subr.mxu0 0.0
  %v576 = vand.u32 %v80, 4294901760
  %v577 = vsub.f32 %v80, %v576
  %v578 = vand.u32 %v577, 4294901760
  %v579 = vsub.f32 %v577, %v578
  %v580 = vand.u32 %v579, 4294901760
  %581 = vmatpush2.msra.mxu0 %v580
  %582 = vmatprep.subr.mxu0 0.0
  %v583 = vand.u32 %v79, 4294901760
  %v584 = vsub.f32 %v79, %v583
  %v585 = vand.u32 %v584, 4294901760
  %v586 = vsub.f32 %v584, %v585
  %v587 = vand.u32 %v586, 4294901760
  %588 = vmatpush2.msra.mxu0 %v587
  %589 = vmatprep.subr.mxu0 0.0
  %v590 = vand.u32 %v78, 4294901760
  %v591 = vsub.f32 %v78, %v590
  %v592 = vand.u32 %v591, 4294901760
  %v593 = vsub.f32 %v591, %v592
  %v594 = vand.u32 %v593, 4294901760
  %595 = vmatpush2.msra.mxu0 %v594
  %596 = vmatprep.subr.mxu0 0.0
  %v597 = vand.u32 %v77, 4294901760
  %v598 = vsub.f32 %v77, %v597
  %v599 = vand.u32 %v598, 4294901760
  %v600 = vsub.f32 %v598, %v599
  %v601 = vand.u32 %v600, 4294901760
  %602 = vmatpush2.msra.mxu0 %v601
  %603 = vmatprep.subr.mxu0 0.0
  %v604 = vand.u32 %v76, 4294901760
  %v605 = vsub.f32 %v76, %v604
  %v606 = vand.u32 %v605, 4294901760
  %v607 = vsub.f32 %v605, %v606
  %v608 = vand.u32 %v607, 4294901760
  %609 = vmatpush2.msra.mxu0 %v608
  %610 = vmatprep.subr.mxu0 0.0
  %v611 = vand.u32 %v75, 4294901760
  %v612 = vsub.f32 %v75, %v611
  %v613 = vand.u32 %v612, 4294901760
  %v614 = vsub.f32 %v612, %v613
  %v615 = vand.u32 %v614, 4294901760
  %616 = vmatpush2.msra.mxu0 %v615
  %617 = vmatprep.subr.mxu0 0.0
  %v618 = vand.u32 %v74, 4294901760
  %v619 = vsub.f32 %v74, %v618
  %v620 = vand.u32 %v619, 4294901760
  %v621 = vsub.f32 %v619, %v620
  %v622 = vand.u32 %v621, 4294901760
  %623 = vmatpush2.msra.mxu0 %v622
  %624 = vmatprep.subr.mxu0 0.0
  %v625 = vand.u32 %v73, 4294901760
  %v626 = vsub.f32 %v73, %v625
  %v627 = vand.u32 %v626, 4294901760
  %v628 = vsub.f32 %v626, %v627
  %v629 = vand.u32 %v628, 4294901760
  %630 = vmatpush2.msra.mxu0 %v629
  %631 = vmatprep.subr.mxu0 0.0
  %v632 = vand.u32 %v72, 4294901760
  %v633 = vsub.f32 %v72, %v632
  %v634 = vand.u32 %v633, 4294901760
  %v635 = vsub.f32 %v633, %v634
  %v636 = vand.u32 %v635, 4294901760
  %637 = vmatpush2.msra.mxu0 %v636
  %638 = vmatprep.subr.mxu0 0.0
  %v639 = vand.u32 %v71, 4294901760
  %v640 = vsub.f32 %v71, %v639
  %v641 = vand.u32 %v640, 4294901760
  %v642 = vsub.f32 %v640, %v641
  %v643 = vand.u32 %v642, 4294901760
  %644 = vmatpush2.msra.mxu0 %v643
  %645 = vmatprep.subr.mxu0 0.0
  %v646 = vand.u32 %v70, 4294901760
  %v647 = vsub.f32 %v70, %v646
  %v648 = vand.u32 %v647, 4294901760
  %v649 = vsub.f32 %v647, %v648
  %v650 = vand.u32 %v649, 4294901760
  %651 = vmatpush2.msra.mxu0 %v650
  %652 = vmatprep.subr.mxu0 0.0
  %v653 = vand.u32 %v69, 4294901760
  %v654 = vsub.f32 %v69, %v653
  %v655 = vand.u32 %v654, 4294901760
  %v656 = vsub.f32 %v654, %v655
  %v657 = vand.u32 %v656, 4294901760
  %658 = vmatpush2.msra.mxu0 %v657
  %659 = vmatprep.subr.mxu0 0.0
  %v660 = vand.u32 %v68, 4294901760
  %v661 = vsub.f32 %v68, %v660
  %v662 = vand.u32 %v661, 4294901760
  %v663 = vsub.f32 %v661, %v662
  %v664 = vand.u32 %v663, 4294901760
  %665 = vmatpush2.msra.mxu0 %v664
  %666 = vmatprep.subr.mxu0 0.0
  %v667 = vand.u32 %v67, 4294901760
  %v668 = vsub.f32 %v67, %v667
  %v669 = vand.u32 %v668, 4294901760
  %v670 = vsub.f32 %v668, %v669
  %v671 = vand.u32 %v670, 4294901760
  %672 = vmatpush2.msra.mxu0 %v671
  %673 = vmatprep.subr.mxu0 0.0
  %v674 = vand.u32 %v66, 4294901760
  %v675 = vsub.f32 %v66, %v674
  %v676 = vand.u32 %v675, 4294901760
  %v677 = vsub.f32 %v675, %v676
  %v678 = vand.u32 %v677, 4294901760
  %679 = vmatpush2.msra.mxu0 %v678
  %v680 = vand.u32 %v15, 4294901760
  %681 = vmatprep.mubr.f32.mxu0 %v680
  %v682 = vand.u32 %v14, 4294901760
  %683 = vmatmul.mubr.f32.gmra.mxu0 %v682
  %v684 = vpop.f32.mrf.mxu0
  %v685 = vadd.f32 %v198, %v684
  %v686 = vpop.f32.mrf.mxu0
  %v687 = vand.u32 %v17, 4294901760
  %688 = vmatprep.mubr.f32.mxu0 %v687
  %v689 = vand.u32 %v16, 4294901760
  %690 = vmatmul.mubr.f32.gmra.mxu0 %v689
  %v691 = vpop.f32.mrf.mxu0
  %v692 = vadd.f32 %v213, %v691
  %v693 = vpop.f32.mrf.mxu0
  %v694 = vand.u32 %v19, 4294901760
  %695 = vmatprep.mubr.f32.mxu0 %v694
  %v696 = vand.u32 %v18, 4294901760
  %697 = vmatmul.mubr.f32.gmra.mxu0 %v696
  %v698 = vpop.f32.mrf.mxu0
  %v699 = vadd.f32 %v228, %v698
  %v700 = vpop.f32.mrf.mxu0
  %v701 = vand.u32 %v21, 4294901760
  %702 = vmatprep.mubr.f32.mxu0 %v701
  %v703 = vand.u32 %v20, 4294901760
  %704 = vmatmul.mubr.f32.gmra.mxu0 %v703
  %v705 = vpop.f32.mrf.mxu0
  %v706 = vadd.f32 %v243, %v705
  %v707 = vpop.f32.mrf.mxu0
  %v708 = vand.u32 %v23, 4294901760
  %709 = vmatprep.mubr.f32.mxu0 %v708
  %v710 = vand.u32 %v22, 4294901760
  %711 = vmatmul.mubr.f32.gmra.mxu0 %v710
  %v712 = vpop.f32.mrf.mxu0
  %v713 = vadd.f32 %v258, %v712
  %v714 = vpop.f32.mrf.mxu0
  %v715 = vand.u32 %v25, 4294901760
  %716 = vmatprep.mubr.f32.mxu0 %v715
  %v717 = vand.u32 %v24, 4294901760
  %718 = vmatmul.mubr.f32.gmra.mxu0 %v717
  %v719 = vpop.f32.mrf.mxu0
  %v720 = vadd.f32 %v273, %v719
  %v721 = vpop.f32.mrf.mxu0
  %v722 = vand.u32 %v27, 4294901760
  %723 = vmatprep.mubr.f32.mxu0 %v722
  %v724 = vand.u32 %v26, 4294901760
  %725 = vmatmul.mubr.f32.gmra.mxu0 %v724
  %v726 = vpop.f32.mrf.mxu0
  %v727 = vadd.f32 %v288, %v726
  %v728 = vpop.f32.mrf.mxu0
  %v729 = vand.u32 %v29, 4294901760
  %730 = vmatprep.mubr.f32.mxu0 %v729
  %v731 = vand.u32 %v28, 4294901760
  %732 = vmatmul.mubr.f32.gmra.mxu0 %v731
  %v733 = vpop.f32.mrf.mxu0
  %v734 = vadd.f32 %v303, %v733
  %v735 = vpop.f32.mrf.mxu0
  %v736 = vand.u32 %v31, 4294901760
  %737 = vmatprep.mubr.f32.mxu0 %v736
  %v738 = vand.u32 %v30, 4294901760
  %739 = vmatmul.mubr.f32.gmra.mxu0 %v738
  %v740 = vpop.f32.mrf.mxu0
  %v741 = vadd.f32 %v318, %v740
  %v742 = vpop.f32.mrf.mxu0
  %v743 = vand.u32 %v33, 4294901760
  %744 = vmatprep.mubr.f32.mxu0 %v743
  %v745 = vand.u32 %v32, 4294901760
  %746 = vmatmul.mubr.f32.gmra.mxu0 %v745
  %v747 = vpop.f32.mrf.mxu0
  %v748 = vadd.f32 %v333, %v747
  %v749 = vpop.f32.mrf.mxu0
  %v750 = vand.u32 %v35, 4294901760
  %751 = vmatprep.mubr.f32.mxu0 %v750
  %v752 = vand.u32 %v34, 4294901760
  %753 = vmatmul.mubr.f32.gmra.mxu0 %v752
  %v754 = vpop.f32.mrf.mxu0
  %v755 = vadd.f32 %v348, %v754
  %v756 = vpop.f32.mrf.mxu0
  %v757 = vand.u32 %v37, 4294901760
  %758 = vmatprep.mubr.f32.mxu0 %v757
  %v759 = vand.u32 %v36, 4294901760
  %760 = vmatmul.mubr.f32.gmra.mxu0 %v759
  %v761 = vpop.f32.mrf.mxu0
  %v762 = vadd.f32 %v363, %v761
  %v763 = vpop.f32.mrf.mxu0
  %v764 = vand.u32 %v39, 4294901760
  %765 = vmatprep.mubr.f32.mxu0 %v764
  %v766 = vand.u32 %v38, 4294901760
  %767 = vmatmul.mubr.f32.gmra.mxu0 %v766
  %v768 = vpop.f32.mrf.mxu0
  %v769 = vadd.f32 %v378, %v768
  %v770 = vpop.f32.mrf.mxu0
  %v771 = vand.u32 %v41, 4294901760
  %772 = vmatprep.mubr.f32.mxu0 %v771
  %v773 = vand.u32 %v40, 4294901760
  %774 = vmatmul.mubr.f32.gmra.mxu0 %v773
  %v775 = vpop.f32.mrf.mxu0
  %v776 = vadd.f32 %v393, %v775
  %v777 = vpop.f32.mrf.mxu0
  %v778 = vand.u32 %v43, 4294901760
  %779 = vmatprep.mubr.f32.mxu0 %v778
  %v780 = vand.u32 %v42, 4294901760
  %781 = vmatmul.mubr.f32.gmra.mxu0 %v780
  %v782 = vpop.f32.mrf.mxu0
  %v783 = vadd.f32 %v408, %v782
  %v784 = vpop.f32.mrf.mxu0
  %v785 = vand.u32 %v45, 4294901760
  %786 = vmatprep.mubr.f32.mxu0 %v785
  %v787 = vand.u32 %v44, 4294901760
  %788 = vmatmul.mubr.f32.gmra.mxu0 %v787
  %v789 = vpop.f32.mrf.mxu0
  %v790 = vadd.f32 %v423, %v789
  %v791 = vpop.f32.mrf.mxu0
  %v792 = vand.u32 %v47, 4294901760
  %793 = vmatprep.mubr.f32.mxu0 %v792
  %v794 = vand.u32 %v46, 4294901760
  %795 = vmatmul.mubr.f32.gmra.mxu0 %v794
  %v796 = vpop.f32.mrf.mxu0
  %v797 = vadd.f32 %v438, %v796
  %v798 = vpop.f32.mrf.mxu0
  %v799 = vand.u32 %v49, 4294901760
  %800 = vmatprep.mubr.f32.mxu0 %v799
  %v801 = vand.u32 %v48, 4294901760
  %802 = vmatmul.mubr.f32.gmra.mxu0 %v801
  %v803 = vpop.f32.mrf.mxu0
  %v804 = vadd.f32 %v453, %v803
  %v805 = vpop.f32.mrf.mxu0
  %806 = vdwg.mxu0
  %807 = vmatprep.subr.mxu0 0.0
  %v808 = vand.u32 %v65, 4294901760
  %v809 = vsub.f32 %v65, %v808
  %810 = vmatpush1.msra.mxu0 %v809
  %811 = vmatprep.subr.mxu0 0.0
  %v812 = vand.u32 %v64, 4294901760
  %v813 = vsub.f32 %v64, %v812
  %814 = vmatpush1.msra.mxu0 %v813
  %815 = vmatprep.subr.mxu0 0.0
  %v816 = vand.u32 %v63, 4294901760
  %v817 = vsub.f32 %v63, %v816
  %818 = vmatpush1.msra.mxu0 %v817
  %819 = vmatprep.subr.mxu0 0.0
  %v820 = vand.u32 %v62, 4294901760
  %v821 = vsub.f32 %v62, %v820
  %822 = vmatpush1.msra.mxu0 %v821
  %823 = vmatprep.subr.mxu0 0.0
  %v824 = vand.u32 %v61, 4294901760
  %v825 = vsub.f32 %v61, %v824
  %826 = vmatpush1.msra.mxu0 %v825
  %827 = vmatprep.subr.mxu0 0.0
  %v828 = vand.u32 %v60, 4294901760
  %v829 = vsub.f32 %v60, %v828
  %830 = vmatpush1.msra.mxu0 %v829
  %831 = vmatprep.subr.mxu0 0.0
  %v832 = vand.u32 %v59, 4294901760
  %v833 = vsub.f32 %v59, %v832
  %834 = vmatpush1.msra.mxu0 %v833
  %835 = vmatprep.subr.mxu0 0.0
  %v836 = vand.u32 %v58, 4294901760
  %v837 = vsub.f32 %v58, %v836
  %838 = vmatpush1.msra.mxu0 %v837
  %839 = vmatprep.subr.mxu0 0.0
  %v840 = vand.u32 %v57, 4294901760
  %v841 = vsub.f32 %v57, %v840
  %842 = vmatpush1.msra.mxu0 %v841
  %843 = vmatprep.subr.mxu0 0.0
  %v844 = vand.u32 %v56, 4294901760
  %v845 = vsub.f32 %v56, %v844
  %846 = vmatpush1.msra.mxu0 %v845
  %847 = vmatprep.subr.mxu0 0.0
  %v848 = vand.u32 %v55, 4294901760
  %v849 = vsub.f32 %v55, %v848
  %850 = vmatpush1.msra.mxu0 %v849
  %851 = vmatprep.subr.mxu0 0.0
  %v852 = vand.u32 %v54, 4294901760
  %v853 = vsub.f32 %v54, %v852
  %854 = vmatpush1.msra.mxu0 %v853
  %855 = vmatprep.subr.mxu0 0.0
  %v856 = vand.u32 %v53, 4294901760
  %v857 = vsub.f32 %v53, %v856
  %858 = vmatpush1.msra.mxu0 %v857
  %859 = vmatprep.subr.mxu0 0.0
  %v860 = vand.u32 %v52, 4294901760
  %v861 = vsub.f32 %v52, %v860
  %862 = vmatpush1.msra.mxu0 %v861
  %863 = vmatprep.subr.mxu0 0.0
  %v864 = vand.u32 %v51, 4294901760
  %v865 = vsub.f32 %v51, %v864
  %866 = vmatpush1.msra.mxu0 %v865
  %867 = vmatprep.subr.mxu0 0.0
  %v868 = vand.u32 %v50, 4294901760
  %v869 = vsub.f32 %v50, %v868
  %870 = vmatpush1.msra.mxu0 %v869
  %871 = vmatprep.subr.mxu0 0.0
  %v872 = vand.u32 %v81, 4294901760
  %v873 = vsub.f32 %v81, %v872
  %874 = vmatpush2.msra.mxu0 %v873
  %875 = vmatprep.subr.mxu0 0.0
  %v876 = vand.u32 %v80, 4294901760
  %v877 = vsub.f32 %v80, %v876
  %878 = vmatpush2.msra.mxu0 %v877
  %879 = vmatprep.subr.mxu0 0.0
  %v880 = vand.u32 %v79, 4294901760
  %v881 = vsub.f32 %v79, %v880
  %882 = vmatpush2.msra.mxu0 %v881
  %883 = vmatprep.subr.mxu0 0.0
  %v884 = vand.u32 %v78, 4294901760
  %v885 = vsub.f32 %v78, %v884
  %886 = vmatpush2.msra.mxu0 %v885
  %887 = vmatprep.subr.mxu0 0.0
  %v888 = vand.u32 %v77, 4294901760
  %v889 = vsub.f32 %v77, %v888
  %890 = vmatpush2.msra.mxu0 %v889
  %891 = vmatprep.subr.mxu0 0.0
  %v892 = vand.u32 %v76, 4294901760
  %v893 = vsub.f32 %v76, %v892
  %894 = vmatpush2.msra.mxu0 %v893
  %895 = vmatprep.subr.mxu0 0.0
  %v896 = vand.u32 %v75, 4294901760
  %v897 = vsub.f32 %v75, %v896
  %898 = vmatpush2.msra.mxu0 %v897
  %899 = vmatprep.subr.mxu0 0.0
  %v900 = vand.u32 %v74, 4294901760
  %v901 = vsub.f32 %v74, %v900
  %902 = vmatpush2.msra.mxu0 %v901
  %903 = vmatprep.subr.mxu0 0.0
  %v904 = vand.u32 %v73, 4294901760
  %v905 = vsub.f32 %v73, %v904
  %906 = vmatpush2.msra.mxu0 %v905
  %907 = vmatprep.subr.mxu0 0.0
  %v908 = vand.u32 %v72, 4294901760
  %v909 = vsub.f32 %v72, %v908
  %910 = vmatpush2.msra.mxu0 %v909
  %911 = vmatprep.subr.mxu0 0.0
  %v912 = vand.u32 %v71, 4294901760
  %v913 = vsub.f32 %v71, %v912
  %914 = vmatpush2.msra.mxu0 %v913
  %915 = vmatprep.subr.mxu0 0.0
  %v916 = vand.u32 %v70, 4294901760
  %v917 = vsub.f32 %v70, %v916
  %918 = vmatpush2.msra.mxu0 %v917
  %919 = vmatprep.subr.mxu0 0.0
  %v920 = vand.u32 %v69, 4294901760
  %v921 = vsub.f32 %v69, %v920
  %922 = vmatpush2.msra.mxu0 %v921
  %923 = vmatprep.subr.mxu0 0.0
  %v924 = vand.u32 %v68, 4294901760
  %v925 = vsub.f32 %v68, %v924
  %926 = vmatpush2.msra.mxu0 %v925
  %927 = vmatprep.subr.mxu0 0.0
  %v928 = vand.u32 %v67, 4294901760
  %v929 = vsub.f32 %v67, %v928
  %930 = vmatpush2.msra.mxu0 %v929
  %931 = vmatprep.subr.mxu0 0.0
  %v932 = vand.u32 %v66, 4294901760
  %v933 = vsub.f32 %v66, %v932
  %934 = vmatpush2.msra.mxu0 %v933
  %v935 = vand.u32 %v15, 4294901760
  %v936 = vsub.f32 %v15, %v935
  %937 = vmatprep.mubr.f32.mxu0 %v936
  %v938 = vand.u32 %v14, 4294901760
  %v939 = vsub.f32 %v14, %v938
  %940 = vmatmul.mubr.f32.gmra.mxu0 %v939
  %v941 = vpop.f32.mrf.mxu0
  %v942 = vadd.f32 %v685, %v941
  %v943 = vpop.f32.mrf.mxu0
  %v944 = vand.u32 %v17, 4294901760
  %v945 = vsub.f32 %v17, %v944
  %946 = vmatprep.mubr.f32.mxu0 %v945
  %v947 = vand.u32 %v16, 4294901760
  %v948 = vsub.f32 %v16, %v947
  %949 = vmatmul.mubr.f32.gmra.mxu0 %v948
  %v950 = vpop.f32.mrf.mxu0
  %v951 = vadd.f32 %v692, %v950
  %v952 = vpop.f32.mrf.mxu0
  %v953 = vand.u32 %v19, 4294901760
  %v954 = vsub.f32 %v19, %v953
  %955 = vmatprep.mubr.f32.mxu0 %v954
  %v956 = vand.u32 %v18, 4294901760
  %v957 = vsub.f32 %v18, %v956
  %958 = vmatmul.mubr.f32.gmra.mxu0 %v957
  %v959 = vpop.f32.mrf.mxu0
  %v960 = vadd.f32 %v699, %v959
  %v961 = vpop.f32.mrf.mxu0
  %v962 = vand.u32 %v21, 4294901760
  %v963 = vsub.f32 %v21, %v962
  %964 = vmatprep.mubr.f32.mxu0 %v963
  %v965 = vand.u32 %v20, 4294901760
  %v966 = vsub.f32 %v20, %v965
  %967 = vmatmul.mubr.f32.gmra.mxu0 %v966
  %v968 = vpop.f32.mrf.mxu0
  %v969 = vadd.f32 %v706, %v968
  %v970 = vpop.f32.mrf.mxu0
  %v971 = vand.u32 %v23, 4294901760
  %v972 = vsub.f32 %v23, %v971
  %973 = vmatprep.mubr.f32.mxu0 %v972
  %v974 = vand.u32 %v22, 4294901760
  %v975 = vsub.f32 %v22, %v974
  %976 = vmatmul.mubr.f32.gmra.mxu0 %v975
  %v977 = vpop.f32.mrf.mxu0
  %v978 = vadd.f32 %v713, %v977
  %v979 = vpop.f32.mrf.mxu0
  %v980 = vand.u32 %v25, 4294901760
  %v981 = vsub.f32 %v25, %v980
  %982 = vmatprep.mubr.f32.mxu0 %v981
  %v983 = vand.u32 %v24, 4294901760
  %v984 = vsub.f32 %v24, %v983
  %985 = vmatmul.mubr.f32.gmra.mxu0 %v984
  %v986 = vpop.f32.mrf.mxu0
  %v987 = vadd.f32 %v720, %v986
  %v988 = vpop.f32.mrf.mxu0
  %v989 = vand.u32 %v27, 4294901760
  %v990 = vsub.f32 %v27, %v989
  %991 = vmatprep.mubr.f32.mxu0 %v990
  %v992 = vand.u32 %v26, 4294901760
  %v993 = vsub.f32 %v26, %v992
  %994 = vmatmul.mubr.f32.gmra.mxu0 %v993
  %v995 = vpop.f32.mrf.mxu0
  %v996 = vadd.f32 %v727, %v995
  %v997 = vpop.f32.mrf.mxu0
  %v998 = vand.u32 %v29, 4294901760
  %v999 = vsub.f32 %v29, %v998
  %1000 = vmatprep.mubr.f32.mxu0 %v999
  %v1001 = vand.u32 %v28, 4294901760
  %v1002 = vsub.f32 %v28, %v1001
  %1003 = vmatmul.mubr.f32.gmra.mxu0 %v1002
  %v1004 = vpop.f32.mrf.mxu0
  %v1005 = vadd.f32 %v734, %v1004
  %v1006 = vpop.f32.mrf.mxu0
  %v1007 = vand.u32 %v31, 4294901760
  %v1008 = vsub.f32 %v31, %v1007
  %1009 = vmatprep.mubr.f32.mxu0 %v1008
  %v1010 = vand.u32 %v30, 4294901760
  %v1011 = vsub.f32 %v30, %v1010
  %1012 = vmatmul.mubr.f32.gmra.mxu0 %v1011
  %v1013 = vpop.f32.mrf.mxu0
  %v1014 = vadd.f32 %v741, %v1013
  %v1015 = vpop.f32.mrf.mxu0
  %v1016 = vand.u32 %v33, 4294901760
  %v1017 = vsub.f32 %v33, %v1016
  %1018 = vmatprep.mubr.f32.mxu0 %v1017
  %v1019 = vand.u32 %v32, 4294901760
  %v1020 = vsub.f32 %v32, %v1019
  %1021 = vmatmul.mubr.f32.gmra.mxu0 %v1020
  %v1022 = vpop.f32.mrf.mxu0
  %v1023 = vadd.f32 %v748, %v1022
  %v1024 = vpop.f32.mrf.mxu0
  %v1025 = vand.u32 %v35, 4294901760
  %v1026 = vsub.f32 %v35, %v1025
  %1027 = vmatprep.mubr.f32.mxu0 %v1026
  %v1028 = vand.u32 %v34, 4294901760
  %v1029 = vsub.f32 %v34, %v1028
  %1030 = vmatmul.mubr.f32.gmra.mxu0 %v1029
  %v1031 = vpop.f32.mrf.mxu0
  %v1032 = vadd.f32 %v755, %v1031
  %v1033 = vpop.f32.mrf.mxu0
  %v1034 = vand.u32 %v37, 4294901760
  %v1035 = vsub.f32 %v37, %v1034
  %1036 = vmatprep.mubr.f32.mxu0 %v1035
  %v1037 = vand.u32 %v36, 4294901760
  %v1038 = vsub.f32 %v36, %v1037
  %1039 = vmatmul.mubr.f32.gmra.mxu0 %v1038
  %v1040 = vpop.f32.mrf.mxu0
  %v1041 = vadd.f32 %v762, %v1040
  %v1042 = vpop.f32.mrf.mxu0
  %v1043 = vand.u32 %v39, 4294901760
  %v1044 = vsub.f32 %v39, %v1043
  %1045 = vmatprep.mubr.f32.mxu0 %v1044
  %v1046 = vand.u32 %v38, 4294901760
  %v1047 = vsub.f32 %v38, %v1046
  %1048 = vmatmul.mubr.f32.gmra.mxu0 %v1047
  %v1049 = vpop.f32.mrf.mxu0
  %v1050 = vadd.f32 %v769, %v1049
  %v1051 = vpop.f32.mrf.mxu0
  %v1052 = vand.u32 %v41, 4294901760
  %v1053 = vsub.f32 %v41, %v1052
  %1054 = vmatprep.mubr.f32.mxu0 %v1053
  %v1055 = vand.u32 %v40, 4294901760
  %v1056 = vsub.f32 %v40, %v1055
  %1057 = vmatmul.mubr.f32.gmra.mxu0 %v1056
  %v1058 = vpop.f32.mrf.mxu0
  %v1059 = vadd.f32 %v776, %v1058
  %v1060 = vpop.f32.mrf.mxu0
  %v1061 = vand.u32 %v43, 4294901760
  %v1062 = vsub.f32 %v43, %v1061
  %1063 = vmatprep.mubr.f32.mxu0 %v1062
  %v1064 = vand.u32 %v42, 4294901760
  %v1065 = vsub.f32 %v42, %v1064
  %1066 = vmatmul.mubr.f32.gmra.mxu0 %v1065
  %v1067 = vpop.f32.mrf.mxu0
  %v1068 = vadd.f32 %v783, %v1067
  %v1069 = vpop.f32.mrf.mxu0
  %v1070 = vand.u32 %v45, 4294901760
  %v1071 = vsub.f32 %v45, %v1070
  %1072 = vmatprep.mubr.f32.mxu0 %v1071
  %v1073 = vand.u32 %v44, 4294901760
  %v1074 = vsub.f32 %v44, %v1073
  %1075 = vmatmul.mubr.f32.gmra.mxu0 %v1074
  %v1076 = vpop.f32.mrf.mxu0
  %v1077 = vadd.f32 %v790, %v1076
  %v1078 = vpop.f32.mrf.mxu0
  %v1079 = vand.u32 %v47, 4294901760
  %v1080 = vsub.f32 %v47, %v1079
  %1081 = vmatprep.mubr.f32.mxu0 %v1080
  %v1082 = vand.u32 %v46, 4294901760
  %v1083 = vsub.f32 %v46, %v1082
  %1084 = vmatmul.mubr.f32.gmra.mxu0 %v1083
  %v1085 = vpop.f32.mrf.mxu0
  %v1086 = vadd.f32 %v797, %v1085
  %v1087 = vpop.f32.mrf.mxu0
  %v1088 = vand.u32 %v49, 4294901760
  %v1089 = vsub.f32 %v49, %v1088
  %1090 = vmatprep.mubr.f32.mxu0 %v1089
  %v1091 = vand.u32 %v48, 4294901760
  %v1092 = vsub.f32 %v48, %v1091
  %1093 = vmatmul.mubr.f32.gmra.mxu0 %v1092
  %v1094 = vpop.f32.mrf.mxu0
  %v1095 = vadd.f32 %v804, %v1094
  %v1096 = vpop.f32.mrf.mxu0
  %1097 = vdwg.mxu0
  %1098 = vmatprep.subr.mxu0 0.0
  %v1099 = vand.u32 %v65, 4294901760
  %1100 = vmatpush1.msra.mxu0 %v1099
  %1101 = vmatprep.subr.mxu0 0.0
  %v1102 = vand.u32 %v64, 4294901760
  %1103 = vmatpush1.msra.mxu0 %v1102
  %1104 = vmatprep.subr.mxu0 0.0
  %v1105 = vand.u32 %v63, 4294901760
  %1106 = vmatpush1.msra.mxu0 %v1105
  %1107 = vmatprep.subr.mxu0 0.0
  %v1108 = vand.u32 %v62, 4294901760
  %1109 = vmatpush1.msra.mxu0 %v1108
  %1110 = vmatprep.subr.mxu0 0.0
  %v1111 = vand.u32 %v61, 4294901760
  %1112 = vmatpush1.msra.mxu0 %v1111
  %1113 = vmatprep.subr.mxu0 0.0
  %v1114 = vand.u32 %v60, 4294901760
  %1115 = vmatpush1.msra.mxu0 %v1114
  %1116 = vmatprep.subr.mxu0 0.0
  %v1117 = vand.u32 %v59, 4294901760
  %1118 = vmatpush1.msra.mxu0 %v1117
  %1119 = vmatprep.subr.mxu0 0.0
  %v1120 = vand.u32 %v58, 4294901760
  %1121 = vmatpush1.msra.mxu0 %v1120
  %1122 = vmatprep.subr.mxu0 0.0
  %v1123 = vand.u32 %v57, 4294901760
  %1124 = vmatpush1.msra.mxu0 %v1123
  %1125 = vmatprep.subr.mxu0 0.0
  %v1126 = vand.u32 %v56, 4294901760
  %1127 = vmatpush1.msra.mxu0 %v1126
  %1128 = vmatprep.subr.mxu0 0.0
  %v1129 = vand.u32 %v55, 4294901760
  %1130 = vmatpush1.msra.mxu0 %v1129
  %1131 = vmatprep.subr.mxu0 0.0
  %v1132 = vand.u32 %v54, 4294901760
  %1133 = vmatpush1.msra.mxu0 %v1132
  %1134 = vmatprep.subr.mxu0 0.0
  %v1135 = vand.u32 %v53, 4294901760
  %1136 = vmatpush1.msra.mxu0 %v1135
  %1137 = vmatprep.subr.mxu0 0.0
  %v1138 = vand.u32 %v52, 4294901760
  %1139 = vmatpush1.msra.mxu0 %v1138
  %1140 = vmatprep.subr.mxu0 0.0
  %v1141 = vand.u32 %v51, 4294901760
  %1142 = vmatpush1.msra.mxu0 %v1141
  %1143 = vmatprep.subr.mxu0 0.0
  %v1144 = vand.u32 %v50, 4294901760
  %1145 = vmatpush1.msra.mxu0 %v1144
  %1146 = vmatprep.subr.mxu0 0.0
  %v1147 = vand.u32 %v81, 4294901760
  %1148 = vmatpush2.msra.mxu0 %v1147
  %1149 = vmatprep.subr.mxu0 0.0
  %v1150 = vand.u32 %v80, 4294901760
  %1151 = vmatpush2.msra.mxu0 %v1150
  %1152 = vmatprep.subr.mxu0 0.0
  %v1153 = vand.u32 %v79, 4294901760
  %1154 = vmatpush2.msra.mxu0 %v1153
  %1155 = vmatprep.subr.mxu0 0.0
  %v1156 = vand.u32 %v78, 4294901760
  %1157 = vmatpush2.msra.mxu0 %v1156
  %1158 = vmatprep.subr.mxu0 0.0
  %v1159 = vand.u32 %v77, 4294901760
  %1160 = vmatpush2.msra.mxu0 %v1159
  %1161 = vmatprep.subr.mxu0 0.0
  %v1162 = vand.u32 %v76, 4294901760
  %1163 = vmatpush2.msra.mxu0 %v1162
  %1164 = vmatprep.subr.mxu0 0.0
  %v1165 = vand.u32 %v75, 4294901760
  %1166 = vmatpush2.msra.mxu0 %v1165
  %1167 = vmatprep.subr.mxu0 0.0
  %v1168 = vand.u32 %v74, 4294901760
  %1169 = vmatpush2.msra.mxu0 %v1168
  %1170 = vmatprep.subr.mxu0 0.0
  %v1171 = vand.u32 %v73, 4294901760
  %1172 = vmatpush2.msra.mxu0 %v1171
  %1173 = vmatprep.subr.mxu0 0.0
  %v1174 = vand.u32 %v72, 4294901760
  %1175 = vmatpush2.msra.mxu0 %v1174
  %1176 = vmatprep.subr.mxu0 0.0
  %v1177 = vand.u32 %v71, 4294901760
  %1178 = vmatpush2.msra.mxu0 %v1177
  %1179 = vmatprep.subr.mxu0 0.0
  %v1180 = vand.u32 %v70, 4294901760
  %1181 = vmatpush2.msra.mxu0 %v1180
  %1182 = vmatprep.subr.mxu0 0.0
  %v1183 = vand.u32 %v69, 4294901760
  %1184 = vmatpush2.msra.mxu0 %v1183
  %1185 = vmatprep.subr.mxu0 0.0
  %v1186 = vand.u32 %v68, 4294901760
  %1187 = vmatpush2.msra.mxu0 %v1186
  %1188 = vmatprep.subr.mxu0 0.0
  %v1189 = vand.u32 %v67, 4294901760
  %1190 = vmatpush2.msra.mxu0 %v1189
  %1191 = vmatprep.subr.mxu0 0.0
  %v1192 = vand.u32 %v66, 4294901760
  %1193 = vmatpush2.msra.mxu0 %v1192
  %v1194 = vand.u32 %v15, 4294901760
  %v1195 = vsub.f32 %v15, %v1194
  %v1196 = vand.u32 %v1195, 4294901760
  %1197 = vmatprep.mubr.f32.mxu0 %v1196
  %v1198 = vand.u32 %v14, 4294901760
  %v1199 = vsub.f32 %v14, %v1198
  %v1200 = vand.u32 %v1199, 4294901760
  %1201 = vmatmul.mubr.f32.gmra.mxu0 %v1200
  %v1202 = vpop.f32.mrf.mxu0
  %v1203 = vadd.f32 %v942, %v1202
  %v1204 = vpop.f32.mrf.mxu0
  %v1205 = vand.u32 %v17, 4294901760
  %v1206 = vsub.f32 %v17, %v1205
  %v1207 = vand.u32 %v1206, 4294901760
  %1208 = vmatprep.mubr.f32.mxu0 %v1207
  %v1209 = vand.u32 %v16, 4294901760
  %v1210 = vsub.f32 %v16, %v1209
  %v1211 = vand.u32 %v1210, 4294901760
  %1212 = vmatmul.mubr.f32.gmra.mxu0 %v1211
  %v1213 = vpop.f32.mrf.mxu0
  %v1214 = vadd.f32 %v951, %v1213
  %v1215 = vpop.f32.mrf.mxu0
  %v1216 = vand.u32 %v19, 4294901760
  %v1217 = vsub.f32 %v19, %v1216
  %v1218 = vand.u32 %v1217, 4294901760
  %1219 = vmatprep.mubr.f32.mxu0 %v1218
  %v1220 = vand.u32 %v18, 4294901760
  %v1221 = vsub.f32 %v18, %v1220
  %v1222 = vand.u32 %v1221, 4294901760
  %1223 = vmatmul.mubr.f32.gmra.mxu0 %v1222
  %v1224 = vpop.f32.mrf.mxu0
  %v1225 = vadd.f32 %v960, %v1224
  %v1226 = vpop.f32.mrf.mxu0
  %v1227 = vand.u32 %v21, 4294901760
  %v1228 = vsub.f32 %v21, %v1227
  %v1229 = vand.u32 %v1228, 4294901760
  %1230 = vmatprep.mubr.f32.mxu0 %v1229
  %v1231 = vand.u32 %v20, 4294901760
  %v1232 = vsub.f32 %v20, %v1231
  %v1233 = vand.u32 %v1232, 4294901760
  %1234 = vmatmul.mubr.f32.gmra.mxu0 %v1233
  %v1235 = vpop.f32.mrf.mxu0
  %v1236 = vadd.f32 %v969, %v1235
  %v1237 = vpop.f32.mrf.mxu0
  %v1238 = vand.u32 %v23, 4294901760
  %v1239 = vsub.f32 %v23, %v1238
  %v1240 = vand.u32 %v1239, 4294901760
  %1241 = vmatprep.mubr.f32.mxu0 %v1240
  %v1242 = vand.u32 %v22, 4294901760
  %v1243 = vsub.f32 %v22, %v1242
  %v1244 = vand.u32 %v1243, 4294901760
  %1245 = vmatmul.mubr.f32.gmra.mxu0 %v1244
  %v1246 = vpop.f32.mrf.mxu0
  %v1247 = vadd.f32 %v978, %v1246
  %v1248 = vpop.f32.mrf.mxu0
  %v1249 = vand.u32 %v25, 4294901760
  %v1250 = vsub.f32 %v25, %v1249
  %v1251 = vand.u32 %v1250, 4294901760
  %1252 = vmatprep.mubr.f32.mxu0 %v1251
  %v1253 = vand.u32 %v24, 4294901760
  %v1254 = vsub.f32 %v24, %v1253
  %v1255 = vand.u32 %v1254, 4294901760
  %1256 = vmatmul.mubr.f32.gmra.mxu0 %v1255
  %v1257 = vpop.f32.mrf.mxu0
  %v1258 = vadd.f32 %v987, %v1257
  %v1259 = vpop.f32.mrf.mxu0
  %v1260 = vand.u32 %v27, 4294901760
  %v1261 = vsub.f32 %v27, %v1260
  %v1262 = vand.u32 %v1261, 4294901760
  %1263 = vmatprep.mubr.f32.mxu0 %v1262
  %v1264 = vand.u32 %v26, 4294901760
  %v1265 = vsub.f32 %v26, %v1264
  %v1266 = vand.u32 %v1265, 4294901760
  %1267 = vmatmul.mubr.f32.gmra.mxu0 %v1266
  %v1268 = vpop.f32.mrf.mxu0
  %v1269 = vadd.f32 %v996, %v1268
  %v1270 = vpop.f32.mrf.mxu0
  %v1271 = vand.u32 %v29, 4294901760
  %v1272 = vsub.f32 %v29, %v1271
  %v1273 = vand.u32 %v1272, 4294901760
  %1274 = vmatprep.mubr.f32.mxu0 %v1273
  %v1275 = vand.u32 %v28, 4294901760
  %v1276 = vsub.f32 %v28, %v1275
  %v1277 = vand.u32 %v1276, 4294901760
  %1278 = vmatmul.mubr.f32.gmra.mxu0 %v1277
  %v1279 = vpop.f32.mrf.mxu0
  %v1280 = vadd.f32 %v1005, %v1279
  %v1281 = vpop.f32.mrf.mxu0
  %v1282 = vand.u32 %v31, 4294901760
  %v1283 = vsub.f32 %v31, %v1282
  %v1284 = vand.u32 %v1283, 4294901760
  %1285 = vmatprep.mubr.f32.mxu0 %v1284
  %v1286 = vand.u32 %v30, 4294901760
  %v1287 = vsub.f32 %v30, %v1286
  %v1288 = vand.u32 %v1287, 4294901760
  %1289 = vmatmul.mubr.f32.gmra.mxu0 %v1288
  %v1290 = vpop.f32.mrf.mxu0
  %v1291 = vadd.f32 %v1014, %v1290
  %v1292 = vpop.f32.mrf.mxu0
  %v1293 = vand.u32 %v33, 4294901760
  %v1294 = vsub.f32 %v33, %v1293
  %v1295 = vand.u32 %v1294, 4294901760
  %1296 = vmatprep.mubr.f32.mxu0 %v1295
  %v1297 = vand.u32 %v32, 4294901760
  %v1298 = vsub.f32 %v32, %v1297
  %v1299 = vand.u32 %v1298, 4294901760
  %1300 = vmatmul.mubr.f32.gmra.mxu0 %v1299
  %v1301 = vpop.f32.mrf.mxu0
  %v1302 = vadd.f32 %v1023, %v1301
  %v1303 = vpop.f32.mrf.mxu0
  %v1304 = vand.u32 %v35, 4294901760
  %v1305 = vsub.f32 %v35, %v1304
  %v1306 = vand.u32 %v1305, 4294901760
  %1307 = vmatprep.mubr.f32.mxu0 %v1306
  %v1308 = vand.u32 %v34, 4294901760
  %v1309 = vsub.f32 %v34, %v1308
  %v1310 = vand.u32 %v1309, 4294901760
  %1311 = vmatmul.mubr.f32.gmra.mxu0 %v1310
  %v1312 = vpop.f32.mrf.mxu0
  %v1313 = vadd.f32 %v1032, %v1312
  %v1314 = vpop.f32.mrf.mxu0
  %v1315 = vand.u32 %v37, 4294901760
  %v1316 = vsub.f32 %v37, %v1315
  %v1317 = vand.u32 %v1316, 4294901760
  %1318 = vmatprep.mubr.f32.mxu0 %v1317
  %v1319 = vand.u32 %v36, 4294901760
  %v1320 = vsub.f32 %v36, %v1319
  %v1321 = vand.u32 %v1320, 4294901760
  %1322 = vmatmul.mubr.f32.gmra.mxu0 %v1321
  %v1323 = vpop.f32.mrf.mxu0
  %v1324 = vadd.f32 %v1041, %v1323
  %v1325 = vpop.f32.mrf.mxu0
  %v1326 = vand.u32 %v39, 4294901760
  %v1327 = vsub.f32 %v39, %v1326
  %v1328 = vand.u32 %v1327, 4294901760
  %1329 = vmatprep.mubr.f32.mxu0 %v1328
  %v1330 = vand.u32 %v38, 4294901760
  %v1331 = vsub.f32 %v38, %v1330
  %v1332 = vand.u32 %v1331, 4294901760
  %1333 = vmatmul.mubr.f32.gmra.mxu0 %v1332
  %v1334 = vpop.f32.mrf.mxu0
  %v1335 = vadd.f32 %v1050, %v1334
  %v1336 = vpop.f32.mrf.mxu0
  %v1337 = vand.u32 %v41, 4294901760
  %v1338 = vsub.f32 %v41, %v1337
  %v1339 = vand.u32 %v1338, 4294901760
  %1340 = vmatprep.mubr.f32.mxu0 %v1339
  %v1341 = vand.u32 %v40, 4294901760
  %v1342 = vsub.f32 %v40, %v1341
  %v1343 = vand.u32 %v1342, 4294901760
  %1344 = vmatmul.mubr.f32.gmra.mxu0 %v1343
  %v1345 = vpop.f32.mrf.mxu0
  %v1346 = vadd.f32 %v1059, %v1345
  %v1347 = vpop.f32.mrf.mxu0
  %v1348 = vand.u32 %v43, 4294901760
  %v1349 = vsub.f32 %v43, %v1348
  %v1350 = vand.u32 %v1349, 4294901760
  %1351 = vmatprep.mubr.f32.mxu0 %v1350
  %v1352 = vand.u32 %v42, 4294901760
  %v1353 = vsub.f32 %v42, %v1352
  %v1354 = vand.u32 %v1353, 4294901760
  %1355 = vmatmul.mubr.f32.gmra.mxu0 %v1354
  %v1356 = vpop.f32.mrf.mxu0
  %v1357 = vadd.f32 %v1068, %v1356
  %v1358 = vpop.f32.mrf.mxu0
  %v1359 = vand.u32 %v45, 4294901760
  %v1360 = vsub.f32 %v45, %v1359
  %v1361 = vand.u32 %v1360, 4294901760
  %1362 = vmatprep.mubr.f32.mxu0 %v1361
  %v1363 = vand.u32 %v44, 4294901760
  %v1364 = vsub.f32 %v44, %v1363
  %v1365 = vand.u32 %v1364, 4294901760
  %1366 = vmatmul.mubr.f32.gmra.mxu0 %v1365
  %v1367 = vpop.f32.mrf.mxu0
  %v1368 = vadd.f32 %v1077, %v1367
  %v1369 = vpop.f32.mrf.mxu0
  %v1370 = vand.u32 %v47, 4294901760
  %v1371 = vsub.f32 %v47, %v1370
  %v1372 = vand.u32 %v1371, 4294901760
  %1373 = vmatprep.mubr.f32.mxu0 %v1372
  %v1374 = vand.u32 %v46, 4294901760
  %v1375 = vsub.f32 %v46, %v1374
  %v1376 = vand.u32 %v1375, 4294901760
  %1377 = vmatmul.mubr.f32.gmra.mxu0 %v1376
  %v1378 = vpop.f32.mrf.mxu0
  %v1379 = vadd.f32 %v1086, %v1378
  %v1380 = vpop.f32.mrf.mxu0
  %v1381 = vand.u32 %v49, 4294901760
  %v1382 = vsub.f32 %v49, %v1381
  %v1383 = vand.u32 %v1382, 4294901760
  %1384 = vmatprep.mubr.f32.mxu0 %v1383
  %v1385 = vand.u32 %v48, 4294901760
  %v1386 = vsub.f32 %v48, %v1385
  %v1387 = vand.u32 %v1386, 4294901760
  %1388 = vmatmul.mubr.f32.gmra.mxu0 %v1387
  %v1389 = vpop.f32.mrf.mxu0
  %v1390 = vadd.f32 %v1095, %v1389
  %v1391 = vpop.f32.mrf.mxu0
  %1392 = vdwg.mxu0
  %1393 = vmatprep.subr.mxu0 0.0
  %v1394 = vand.u32 %v65, 4294901760
  %v1395 = vsub.f32 %v65, %v1394
  %v1396 = vand.u32 %v1395, 4294901760
  %1397 = vmatpush1.msra.mxu0 %v1396
  %1398 = vmatprep.subr.mxu0 0.0
  %v1399 = vand.u32 %v64, 4294901760
  %v1400 = vsub.f32 %v64, %v1399
  %v1401 = vand.u32 %v1400, 4294901760
  %1402 = vmatpush1.msra.mxu0 %v1401
  %1403 = vmatprep.subr.mxu0 0.0
  %v1404 = vand.u32 %v63, 4294901760
  %v1405 = vsub.f32 %v63, %v1404
  %v1406 = vand.u32 %v1405, 4294901760
  %1407 = vmatpush1.msra.mxu0 %v1406
  %1408 = vmatprep.subr.mxu0 0.0
  %v1409 = vand.u32 %v62, 4294901760
  %v1410 = vsub.f32 %v62, %v1409
  %v1411 = vand.u32 %v1410, 4294901760
  %1412 = vmatpush1.msra.mxu0 %v1411
  %1413 = vmatprep.subr.mxu0 0.0
  %v1414 = vand.u32 %v61, 4294901760
  %v1415 = vsub.f32 %v61, %v1414
  %v1416 = vand.u32 %v1415, 4294901760
  %1417 = vmatpush1.msra.mxu0 %v1416
  %1418 = vmatprep.subr.mxu0 0.0
  %v1419 = vand.u32 %v60, 4294901760
  %v1420 = vsub.f32 %v60, %v1419
  %v1421 = vand.u32 %v1420, 4294901760
  %1422 = vmatpush1.msra.mxu0 %v1421
  %1423 = vmatprep.subr.mxu0 0.0
  %v1424 = vand.u32 %v59, 4294901760
  %v1425 = vsub.f32 %v59, %v1424
  %v1426 = vand.u32 %v1425, 4294901760
  %1427 = vmatpush1.msra.mxu0 %v1426
  %1428 = vmatprep.subr.mxu0 0.0
  %v1429 = vand.u32 %v58, 4294901760
  %v1430 = vsub.f32 %v58, %v1429
  %v1431 = vand.u32 %v1430, 4294901760
  %1432 = vmatpush1.msra.mxu0 %v1431
  %1433 = vmatprep.subr.mxu0 0.0
  %v1434 = vand.u32 %v57, 4294901760
  %v1435 = vsub.f32 %v57, %v1434
  %v1436 = vand.u32 %v1435, 4294901760
  %1437 = vmatpush1.msra.mxu0 %v1436
  %1438 = vmatprep.subr.mxu0 0.0
  %v1439 = vand.u32 %v56, 4294901760
  %v1440 = vsub.f32 %v56, %v1439
  %v1441 = vand.u32 %v1440, 4294901760
  %1442 = vmatpush1.msra.mxu0 %v1441
  %1443 = vmatprep.subr.mxu0 0.0
  %v1444 = vand.u32 %v55, 4294901760
  %v1445 = vsub.f32 %v55, %v1444
  %v1446 = vand.u32 %v1445, 4294901760
  %1447 = vmatpush1.msra.mxu0 %v1446
  %1448 = vmatprep.subr.mxu0 0.0
  %v1449 = vand.u32 %v54, 4294901760
  %v1450 = vsub.f32 %v54, %v1449
  %v1451 = vand.u32 %v1450, 4294901760
  %1452 = vmatpush1.msra.mxu0 %v1451
  %1453 = vmatprep.subr.mxu0 0.0
  %v1454 = vand.u32 %v53, 4294901760
  %v1455 = vsub.f32 %v53, %v1454
  %v1456 = vand.u32 %v1455, 4294901760
  %1457 = vmatpush1.msra.mxu0 %v1456
  %1458 = vmatprep.subr.mxu0 0.0
  %v1459 = vand.u32 %v52, 4294901760
  %v1460 = vsub.f32 %v52, %v1459
  %v1461 = vand.u32 %v1460, 4294901760
  %1462 = vmatpush1.msra.mxu0 %v1461
  %1463 = vmatprep.subr.mxu0 0.0
  %v1464 = vand.u32 %v51, 4294901760
  %v1465 = vsub.f32 %v51, %v1464
  %v1466 = vand.u32 %v1465, 4294901760
  %1467 = vmatpush1.msra.mxu0 %v1466
  %1468 = vmatprep.subr.mxu0 0.0
  %v1469 = vand.u32 %v50, 4294901760
  %v1470 = vsub.f32 %v50, %v1469
  %v1471 = vand.u32 %v1470, 4294901760
  %1472 = vmatpush1.msra.mxu0 %v1471
  %1473 = vmatprep.subr.mxu0 0.0
  %v1474 = vand.u32 %v81, 4294901760
  %v1475 = vsub.f32 %v81, %v1474
  %v1476 = vand.u32 %v1475, 4294901760
  %1477 = vmatpush2.msra.mxu0 %v1476
  %1478 = vmatprep.subr.mxu0 0.0
  %v1479 = vand.u32 %v80, 4294901760
  %v1480 = vsub.f32 %v80, %v1479
  %v1481 = vand.u32 %v1480, 4294901760
  %1482 = vmatpush2.msra.mxu0 %v1481
  %1483 = vmatprep.subr.mxu0 0.0
  %v1484 = vand.u32 %v79, 4294901760
  %v1485 = vsub.f32 %v79, %v1484
  %v1486 = vand.u32 %v1485, 4294901760
  %1487 = vmatpush2.msra.mxu0 %v1486
  %1488 = vmatprep.subr.mxu0 0.0
  %v1489 = vand.u32 %v78, 4294901760
  %v1490 = vsub.f32 %v78, %v1489
  %v1491 = vand.u32 %v1490, 4294901760
  %1492 = vmatpush2.msra.mxu0 %v1491
  %1493 = vmatprep.subr.mxu0 0.0
  %v1494 = vand.u32 %v77, 4294901760
  %v1495 = vsub.f32 %v77, %v1494
  %v1496 = vand.u32 %v1495, 4294901760
  %1497 = vmatpush2.msra.mxu0 %v1496
  %1498 = vmatprep.subr.mxu0 0.0
  %v1499 = vand.u32 %v76, 4294901760
  %v1500 = vsub.f32 %v76, %v1499
  %v1501 = vand.u32 %v1500, 4294901760
  %1502 = vmatpush2.msra.mxu0 %v1501
  %1503 = vmatprep.subr.mxu0 0.0
  %v1504 = vand.u32 %v75, 4294901760
  %v1505 = vsub.f32 %v75, %v1504
  %v1506 = vand.u32 %v1505, 4294901760
  %1507 = vmatpush2.msra.mxu0 %v1506
  %1508 = vmatprep.subr.mxu0 0.0
  %v1509 = vand.u32 %v74, 4294901760
  %v1510 = vsub.f32 %v74, %v1509
  %v1511 = vand.u32 %v1510, 4294901760
  %1512 = vmatpush2.msra.mxu0 %v1511
  %1513 = vmatprep.subr.mxu0 0.0
  %v1514 = vand.u32 %v73, 4294901760
  %v1515 = vsub.f32 %v73, %v1514
  %v1516 = vand.u32 %v1515, 4294901760
  %1517 = vmatpush2.msra.mxu0 %v1516
  %1518 = vmatprep.subr.mxu0 0.0
  %v1519 = vand.u32 %v72, 4294901760
  %v1520 = vsub.f32 %v72, %v1519
  %v1521 = vand.u32 %v1520, 4294901760
  %1522 = vmatpush2.msra.mxu0 %v1521
  %1523 = vmatprep.subr.mxu0 0.0
  %v1524 = vand.u32 %v71, 4294901760
  %v1525 = vsub.f32 %v71, %v1524
  %v1526 = vand.u32 %v1525, 4294901760
  %1527 = vmatpush2.msra.mxu0 %v1526
  %1528 = vmatprep.subr.mxu0 0.0
  %v1529 = vand.u32 %v70, 4294901760
  %v1530 = vsub.f32 %v70, %v1529
  %v1531 = vand.u32 %v1530, 4294901760
  %1532 = vmatpush2.msra.mxu0 %v1531
  %1533 = vmatprep.subr.mxu0 0.0
  %v1534 = vand.u32 %v69, 4294901760
  %v1535 = vsub.f32 %v69, %v1534
  %v1536 = vand.u32 %v1535, 4294901760
  %1537 = vmatpush2.msra.mxu0 %v1536
  %1538 = vmatprep.subr.mxu0 0.0
  %v1539 = vand.u32 %v68, 4294901760
  %v1540 = vsub.f32 %v68, %v1539
  %v1541 = vand.u32 %v1540, 4294901760
  %1542 = vmatpush2.msra.mxu0 %v1541
  %1543 = vmatprep.subr.mxu0 0.0
  %v1544 = vand.u32 %v67, 4294901760
  %v1545 = vsub.f32 %v67, %v1544
  %v1546 = vand.u32 %v1545, 4294901760
  %1547 = vmatpush2.msra.mxu0 %v1546
  %1548 = vmatprep.subr.mxu0 0.0
  %v1549 = vand.u32 %v66, 4294901760
  %v1550 = vsub.f32 %v66, %v1549
  %v1551 = vand.u32 %v1550, 4294901760
  %1552 = vmatpush2.msra.mxu0 %v1551
  %v1553 = vand.u32 %v15, 4294901760
  %1554 = vmatprep.mubr.f32.mxu0 %v1553
  %v1555 = vand.u32 %v14, 4294901760
  %1556 = vmatmul.mubr.f32.gmra.mxu0 %v1555
  %v1557 = vpop.f32.mrf.mxu0
  %v1558 = vadd.f32 %v1203, %v1557
  %v1559 = vpop.f32.mrf.mxu0
  %v1560 = vand.u32 %v17, 4294901760
  %1561 = vmatprep.mubr.f32.mxu0 %v1560
  %v1562 = vand.u32 %v16, 4294901760
  %1563 = vmatmul.mubr.f32.gmra.mxu0 %v1562
  %v1564 = vpop.f32.mrf.mxu0
  %v1565 = vadd.f32 %v1214, %v1564
  %v1566 = vpop.f32.mrf.mxu0
  %v1567 = vand.u32 %v19, 4294901760
  %1568 = vmatprep.mubr.f32.mxu0 %v1567
  %v1569 = vand.u32 %v18, 4294901760
  %1570 = vmatmul.mubr.f32.gmra.mxu0 %v1569
  %v1571 = vpop.f32.mrf.mxu0
  %v1572 = vadd.f32 %v1225, %v1571
  %v1573 = vpop.f32.mrf.mxu0
  %v1574 = vand.u32 %v21, 4294901760
  %1575 = vmatprep.mubr.f32.mxu0 %v1574
  %v1576 = vand.u32 %v20, 4294901760
  %1577 = vmatmul.mubr.f32.gmra.mxu0 %v1576
  %v1578 = vpop.f32.mrf.mxu0
  %v1579 = vadd.f32 %v1236, %v1578
  %v1580 = vpop.f32.mrf.mxu0
  %v1581 = vand.u32 %v23, 4294901760
  %1582 = vmatprep.mubr.f32.mxu0 %v1581
  %v1583 = vand.u32 %v22, 4294901760
  %1584 = vmatmul.mubr.f32.gmra.mxu0 %v1583
  %v1585 = vpop.f32.mrf.mxu0
  %v1586 = vadd.f32 %v1247, %v1585
  %v1587 = vpop.f32.mrf.mxu0
  %v1588 = vand.u32 %v25, 4294901760
  %1589 = vmatprep.mubr.f32.mxu0 %v1588
  %v1590 = vand.u32 %v24, 4294901760
  %1591 = vmatmul.mubr.f32.gmra.mxu0 %v1590
  %v1592 = vpop.f32.mrf.mxu0
  %v1593 = vadd.f32 %v1258, %v1592
  %v1594 = vpop.f32.mrf.mxu0
  %v1595 = vand.u32 %v27, 4294901760
  %1596 = vmatprep.mubr.f32.mxu0 %v1595
  %v1597 = vand.u32 %v26, 4294901760
  %1598 = vmatmul.mubr.f32.gmra.mxu0 %v1597
  %v1599 = vpop.f32.mrf.mxu0
  %v1600 = vadd.f32 %v1269, %v1599
  %v1601 = vpop.f32.mrf.mxu0
  %v1602 = vand.u32 %v29, 4294901760
  %1603 = vmatprep.mubr.f32.mxu0 %v1602
  %v1604 = vand.u32 %v28, 4294901760
  %1605 = vmatmul.mubr.f32.gmra.mxu0 %v1604
  %v1606 = vpop.f32.mrf.mxu0
  %v1607 = vadd.f32 %v1280, %v1606
  %v1608 = vpop.f32.mrf.mxu0
  %v1609 = vand.u32 %v31, 4294901760
  %1610 = vmatprep.mubr.f32.mxu0 %v1609
  %v1611 = vand.u32 %v30, 4294901760
  %1612 = vmatmul.mubr.f32.gmra.mxu0 %v1611
  %v1613 = vpop.f32.mrf.mxu0
  %v1614 = vadd.f32 %v1291, %v1613
  %v1615 = vpop.f32.mrf.mxu0
  %v1616 = vand.u32 %v33, 4294901760
  %1617 = vmatprep.mubr.f32.mxu0 %v1616
  %v1618 = vand.u32 %v32, 4294901760
  %1619 = vmatmul.mubr.f32.gmra.mxu0 %v1618
  %v1620 = vpop.f32.mrf.mxu0
  %v1621 = vadd.f32 %v1302, %v1620
  %v1622 = vpop.f32.mrf.mxu0
  %v1623 = vand.u32 %v35, 4294901760
  %1624 = vmatprep.mubr.f32.mxu0 %v1623
  %v1625 = vand.u32 %v34, 4294901760
  %1626 = vmatmul.mubr.f32.gmra.mxu0 %v1625
  %v1627 = vpop.f32.mrf.mxu0
  %v1628 = vadd.f32 %v1313, %v1627
  %v1629 = vpop.f32.mrf.mxu0
  %v1630 = vand.u32 %v37, 4294901760
  %1631 = vmatprep.mubr.f32.mxu0 %v1630
  %v1632 = vand.u32 %v36, 4294901760
  %1633 = vmatmul.mubr.f32.gmra.mxu0 %v1632
  %v1634 = vpop.f32.mrf.mxu0
  %v1635 = vadd.f32 %v1324, %v1634
  %v1636 = vpop.f32.mrf.mxu0
  %v1637 = vand.u32 %v39, 4294901760
  %1638 = vmatprep.mubr.f32.mxu0 %v1637
  %v1639 = vand.u32 %v38, 4294901760
  %1640 = vmatmul.mubr.f32.gmra.mxu0 %v1639
  %v1641 = vpop.f32.mrf.mxu0
  %v1642 = vadd.f32 %v1335, %v1641
  %v1643 = vpop.f32.mrf.mxu0
  %v1644 = vand.u32 %v41, 4294901760
  %1645 = vmatprep.mubr.f32.mxu0 %v1644
  %v1646 = vand.u32 %v40, 4294901760
  %1647 = vmatmul.mubr.f32.gmra.mxu0 %v1646
  %v1648 = vpop.f32.mrf.mxu0
  %v1649 = vadd.f32 %v1346, %v1648
  %v1650 = vpop.f32.mrf.mxu0
  %v1651 = vand.u32 %v43, 4294901760
  %1652 = vmatprep.mubr.f32.mxu0 %v1651
  %v1653 = vand.u32 %v42, 4294901760
  %1654 = vmatmul.mubr.f32.gmra.mxu0 %v1653
  %v1655 = vpop.f32.mrf.mxu0
  %v1656 = vadd.f32 %v1357, %v1655
  %v1657 = vpop.f32.mrf.mxu0
  %v1658 = vand.u32 %v45, 4294901760
  %1659 = vmatprep.mubr.f32.mxu0 %v1658
  %v1660 = vand.u32 %v44, 4294901760
  %1661 = vmatmul.mubr.f32.gmra.mxu0 %v1660
  %v1662 = vpop.f32.mrf.mxu0
  %v1663 = vadd.f32 %v1368, %v1662
  %v1664 = vpop.f32.mrf.mxu0
  %v1665 = vand.u32 %v47, 4294901760
  %1666 = vmatprep.mubr.f32.mxu0 %v1665
  %v1667 = vand.u32 %v46, 4294901760
  %1668 = vmatmul.mubr.f32.gmra.mxu0 %v1667
  %v1669 = vpop.f32.mrf.mxu0
  %v1670 = vadd.f32 %v1379, %v1669
  %v1671 = vpop.f32.mrf.mxu0
  %v1672 = vand.u32 %v49, 4294901760
  %1673 = vmatprep.mubr.f32.mxu0 %v1672
  %v1674 = vand.u32 %v48, 4294901760
  %1675 = vmatmul.mubr.f32.gmra.mxu0 %v1674
  %v1676 = vpop.f32.mrf.mxu0
  %v1677 = vadd.f32 %v1390, %v1676
  %v1678 = vpop.f32.mrf.mxu0
  %1679 = vdwg.mxu0
  %1680 = vmatprep.subr.mxu0 0.0
  %v1681 = vand.u32 %v65, 4294901760
  %1682 = vmatpush1.msra.mxu0 %v1681
  %1683 = vmatprep.subr.mxu0 0.0
  %v1684 = vand.u32 %v64, 4294901760
  %1685 = vmatpush1.msra.mxu0 %v1684
  %1686 = vmatprep.subr.mxu0 0.0
  %v1687 = vand.u32 %v63, 4294901760
  %1688 = vmatpush1.msra.mxu0 %v1687
  %1689 = vmatprep.subr.mxu0 0.0
  %v1690 = vand.u32 %v62, 4294901760
  %1691 = vmatpush1.msra.mxu0 %v1690
  %1692 = vmatprep.subr.mxu0 0.0
  %v1693 = vand.u32 %v61, 4294901760
  %1694 = vmatpush1.msra.mxu0 %v1693
  %1695 = vmatprep.subr.mxu0 0.0
  %v1696 = vand.u32 %v60, 4294901760
  %1697 = vmatpush1.msra.mxu0 %v1696
  %1698 = vmatprep.subr.mxu0 0.0
  %v1699 = vand.u32 %v59, 4294901760
  %1700 = vmatpush1.msra.mxu0 %v1699
  %1701 = vmatprep.subr.mxu0 0.0
  %v1702 = vand.u32 %v58, 4294901760
  %1703 = vmatpush1.msra.mxu0 %v1702
  %1704 = vmatprep.subr.mxu0 0.0
  %v1705 = vand.u32 %v57, 4294901760
  %1706 = vmatpush1.msra.mxu0 %v1705
  %1707 = vmatprep.subr.mxu0 0.0
  %v1708 = vand.u32 %v56, 4294901760
  %1709 = vmatpush1.msra.mxu0 %v1708
  %1710 = vmatprep.subr.mxu0 0.0
  %v1711 = vand.u32 %v55, 4294901760
  %1712 = vmatpush1.msra.mxu0 %v1711
  %1713 = vmatprep.subr.mxu0 0.0
  %v1714 = vand.u32 %v54, 4294901760
  %1715 = vmatpush1.msra.mxu0 %v1714
  %1716 = vmatprep.subr.mxu0 0.0
  %v1717 = vand.u32 %v53, 4294901760
  %1718 = vmatpush1.msra.mxu0 %v1717
  %1719 = vmatprep.subr.mxu0 0.0
  %v1720 = vand.u32 %v52, 4294901760
  %1721 = vmatpush1.msra.mxu0 %v1720
  %1722 = vmatprep.subr.mxu0 0.0
  %v1723 = vand.u32 %v51, 4294901760
  %1724 = vmatpush1.msra.mxu0 %v1723
  %1725 = vmatprep.subr.mxu0 0.0
  %v1726 = vand.u32 %v50, 4294901760
  %1727 = vmatpush1.msra.mxu0 %v1726
  %1728 = vmatprep.subr.mxu0 0.0
  %v1729 = vand.u32 %v81, 4294901760
  %1730 = vmatpush2.msra.mxu0 %v1729
  %1731 = vmatprep.subr.mxu0 0.0
  %v1732 = vand.u32 %v80, 4294901760
  %1733 = vmatpush2.msra.mxu0 %v1732
  %1734 = vmatprep.subr.mxu0 0.0
  %v1735 = vand.u32 %v79, 4294901760
  %1736 = vmatpush2.msra.mxu0 %v1735
  %1737 = vmatprep.subr.mxu0 0.0
  %v1738 = vand.u32 %v78, 4294901760
  %1739 = vmatpush2.msra.mxu0 %v1738
  %1740 = vmatprep.subr.mxu0 0.0
  %v1741 = vand.u32 %v77, 4294901760
  %1742 = vmatpush2.msra.mxu0 %v1741
  %1743 = vmatprep.subr.mxu0 0.0
  %v1744 = vand.u32 %v76, 4294901760
  %1745 = vmatpush2.msra.mxu0 %v1744
  %1746 = vmatprep.subr.mxu0 0.0
  %v1747 = vand.u32 %v75, 4294901760
  %1748 = vmatpush2.msra.mxu0 %v1747
  %1749 = vmatprep.subr.mxu0 0.0
  %v1750 = vand.u32 %v74, 4294901760
  %1751 = vmatpush2.msra.mxu0 %v1750
  %1752 = vmatprep.subr.mxu0 0.0
  %v1753 = vand.u32 %v73, 4294901760
  %1754 = vmatpush2.msra.mxu0 %v1753
  %1755 = vmatprep.subr.mxu0 0.0
  %v1756 = vand.u32 %v72, 4294901760
  %1757 = vmatpush2.msra.mxu0 %v1756
  %1758 = vmatprep.subr.mxu0 0.0
  %v1759 = vand.u32 %v71, 4294901760
  %1760 = vmatpush2.msra.mxu0 %v1759
  %1761 = vmatprep.subr.mxu0 0.0
  %v1762 = vand.u32 %v70, 4294901760
  %1763 = vmatpush2.msra.mxu0 %v1762
  %1764 = vmatprep.subr.mxu0 0.0
  %v1765 = vand.u32 %v69, 4294901760
  %1766 = vmatpush2.msra.mxu0 %v1765
  %1767 = vmatprep.subr.mxu0 0.0
  %v1768 = vand.u32 %v68, 4294901760
  %1769 = vmatpush2.msra.mxu0 %v1768
  %1770 = vmatprep.subr.mxu0 0.0
  %v1771 = vand.u32 %v67, 4294901760
  %1772 = vmatpush2.msra.mxu0 %v1771
  %1773 = vmatprep.subr.mxu0 0.0
  %v1774 = vand.u32 %v66, 4294901760
  %1775 = vmatpush2.msra.mxu0 %v1774
  %v1776 = vand.u32 %v15, 4294901760
  %1777 = vmatprep.mubr.f32.mxu0 %v1776
  %v1778 = vand.u32 %v14, 4294901760
  %1779 = vmatmul.mubr.f32.gmra.mxu0 %v1778
  %v1780 = vpop.f32.mrf.mxu0
  %v1781 = vadd.f32 %v1558, %v1780
  %v1782 = vpop.f32.mrf.mxu0
  %v1783 = vand.u32 %v17, 4294901760
  %1784 = vmatprep.mubr.f32.mxu0 %v1783
  %v1785 = vand.u32 %v16, 4294901760
  %1786 = vmatmul.mubr.f32.gmra.mxu0 %v1785
  %v1787 = vpop.f32.mrf.mxu0
  %v1788 = vadd.f32 %v1565, %v1787
  %v1789 = vpop.f32.mrf.mxu0
  %v1790 = vand.u32 %v19, 4294901760
  %1791 = vmatprep.mubr.f32.mxu0 %v1790
  %v1792 = vand.u32 %v18, 4294901760
  %1793 = vmatmul.mubr.f32.gmra.mxu0 %v1792
  %v1794 = vpop.f32.mrf.mxu0
  %v1795 = vadd.f32 %v1572, %v1794
  %v1796 = vpop.f32.mrf.mxu0
  %v1797 = vand.u32 %v21, 4294901760
  %1798 = vmatprep.mubr.f32.mxu0 %v1797
  %v1799 = vand.u32 %v20, 4294901760
  %1800 = vmatmul.mubr.f32.gmra.mxu0 %v1799
  %v1801 = vpop.f32.mrf.mxu0
  %v1802 = vadd.f32 %v1579, %v1801
  %v1803 = vpop.f32.mrf.mxu0
  %v1804 = vand.u32 %v23, 4294901760
  %1805 = vmatprep.mubr.f32.mxu0 %v1804
  %v1806 = vand.u32 %v22, 4294901760
  %1807 = vmatmul.mubr.f32.gmra.mxu0 %v1806
  %v1808 = vpop.f32.mrf.mxu0
  %v1809 = vadd.f32 %v1586, %v1808
  %v1810 = vpop.f32.mrf.mxu0
  %v1811 = vand.u32 %v25, 4294901760
  %1812 = vmatprep.mubr.f32.mxu0 %v1811
  %v1813 = vand.u32 %v24, 4294901760
  %1814 = vmatmul.mubr.f32.gmra.mxu0 %v1813
  %v1815 = vpop.f32.mrf.mxu0
  %v1816 = vadd.f32 %v1593, %v1815
  %v1817 = vpop.f32.mrf.mxu0
  %v1818 = vand.u32 %v27, 4294901760
  %1819 = vmatprep.mubr.f32.mxu0 %v1818
  %v1820 = vand.u32 %v26, 4294901760
  %1821 = vmatmul.mubr.f32.gmra.mxu0 %v1820
  %v1822 = vpop.f32.mrf.mxu0
  %v1823 = vadd.f32 %v1600, %v1822
  %v1824 = vpop.f32.mrf.mxu0
  %v1825 = vand.u32 %v29, 4294901760
  %1826 = vmatprep.mubr.f32.mxu0 %v1825
  %v1827 = vand.u32 %v28, 4294901760
  %1828 = vmatmul.mubr.f32.gmra.mxu0 %v1827
  %v1829 = vpop.f32.mrf.mxu0
  %v1830 = vadd.f32 %v1607, %v1829
  %v1831 = vpop.f32.mrf.mxu0
  %v1832 = vand.u32 %v31, 4294901760
  %1833 = vmatprep.mubr.f32.mxu0 %v1832
  %v1834 = vand.u32 %v30, 4294901760
  %1835 = vmatmul.mubr.f32.gmra.mxu0 %v1834
  %v1836 = vpop.f32.mrf.mxu0
  %v1837 = vadd.f32 %v1614, %v1836
  %v1838 = vpop.f32.mrf.mxu0
  %v1839 = vand.u32 %v33, 4294901760
  %1840 = vmatprep.mubr.f32.mxu0 %v1839
  %v1841 = vand.u32 %v32, 4294901760
  %1842 = vmatmul.mubr.f32.gmra.mxu0 %v1841
  %v1843 = vpop.f32.mrf.mxu0
  %v1844 = vadd.f32 %v1621, %v1843
  %v1845 = vpop.f32.mrf.mxu0
  %v1846 = vand.u32 %v35, 4294901760
  %1847 = vmatprep.mubr.f32.mxu0 %v1846
  %v1848 = vand.u32 %v34, 4294901760
  %1849 = vmatmul.mubr.f32.gmra.mxu0 %v1848
  %v1850 = vpop.f32.mrf.mxu0
  %v1851 = vadd.f32 %v1628, %v1850
  %v1852 = vpop.f32.mrf.mxu0
  %v1853 = vand.u32 %v37, 4294901760
  %1854 = vmatprep.mubr.f32.mxu0 %v1853
  %v1855 = vand.u32 %v36, 4294901760
  %1856 = vmatmul.mubr.f32.gmra.mxu0 %v1855
  %v1857 = vpop.f32.mrf.mxu0
  %v1858 = vadd.f32 %v1635, %v1857
  %v1859 = vpop.f32.mrf.mxu0
  %v1860 = vand.u32 %v39, 4294901760
  %1861 = vmatprep.mubr.f32.mxu0 %v1860
  %v1862 = vand.u32 %v38, 4294901760
  %1863 = vmatmul.mubr.f32.gmra.mxu0 %v1862
  %v1864 = vpop.f32.mrf.mxu0
  %v1865 = vadd.f32 %v1642, %v1864
  %v1866 = vpop.f32.mrf.mxu0
  %v1867 = vand.u32 %v41, 4294901760
  %1868 = vmatprep.mubr.f32.mxu0 %v1867
  %v1869 = vand.u32 %v40, 4294901760
  %1870 = vmatmul.mubr.f32.gmra.mxu0 %v1869
  %v1871 = vpop.f32.mrf.mxu0
  %v1872 = vadd.f32 %v1649, %v1871
  %v1873 = vpop.f32.mrf.mxu0
  %v1874 = vand.u32 %v43, 4294901760
  %1875 = vmatprep.mubr.f32.mxu0 %v1874
  %v1876 = vand.u32 %v42, 4294901760
  %1877 = vmatmul.mubr.f32.gmra.mxu0 %v1876
  %v1878 = vpop.f32.mrf.mxu0
  %v1879 = vadd.f32 %v1656, %v1878
  %v1880 = vpop.f32.mrf.mxu0
  %v1881 = vand.u32 %v45, 4294901760
  %1882 = vmatprep.mubr.f32.mxu0 %v1881
  %v1883 = vand.u32 %v44, 4294901760
  %1884 = vmatmul.mubr.f32.gmra.mxu0 %v1883
  %v1885 = vpop.f32.mrf.mxu0
  %v1886 = vadd.f32 %v1663, %v1885
  %v1887 = vpop.f32.mrf.mxu0
  %v1888 = vand.u32 %v47, 4294901760
  %1889 = vmatprep.mubr.f32.mxu0 %v1888
  %v1890 = vand.u32 %v46, 4294901760
  %1891 = vmatmul.mubr.f32.gmra.mxu0 %v1890
  %v1892 = vpop.f32.mrf.mxu0
  %v1893 = vadd.f32 %v1670, %v1892
  %v1894 = vpop.f32.mrf.mxu0
  %v1895 = vand.u32 %v49, 4294901760
  %1896 = vmatprep.mubr.f32.mxu0 %v1895
  %v1897 = vand.u32 %v48, 4294901760
  %1898 = vmatmul.mubr.f32.gmra.mxu0 %v1897
  %v1899 = vpop.f32.mrf.mxu0
  %v1900 = vadd.f32 %v1677, %v1899
  %v1901 = vpop.f32.mrf.mxu0
  %1902 = vdwg.mxu0
  %v1903 = vmax.f32 %v1781, 0.0
  %v1904 = vmax.f32 %v1788, 0.0
  %v1905 = vmax.f32 %v1795, 0.0
  %v1906 = vmax.f32 %v1802, 0.0
  %v1907 = vmax.f32 %v1809, 0.0
  %v1908 = vmax.f32 %v1816, 0.0
  %v1909 = vmax.f32 %v1823, 0.0
  %v1910 = vmax.f32 %v1830, 0.0
  %v1911 = vmax.f32 %v1837, 0.0
  %v1912 = vmax.f32 %v1844, 0.0
  %v1913 = vmax.f32 %v1851, 0.0
  %v1914 = vmax.f32 %v1858, 0.0
  %v1915 = vmax.f32 %v1865, 0.0
  %v1916 = vmax.f32 %v1872, 0.0
  %v1917 = vmax.f32 %v1879, 0.0
  %v1918 = vmax.f32 %v1886, 0.0
  %v1919 = vmax.f32 %v1893, 0.0
  %v1920 = vmax.f32 %v1900, 0.0
  %vm1921 = vcmask 64512
  %1922 = vst.msk [vmem:[%s3] sm:$0xff] %vm1921, %v1903
  %1923 = vst.msk [vmem:[%s3 + $0x8] sm:$0xff] %vm1921, %v1904
  %1924 = vst.msk [vmem:[%s3 + $0x10] sm:$0xff] %vm1921, %v1905
  %1925 = vst.msk [vmem:[%s3 + $0x18] sm:$0xff] %vm1921, %v1906
  %1926 = vst.msk [vmem:[%s3 + $0x20] sm:$0xff] %vm1921, %v1907
  %1927 = vst.msk [vmem:[%s3 + $0x28] sm:$0xff] %vm1921, %v1908
  %1928 = vst.msk [vmem:[%s3 + $0x30] sm:$0xff] %vm1921, %v1909
  %1929 = vst.msk [vmem:[%s3 + $0x38] sm:$0xff] %vm1921, %v1910
  %1930 = vst.msk [vmem:[%s3 + $0x40] sm:$0xff] %vm1921, %v1911
  %1931 = vst.msk [vmem:[%s3 + $0x48] sm:$0xff] %vm1921, %v1912
  %1932 = vst.msk [vmem:[%s3 + $0x50] sm:$0xff] %vm1921, %v1913
  %1933 = vst.msk [vmem:[%s3 + $0x58] sm:$0xff] %vm1921, %v1914
  %1934 = vst.msk [vmem:[%s3 + $0x60] sm:$0xff] %vm1921, %v1915
  %1935 = vst.msk [vmem:[%s3 + $0x68] sm:$0xff] %vm1921, %v1916
  %1936 = vst.msk [vmem:[%s3 + $0x70] sm:$0xff] %vm1921, %v1917
  %1937 = vst.msk [vmem:[%s3 + $0x78] sm:$0xff] %vm1921, %v1918
  %1938 = vst.msk [vmem:[%s3 + $0x80] sm:$0xff] %vm1921, %v1919
  %1939 = vst.msk [vmem:[%s3 + $0x88] sm:$0xff] %vm1921, %v1920
  // Predicated region
  $region14: #{pi_conv_lstm_forward.5} parent=0 // pred_check
    _
  $region15: #{pi_conv_lstm_forward.5} parent=0 // pred_check_branch
    %1941 = sbr.rel (0) target = $region17
  $region16: #{pi_conv_lstm_forward.5} parent=0 // pred_region
    _
  $region17: #{pi_conv_lstm_forward.5} parent=0 // pred_fallthru
    _
  // Predicated region
  $region18: #{pi_conv_lstm_forward.5} parent=0 // pred_check
    _
  $region19: #{pi_conv_lstm_forward.5} parent=0 // pred_check_branch
    %1943 = sbr.rel (0) target = $region21
  $region20: #{pi_conv_lstm_forward.5} parent=0 // pred_region
    _
  $region21: #{pi_conv_lstm_forward.5} parent=0 // pred_fallthru
    _

// kernel: pi_conv_lstm_forward.7
$region0: #{pi_conv_lstm_forward.7}
  #allocation0 [shape = 'u32[]', space=smem, size = 0x4, offset = 0x4, fixed_abs, tag = 'smem constant byte address 0x4 - core index']
  #allocation1 [shape = 'u32[144,128]{1,0:T(1,128)}', space=vmem, size = 0x12000, scoped, tag = 'internal scratch']
  %s0 = inlined_call_operand.vmem [shape: f32[16,16], index: 0, kind: input, shape index: {}]
  %s1 = inlined_call_operand.vmem [shape: f32[16,128], index: 1, kind: input, shape index: {}]
  %s2 = inlined_call_operand.vmem [shape: f32[1,128], index: 2, kind: input, shape index: {}]
  %s3 = inlined_call_operand.vmem [shape: f32[16,5], index: 3, kind: input, shape index: {}]
  %s4 = inlined_call_operand.vmem [shape: f32[128,256], index: 4, kind: input, shape index: {}]
  %s5 = inlined_call_operand.vmem [shape: f32[5,256], index: 5, kind: input, shape index: {}]
  %s6 = inlined_call_operand.vmem [shape: f32[1,256], index: 6, kind: input, shape index: {}]
  %s7 = inlined_call_operand.vmem [shape: f32[16,256], index: 7, kind: output, shape index: {}]
  %s8 = sld [smem:[#allocation0]]
  $region38: #{pi_conv_lstm_forward.7} parent=0
    _
  %s10 = ssub.s32 1, %s8
  %s11 = scalar_select 0, %s10, %s8
  // Predicated region
  $region2: #{pi_conv_lstm_forward.7} parent=0 // pred_check
    _
  $region3: #{pi_conv_lstm_forward.7} parent=0 // pred_check_branch
    %13 = sbr.rel (0) target = $region5
  $region4: #{pi_conv_lstm_forward.7} parent=0 // pred_region
    _
  $region5: #{pi_conv_lstm_forward.7} parent=0 // pred_fallthru
    _
  // Predicated region
  $region6: #{pi_conv_lstm_forward.7} parent=0 // pred_check
    _
  $region7: #{pi_conv_lstm_forward.7} parent=0 // pred_check_branch
    %15 = sbr.rel (0) target = $region9
  $region8: #{pi_conv_lstm_forward.7} parent=0 // pred_region
    _
  $region9: #{pi_conv_lstm_forward.7} parent=0 // pred_fallthru
    _
  // Predicated region
  $region10: #{pi_conv_lstm_forward.7} parent=0 // pred_check
    _
  $region11: #{pi_conv_lstm_forward.7} parent=0 // pred_check_branch
    %17 = sbr.rel (0) target = $region13
  $region12: #{pi_conv_lstm_forward.7} parent=0 // pred_region
    _
  $region13: #{pi_conv_lstm_forward.7} parent=0 // pred_fallthru
    _
  // Predicated region
  $region14: #{pi_conv_lstm_forward.7} parent=0 // pred_check
    _
  $region15: #{pi_conv_lstm_forward.7} parent=0 // pred_check_branch
    %19 = sbr.rel (0) target = $region17
  $region16: #{pi_conv_lstm_forward.7} parent=0 // pred_region
    _
  $region17: #{pi_conv_lstm_forward.7} parent=0 // pred_fallthru
    _
  // Predicated region
  $region18: #{pi_conv_lstm_forward.7} parent=0 // pred_check
    _
  $region19: #{pi_conv_lstm_forward.7} parent=0 // pred_check_branch
    %21 = sbr.rel (0) target = $region21
  $region20: #{pi_conv_lstm_forward.7} parent=0 // pred_region
    _
  $region21: #{pi_conv_lstm_forward.7} parent=0 // pred_fallthru
    _
  // Predicated region
  $region22: #{pi_conv_lstm_forward.7} parent=0 // pred_check
    _
  $region23: #{pi_conv_lstm_forward.7} parent=0 // pred_check_branch
    %23 = sbr.rel (0) target = $region25
  $region24: #{pi_conv_lstm_forward.7} parent=0 // pred_region
    _
  $region25: #{pi_conv_lstm_forward.7} parent=0 // pred_fallthru
    _
  // Predicated region
  $region26: #{pi_conv_lstm_forward.7} parent=0 // pred_check
    _
  $region27: #{pi_conv_lstm_forward.7} parent=0 // pred_check_branch
    %25 = sbr.rel (0) target = $region29
  $region28: #{pi_conv_lstm_forward.7} parent=0 // pred_region
    _
  $region29: #{pi_conv_lstm_forward.7} parent=0 // pred_fallthru
    _
  %v26 = vld [vmem:[%s0] sm:$0xff]
  %v27 = vld [vmem:[%s0 + $0x8] sm:$0xff]
  %v28 = vld [vmem:[%s1] sm:$0xff]
  %v29 = vld [vmem:[%s1 + $0x8] sm:$0xff]
  %v30 = vld [vmem:[%s2] sm:$0x1]
  %v32 = vlaneseq
  %v33 = vshrl.u32 %v32, 7
  %v34 = vsub.s32 0, %v33
  %v35 = vrot.slane %v30, %v34
  %vm37 = vcmask 130048
  %v39 = vsel %vm37, %v26, 0
  %v42 = vsel %vm37, %v27, 0
  %44 = vmatprep.subr.mxu0 0.0
  %45 = vmatpush1.msra.mxu0 0.0
  %46 = vmatprep.subr.mxu0 0.0
  %47 = vmatpush1.msra.mxu0 0.0
  %48 = vmatprep.subr.mxu0 0.0
  %49 = vmatpush1.msra.mxu0 0.0
  %50 = vmatprep.subr.mxu0 0.0
  %51 = vmatpush1.msra.mxu0 0.0
  %52 = vmatprep.subr.mxu0 0.0
  %53 = vmatpush1.msra.mxu0 0.0
  %54 = vmatprep.subr.mxu0 0.0
  %55 = vmatpush1.msra.mxu0 0.0
  %56 = vmatprep.subr.mxu0 0.0
  %57 = vmatpush1.msra.mxu0 0.0
  %58 = vmatprep.subr.mxu0 0.0
  %59 = vmatpush1.msra.mxu0 0.0
  %60 = vmatprep.subr.mxu0 0.0
  %61 = vmatpush1.msra.mxu0 0.0
  %62 = vmatprep.subr.mxu0 0.0
  %63 = vmatpush1.msra.mxu0 0.0
  %64 = vmatprep.subr.mxu0 0.0
  %65 = vmatpush1.msra.mxu0 0.0
  %66 = vmatprep.subr.mxu0 0.0
  %67 = vmatpush1.msra.mxu0 0.0
  %68 = vmatprep.subr.mxu0 0.0
  %69 = vmatpush1.msra.mxu0 0.0
  %70 = vmatprep.subr.mxu0 0.0
  %71 = vmatpush1.msra.mxu0 0.0
  %72 = vmatprep.subr.mxu0 0.0
  %v73 = vand.u32 %v29, 4294901760
  %74 = vmatpush1.msra.mxu0 %v73
  %75 = vmatprep.subr.mxu0 0.0
  %v76 = vand.u32 %v28, 4294901760
  %77 = vmatpush1.msra.mxu0 %v76
  %78 = vmatprep.subr.mxu0 0.0
  %79 = vmatpush2.msra.mxu0 0.0
  %80 = vmatprep.subr.mxu0 0.0
  %81 = vmatpush2.msra.mxu0 0.0
  %82 = vmatprep.subr.mxu0 0.0
  %83 = vmatpush2.msra.mxu0 0.0
  %84 = vmatprep.subr.mxu0 0.0
  %85 = vmatpush2.msra.mxu0 0.0
  %86 = vmatprep.subr.mxu0 0.0
  %87 = vmatpush2.msra.mxu0 0.0
  %88 = vmatprep.subr.mxu0 0.0
  %89 = vmatpush2.msra.mxu0 0.0
  %90 = vmatprep.subr.mxu0 0.0
  %91 = vmatpush2.msra.mxu0 0.0
  %92 = vmatprep.subr.mxu0 0.0
  %93 = vmatpush2.msra.mxu0 0.0
  %94 = vmatprep.subr.mxu0 0.0
  %95 = vmatpush2.msra.mxu0 0.0
  %96 = vmatprep.subr.mxu0 0.0
  %97 = vmatpush2.msra.mxu0 0.0
  %98 = vmatprep.subr.mxu0 0.0
  %99 = vmatpush2.msra.mxu0 0.0
  %100 = vmatprep.subr.mxu0 0.0
  %101 = vmatpush2.msra.mxu0 0.0
  %102 = vmatprep.subr.mxu0 0.0
  %103 = vmatpush2.msra.mxu0 0.0
  %104 = vmatprep.subr.mxu0 0.0
  %105 = vmatpush2.msra.mxu0 0.0
  %106 = vmatprep.subr.mxu0 0.0
  %107 = vmatpush2.msra.mxu0 0.0
  %108 = vmatprep.subr.mxu0 0.0
  %109 = vmatpush2.msra.mxu0 0.0
  %110 = vmatprep.mubr.f32.mxu0 0.0
  %v111 = vand.u32 %v39, 4294901760
  %v112 = vsub.f32 %v39, %v111
  %v113 = vand.u32 %v112, 4294901760
  %v114 = vsub.f32 %v112, %v113
  %v115 = vand.u32 %v114, 4294901760
  %116 = vmatmul.mubr.f32.gmra.mxu0 %v115
  %v117 = vpop.f32.mrf.mxu0
  %v118 = vadd.f32 %v35, %v117
  %v119 = vpop.f32.mrf.mxu0
  %120 = vmatprep.mubr.f32.mxu0 0.0
  %v121 = vand.u32 %v42, 4294901760
  %v122 = vsub.f32 %v42, %v121
  %v123 = vand.u32 %v122, 4294901760
  %v124 = vsub.f32 %v122, %v123
  %v125 = vand.u32 %v124, 4294901760
  %126 = vmatmul.mubr.f32.gmra.mxu0 %v125
  %v127 = vpop.f32.mrf.mxu0
  %v128 = vadd.f32 %v35, %v127
  %v129 = vpop.f32.mrf.mxu0
  %130 = vdwg.mxu0
  %131 = vmatprep.subr.mxu0 0.0
  %132 = vmatpush1.msra.mxu0 0.0
  %133 = vmatprep.subr.mxu0 0.0
  %134 = vmatpush1.msra.mxu0 0.0
  %135 = vmatprep.subr.mxu0 0.0
  %136 = vmatpush1.msra.mxu0 0.0
  %137 = vmatprep.subr.mxu0 0.0
  %138 = vmatpush1.msra.mxu0 0.0
  %139 = vmatprep.subr.mxu0 0.0
  %140 = vmatpush1.msra.mxu0 0.0
  %141 = vmatprep.subr.mxu0 0.0
  %142 = vmatpush1.msra.mxu0 0.0
  %143 = vmatprep.subr.mxu0 0.0
  %144 = vmatpush1.msra.mxu0 0.0
  %145 = vmatprep.subr.mxu0 0.0
  %146 = vmatpush1.msra.mxu0 0.0
  %147 = vmatprep.subr.mxu0 0.0
  %148 = vmatpush1.msra.mxu0 0.0
  %149 = vmatprep.subr.mxu0 0.0
  %150 = vmatpush1.msra.mxu0 0.0
  %151 = vmatprep.subr.mxu0 0.0
  %152 = vmatpush1.msra.mxu0 0.0
  %153 = vmatprep.subr.mxu0 0.0
  %154 = vmatpush1.msra.mxu0 0.0
  %155 = vmatprep.subr.mxu0 0.0
  %156 = vmatpush1.msra.mxu0 0.0
  %157 = vmatprep.subr.mxu0 0.0
  %158 = vmatpush1.msra.mxu0 0.0
  %159 = vmatprep.subr.mxu0 0.0
  %v160 = vand.u32 %v29, 4294901760
  %v161 = vsub.f32 %v29, %v160
  %v162 = vand.u32 %v161, 4294901760
  %v163 = vsub.f32 %v161, %v162
  %v164 = vand.u32 %v163, 4294901760
  %165 = vmatpush1.msra.mxu0 %v164
  %166 = vmatprep.subr.mxu0 0.0
  %v167 = vand.u32 %v28, 4294901760
  %v168 = vsub.f32 %v28, %v167
  %v169 = vand.u32 %v168, 4294901760
  %v170 = vsub.f32 %v168, %v169
  %v171 = vand.u32 %v170, 4294901760
  %172 = vmatpush1.msra.mxu0 %v171
  %173 = vmatprep.subr.mxu0 0.0
  %174 = vmatpush2.msra.mxu0 0.0
  %175 = vmatprep.subr.mxu0 0.0
  %176 = vmatpush2.msra.mxu0 0.0
  %177 = vmatprep.subr.mxu0 0.0
  %178 = vmatpush2.msra.mxu0 0.0
  %179 = vmatprep.subr.mxu0 0.0
  %180 = vmatpush2.msra.mxu0 0.0
  %181 = vmatprep.subr.mxu0 0.0
  %182 = vmatpush2.msra.mxu0 0.0
  %183 = vmatprep.subr.mxu0 0.0
  %184 = vmatpush2.msra.mxu0 0.0
  %185 = vmatprep.subr.mxu0 0.0
  %186 = vmatpush2.msra.mxu0 0.0
  %187 = vmatprep.subr.mxu0 0.0
  %188 = vmatpush2.msra.mxu0 0.0
  %189 = vmatprep.subr.mxu0 0.0
  %190 = vmatpush2.msra.mxu0 0.0
  %191 = vmatprep.subr.mxu0 0.0
  %192 = vmatpush2.msra.mxu0 0.0
  %193 = vmatprep.subr.mxu0 0.0
  %194 = vmatpush2.msra.mxu0 0.0
  %195 = vmatprep.subr.mxu0 0.0
  %196 = vmatpush2.msra.mxu0 0.0
  %197 = vmatprep.subr.mxu0 0.0
  %198 = vmatpush2.msra.mxu0 0.0
  %199 = vmatprep.subr.mxu0 0.0
  %200 = vmatpush2.msra.mxu0 0.0
  %201 = vmatprep.subr.mxu0 0.0
  %202 = vmatpush2.msra.mxu0 0.0
  %203 = vmatprep.subr.mxu0 0.0
  %204 = vmatpush2.msra.mxu0 0.0
  %205 = vmatprep.mubr.f32.mxu0 0.0
  %v206 = vand.u32 %v39, 4294901760
  %207 = vmatmul.mubr.f32.gmra.mxu0 %v206
  %v208 = vpop.f32.mrf.mxu0
  %v209 = vadd.f32 %v118, %v208
  %v210 = vpop.f32.mrf.mxu0
  %211 = vmatprep.mubr.f32.mxu0 0.0
  %v212 = vand.u32 %v42, 4294901760
  %213 = vmatmul.mubr.f32.gmra.mxu0 %v212
  %v214 = vpop.f32.mrf.mxu0
  %v215 = vadd.f32 %v128, %v214
  %v216 = vpop.f32.mrf.mxu0
  %217 = vdwg.mxu0
  %218 = vmatprep.subr.mxu0 0.0
  %219 = vmatpush1.msra.mxu0 0.0
  %220 = vmatprep.subr.mxu0 0.0
  %221 = vmatpush1.msra.mxu0 0.0
  %222 = vmatprep.subr.mxu0 0.0
  %223 = vmatpush1.msra.mxu0 0.0
  %224 = vmatprep.subr.mxu0 0.0
  %225 = vmatpush1.msra.mxu0 0.0
  %226 = vmatprep.subr.mxu0 0.0
  %227 = vmatpush1.msra.mxu0 0.0
  %228 = vmatprep.subr.mxu0 0.0
  %229 = vmatpush1.msra.mxu0 0.0
  %230 = vmatprep.subr.mxu0 0.0
  %231 = vmatpush1.msra.mxu0 0.0
  %232 = vmatprep.subr.mxu0 0.0
  %233 = vmatpush1.msra.mxu0 0.0
  %234 = vmatprep.subr.mxu0 0.0
  %235 = vmatpush1.msra.mxu0 0.0
  %236 = vmatprep.subr.mxu0 0.0
  %237 = vmatpush1.msra.mxu0 0.0
  %238 = vmatprep.subr.mxu0 0.0
  %239 = vmatpush1.msra.mxu0 0.0
  %240 = vmatprep.subr.mxu0 0.0
  %241 = vmatpush1.msra.mxu0 0.0
  %242 = vmatprep.subr.mxu0 0.0
  %243 = vmatpush1.msra.mxu0 0.0
  %244 = vmatprep.subr.mxu0 0.0
  %245 = vmatpush1.msra.mxu0 0.0
  %246 = vmatprep.subr.mxu0 0.0
  %v247 = vand.u32 %v29, 4294901760
  %v248 = vsub.f32 %v29, %v247
  %249 = vmatpush1.msra.mxu0 %v248
  %250 = vmatprep.subr.mxu0 0.0
  %v251 = vand.u32 %v28, 4294901760
  %v252 = vsub.f32 %v28, %v251
  %253 = vmatpush1.msra.mxu0 %v252
  %254 = vmatprep.subr.mxu0 0.0
  %255 = vmatpush2.msra.mxu0 0.0
  %256 = vmatprep.subr.mxu0 0.0
  %257 = vmatpush2.msra.mxu0 0.0
  %258 = vmatprep.subr.mxu0 0.0
  %259 = vmatpush2.msra.mxu0 0.0
  %260 = vmatprep.subr.mxu0 0.0
  %261 = vmatpush2.msra.mxu0 0.0
  %262 = vmatprep.subr.mxu0 0.0
  %263 = vmatpush2.msra.mxu0 0.0
  %264 = vmatprep.subr.mxu0 0.0
  %265 = vmatpush2.msra.mxu0 0.0
  %266 = vmatprep.subr.mxu0 0.0
  %267 = vmatpush2.msra.mxu0 0.0
  %268 = vmatprep.subr.mxu0 0.0
  %269 = vmatpush2.msra.mxu0 0.0
  %270 = vmatprep.subr.mxu0 0.0
  %271 = vmatpush2.msra.mxu0 0.0
  %272 = vmatprep.subr.mxu0 0.0
  %273 = vmatpush2.msra.mxu0 0.0
  %274 = vmatprep.subr.mxu0 0.0
  %275 = vmatpush2.msra.mxu0 0.0
  %276 = vmatprep.subr.mxu0 0.0
  %277 = vmatpush2.msra.mxu0 0.0
  %278 = vmatprep.subr.mxu0 0.0
  %279 = vmatpush2.msra.mxu0 0.0
  %280 = vmatprep.subr.mxu0 0.0
  %281 = vmatpush2.msra.mxu0 0.0
  %282 = vmatprep.subr.mxu0 0.0
  %283 = vmatpush2.msra.mxu0 0.0
  %284 = vmatprep.subr.mxu0 0.0
  %285 = vmatpush2.msra.mxu0 0.0
  %286 = vmatprep.mubr.f32.mxu0 0.0
  %v287 = vand.u32 %v39, 4294901760
  %v288 = vsub.f32 %v39, %v287
  %289 = vmatmul.mubr.f32.gmra.mxu0 %v288
  %v290 = vpop.f32.mrf.mxu0
  %v291 = vadd.f32 %v209, %v290
  %v292 = vpop.f32.mrf.mxu0
  %293 = vmatprep.mubr.f32.mxu0 0.0
  %v294 = vand.u32 %v42, 4294901760
  %v295 = vsub.f32 %v42, %v294
  %296 = vmatmul.mubr.f32.gmra.mxu0 %v295
  %v297 = vpop.f32.mrf.mxu0
  %v298 = vadd.f32 %v215, %v297
  %v299 = vpop.f32.mrf.mxu0
  %300 = vdwg.mxu0
  %301 = vmatprep.subr.mxu0 0.0
  %302 = vmatpush1.msra.mxu0 0.0
  %303 = vmatprep.subr.mxu0 0.0
  %304 = vmatpush1.msra.mxu0 0.0
  %305 = vmatprep.subr.mxu0 0.0
  %306 = vmatpush1.msra.mxu0 0.0
  %307 = vmatprep.subr.mxu0 0.0
  %308 = vmatpush1.msra.mxu0 0.0
  %309 = vmatprep.subr.mxu0 0.0
  %310 = vmatpush1.msra.mxu0 0.0
  %311 = vmatprep.subr.mxu0 0.0
  %312 = vmatpush1.msra.mxu0 0.0
  %313 = vmatprep.subr.mxu0 0.0
  %314 = vmatpush1.msra.mxu0 0.0
  %315 = vmatprep.subr.mxu0 0.0
  %316 = vmatpush1.msra.mxu0 0.0
  %317 = vmatprep.subr.mxu0 0.0
  %318 = vmatpush1.msra.mxu0 0.0
  %319 = vmatprep.subr.mxu0 0.0
  %320 = vmatpush1.msra.mxu0 0.0
  %321 = vmatprep.subr.mxu0 0.0
  %322 = vmatpush1.msra.mxu0 0.0
  %323 = vmatprep.subr.mxu0 0.0
  %324 = vmatpush1.msra.mxu0 0.0
  %325 = vmatprep.subr.mxu0 0.0
  %326 = vmatpush1.msra.mxu0 0.0
  %327 = vmatprep.subr.mxu0 0.0
  %328 = vmatpush1.msra.mxu0 0.0
  %329 = vmatprep.subr.mxu0 0.0
  %v330 = vand.u32 %v29, 4294901760
  %331 = vmatpush1.msra.mxu0 %v330
  %332 = vmatprep.subr.mxu0 0.0
  %v333 = vand.u32 %v28, 4294901760
  %334 = vmatpush1.msra.mxu0 %v333
  %335 = vmatprep.subr.mxu0 0.0
  %336 = vmatpush2.msra.mxu0 0.0
  %337 = vmatprep.subr.mxu0 0.0
  %338 = vmatpush2.msra.mxu0 0.0
  %339 = vmatprep.subr.mxu0 0.0
  %340 = vmatpush2.msra.mxu0 0.0
  %341 = vmatprep.subr.mxu0 0.0
  %342 = vmatpush2.msra.mxu0 0.0
  %343 = vmatprep.subr.mxu0 0.0
  %344 = vmatpush2.msra.mxu0 0.0
  %345 = vmatprep.subr.mxu0 0.0
  %346 = vmatpush2.msra.mxu0 0.0
  %347 = vmatprep.subr.mxu0 0.0
  %348 = vmatpush2.msra.mxu0 0.0
  %349 = vmatprep.subr.mxu0 0.0
  %350 = vmatpush2.msra.mxu0 0.0
  %351 = vmatprep.subr.mxu0 0.0
  %352 = vmatpush2.msra.mxu0 0.0
  %353 = vmatprep.subr.mxu0 0.0
  %354 = vmatpush2.msra.mxu0 0.0
  %355 = vmatprep.subr.mxu0 0.0
  %356 = vmatpush2.msra.mxu0 0.0
  %357 = vmatprep.subr.mxu0 0.0
  %358 = vmatpush2.msra.mxu0 0.0
  %359 = vmatprep.subr.mxu0 0.0
  %360 = vmatpush2.msra.mxu0 0.0
  %361 = vmatprep.subr.mxu0 0.0
  %362 = vmatpush2.msra.mxu0 0.0
  %363 = vmatprep.subr.mxu0 0.0
  %364 = vmatpush2.msra.mxu0 0.0
  %365 = vmatprep.subr.mxu0 0.0
  %366 = vmatpush2.msra.mxu0 0.0
  %367 = vmatprep.mubr.f32.mxu0 0.0
  %v368 = vand.u32 %v39, 4294901760
  %v369 = vsub.f32 %v39, %v368
  %v370 = vand.u32 %v369, 4294901760
  %371 = vmatmul.mubr.f32.gmra.mxu0 %v370
  %v372 = vpop.f32.mrf.mxu0
  %v373 = vadd.f32 %v291, %v372
  %v374 = vpop.f32.mrf.mxu0
  %375 = vmatprep.mubr.f32.mxu0 0.0
  %v376 = vand.u32 %v42, 4294901760
  %v377 = vsub.f32 %v42, %v376
  %v378 = vand.u32 %v377, 4294901760
  %379 = vmatmul.mubr.f32.gmra.mxu0 %v378
  %v380 = vpop.f32.mrf.mxu0
  %v381 = vadd.f32 %v298, %v380
  %v382 = vpop.f32.mrf.mxu0
  %383 = vdwg.mxu0
  %384 = vmatprep.subr.mxu0 0.0
  %385 = vmatpush1.msra.mxu0 0.0
  %386 = vmatprep.subr.mxu0 0.0
  %387 = vmatpush1.msra.mxu0 0.0
  %388 = vmatprep.subr.mxu0 0.0
  %389 = vmatpush1.msra.mxu0 0.0
  %390 = vmatprep.subr.mxu0 0.0
  %391 = vmatpush1.msra.mxu0 0.0
  %392 = vmatprep.subr.mxu0 0.0
  %393 = vmatpush1.msra.mxu0 0.0
  %394 = vmatprep.subr.mxu0 0.0
  %395 = vmatpush1.msra.mxu0 0.0
  %396 = vmatprep.subr.mxu0 0.0
  %397 = vmatpush1.msra.mxu0 0.0
  %398 = vmatprep.subr.mxu0 0.0
  %399 = vmatpush1.msra.mxu0 0.0
  %400 = vmatprep.subr.mxu0 0.0
  %401 = vmatpush1.msra.mxu0 0.0
  %402 = vmatprep.subr.mxu0 0.0
  %403 = vmatpush1.msra.mxu0 0.0
  %404 = vmatprep.subr.mxu0 0.0
  %405 = vmatpush1.msra.mxu0 0.0
  %406 = vmatprep.subr.mxu0 0.0
  %407 = vmatpush1.msra.mxu0 0.0
  %408 = vmatprep.subr.mxu0 0.0
  %409 = vmatpush1.msra.mxu0 0.0
  %410 = vmatprep.subr.mxu0 0.0
  %411 = vmatpush1.msra.mxu0 0.0
  %412 = vmatprep.subr.mxu0 0.0
  %v413 = vand.u32 %v29, 4294901760
  %v414 = vsub.f32 %v29, %v413
  %v415 = vand.u32 %v414, 4294901760
  %416 = vmatpush1.msra.mxu0 %v415
  %417 = vmatprep.subr.mxu0 0.0
  %v418 = vand.u32 %v28, 4294901760
  %v419 = vsub.f32 %v28, %v418
  %v420 = vand.u32 %v419, 4294901760
  %421 = vmatpush1.msra.mxu0 %v420
  %422 = vmatprep.subr.mxu0 0.0
  %423 = vmatpush2.msra.mxu0 0.0
  %424 = vmatprep.subr.mxu0 0.0
  %425 = vmatpush2.msra.mxu0 0.0
  %426 = vmatprep.subr.mxu0 0.0
  %427 = vmatpush2.msra.mxu0 0.0
  %428 = vmatprep.subr.mxu0 0.0
  %429 = vmatpush2.msra.mxu0 0.0
  %430 = vmatprep.subr.mxu0 0.0
  %431 = vmatpush2.msra.mxu0 0.0
  %432 = vmatprep.subr.mxu0 0.0
  %433 = vmatpush2.msra.mxu0 0.0
  %434 = vmatprep.subr.mxu0 0.0
  %435 = vmatpush2.msra.mxu0 0.0
  %436 = vmatprep.subr.mxu0 0.0
  %437 = vmatpush2.msra.mxu0 0.0
  %438 = vmatprep.subr.mxu0 0.0
  %439 = vmatpush2.msra.mxu0 0.0
  %440 = vmatprep.subr.mxu0 0.0
  %441 = vmatpush2.msra.mxu0 0.0
  %442 = vmatprep.subr.mxu0 0.0
  %443 = vmatpush2.msra.mxu0 0.0
  %444 = vmatprep.subr.mxu0 0.0
  %445 = vmatpush2.msra.mxu0 0.0
  %446 = vmatprep.subr.mxu0 0.0
  %447 = vmatpush2.msra.mxu0 0.0
  %448 = vmatprep.subr.mxu0 0.0
  %449 = vmatpush2.msra.mxu0 0.0
  %450 = vmatprep.subr.mxu0 0.0
  %451 = vmatpush2.msra.mxu0 0.0
  %452 = vmatprep.subr.mxu0 0.0
  %453 = vmatpush2.msra.mxu0 0.0
  %454 = vmatprep.mubr.f32.mxu0 0.0
  %v455 = vand.u32 %v39, 4294901760
  %456 = vmatmul.mubr.f32.gmra.mxu0 %v455
  %v457 = vpop.f32.mrf.mxu0
  %v458 = vadd.f32 %v373, %v457
  %v459 = vpop.f32.mrf.mxu0
  %460 = vmatprep.mubr.f32.mxu0 0.0
  %v461 = vand.u32 %v42, 4294901760
  %462 = vmatmul.mubr.f32.gmra.mxu0 %v461
  %v463 = vpop.f32.mrf.mxu0
  %v464 = vadd.f32 %v381, %v463
  %v465 = vpop.f32.mrf.mxu0
  %466 = vdwg.mxu0
  %467 = vmatprep.subr.mxu0 0.0
  %468 = vmatpush1.msra.mxu0 0.0
  %469 = vmatprep.subr.mxu0 0.0
  %470 = vmatpush1.msra.mxu0 0.0
  %471 = vmatprep.subr.mxu0 0.0
  %472 = vmatpush1.msra.mxu0 0.0
  %473 = vmatprep.subr.mxu0 0.0
  %474 = vmatpush1.msra.mxu0 0.0
  %475 = vmatprep.subr.mxu0 0.0
  %476 = vmatpush1.msra.mxu0 0.0
  %477 = vmatprep.subr.mxu0 0.0
  %478 = vmatpush1.msra.mxu0 0.0
  %479 = vmatprep.subr.mxu0 0.0
  %480 = vmatpush1.msra.mxu0 0.0
  %481 = vmatprep.subr.mxu0 0.0
  %482 = vmatpush1.msra.mxu0 0.0
  %483 = vmatprep.subr.mxu0 0.0
  %484 = vmatpush1.msra.mxu0 0.0
  %485 = vmatprep.subr.mxu0 0.0
  %486 = vmatpush1.msra.mxu0 0.0
  %487 = vmatprep.subr.mxu0 0.0
  %488 = vmatpush1.msra.mxu0 0.0
  %489 = vmatprep.subr.mxu0 0.0
  %490 = vmatpush1.msra.mxu0 0.0
  %491 = vmatprep.subr.mxu0 0.0
  %492 = vmatpush1.msra.mxu0 0.0
  %493 = vmatprep.subr.mxu0 0.0
  %494 = vmatpush1.msra.mxu0 0.0
  %495 = vmatprep.subr.mxu0 0.0
  %v496 = vand.u32 %v29, 4294901760
  %497 = vmatpush1.msra.mxu0 %v496
  %498 = vmatprep.subr.mxu0 0.0
  %v499 = vand.u32 %v28, 4294901760
  %500 = vmatpush1.msra.mxu0 %v499
  %501 = vmatprep.subr.mxu0 0.0
  %502 = vmatpush2.msra.mxu0 0.0
  %503 = vmatprep.subr.mxu0 0.0
  %504 = vmatpush2.msra.mxu0 0.0
  %505 = vmatprep.subr.mxu0 0.0
  %506 = vmatpush2.msra.mxu0 0.0
  %507 = vmatprep.subr.mxu0 0.0
  %508 = vmatpush2.msra.mxu0 0.0
  %509 = vmatprep.subr.mxu0 0.0
  %510 = vmatpush2.msra.mxu0 0.0
  %511 = vmatprep.subr.mxu0 0.0
  %512 = vmatpush2.msra.mxu0 0.0
  %513 = vmatprep.subr.mxu0 0.0
  %514 = vmatpush2.msra.mxu0 0.0
  %515 = vmatprep.subr.mxu0 0.0
  %516 = vmatpush2.msra.mxu0 0.0
  %517 = vmatprep.subr.mxu0 0.0
  %518 = vmatpush2.msra.mxu0 0.0
  %519 = vmatprep.subr.mxu0 0.0
  %520 = vmatpush2.msra.mxu0 0.0
  %521 = vmatprep.subr.mxu0 0.0
  %522 = vmatpush2.msra.mxu0 0.0
  %523 = vmatprep.subr.mxu0 0.0
  %524 = vmatpush2.msra.mxu0 0.0
  %525 = vmatprep.subr.mxu0 0.0
  %526 = vmatpush2.msra.mxu0 0.0
  %527 = vmatprep.subr.mxu0 0.0
  %528 = vmatpush2.msra.mxu0 0.0
  %529 = vmatprep.subr.mxu0 0.0
  %530 = vmatpush2.msra.mxu0 0.0
  %531 = vmatprep.subr.mxu0 0.0
  %532 = vmatpush2.msra.mxu0 0.0
  %533 = vmatprep.mubr.f32.mxu0 0.0
  %v534 = vand.u32 %v39, 4294901760
  %535 = vmatmul.mubr.f32.gmra.mxu0 %v534
  %v536 = vpop.f32.mrf.mxu0
  %v537 = vadd.f32 %v458, %v536
  %v538 = vpop.f32.mrf.mxu0
  %539 = vmatprep.mubr.f32.mxu0 0.0
  %v540 = vand.u32 %v42, 4294901760
  %541 = vmatmul.mubr.f32.gmra.mxu0 %v540
  %v542 = vpop.f32.mrf.mxu0
  %v543 = vadd.f32 %v464, %v542
  %v544 = vpop.f32.mrf.mxu0
  %545 = vdwg.mxu0
  %v546 = vmax.f32 %v537, 0.0
  %v547 = vmax.f32 %v543, 0.0
  %v548 = vld [vmem:[%s4] sm:$0xff]
  %v549 = vld [vmem:[%s4 + $0x8] sm:$0xff]
  %v550 = vld [vmem:[%s4 + $0x10] sm:$0xff]
  %v551 = vld [vmem:[%s4 + $0x18] sm:$0xff]
  %v552 = vld [vmem:[%s4 + $0x20] sm:$0xff]
  %v553 = vld [vmem:[%s4 + $0x28] sm:$0xff]
  %v554 = vld [vmem:[%s4 + $0x30] sm:$0xff]
  %v555 = vld [vmem:[%s4 + $0x38] sm:$0xff]
  %v556 = vld [vmem:[%s4 + $0x40] sm:$0xff]
  %v557 = vld [vmem:[%s4 + $0x48] sm:$0xff]
  %v558 = vld [vmem:[%s4 + $0x50] sm:$0xff]
  %v559 = vld [vmem:[%s4 + $0x58] sm:$0xff]
  %v560 = vld [vmem:[%s4 + $0x60] sm:$0xff]
  %v561 = vld [vmem:[%s4 + $0x68] sm:$0xff]
  %v562 = vld [vmem:[%s4 + $0x70] sm:$0xff]
  %v563 = vld [vmem:[%s4 + $0x78] sm:$0xff]
  %v564 = vld [vmem:[%s4 + $0x80] sm:$0xff]
  %v565 = vld [vmem:[%s4 + $0x88] sm:$0xff]
  %v566 = vld [vmem:[%s4 + $0x90] sm:$0xff]
  %v567 = vld [vmem:[%s4 + $0x98] sm:$0xff]
  %v568 = vld [vmem:[%s4 + $0xa0] sm:$0xff]
  %v569 = vld [vmem:[%s4 + $0xa8] sm:$0xff]
  %v570 = vld [vmem:[%s4 + $0xb0] sm:$0xff]
  %v571 = vld [vmem:[%s4 + $0xb8] sm:$0xff]
  %v572 = vld [vmem:[%s4 + $0xc0] sm:$0xff]
  %v573 = vld [vmem:[%s4 + $0xc8] sm:$0xff]
  %v574 = vld [vmem:[%s4 + $0xd0] sm:$0xff]
  %v575 = vld [vmem:[%s4 + $0xd8] sm:$0xff]
  %v576 = vld [vmem:[%s4 + $0xe0] sm:$0xff]
  %v577 = vld [vmem:[%s4 + $0xe8] sm:$0xff]
  %v578 = vld [vmem:[%s4 + $0xf0] sm:$0xff]
  %v579 = vld [vmem:[%s4 + $0xf8] sm:$0xff]
  %v580 = vld [vmem:[%s3] sm:$0xff]
  %v581 = vld [vmem:[%s3 + $0x8] sm:$0xff]
  %v582 = vld [vmem:[%s5] sm:$0x1f]
  %v583 = vld [vmem:[%s5 + $0x8] sm:$0x1f]
  %vm584 = vcmask 39936
  %v586 = vsel %vm584, %v580, 0
  %v589 = vsel %vm584, %v581, 0
  %vm591 = vcmask 1044480
  %v593 = vsel %vm591, %v582, 0
  %v596 = vsel %vm591, %v583, 0
  %598 = vmatprep.subr.mxu0 0.0
  %599 = vmatpush1.msra.mxu0 0.0
  %600 = vmatprep.subr.mxu0 0.0
  %601 = vmatpush1.msra.mxu0 0.0
  %602 = vmatprep.subr.mxu0 0.0
  %603 = vmatpush1.msra.mxu0 0.0
  %604 = vmatprep.subr.mxu0 0.0
  %605 = vmatpush1.msra.mxu0 0.0
  %606 = vmatprep.subr.mxu0 0.0
  %607 = vmatpush1.msra.mxu0 0.0
  %608 = vmatprep.subr.mxu0 0.0
  %609 = vmatpush1.msra.mxu0 0.0
  %610 = vmatprep.subr.mxu0 0.0
  %611 = vmatpush1.msra.mxu0 0.0
  %612 = vmatprep.subr.mxu0 0.0
  %613 = vmatpush1.msra.mxu0 0.0
  %614 = vmatprep.subr.mxu0 0.0
  %615 = vmatpush1.msra.mxu0 0.0
  %616 = vmatprep.subr.mxu0 0.0
  %617 = vmatpush1.msra.mxu0 0.0
  %618 = vmatprep.subr.mxu0 0.0
  %619 = vmatpush1.msra.mxu0 0.0
  %620 = vmatprep.subr.mxu0 0.0
  %621 = vmatpush1.msra.mxu0 0.0
  %622 = vmatprep.subr.mxu0 0.0
  %623 = vmatpush1.msra.mxu0 0.0
  %624 = vmatprep.subr.mxu0 0.0
  %625 = vmatpush1.msra.mxu0 0.0
  %626 = vmatprep.subr.mxu0 0.0
  %627 = vmatpush1.msra.mxu0 0.0
  %v628 = vand.u32 %v596, 4294901760
  %629 = vmatprep.subr.mxu0 %v628
  %v630 = vand.u32 %v593, 4294901760
  %631 = vmatpush1.msra.mxu0 %v630
  %632 = vmatprep.subr.mxu0 0.0
  %633 = vmatpush2.msra.mxu0 0.0
  %634 = vmatprep.subr.mxu0 0.0
  %635 = vmatpush2.msra.mxu0 0.0
  %636 = vmatprep.subr.mxu0 0.0
  %637 = vmatpush2.msra.mxu0 0.0
  %638 = vmatprep.subr.mxu0 0.0
  %639 = vmatpush2.msra.mxu0 0.0
  %640 = vmatprep.subr.mxu0 0.0
  %641 = vmatpush2.msra.mxu0 0.0
  %642 = vmatprep.subr.mxu0 0.0
  %643 = vmatpush2.msra.mxu0 0.0
  %644 = vmatprep.subr.mxu0 0.0
  %645 = vmatpush2.msra.mxu0 0.0
  %646 = vmatprep.subr.mxu0 0.0
  %647 = vmatpush2.msra.mxu0 0.0
  %648 = vmatprep.subr.mxu0 0.0
  %649 = vmatpush2.msra.mxu0 0.0
  %650 = vmatprep.subr.mxu0 0.0
  %651 = vmatpush2.msra.mxu0 0.0
  %652 = vmatprep.subr.mxu0 0.0
  %653 = vmatpush2.msra.mxu0 0.0
  %654 = vmatprep.subr.mxu0 0.0
  %655 = vmatpush2.msra.mxu0 0.0
  %656 = vmatprep.subr.mxu0 0.0
  %657 = vmatpush2.msra.mxu0 0.0
  %658 = vmatprep.subr.mxu0 0.0
  %659 = vmatpush2.msra.mxu0 0.0
  %660 = vmatprep.subr.mxu0 0.0
  %661 = vmatpush2.msra.mxu0 0.0
  %662 = vmatprep.subr.mxu0 0.0
  %663 = vmatpush2.msra.mxu0 0.0
  %664 = vmatprep.mubr.f32.mxu0 0.0
  %v665 = vand.u32 %v586, 4294901760
  %v666 = vsub.f32 %v586, %v665
  %v667 = vand.u32 %v666, 4294901760
  %v668 = vsub.f32 %v666, %v667
  %v669 = vand.u32 %v668, 4294901760
  %670 = vmatmul.mubr.f32.gmra.mxu0 %v669
  %v671 = vpop.f32.mrf.mxu0
  %v672 = vadd.f32 0.0, %v671
  %v673 = vpop.f32.mrf.mxu0
  %v674 = vadd.f32 0.0, %v673
  %675 = vmatprep.mubr.f32.mxu0 0.0
  %v676 = vand.u32 %v589, 4294901760
  %v677 = vsub.f32 %v589, %v676
  %v678 = vand.u32 %v677, 4294901760
  %v679 = vsub.f32 %v677, %v678
  %v680 = vand.u32 %v679, 4294901760
  %681 = vmatmul.mubr.f32.gmra.mxu0 %v680
  %v682 = vpop.f32.mrf.mxu0
  %v683 = vadd.f32 0.0, %v682
  %v684 = vpop.f32.mrf.mxu0
  %v685 = vadd.f32 0.0, %v684
  %686 = vdwg.mxu0
  %687 = vmatprep.subr.mxu0 0.0
  %688 = vmatpush1.msra.mxu0 0.0
  %689 = vmatprep.subr.mxu0 0.0
  %690 = vmatpush1.msra.mxu0 0.0
  %691 = vmatprep.subr.mxu0 0.0
  %692 = vmatpush1.msra.mxu0 0.0
  %693 = vmatprep.subr.mxu0 0.0
  %694 = vmatpush1.msra.mxu0 0.0
  %695 = vmatprep.subr.mxu0 0.0
  %696 = vmatpush1.msra.mxu0 0.0
  %697 = vmatprep.subr.mxu0 0.0
  %698 = vmatpush1.msra.mxu0 0.0
  %699 = vmatprep.subr.mxu0 0.0
  %700 = vmatpush1.msra.mxu0 0.0
  %701 = vmatprep.subr.mxu0 0.0
  %702 = vmatpush1.msra.mxu0 0.0
  %703 = vmatprep.subr.mxu0 0.0
  %704 = vmatpush1.msra.mxu0 0.0
  %705 = vmatprep.subr.mxu0 0.0
  %706 = vmatpush1.msra.mxu0 0.0
  %707 = vmatprep.subr.mxu0 0.0
  %708 = vmatpush1.msra.mxu0 0.0
  %709 = vmatprep.subr.mxu0 0.0
  %710 = vmatpush1.msra.mxu0 0.0
  %711 = vmatprep.subr.mxu0 0.0
  %712 = vmatpush1.msra.mxu0 0.0
  %713 = vmatprep.subr.mxu0 0.0
  %714 = vmatpush1.msra.mxu0 0.0
  %715 = vmatprep.subr.mxu0 0.0
  %716 = vmatpush1.msra.mxu0 0.0
  %v717 = vand.u32 %v596, 4294901760
  %v718 = vsub.f32 %v596, %v717
  %v719 = vand.u32 %v718, 4294901760
  %v720 = vsub.f32 %v718, %v719
  %v721 = vand.u32 %v720, 4294901760
  %722 = vmatprep.subr.mxu0 %v721
  %v723 = vand.u32 %v593, 4294901760
  %v724 = vsub.f32 %v593, %v723
  %v725 = vand.u32 %v724, 4294901760
  %v726 = vsub.f32 %v724, %v725
  %v727 = vand.u32 %v726, 4294901760
  %728 = vmatpush1.msra.mxu0 %v727
  %729 = vmatprep.subr.mxu0 0.0
  %730 = vmatpush2.msra.mxu0 0.0
  %731 = vmatprep.subr.mxu0 0.0
  %732 = vmatpush2.msra.mxu0 0.0
  %733 = vmatprep.subr.mxu0 0.0
  %734 = vmatpush2.msra.mxu0 0.0
  %735 = vmatprep.subr.mxu0 0.0
  %736 = vmatpush2.msra.mxu0 0.0
  %737 = vmatprep.subr.mxu0 0.0
  %738 = vmatpush2.msra.mxu0 0.0
  %739 = vmatprep.subr.mxu0 0.0
  %740 = vmatpush2.msra.mxu0 0.0
  %741 = vmatprep.subr.mxu0 0.0
  %742 = vmatpush2.msra.mxu0 0.0
  %743 = vmatprep.subr.mxu0 0.0
  %744 = vmatpush2.msra.mxu0 0.0
  %745 = vmatprep.subr.mxu0 0.0
  %746 = vmatpush2.msra.mxu0 0.0
  %747 = vmatprep.subr.mxu0 0.0
  %748 = vmatpush2.msra.mxu0 0.0
  %749 = vmatprep.subr.mxu0 0.0
  %750 = vmatpush2.msra.mxu0 0.0
  %751 = vmatprep.subr.mxu0 0.0
  %752 = vmatpush2.msra.mxu0 0.0
  %753 = vmatprep.subr.mxu0 0.0
  %754 = vmatpush2.msra.mxu0 0.0
  %755 = vmatprep.subr.mxu0 0.0
  %756 = vmatpush2.msra.mxu0 0.0
  %757 = vmatprep.subr.mxu0 0.0
  %758 = vmatpush2.msra.mxu0 0.0
  %759 = vmatprep.subr.mxu0 0.0
  %760 = vmatpush2.msra.mxu0 0.0
  %761 = vmatprep.mubr.f32.mxu0 0.0
  %v762 = vand.u32 %v586, 4294901760
  %763 = vmatmul.mubr.f32.gmra.mxu0 %v762
  %v764 = vpop.f32.mrf.mxu0
  %v765 = vadd.f32 %v672, %v764
  %v766 = vpop.f32.mrf.mxu0
  %v767 = vadd.f32 %v674, %v766
  %768 = vmatprep.mubr.f32.mxu0 0.0
  %v769 = vand.u32 %v589, 4294901760
  %770 = vmatmul.mubr.f32.gmra.mxu0 %v769
  %v771 = vpop.f32.mrf.mxu0
  %v772 = vadd.f32 %v683, %v771
  %v773 = vpop.f32.mrf.mxu0
  %v774 = vadd.f32 %v685, %v773
  %775 = vdwg.mxu0
  %776 = vmatprep.subr.mxu0 0.0
  %777 = vmatpush1.msra.mxu0 0.0
  %778 = vmatprep.subr.mxu0 0.0
  %779 = vmatpush1.msra.mxu0 0.0
  %780 = vmatprep.subr.mxu0 0.0
  %781 = vmatpush1.msra.mxu0 0.0
  %782 = vmatprep.subr.mxu0 0.0
  %783 = vmatpush1.msra.mxu0 0.0
  %784 = vmatprep.subr.mxu0 0.0
  %785 = vmatpush1.msra.mxu0 0.0
  %786 = vmatprep.subr.mxu0 0.0
  %787 = vmatpush1.msra.mxu0 0.0
  %788 = vmatprep.subr.mxu0 0.0
  %789 = vmatpush1.msra.mxu0 0.0
  %790 = vmatprep.subr.mxu0 0.0
  %791 = vmatpush1.msra.mxu0 0.0
  %792 = vmatprep.subr.mxu0 0.0
  %793 = vmatpush1.msra.mxu0 0.0
  %794 = vmatprep.subr.mxu0 0.0
  %795 = vmatpush1.msra.mxu0 0.0
  %796 = vmatprep.subr.mxu0 0.0
  %797 = vmatpush1.msra.mxu0 0.0
  %798 = vmatprep.subr.mxu0 0.0
  %799 = vmatpush1.msra.mxu0 0.0
  %800 = vmatprep.subr.mxu0 0.0
  %801 = vmatpush1.msra.mxu0 0.0
  %802 = vmatprep.subr.mxu0 0.0
  %803 = vmatpush1.msra.mxu0 0.0
  %804 = vmatprep.subr.mxu0 0.0
  %805 = vmatpush1.msra.mxu0 0.0
  %v806 = vand.u32 %v596, 4294901760
  %v807 = vsub.f32 %v596, %v806
  %808 = vmatprep.subr.mxu0 %v807
  %v809 = vand.u32 %v593, 4294901760
  %v810 = vsub.f32 %v593, %v809
  %811 = vmatpush1.msra.mxu0 %v810
  %812 = vmatprep.subr.mxu0 0.0
  %813 = vmatpush2.msra.mxu0 0.0
  %814 = vmatprep.subr.mxu0 0.0
  %815 = vmatpush2.msra.mxu0 0.0
  %816 = vmatprep.subr.mxu0 0.0
  %817 = vmatpush2.msra.mxu0 0.0
  %818 = vmatprep.subr.mxu0 0.0
  %819 = vmatpush2.msra.mxu0 0.0
  %820 = vmatprep.subr.mxu0 0.0
  %821 = vmatpush2.msra.mxu0 0.0
  %822 = vmatprep.subr.mxu0 0.0
  %823 = vmatpush2.msra.mxu0 0.0
  %824 = vmatprep.subr.mxu0 0.0
  %825 = vmatpush2.msra.mxu0 0.0
  %826 = vmatprep.subr.mxu0 0.0
  %827 = vmatpush2.msra.mxu0 0.0
  %828 = vmatprep.subr.mxu0 0.0
  %829 = vmatpush2.msra.mxu0 0.0
  %830 = vmatprep.subr.mxu0 0.0
  %831 = vmatpush2.msra.mxu0 0.0
  %832 = vmatprep.subr.mxu0 0.0
  %833 = vmatpush2.msra.mxu0 0.0
  %834 = vmatprep.subr.mxu0 0.0
  %835 = vmatpush2.msra.mxu0 0.0
  %836 = vmatprep.subr.mxu0 0.0
  %837 = vmatpush2.msra.mxu0 0.0
  %838 = vmatprep.subr.mxu0 0.0
  %839 = vmatpush2.msra.mxu0 0.0
  %840 = vmatprep.subr.mxu0 0.0
  %841 = vmatpush2.msra.mxu0 0.0
  %842 = vmatprep.subr.mxu0 0.0
  %843 = vmatpush2.msra.mxu0 0.0
  %844 = vmatprep.mubr.f32.mxu0 0.0
  %v845 = vand.u32 %v586, 4294901760
  %v846 = vsub.f32 %v586, %v845
  %847 = vmatmul.mubr.f32.gmra.mxu0 %v846
  %v848 = vpop.f32.mrf.mxu0
  %v849 = vadd.f32 %v765, %v848
  %v850 = vpop.f32.mrf.mxu0
  %v851 = vadd.f32 %v767, %v850
  %852 = vmatprep.mubr.f32.mxu0 0.0
  %v853 = vand.u32 %v589, 4294901760
  %v854 = vsub.f32 %v589, %v853
  %855 = vmatmul.mubr.f32.gmra.mxu0 %v854
  %v856 = vpop.f32.mrf.mxu0
  %v857 = vadd.f32 %v772, %v856
  %v858 = vpop.f32.mrf.mxu0
  %v859 = vadd.f32 %v774, %v858
  %860 = vdwg.mxu0
  %861 = vmatprep.subr.mxu0 0.0
  %862 = vmatpush1.msra.mxu0 0.0
  %863 = vmatprep.subr.mxu0 0.0
  %864 = vmatpush1.msra.mxu0 0.0
  %865 = vmatprep.subr.mxu0 0.0
  %866 = vmatpush1.msra.mxu0 0.0
  %867 = vmatprep.subr.mxu0 0.0
  %868 = vmatpush1.msra.mxu0 0.0
  %869 = vmatprep.subr.mxu0 0.0
  %870 = vmatpush1.msra.mxu0 0.0
  %871 = vmatprep.subr.mxu0 0.0
  %872 = vmatpush1.msra.mxu0 0.0
  %873 = vmatprep.subr.mxu0 0.0
  %874 = vmatpush1.msra.mxu0 0.0
  %875 = vmatprep.subr.mxu0 0.0
  %876 = vmatpush1.msra.mxu0 0.0
  %877 = vmatprep.subr.mxu0 0.0
  %878 = vmatpush1.msra.mxu0 0.0
  %879 = vmatprep.subr.mxu0 0.0
  %880 = vmatpush1.msra.mxu0 0.0
  %881 = vmatprep.subr.mxu0 0.0
  %882 = vmatpush1.msra.mxu0 0.0
  %883 = vmatprep.subr.mxu0 0.0
  %884 = vmatpush1.msra.mxu0 0.0
  %885 = vmatprep.subr.mxu0 0.0
  %886 = vmatpush1.msra.mxu0 0.0
  %887 = vmatprep.subr.mxu0 0.0
  %888 = vmatpush1.msra.mxu0 0.0
  %889 = vmatprep.subr.mxu0 0.0
  %890 = vmatpush1.msra.mxu0 0.0
  %v891 = vand.u32 %v596, 4294901760
  %892 = vmatprep.subr.mxu0 %v891
  %v893 = vand.u32 %v593, 4294901760
  %894 = vmatpush1.msra.mxu0 %v893
  %895 = vmatprep.subr.mxu0 0.0
  %896 = vmatpush2.msra.mxu0 0.0
  %897 = vmatprep.subr.mxu0 0.0
  %898 = vmatpush2.msra.mxu0 0.0
  %899 = vmatprep.subr.mxu0 0.0
  %900 = vmatpush2.msra.mxu0 0.0
  %901 = vmatprep.subr.mxu0 0.0
  %902 = vmatpush2.msra.mxu0 0.0
  %903 = vmatprep.subr.mxu0 0.0
  %904 = vmatpush2.msra.mxu0 0.0
  %905 = vmatprep.subr.mxu0 0.0
  %906 = vmatpush2.msra.mxu0 0.0
  %907 = vmatprep.subr.mxu0 0.0
  %908 = vmatpush2.msra.mxu0 0.0
  %909 = vmatprep.subr.mxu0 0.0
  %910 = vmatpush2.msra.mxu0 0.0
  %911 = vmatprep.subr.mxu0 0.0
  %912 = vmatpush2.msra.mxu0 0.0
  %913 = vmatprep.subr.mxu0 0.0
  %914 = vmatpush2.msra.mxu0 0.0
  %915 = vmatprep.subr.mxu0 0.0
  %916 = vmatpush2.msra.mxu0 0.0
  %917 = vmatprep.subr.mxu0 0.0
  %918 = vmatpush2.msra.mxu0 0.0
  %919 = vmatprep.subr.mxu0 0.0
  %920 = vmatpush2.msra.mxu0 0.0
  %921 = vmatprep.subr.mxu0 0.0
  %922 = vmatpush2.msra.mxu0 0.0
  %923 = vmatprep.subr.mxu0 0.0
  %924 = vmatpush2.msra.mxu0 0.0
  %925 = vmatprep.subr.mxu0 0.0
  %926 = vmatpush2.msra.mxu0 0.0
  %927 = vmatprep.mubr.f32.mxu0 0.0
  %v928 = vand.u32 %v586, 4294901760
  %v929 = vsub.f32 %v586, %v928
  %v930 = vand.u32 %v929, 4294901760
  %931 = vmatmul.mubr.f32.gmra.mxu0 %v930
  %v932 = vpop.f32.mrf.mxu0
  %v933 = vadd.f32 %v849, %v932
  %v934 = vpop.f32.mrf.mxu0
  %v935 = vadd.f32 %v851, %v934
  %936 = vmatprep.mubr.f32.mxu0 0.0
  %v937 = vand.u32 %v589, 4294901760
  %v938 = vsub.f32 %v589, %v937
  %v939 = vand.u32 %v938, 4294901760
  %940 = vmatmul.mubr.f32.gmra.mxu0 %v939
  %v941 = vpop.f32.mrf.mxu0
  %v942 = vadd.f32 %v857, %v941
  %v943 = vpop.f32.mrf.mxu0
  %v944 = vadd.f32 %v859, %v943
  %945 = vdwg.mxu0
  %946 = vmatprep.subr.mxu0 0.0
  %947 = vmatpush1.msra.mxu0 0.0
  %948 = vmatprep.subr.mxu0 0.0
  %949 = vmatpush1.msra.mxu0 0.0
  %950 = vmatprep.subr.mxu0 0.0
  %951 = vmatpush1.msra.mxu0 0.0
  %952 = vmatprep.subr.mxu0 0.0
  %953 = vmatpush1.msra.mxu0 0.0
  %954 = vmatprep.subr.mxu0 0.0
  %955 = vmatpush1.msra.mxu0 0.0
  %956 = vmatprep.subr.mxu0 0.0
  %957 = vmatpush1.msra.mxu0 0.0
  %958 = vmatprep.subr.mxu0 0.0
  %959 = vmatpush1.msra.mxu0 0.0
  %960 = vmatprep.subr.mxu0 0.0
  %961 = vmatpush1.msra.mxu0 0.0
  %962 = vmatprep.subr.mxu0 0.0
  %963 = vmatpush1.msra.mxu0 0.0
  %964 = vmatprep.subr.mxu0 0.0
  %965 = vmatpush1.msra.mxu0 0.0
  %966 = vmatprep.subr.mxu0 0.0
  %967 = vmatpush1.msra.mxu0 0.0
  %968 = vmatprep.subr.mxu0 0.0
  %969 = vmatpush1.msra.mxu0 0.0
  %970 = vmatprep.subr.mxu0 0.0
  %971 = vmatpush1.msra.mxu0 0.0
  %972 = vmatprep.subr.mxu0 0.0
  %973 = vmatpush1.msra.mxu0 0.0
  %974 = vmatprep.subr.mxu0 0.0
  %975 = vmatpush1.msra.mxu0 0.0
  %v976 = vand.u32 %v596, 4294901760
  %v977 = vsub.f32 %v596, %v976
  %v978 = vand.u32 %v977, 4294901760
  %979 = vmatprep.subr.mxu0 %v978
  %v980 = vand.u32 %v593, 4294901760
  %v981 = vsub.f32 %v593, %v980
  %v982 = vand.u32 %v981, 4294901760
  %983 = vmatpush1.msra.mxu0 %v982
  %984 = vmatprep.subr.mxu0 0.0
  %985 = vmatpush2.msra.mxu0 0.0
  %986 = vmatprep.subr.mxu0 0.0
  %987 = vmatpush2.msra.mxu0 0.0
  %988 = vmatprep.subr.mxu0 0.0
  %989 = vmatpush2.msra.mxu0 0.0
  %990 = vmatprep.subr.mxu0 0.0
  %991 = vmatpush2.msra.mxu0 0.0
  %992 = vmatprep.subr.mxu0 0.0
  %993 = vmatpush2.msra.mxu0 0.0
  %994 = vmatprep.subr.mxu0 0.0
  %995 = vmatpush2.msra.mxu0 0.0
  %996 = vmatprep.subr.mxu0 0.0
  %997 = vmatpush2.msra.mxu0 0.0
  %998 = vmatprep.subr.mxu0 0.0
  %999 = vmatpush2.msra.mxu0 0.0
  %1000 = vmatprep.subr.mxu0 0.0
  %1001 = vmatpush2.msra.mxu0 0.0
  %1002 = vmatprep.subr.mxu0 0.0
  %1003 = vmatpush2.msra.mxu0 0.0
  %1004 = vmatprep.subr.mxu0 0.0
  %1005 = vmatpush2.msra.mxu0 0.0
  %1006 = vmatprep.subr.mxu0 0.0
  %1007 = vmatpush2.msra.mxu0 0.0
  %1008 = vmatprep.subr.mxu0 0.0
  %1009 = vmatpush2.msra.mxu0 0.0
  %1010 = vmatprep.subr.mxu0 0.0
  %1011 = vmatpush2.msra.mxu0 0.0
  %1012 = vmatprep.subr.mxu0 0.0
  %1013 = vmatpush2.msra.mxu0 0.0
  %1014 = vmatprep.subr.mxu0 0.0
  %1015 = vmatpush2.msra.mxu0 0.0
  %1016 = vmatprep.mubr.f32.mxu0 0.0
  %v1017 = vand.u32 %v586, 4294901760
  %1018 = vmatmul.mubr.f32.gmra.mxu0 %v1017
  %v1019 = vpop.f32.mrf.mxu0
  %v1020 = vadd.f32 %v933, %v1019
  %v1021 = vpop.f32.mrf.mxu0
  %v1022 = vadd.f32 %v935, %v1021
  %1023 = vmatprep.mubr.f32.mxu0 0.0
  %v1024 = vand.u32 %v589, 4294901760
  %1025 = vmatmul.mubr.f32.gmra.mxu0 %v1024
  %v1026 = vpop.f32.mrf.mxu0
  %v1027 = vadd.f32 %v942, %v1026
  %v1028 = vpop.f32.mrf.mxu0
  %v1029 = vadd.f32 %v944, %v1028
  %1030 = vdwg.mxu0
  %1031 = vmatprep.subr.mxu0 0.0
  %1032 = vmatpush1.msra.mxu0 0.0
  %1033 = vmatprep.subr.mxu0 0.0
  %1034 = vmatpush1.msra.mxu0 0.0
  %1035 = vmatprep.subr.mxu0 0.0
  %1036 = vmatpush1.msra.mxu0 0.0
  %1037 = vmatprep.subr.mxu0 0.0
  %1038 = vmatpush1.msra.mxu0 0.0
  %1039 = vmatprep.subr.mxu0 0.0
  %1040 = vmatpush1.msra.mxu0 0.0
  %1041 = vmatprep.subr.mxu0 0.0
  %1042 = vmatpush1.msra.mxu0 0.0
  %1043 = vmatprep.subr.mxu0 0.0
  %1044 = vmatpush1.msra.mxu0 0.0
  %1045 = vmatprep.subr.mxu0 0.0
  %1046 = vmatpush1.msra.mxu0 0.0
  %1047 = vmatprep.subr.mxu0 0.0
  %1048 = vmatpush1.msra.mxu0 0.0
  %1049 = vmatprep.subr.mxu0 0.0
  %1050 = vmatpush1.msra.mxu0 0.0
  %1051 = vmatprep.subr.mxu0 0.0
  %1052 = vmatpush1.msra.mxu0 0.0
  %1053 = vmatprep.subr.mxu0 0.0
  %1054 = vmatpush1.msra.mxu0 0.0
  %1055 = vmatprep.subr.mxu0 0.0
  %1056 = vmatpush1.msra.mxu0 0.0
  %1057 = vmatprep.subr.mxu0 0.0
  %1058 = vmatpush1.msra.mxu0 0.0
  %1059 = vmatprep.subr.mxu0 0.0
  %1060 = vmatpush1.msra.mxu0 0.0
  %v1061 = vand.u32 %v596, 4294901760
  %1062 = vmatprep.subr.mxu0 %v1061
  %v1063 = vand.u32 %v593, 4294901760
  %1064 = vmatpush1.msra.mxu0 %v1063
  %1065 = vmatprep.subr.mxu0 0.0
  %1066 = vmatpush2.msra.mxu0 0.0
  %1067 = vmatprep.subr.mxu0 0.0
  %1068 = vmatpush2.msra.mxu0 0.0
  %1069 = vmatprep.subr.mxu0 0.0
  %1070 = vmatpush2.msra.mxu0 0.0
  %1071 = vmatprep.subr.mxu0 0.0
  %1072 = vmatpush2.msra.mxu0 0.0
  %1073 = vmatprep.subr.mxu0 0.0
  %1074 = vmatpush2.msra.mxu0 0.0
  %1075 = vmatprep.subr.mxu0 0.0
  %1076 = vmatpush2.msra.mxu0 0.0
  %1077 = vmatprep.subr.mxu0 0.0
  %1078 = vmatpush2.msra.mxu0 0.0
  %1079 = vmatprep.subr.mxu0 0.0
  %1080 = vmatpush2.msra.mxu0 0.0
  %1081 = vmatprep.subr.mxu0 0.0
  %1082 = vmatpush2.msra.mxu0 0.0
  %1083 = vmatprep.subr.mxu0 0.0
  %1084 = vmatpush2.msra.mxu0 0.0
  %1085 = vmatprep.subr.mxu0 0.0
  %1086 = vmatpush2.msra.mxu0 0.0
  %1087 = vmatprep.subr.mxu0 0.0
  %1088 = vmatpush2.msra.mxu0 0.0
  %1089 = vmatprep.subr.mxu0 0.0
  %1090 = vmatpush2.msra.mxu0 0.0
  %1091 = vmatprep.subr.mxu0 0.0
  %1092 = vmatpush2.msra.mxu0 0.0
  %1093 = vmatprep.subr.mxu0 0.0
  %1094 = vmatpush2.msra.mxu0 0.0
  %1095 = vmatprep.subr.mxu0 0.0
  %1096 = vmatpush2.msra.mxu0 0.0
  %1097 = vmatprep.mubr.f32.mxu0 0.0
  %v1098 = vand.u32 %v586, 4294901760
  %1099 = vmatmul.mubr.f32.gmra.mxu0 %v1098
  %v1100 = vpop.f32.mrf.mxu0
  %v1101 = vadd.f32 %v1020, %v1100
  %v1102 = vpop.f32.mrf.mxu0
  %v1103 = vadd.f32 %v1022, %v1102
  %1104 = vmatprep.mubr.f32.mxu0 0.0
  %v1105 = vand.u32 %v589, 4294901760
  %1106 = vmatmul.mubr.f32.gmra.mxu0 %v1105
  %v1107 = vpop.f32.mrf.mxu0
  %v1108 = vadd.f32 %v1027, %v1107
  %v1109 = vpop.f32.mrf.mxu0
  %v1110 = vadd.f32 %v1029, %v1109
  %1111 = vdwg.mxu0
  %v1112 = vand.u32 %v579, 4294901760
  %1113 = vmatprep.subr.mxu0 %v1112
  %v1114 = vand.u32 %v578, 4294901760
  %1115 = vmatpush1.msra.mxu0 %v1114
  %v1116 = vand.u32 %v577, 4294901760
  %1117 = vmatprep.subr.mxu0 %v1116
  %v1118 = vand.u32 %v576, 4294901760
  %1119 = vmatpush1.msra.mxu0 %v1118
  %v1120 = vand.u32 %v575, 4294901760
  %1121 = vmatprep.subr.mxu0 %v1120
  %v1122 = vand.u32 %v574, 4294901760
  %1123 = vmatpush1.msra.mxu0 %v1122
  %v1124 = vand.u32 %v573, 4294901760
  %1125 = vmatprep.subr.mxu0 %v1124
  %v1126 = vand.u32 %v572, 4294901760
  %1127 = vmatpush1.msra.mxu0 %v1126
  %v1128 = vand.u32 %v571, 4294901760
  %1129 = vmatprep.subr.mxu0 %v1128
  %v1130 = vand.u32 %v570, 4294901760
  %1131 = vmatpush1.msra.mxu0 %v1130
  %v1132 = vand.u32 %v569, 4294901760
  %1133 = vmatprep.subr.mxu0 %v1132
  %v1134 = vand.u32 %v568, 4294901760
  %1135 = vmatpush1.msra.mxu0 %v1134
  %v1136 = vand.u32 %v567, 4294901760
  %1137 = vmatprep.subr.mxu0 %v1136
  %v1138 = vand.u32 %v566, 4294901760
  %1139 = vmatpush1.msra.mxu0 %v1138
  %v1140 = vand.u32 %v565, 4294901760
  %1141 = vmatprep.subr.mxu0 %v1140
  %v1142 = vand.u32 %v564, 4294901760
  %1143 = vmatpush1.msra.mxu0 %v1142
  %v1144 = vand.u32 %v563, 4294901760
  %1145 = vmatprep.subr.mxu0 %v1144
  %v1146 = vand.u32 %v562, 4294901760
  %1147 = vmatpush1.msra.mxu0 %v1146
  %v1148 = vand.u32 %v561, 4294901760
  %1149 = vmatprep.subr.mxu0 %v1148
  %v1150 = vand.u32 %v560, 4294901760
  %1151 = vmatpush1.msra.mxu0 %v1150
  %v1152 = vand.u32 %v559, 4294901760
  %1153 = vmatprep.subr.mxu0 %v1152
  %v1154 = vand.u32 %v558, 4294901760
  %1155 = vmatpush1.msra.mxu0 %v1154
  %v1156 = vand.u32 %v557, 4294901760
  %1157 = vmatprep.subr.mxu0 %v1156
  %v1158 = vand.u32 %v556, 4294901760
  %1159 = vmatpush1.msra.mxu0 %v1158
  %v1160 = vand.u32 %v555, 4294901760
  %1161 = vmatprep.subr.mxu0 %v1160
  %v1162 = vand.u32 %v554, 4294901760
  %1163 = vmatpush1.msra.mxu0 %v1162
  %v1164 = vand.u32 %v553, 4294901760
  %1165 = vmatprep.subr.mxu0 %v1164
  %v1166 = vand.u32 %v552, 4294901760
  %1167 = vmatpush1.msra.mxu0 %v1166
  %v1168 = vand.u32 %v551, 4294901760
  %1169 = vmatprep.subr.mxu0 %v1168
  %v1170 = vand.u32 %v550, 4294901760
  %1171 = vmatpush1.msra.mxu0 %v1170
  %v1172 = vand.u32 %v549, 4294901760
  %1173 = vmatprep.subr.mxu0 %v1172
  %v1174 = vand.u32 %v548, 4294901760
  %1175 = vmatpush1.msra.mxu0 %v1174
  %1176 = vmatprep.subr.mxu0 0.0
  %1177 = vmatpush2.msra.mxu0 0.0
  %1178 = vmatprep.subr.mxu0 0.0
  %1179 = vmatpush2.msra.mxu0 0.0
  %1180 = vmatprep.subr.mxu0 0.0
  %1181 = vmatpush2.msra.mxu0 0.0
  %1182 = vmatprep.subr.mxu0 0.0
  %1183 = vmatpush2.msra.mxu0 0.0
  %1184 = vmatprep.subr.mxu0 0.0
  %1185 = vmatpush2.msra.mxu0 0.0
  %1186 = vmatprep.subr.mxu0 0.0
  %1187 = vmatpush2.msra.mxu0 0.0
  %1188 = vmatprep.subr.mxu0 0.0
  %1189 = vmatpush2.msra.mxu0 0.0
  %1190 = vmatprep.subr.mxu0 0.0
  %1191 = vmatpush2.msra.mxu0 0.0
  %1192 = vmatprep.subr.mxu0 0.0
  %1193 = vmatpush2.msra.mxu0 0.0
  %1194 = vmatprep.subr.mxu0 0.0
  %1195 = vmatpush2.msra.mxu0 0.0
  %1196 = vmatprep.subr.mxu0 0.0
  %1197 = vmatpush2.msra.mxu0 0.0
  %1198 = vmatprep.subr.mxu0 0.0
  %1199 = vmatpush2.msra.mxu0 0.0
  %1200 = vmatprep.subr.mxu0 0.0
  %1201 = vmatpush2.msra.mxu0 0.0
  %1202 = vmatprep.subr.mxu0 0.0
  %1203 = vmatpush2.msra.mxu0 0.0
  %1204 = vmatprep.subr.mxu0 0.0
  %1205 = vmatpush2.msra.mxu0 0.0
  %1206 = vmatprep.subr.mxu0 0.0
  %1207 = vmatpush2.msra.mxu0 0.0
  %1208 = vmatprep.mubr.f32.mxu0 0.0
  %v1209 = vand.u32 %v546, 4294901760
  %v1210 = vsub.f32 %v546, %v1209
  %v1211 = vand.u32 %v1210, 4294901760
  %v1212 = vsub.f32 %v1210, %v1211
  %v1213 = vand.u32 %v1212, 4294901760
  %1214 = vmatmul.mubr.f32.gmra.mxu0 %v1213
  %v1215 = vpop.f32.mrf.mxu0
  %v1216 = vadd.f32 %v1101, %v1215
  %v1217 = vpop.f32.mrf.mxu0
  %v1218 = vadd.f32 %v1103, %v1217
  %1219 = vmatprep.mubr.f32.mxu0 0.0
  %v1220 = vand.u32 %v547, 4294901760
  %v1221 = vsub.f32 %v547, %v1220
  %v1222 = vand.u32 %v1221, 4294901760
  %v1223 = vsub.f32 %v1221, %v1222
  %v1224 = vand.u32 %v1223, 4294901760
  %1225 = vmatmul.mubr.f32.gmra.mxu0 %v1224
  %v1226 = vpop.f32.mrf.mxu0
  %v1227 = vadd.f32 %v1108, %v1226
  %v1228 = vpop.f32.mrf.mxu0
  %v1229 = vadd.f32 %v1110, %v1228
  %1230 = vdwg.mxu0
  %v1231 = vand.u32 %v579, 4294901760
  %v1232 = vsub.f32 %v579, %v1231
  %v1233 = vand.u32 %v1232, 4294901760
  %v1234 = vsub.f32 %v1232, %v1233
  %v1235 = vand.u32 %v1234, 4294901760
  %1236 = vmatprep.subr.mxu0 %v1235
  %v1237 = vand.u32 %v578, 4294901760
  %v1238 = vsub.f32 %v578, %v1237
  %v1239 = vand.u32 %v1238, 4294901760
  %v1240 = vsub.f32 %v1238, %v1239
  %v1241 = vand.u32 %v1240, 4294901760
  %1242 = vmatpush1.msra.mxu0 %v1241
  %v1243 = vand.u32 %v577, 4294901760
  %v1244 = vsub.f32 %v577, %v1243
  %v1245 = vand.u32 %v1244, 4294901760
  %v1246 = vsub.f32 %v1244, %v1245
  %v1247 = vand.u32 %v1246, 4294901760
  %1248 = vmatprep.subr.mxu0 %v1247
  %v1249 = vand.u32 %v576, 4294901760
  %v1250 = vsub.f32 %v576, %v1249
  %v1251 = vand.u32 %v1250, 4294901760
  %v1252 = vsub.f32 %v1250, %v1251
  %v1253 = vand.u32 %v1252, 4294901760
  %1254 = vmatpush1.msra.mxu0 %v1253
  %v1255 = vand.u32 %v575, 4294901760
  %v1256 = vsub.f32 %v575, %v1255
  %v1257 = vand.u32 %v1256, 4294901760
  %v1258 = vsub.f32 %v1256, %v1257
  %v1259 = vand.u32 %v1258, 4294901760
  %1260 = vmatprep.subr.mxu0 %v1259
  %v1261 = vand.u32 %v574, 4294901760
  %v1262 = vsub.f32 %v574, %v1261
  %v1263 = vand.u32 %v1262, 4294901760
  %v1264 = vsub.f32 %v1262, %v1263
  %v1265 = vand.u32 %v1264, 4294901760
  %1266 = vmatpush1.msra.mxu0 %v1265
  %v1267 = vand.u32 %v573, 4294901760
  %v1268 = vsub.f32 %v573, %v1267
  %v1269 = vand.u32 %v1268, 4294901760
  %v1270 = vsub.f32 %v1268, %v1269
  %v1271 = vand.u32 %v1270, 4294901760
  %1272 = vmatprep.subr.mxu0 %v1271
  %v1273 = vand.u32 %v572, 4294901760
  %v1274 = vsub.f32 %v572, %v1273
  %v1275 = vand.u32 %v1274, 4294901760
  %v1276 = vsub.f32 %v1274, %v1275
  %v1277 = vand.u32 %v1276, 4294901760
  %1278 = vmatpush1.msra.mxu0 %v1277
  %v1279 = vand.u32 %v571, 4294901760
  %v1280 = vsub.f32 %v571, %v1279
  %v1281 = vand.u32 %v1280, 4294901760
  %v1282 = vsub.f32 %v1280, %v1281
  %v1283 = vand.u32 %v1282, 4294901760
  %1284 = vmatprep.subr.mxu0 %v1283
  %v1285 = vand.u32 %v570, 4294901760
  %v1286 = vsub.f32 %v570, %v1285
  %v1287 = vand.u32 %v1286, 4294901760
  %v1288 = vsub.f32 %v1286, %v1287
  %v1289 = vand.u32 %v1288, 4294901760
  %1290 = vmatpush1.msra.mxu0 %v1289
  %v1291 = vand.u32 %v569, 4294901760
  %v1292 = vsub.f32 %v569, %v1291
  %v1293 = vand.u32 %v1292, 4294901760
  %v1294 = vsub.f32 %v1292, %v1293
  %v1295 = vand.u32 %v1294, 4294901760
  %1296 = vmatprep.subr.mxu0 %v1295
  %v1297 = vand.u32 %v568, 4294901760
  %v1298 = vsub.f32 %v568, %v1297
  %v1299 = vand.u32 %v1298, 4294901760
  %v1300 = vsub.f32 %v1298, %v1299
  %v1301 = vand.u32 %v1300, 4294901760
  %1302 = vmatpush1.msra.mxu0 %v1301
  %v1303 = vand.u32 %v567, 4294901760
  %v1304 = vsub.f32 %v567, %v1303
  %v1305 = vand.u32 %v1304, 4294901760
  %v1306 = vsub.f32 %v1304, %v1305
  %v1307 = vand.u32 %v1306, 4294901760
  %1308 = vmatprep.subr.mxu0 %v1307
  %v1309 = vand.u32 %v566, 4294901760
  %v1310 = vsub.f32 %v566, %v1309
  %v1311 = vand.u32 %v1310, 4294901760
  %v1312 = vsub.f32 %v1310, %v1311
  %v1313 = vand.u32 %v1312, 4294901760
  %1314 = vmatpush1.msra.mxu0 %v1313
  %v1315 = vand.u32 %v565, 4294901760
  %v1316 = vsub.f32 %v565, %v1315
  %v1317 = vand.u32 %v1316, 4294901760
  %v1318 = vsub.f32 %v1316, %v1317
  %v1319 = vand.u32 %v1318, 4294901760
  %1320 = vmatprep.subr.mxu0 %v1319
  %v1321 = vand.u32 %v564, 4294901760
  %v1322 = vsub.f32 %v564, %v1321
  %v1323 = vand.u32 %v1322, 4294901760
  %v1324 = vsub.f32 %v1322, %v1323
  %v1325 = vand.u32 %v1324, 4294901760
  %1326 = vmatpush1.msra.mxu0 %v1325
  %v1327 = vand.u32 %v563, 4294901760
  %v1328 = vsub.f32 %v563, %v1327
  %v1329 = vand.u32 %v1328, 4294901760
  %v1330 = vsub.f32 %v1328, %v1329
  %v1331 = vand.u32 %v1330, 4294901760
  %1332 = vmatprep.subr.mxu0 %v1331
  %v1333 = vand.u32 %v562, 4294901760
  %v1334 = vsub.f32 %v562, %v1333
  %v1335 = vand.u32 %v1334, 4294901760
  %v1336 = vsub.f32 %v1334, %v1335
  %v1337 = vand.u32 %v1336, 4294901760
  %1338 = vmatpush1.msra.mxu0 %v1337
  %v1339 = vand.u32 %v561, 4294901760
  %v1340 = vsub.f32 %v561, %v1339
  %v1341 = vand.u32 %v1340, 4294901760
  %v1342 = vsub.f32 %v1340, %v1341
  %v1343 = vand.u32 %v1342, 4294901760
  %1344 = vmatprep.subr.mxu0 %v1343
  %v1345 = vand.u32 %v560, 4294901760
  %v1346 = vsub.f32 %v560, %v1345
  %v1347 = vand.u32 %v1346, 4294901760
  %v1348 = vsub.f32 %v1346, %v1347
  %v1349 = vand.u32 %v1348, 4294901760
  %1350 = vmatpush1.msra.mxu0 %v1349
  %v1351 = vand.u32 %v559, 4294901760
  %v1352 = vsub.f32 %v559, %v1351
  %v1353 = vand.u32 %v1352, 4294901760
  %v1354 = vsub.f32 %v1352, %v1353
  %v1355 = vand.u32 %v1354, 4294901760
  %1356 = vmatprep.subr.mxu0 %v1355
  %v1357 = vand.u32 %v558, 4294901760
  %v1358 = vsub.f32 %v558, %v1357
  %v1359 = vand.u32 %v1358, 4294901760
  %v1360 = vsub.f32 %v1358, %v1359
  %v1361 = vand.u32 %v1360, 4294901760
  %1362 = vmatpush1.msra.mxu0 %v1361
  %v1363 = vand.u32 %v557, 4294901760
  %v1364 = vsub.f32 %v557, %v1363
  %v1365 = vand.u32 %v1364, 4294901760
  %v1366 = vsub.f32 %v1364, %v1365
  %v1367 = vand.u32 %v1366, 4294901760
  %1368 = vmatprep.subr.mxu0 %v1367
  %v1369 = vand.u32 %v556, 4294901760
  %v1370 = vsub.f32 %v556, %v1369
  %v1371 = vand.u32 %v1370, 4294901760
  %v1372 = vsub.f32 %v1370, %v1371
  %v1373 = vand.u32 %v1372, 4294901760
  %1374 = vmatpush1.msra.mxu0 %v1373
  %v1375 = vand.u32 %v555, 4294901760
  %v1376 = vsub.f32 %v555, %v1375
  %v1377 = vand.u32 %v1376, 4294901760
  %v1378 = vsub.f32 %v1376, %v1377
  %v1379 = vand.u32 %v1378, 4294901760
  %1380 = vmatprep.subr.mxu0 %v1379
  %v1381 = vand.u32 %v554, 4294901760
  %v1382 = vsub.f32 %v554, %v1381
  %v1383 = vand.u32 %v1382, 4294901760
  %v1384 = vsub.f32 %v1382, %v1383
  %v1385 = vand.u32 %v1384, 4294901760
  %1386 = vmatpush1.msra.mxu0 %v1385
  %v1387 = vand.u32 %v553, 4294901760
  %v1388 = vsub.f32 %v553, %v1387
  %v1389 = vand.u32 %v1388, 4294901760
  %v1390 = vsub.f32 %v1388, %v1389
  %v1391 = vand.u32 %v1390, 4294901760
  %1392 = vmatprep.subr.mxu0 %v1391
  %v1393 = vand.u32 %v552, 4294901760
  %v1394 = vsub.f32 %v552, %v1393
  %v1395 = vand.u32 %v1394, 4294901760
  %v1396 = vsub.f32 %v1394, %v1395
  %v1397 = vand.u32 %v1396, 4294901760
  %1398 = vmatpush1.msra.mxu0 %v1397
  %v1399 = vand.u32 %v551, 4294901760
  %v1400 = vsub.f32 %v551, %v1399
  %v1401 = vand.u32 %v1400, 4294901760
  %v1402 = vsub.f32 %v1400, %v1401
  %v1403 = vand.u32 %v1402, 4294901760
  %1404 = vmatprep.subr.mxu0 %v1403
  %v1405 = vand.u32 %v550, 4294901760
  %v1406 = vsub.f32 %v550, %v1405
  %v1407 = vand.u32 %v1406, 4294901760
  %v1408 = vsub.f32 %v1406, %v1407
  %v1409 = vand.u32 %v1408, 4294901760
  %1410 = vmatpush1.msra.mxu0 %v1409
  %v1411 = vand.u32 %v549, 4294901760
  %v1412 = vsub.f32 %v549, %v1411
  %v1413 = vand.u32 %v1412, 4294901760
  %v1414 = vsub.f32 %v1412, %v1413
  %v1415 = vand.u32 %v1414, 4294901760
  %1416 = vmatprep.subr.mxu0 %v1415
  %v1417 = vand.u32 %v548, 4294901760
  %v1418 = vsub.f32 %v548, %v1417
  %v1419 = vand.u32 %v1418, 4294901760
  %v1420 = vsub.f32 %v1418, %v1419
  %v1421 = vand.u32 %v1420, 4294901760
  %1422 = vmatpush1.msra.mxu0 %v1421
  %1423 = vmatprep.subr.mxu0 0.0
  %1424 = vmatpush2.msra.mxu0 0.0
  %1425 = vmatprep.subr.mxu0 0.0
  %1426 = vmatpush2.msra.mxu0 0.0
  %1427 = vmatprep.subr.mxu0 0.0
  %1428 = vmatpush2.msra.mxu0 0.0
  %1429 = vmatprep.subr.mxu0 0.0
  %1430 = vmatpush2.msra.mxu0 0.0
  %1431 = vmatprep.subr.mxu0 0.0
  %1432 = vmatpush2.msra.mxu0 0.0
  %1433 = vmatprep.subr.mxu0 0.0
  %1434 = vmatpush2.msra.mxu0 0.0
  %1435 = vmatprep.subr.mxu0 0.0
  %1436 = vmatpush2.msra.mxu0 0.0
  %1437 = vmatprep.subr.mxu0 0.0
  %1438 = vmatpush2.msra.mxu0 0.0
  %1439 = vmatprep.subr.mxu0 0.0
  %1440 = vmatpush2.msra.mxu0 0.0
  %1441 = vmatprep.subr.mxu0 0.0
  %1442 = vmatpush2.msra.mxu0 0.0
  %1443 = vmatprep.subr.mxu0 0.0
  %1444 = vmatpush2.msra.mxu0 0.0
  %1445 = vmatprep.subr.mxu0 0.0
  %1446 = vmatpush2.msra.mxu0 0.0
  %1447 = vmatprep.subr.mxu0 0.0
  %1448 = vmatpush2.msra.mxu0 0.0
  %1449 = vmatprep.subr.mxu0 0.0
  %1450 = vmatpush2.msra.mxu0 0.0
  %1451 = vmatprep.subr.mxu0 0.0
  %1452 = vmatpush2.msra.mxu0 0.0
  %1453 = vmatprep.subr.mxu0 0.0
  %1454 = vmatpush2.msra.mxu0 0.0
  %1455 = vmatprep.mubr.f32.mxu0 0.0
  %v1456 = vand.u32 %v546, 4294901760
  %1457 = vmatmul.mubr.f32.gmra.mxu0 %v1456
  %v1458 = vpop.f32.mrf.mxu0
  %v1459 = vadd.f32 %v1216, %v1458
  %v1460 = vpop.f32.mrf.mxu0
  %v1461 = vadd.f32 %v1218, %v1460
  %1462 = vmatprep.mubr.f32.mxu0 0.0
  %v1463 = vand.u32 %v547, 4294901760
  %1464 = vmatmul.mubr.f32.gmra.mxu0 %v1463
  %v1465 = vpop.f32.mrf.mxu0
  %v1466 = vadd.f32 %v1227, %v1465
  %v1467 = vpop.f32.mrf.mxu0
  %v1468 = vadd.f32 %v1229, %v1467
  %1469 = vdwg.mxu0
  %v1470 = vand.u32 %v579, 4294901760
  %v1471 = vsub.f32 %v579, %v1470
  %1472 = vmatprep.subr.mxu0 %v1471
  %v1473 = vand.u32 %v578, 4294901760
  %v1474 = vsub.f32 %v578, %v1473
  %1475 = vmatpush1.msra.mxu0 %v1474
  %v1476 = vand.u32 %v577, 4294901760
  %v1477 = vsub.f32 %v577, %v1476
  %1478 = vmatprep.subr.mxu0 %v1477
  %v1479 = vand.u32 %v576, 4294901760
  %v1480 = vsub.f32 %v576, %v1479
  %1481 = vmatpush1.msra.mxu0 %v1480
  %v1482 = vand.u32 %v575, 4294901760
  %v1483 = vsub.f32 %v575, %v1482
  %1484 = vmatprep.subr.mxu0 %v1483
  %v1485 = vand.u32 %v574, 4294901760
  %v1486 = vsub.f32 %v574, %v1485
  %1487 = vmatpush1.msra.mxu0 %v1486
  %v1488 = vand.u32 %v573, 4294901760
  %v1489 = vsub.f32 %v573, %v1488
  %1490 = vmatprep.subr.mxu0 %v1489
  %v1491 = vand.u32 %v572, 4294901760
  %v1492 = vsub.f32 %v572, %v1491
  %1493 = vmatpush1.msra.mxu0 %v1492
  %v1494 = vand.u32 %v571, 4294901760
  %v1495 = vsub.f32 %v571, %v1494
  %1496 = vmatprep.subr.mxu0 %v1495
  %v1497 = vand.u32 %v570, 4294901760
  %v1498 = vsub.f32 %v570, %v1497
  %1499 = vmatpush1.msra.mxu0 %v1498
  %v1500 = vand.u32 %v569, 4294901760
  %v1501 = vsub.f32 %v569, %v1500
  %1502 = vmatprep.subr.mxu0 %v1501
  %v1503 = vand.u32 %v568, 4294901760
  %v1504 = vsub.f32 %v568, %v1503
  %1505 = vmatpush1.msra.mxu0 %v1504
  %v1506 = vand.u32 %v567, 4294901760
  %v1507 = vsub.f32 %v567, %v1506
  %1508 = vmatprep.subr.mxu0 %v1507
  %v1509 = vand.u32 %v566, 4294901760
  %v1510 = vsub.f32 %v566, %v1509
  %1511 = vmatpush1.msra.mxu0 %v1510
  %v1512 = vand.u32 %v565, 4294901760
  %v1513 = vsub.f32 %v565, %v1512
  %1514 = vmatprep.subr.mxu0 %v1513
  %v1515 = vand.u32 %v564, 4294901760
  %v1516 = vsub.f32 %v564, %v1515
  %1517 = vmatpush1.msra.mxu0 %v1516
  %v1518 = vand.u32 %v563, 4294901760
  %v1519 = vsub.f32 %v563, %v1518
  %1520 = vmatprep.subr.mxu0 %v1519
  %v1521 = vand.u32 %v562, 4294901760
  %v1522 = vsub.f32 %v562, %v1521
  %1523 = vmatpush1.msra.mxu0 %v1522
  %v1524 = vand.u32 %v561, 4294901760
  %v1525 = vsub.f32 %v561, %v1524
  %1526 = vmatprep.subr.mxu0 %v1525
  %v1527 = vand.u32 %v560, 4294901760
  %v1528 = vsub.f32 %v560, %v1527
  %1529 = vmatpush1.msra.mxu0 %v1528
  %v1530 = vand.u32 %v559, 4294901760
  %v1531 = vsub.f32 %v559, %v1530
  %1532 = vmatprep.subr.mxu0 %v1531
  %v1533 = vand.u32 %v558, 4294901760
  %v1534 = vsub.f32 %v558, %v1533
  %1535 = vmatpush1.msra.mxu0 %v1534
  %v1536 = vand.u32 %v557, 4294901760
  %v1537 = vsub.f32 %v557, %v1536
  %1538 = vmatprep.subr.mxu0 %v1537
  %v1539 = vand.u32 %v556, 4294901760
  %v1540 = vsub.f32 %v556, %v1539
  %1541 = vmatpush1.msra.mxu0 %v1540
  %v1542 = vand.u32 %v555, 4294901760
  %v1543 = vsub.f32 %v555, %v1542
  %1544 = vmatprep.subr.mxu0 %v1543
  %v1545 = vand.u32 %v554, 4294901760
  %v1546 = vsub.f32 %v554, %v1545
  %1547 = vmatpush1.msra.mxu0 %v1546
  %v1548 = vand.u32 %v553, 4294901760
  %v1549 = vsub.f32 %v553, %v1548
  %1550 = vmatprep.subr.mxu0 %v1549
  %v1551 = vand.u32 %v552, 4294901760
  %v1552 = vsub.f32 %v552, %v1551
  %1553 = vmatpush1.msra.mxu0 %v1552
  %v1554 = vand.u32 %v551, 4294901760
  %v1555 = vsub.f32 %v551, %v1554
  %1556 = vmatprep.subr.mxu0 %v1555
  %v1557 = vand.u32 %v550, 4294901760
  %v1558 = vsub.f32 %v550, %v1557
  %1559 = vmatpush1.msra.mxu0 %v1558
  %v1560 = vand.u32 %v549, 4294901760
  %v1561 = vsub.f32 %v549, %v1560
  %1562 = vmatprep.subr.mxu0 %v1561
  %v1563 = vand.u32 %v548, 4294901760
  %v1564 = vsub.f32 %v548, %v1563
  %1565 = vmatpush1.msra.mxu0 %v1564
  %1566 = vmatprep.subr.mxu0 0.0
  %1567 = vmatpush2.msra.mxu0 0.0
  %1568 = vmatprep.subr.mxu0 0.0
  %1569 = vmatpush2.msra.mxu0 0.0
  %1570 = vmatprep.subr.mxu0 0.0
  %1571 = vmatpush2.msra.mxu0 0.0
  %1572 = vmatprep.subr.mxu0 0.0
  %1573 = vmatpush2.msra.mxu0 0.0
  %1574 = vmatprep.subr.mxu0 0.0
  %1575 = vmatpush2.msra.mxu0 0.0
  %1576 = vmatprep.subr.mxu0 0.0
  %1577 = vmatpush2.msra.mxu0 0.0
  %1578 = vmatprep.subr.mxu0 0.0
  %1579 = vmatpush2.msra.mxu0 0.0
  %1580 = vmatprep.subr.mxu0 0.0
  %1581 = vmatpush2.msra.mxu0 0.0
  %1582 = vmatprep.subr.mxu0 0.0
  %1583 = vmatpush2.msra.mxu0 0.0
  %1584 = vmatprep.subr.mxu0 0.0
  %1585 = vmatpush2.msra.mxu0 0.0
  %1586 = vmatprep.subr.mxu0 0.0
  %1587 = vmatpush2.msra.mxu0 0.0
  %1588 = vmatprep.subr.mxu0 0.0
  %1589 = vmatpush2.msra.mxu0 0.0
  %1590 = vmatprep.subr.mxu0 0.0
  %1591 = vmatpush2.msra.mxu0 0.0
  %1592 = vmatprep.subr.mxu0 0.0
  %1593 = vmatpush2.msra.mxu0 0.0
  %1594 = vmatprep.subr.mxu0 0.0
  %1595 = vmatpush2.msra.mxu0 0.0
  %1596 = vmatprep.subr.mxu0 0.0
  %1597 = vmatpush2.msra.mxu0 0.0
  %1598 = vmatprep.mubr.f32.mxu0 0.0
  %v1599 = vand.u32 %v546, 4294901760
  %v1600 = vsub.f32 %v546, %v1599
  %1601 = vmatmul.mubr.f32.gmra.mxu0 %v1600
  %v1602 = vpop.f32.mrf.mxu0
  %v1603 = vadd.f32 %v1459, %v1602
  %v1604 = vpop.f32.mrf.mxu0
  %v1605 = vadd.f32 %v1461, %v1604
  %1606 = vmatprep.mubr.f32.mxu0 0.0
  %v1607 = vand.u32 %v547, 4294901760
  %v1608 = vsub.f32 %v547, %v1607
  %1609 = vmatmul.mubr.f32.gmra.mxu0 %v1608
  %v1610 = vpop.f32.mrf.mxu0
  %v1611 = vadd.f32 %v1466, %v1610
  %v1612 = vpop.f32.mrf.mxu0
  %v1613 = vadd.f32 %v1468, %v1612
  %1614 = vdwg.mxu0
  %v1615 = vand.u32 %v579, 4294901760
  %1616 = vmatprep.subr.mxu0 %v1615
  %v1617 = vand.u32 %v578, 4294901760
  %1618 = vmatpush1.msra.mxu0 %v1617
  %v1619 = vand.u32 %v577, 4294901760
  %1620 = vmatprep.subr.mxu0 %v1619
  %v1621 = vand.u32 %v576, 4294901760
  %1622 = vmatpush1.msra.mxu0 %v1621
  %v1623 = vand.u32 %v575, 4294901760
  %1624 = vmatprep.subr.mxu0 %v1623
  %v1625 = vand.u32 %v574, 4294901760
  %1626 = vmatpush1.msra.mxu0 %v1625
  %v1627 = vand.u32 %v573, 4294901760
  %1628 = vmatprep.subr.mxu0 %v1627
  %v1629 = vand.u32 %v572, 4294901760
  %1630 = vmatpush1.msra.mxu0 %v1629
  %v1631 = vand.u32 %v571, 4294901760
  %1632 = vmatprep.subr.mxu0 %v1631
  %v1633 = vand.u32 %v570, 4294901760
  %1634 = vmatpush1.msra.mxu0 %v1633
  %v1635 = vand.u32 %v569, 4294901760
  %1636 = vmatprep.subr.mxu0 %v1635
  %v1637 = vand.u32 %v568, 4294901760
  %1638 = vmatpush1.msra.mxu0 %v1637
  %v1639 = vand.u32 %v567, 4294901760
  %1640 = vmatprep.subr.mxu0 %v1639
  %v1641 = vand.u32 %v566, 4294901760
  %1642 = vmatpush1.msra.mxu0 %v1641
  %v1643 = vand.u32 %v565, 4294901760
  %1644 = vmatprep.subr.mxu0 %v1643
  %v1645 = vand.u32 %v564, 4294901760
  %1646 = vmatpush1.msra.mxu0 %v1645
  %v1647 = vand.u32 %v563, 4294901760
  %1648 = vmatprep.subr.mxu0 %v1647
  %v1649 = vand.u32 %v562, 4294901760
  %1650 = vmatpush1.msra.mxu0 %v1649
  %v1651 = vand.u32 %v561, 4294901760
  %1652 = vmatprep.subr.mxu0 %v1651
  %v1653 = vand.u32 %v560, 4294901760
  %1654 = vmatpush1.msra.mxu0 %v1653
  %v1655 = vand.u32 %v559, 4294901760
  %1656 = vmatprep.subr.mxu0 %v1655
  %v1657 = vand.u32 %v558, 4294901760
  %1658 = vmatpush1.msra.mxu0 %v1657
  %v1659 = vand.u32 %v557, 4294901760
  %1660 = vmatprep.subr.mxu0 %v1659
  %v1661 = vand.u32 %v556, 4294901760
  %1662 = vmatpush1.msra.mxu0 %v1661
  %v1663 = vand.u32 %v555, 4294901760
  %1664 = vmatprep.subr.mxu0 %v1663
  %v1665 = vand.u32 %v554, 4294901760
  %1666 = vmatpush1.msra.mxu0 %v1665
  %v1667 = vand.u32 %v553, 4294901760
  %1668 = vmatprep.subr.mxu0 %v1667
  %v1669 = vand.u32 %v552, 4294901760
  %1670 = vmatpush1.msra.mxu0 %v1669
  %v1671 = vand.u32 %v551, 4294901760
  %1672 = vmatprep.subr.mxu0 %v1671
  %v1673 = vand.u32 %v550, 4294901760
  %1674 = vmatpush1.msra.mxu0 %v1673
  %v1675 = vand.u32 %v549, 4294901760
  %1676 = vmatprep.subr.mxu0 %v1675
  %v1677 = vand.u32 %v548, 4294901760
  %1678 = vmatpush1.msra.mxu0 %v1677
  %1679 = vmatprep.subr.mxu0 0.0
  %1680 = vmatpush2.msra.mxu0 0.0
  %1681 = vmatprep.subr.mxu0 0.0
  %1682 = vmatpush2.msra.mxu0 0.0
  %1683 = vmatprep.subr.mxu0 0.0
  %1684 = vmatpush2.msra.mxu0 0.0
  %1685 = vmatprep.subr.mxu0 0.0
  %1686 = vmatpush2.msra.mxu0 0.0
  %1687 = vmatprep.subr.mxu0 0.0
  %1688 = vmatpush2.msra.mxu0 0.0
  %1689 = vmatprep.subr.mxu0 0.0
  %1690 = vmatpush2.msra.mxu0 0.0
  %1691 = vmatprep.subr.mxu0 0.0
  %1692 = vmatpush2.msra.mxu0 0.0
  %1693 = vmatprep.subr.mxu0 0.0
  %1694 = vmatpush2.msra.mxu0 0.0
  %1695 = vmatprep.subr.mxu0 0.0
  %1696 = vmatpush2.msra.mxu0 0.0
  %1697 = vmatprep.subr.mxu0 0.0
  %1698 = vmatpush2.msra.mxu0 0.0
  %1699 = vmatprep.subr.mxu0 0.0
  %1700 = vmatpush2.msra.mxu0 0.0
  %1701 = vmatprep.subr.mxu0 0.0
  %1702 = vmatpush2.msra.mxu0 0.0
  %1703 = vmatprep.subr.mxu0 0.0
  %1704 = vmatpush2.msra.mxu0 0.0
  %1705 = vmatprep.subr.mxu0 0.0
  %1706 = vmatpush2.msra.mxu0 0.0
  %1707 = vmatprep.subr.mxu0 0.0
  %1708 = vmatpush2.msra.mxu0 0.0
  %1709 = vmatprep.subr.mxu0 0.0
  %1710 = vmatpush2.msra.mxu0 0.0
  %1711 = vmatprep.mubr.f32.mxu0 0.0
  %v1712 = vand.u32 %v546, 4294901760
  %v1713 = vsub.f32 %v546, %v1712
  %v1714 = vand.u32 %v1713, 4294901760
  %1715 = vmatmul.mubr.f32.gmra.mxu0 %v1714
  %v1716 = vpop.f32.mrf.mxu0
  %v1717 = vadd.f32 %v1603, %v1716
  %v1718 = vpop.f32.mrf.mxu0
  %v1719 = vadd.f32 %v1605, %v1718
  %1720 = vmatprep.mubr.f32.mxu0 0.0
  %v1721 = vand.u32 %v547, 4294901760
  %v1722 = vsub.f32 %v547, %v1721
  %v1723 = vand.u32 %v1722, 4294901760
  %1724 = vmatmul.mubr.f32.gmra.mxu0 %v1723
  %v1725 = vpop.f32.mrf.mxu0
  %v1726 = vadd.f32 %v1611, %v1725
  %v1727 = vpop.f32.mrf.mxu0
  %v1728 = vadd.f32 %v1613, %v1727
  %1729 = vdwg.mxu0
  %v1730 = vand.u32 %v579, 4294901760
  %v1731 = vsub.f32 %v579, %v1730
  %v1732 = vand.u32 %v1731, 4294901760
  %1733 = vmatprep.subr.mxu0 %v1732
  %v1734 = vand.u32 %v578, 4294901760
  %v1735 = vsub.f32 %v578, %v1734
  %v1736 = vand.u32 %v1735, 4294901760
  %1737 = vmatpush1.msra.mxu0 %v1736
  %v1738 = vand.u32 %v577, 4294901760
  %v1739 = vsub.f32 %v577, %v1738
  %v1740 = vand.u32 %v1739, 4294901760
  %1741 = vmatprep.subr.mxu0 %v1740
  %v1742 = vand.u32 %v576, 4294901760
  %v1743 = vsub.f32 %v576, %v1742
  %v1744 = vand.u32 %v1743, 4294901760
  %1745 = vmatpush1.msra.mxu0 %v1744
  %v1746 = vand.u32 %v575, 4294901760
  %v1747 = vsub.f32 %v575, %v1746
  %v1748 = vand.u32 %v1747, 4294901760
  %1749 = vmatprep.subr.mxu0 %v1748
  %v1750 = vand.u32 %v574, 4294901760
  %v1751 = vsub.f32 %v574, %v1750
  %v1752 = vand.u32 %v1751, 4294901760
  %1753 = vmatpush1.msra.mxu0 %v1752
  %v1754 = vand.u32 %v573, 4294901760
  %v1755 = vsub.f32 %v573, %v1754
  %v1756 = vand.u32 %v1755, 4294901760
  %1757 = vmatprep.subr.mxu0 %v1756
  %v1758 = vand.u32 %v572, 4294901760
  %v1759 = vsub.f32 %v572, %v1758
  %v1760 = vand.u32 %v1759, 4294901760
  %1761 = vmatpush1.msra.mxu0 %v1760
  %v1762 = vand.u32 %v571, 4294901760
  %v1763 = vsub.f32 %v571, %v1762
  %v1764 = vand.u32 %v1763, 4294901760
  %1765 = vmatprep.subr.mxu0 %v1764
  %v1766 = vand.u32 %v570, 4294901760
  %v1767 = vsub.f32 %v570, %v1766
  %v1768 = vand.u32 %v1767, 4294901760
  %1769 = vmatpush1.msra.mxu0 %v1768
  %v1770 = vand.u32 %v569, 4294901760
  %v1771 = vsub.f32 %v569, %v1770
  %v1772 = vand.u32 %v1771, 4294901760
  %1773 = vmatprep.subr.mxu0 %v1772
  %v1774 = vand.u32 %v568, 4294901760
  %v1775 = vsub.f32 %v568, %v1774
  %v1776 = vand.u32 %v1775, 4294901760
  %1777 = vmatpush1.msra.mxu0 %v1776
  %v1778 = vand.u32 %v567, 4294901760
  %v1779 = vsub.f32 %v567, %v1778
  %v1780 = vand.u32 %v1779, 4294901760
  %1781 = vmatprep.subr.mxu0 %v1780
  %v1782 = vand.u32 %v566, 4294901760
  %v1783 = vsub.f32 %v566, %v1782
  %v1784 = vand.u32 %v1783, 4294901760
  %1785 = vmatpush1.msra.mxu0 %v1784
  %v1786 = vand.u32 %v565, 4294901760
  %v1787 = vsub.f32 %v565, %v1786
  %v1788 = vand.u32 %v1787, 4294901760
  %1789 = vmatprep.subr.mxu0 %v1788
  %v1790 = vand.u32 %v564, 4294901760
  %v1791 = vsub.f32 %v564, %v1790
  %v1792 = vand.u32 %v1791, 4294901760
  %1793 = vmatpush1.msra.mxu0 %v1792
  %v1794 = vand.u32 %v563, 4294901760
  %v1795 = vsub.f32 %v563, %v1794
  %v1796 = vand.u32 %v1795, 4294901760
  %1797 = vmatprep.subr.mxu0 %v1796
  %v1798 = vand.u32 %v562, 4294901760
  %v1799 = vsub.f32 %v562, %v1798
  %v1800 = vand.u32 %v1799, 4294901760
  %1801 = vmatpush1.msra.mxu0 %v1800
  %v1802 = vand.u32 %v561, 4294901760
  %v1803 = vsub.f32 %v561, %v1802
  %v1804 = vand.u32 %v1803, 4294901760
  %1805 = vmatprep.subr.mxu0 %v1804
  %v1806 = vand.u32 %v560, 4294901760
  %v1807 = vsub.f32 %v560, %v1806
  %v1808 = vand.u32 %v1807, 4294901760
  %1809 = vmatpush1.msra.mxu0 %v1808
  %v1810 = vand.u32 %v559, 4294901760
  %v1811 = vsub.f32 %v559, %v1810
  %v1812 = vand.u32 %v1811, 4294901760
  %1813 = vmatprep.subr.mxu0 %v1812
  %v1814 = vand.u32 %v558, 4294901760
  %v1815 = vsub.f32 %v558, %v1814
  %v1816 = vand.u32 %v1815, 4294901760
  %1817 = vmatpush1.msra.mxu0 %v1816
  %v1818 = vand.u32 %v557, 4294901760
  %v1819 = vsub.f32 %v557, %v1818
  %v1820 = vand.u32 %v1819, 4294901760
  %1821 = vmatprep.subr.mxu0 %v1820
  %v1822 = vand.u32 %v556, 4294901760
  %v1823 = vsub.f32 %v556, %v1822
  %v1824 = vand.u32 %v1823, 4294901760
  %1825 = vmatpush1.msra.mxu0 %v1824
  %v1826 = vand.u32 %v555, 4294901760
  %v1827 = vsub.f32 %v555, %v1826
  %v1828 = vand.u32 %v1827, 4294901760
  %1829 = vmatprep.subr.mxu0 %v1828
  %v1830 = vand.u32 %v554, 4294901760
  %v1831 = vsub.f32 %v554, %v1830
  %v1832 = vand.u32 %v1831, 4294901760
  %1833 = vmatpush1.msra.mxu0 %v1832
  %v1834 = vand.u32 %v553, 4294901760
  %v1835 = vsub.f32 %v553, %v1834
  %v1836 = vand.u32 %v1835, 4294901760
  %1837 = vmatprep.subr.mxu0 %v1836
  %v1838 = vand.u32 %v552, 4294901760
  %v1839 = vsub.f32 %v552, %v1838
  %v1840 = vand.u32 %v1839, 4294901760
  %1841 = vmatpush1.msra.mxu0 %v1840
  %v1842 = vand.u32 %v551, 4294901760
  %v1843 = vsub.f32 %v551, %v1842
  %v1844 = vand.u32 %v1843, 4294901760
  %1845 = vmatprep.subr.mxu0 %v1844
  %v1846 = vand.u32 %v550, 4294901760
  %v1847 = vsub.f32 %v550, %v1846
  %v1848 = vand.u32 %v1847, 4294901760
  %1849 = vmatpush1.msra.mxu0 %v1848
  %v1850 = vand.u32 %v549, 4294901760
  %v1851 = vsub.f32 %v549, %v1850
  %v1852 = vand.u32 %v1851, 4294901760
  %1853 = vmatprep.subr.mxu0 %v1852
  %v1854 = vand.u32 %v548, 4294901760
  %v1855 = vsub.f32 %v548, %v1854
  %v1856 = vand.u32 %v1855, 4294901760
  %1857 = vmatpush1.msra.mxu0 %v1856
  %1858 = vmatprep.subr.mxu0 0.0
  %1859 = vmatpush2.msra.mxu0 0.0
  %1860 = vmatprep.subr.mxu0 0.0
  %1861 = vmatpush2.msra.mxu0 0.0
  %1862 = vmatprep.subr.mxu0 0.0
  %1863 = vmatpush2.msra.mxu0 0.0
  %1864 = vmatprep.subr.mxu0 0.0
  %1865 = vmatpush2.msra.mxu0 0.0
  %1866 = vmatprep.subr.mxu0 0.0
  %1867 = vmatpush2.msra.mxu0 0.0
  %1868 = vmatprep.subr.mxu0 0.0
  %1869 = vmatpush2.msra.mxu0 0.0
  %1870 = vmatprep.subr.mxu0 0.0
  %1871 = vmatpush2.msra.mxu0 0.0
  %1872 = vmatprep.subr.mxu0 0.0
  %1873 = vmatpush2.msra.mxu0 0.0
  %1874 = vmatprep.subr.mxu0 0.0
  %1875 = vmatpush2.msra.mxu0 0.0
  %1876 = vmatprep.subr.mxu0 0.0
  %1877 = vmatpush2.msra.mxu0 0.0
  %1878 = vmatprep.subr.mxu0 0.0
  %1879 = vmatpush2.msra.mxu0 0.0
  %1880 = vmatprep.subr.mxu0 0.0
  %1881 = vmatpush2.msra.mxu0 0.0
  %1882 = vmatprep.subr.mxu0 0.0
  %1883 = vmatpush2.msra.mxu0 0.0
  %1884 = vmatprep.subr.mxu0 0.0
  %1885 = vmatpush2.msra.mxu0 0.0
  %1886 = vmatprep.subr.mxu0 0.0
  %1887 = vmatpush2.msra.mxu0 0.0
  %1888 = vmatprep.subr.mxu0 0.0
  %1889 = vmatpush2.msra.mxu0 0.0
  %1890 = vmatprep.mubr.f32.mxu0 0.0
  %v1891 = vand.u32 %v546, 4294901760
  %1892 = vmatmul.mubr.f32.gmra.mxu0 %v1891
  %v1893 = vpop.f32.mrf.mxu0
  %v1894 = vadd.f32 %v1717, %v1893
  %v1895 = vpop.f32.mrf.mxu0
  %v1896 = vadd.f32 %v1719, %v1895
  %1897 = vmatprep.mubr.f32.mxu0 0.0
  %v1898 = vand.u32 %v547, 4294901760
  %1899 = vmatmul.mubr.f32.gmra.mxu0 %v1898
  %v1900 = vpop.f32.mrf.mxu0
  %v1901 = vadd.f32 %v1726, %v1900
  %v1902 = vpop.f32.mrf.mxu0
  %v1903 = vadd.f32 %v1728, %v1902
  %1904 = vdwg.mxu0
  %v1905 = vand.u32 %v579, 4294901760
  %1906 = vmatprep.subr.mxu0 %v1905
  %v1907 = vand.u32 %v578, 4294901760
  %1908 = vmatpush1.msra.mxu0 %v1907
  %v1909 = vand.u32 %v577, 4294901760
  %1910 = vmatprep.subr.mxu0 %v1909
  %v1911 = vand.u32 %v576, 4294901760
  %1912 = vmatpush1.msra.mxu0 %v1911
  %v1913 = vand.u32 %v575, 4294901760
  %1914 = vmatprep.subr.mxu0 %v1913
  %v1915 = vand.u32 %v574, 4294901760
  %1916 = vmatpush1.msra.mxu0 %v1915
  %v1917 = vand.u32 %v573, 4294901760
  %1918 = vmatprep.subr.mxu0 %v1917
  %v1919 = vand.u32 %v572, 4294901760
  %1920 = vmatpush1.msra.mxu0 %v1919
  %v1921 = vand.u32 %v571, 4294901760
  %1922 = vmatprep.subr.mxu0 %v1921
  %v1923 = vand.u32 %v570, 4294901760
  %1924 = vmatpush1.msra.mxu0 %v1923
  %v1925 = vand.u32 %v569, 4294901760
  %1926 = vmatprep.subr.mxu0 %v1925
  %v1927 = vand.u32 %v568, 4294901760
  %1928 = vmatpush1.msra.mxu0 %v1927
  %v1929 = vand.u32 %v567, 4294901760
  %1930 = vmatprep.subr.mxu0 %v1929
  %v1931 = vand.u32 %v566, 4294901760
  %1932 = vmatpush1.msra.mxu0 %v1931
  %v1933 = vand.u32 %v565, 4294901760
  %1934 = vmatprep.subr.mxu0 %v1933
  %v1935 = vand.u32 %v564, 4294901760
  %1936 = vmatpush1.msra.mxu0 %v1935
  %v1937 = vand.u32 %v563, 4294901760
  %1938 = vmatprep.subr.mxu0 %v1937
  %v1939 = vand.u32 %v562, 4294901760
  %1940 = vmatpush1.msra.mxu0 %v1939
  %v1941 = vand.u32 %v561, 4294901760
  %1942 = vmatprep.subr.mxu0 %v1941
  %v1943 = vand.u32 %v560, 4294901760
  %1944 = vmatpush1.msra.mxu0 %v1943
  %v1945 = vand.u32 %v559, 4294901760
  %1946 = vmatprep.subr.mxu0 %v1945
  %v1947 = vand.u32 %v558, 4294901760
  %1948 = vmatpush1.msra.mxu0 %v1947
  %v1949 = vand.u32 %v557, 4294901760
  %1950 = vmatprep.subr.mxu0 %v1949
  %v1951 = vand.u32 %v556, 4294901760
  %1952 = vmatpush1.msra.mxu0 %v1951
  %v1953 = vand.u32 %v555, 4294901760
  %1954 = vmatprep.subr.mxu0 %v1953
  %v1955 = vand.u32 %v554, 4294901760
  %1956 = vmatpush1.msra.mxu0 %v1955
  %v1957 = vand.u32 %v553, 4294901760
  %1958 = vmatprep.subr.mxu0 %v1957
  %v1959 = vand.u32 %v552, 4294901760
  %1960 = vmatpush1.msra.mxu0 %v1959
  %v1961 = vand.u32 %v551, 4294901760
  %1962 = vmatprep.subr.mxu0 %v1961
  %v1963 = vand.u32 %v550, 4294901760
  %1964 = vmatpush1.msra.mxu0 %v1963
  %v1965 = vand.u32 %v549, 4294901760
  %1966 = vmatprep.subr.mxu0 %v1965
  %v1967 = vand.u32 %v548, 4294901760
  %1968 = vmatpush1.msra.mxu0 %v1967
  %1969 = vmatprep.subr.mxu0 0.0
  %1970 = vmatpush2.msra.mxu0 0.0
  %1971 = vmatprep.subr.mxu0 0.0
  %1972 = vmatpush2.msra.mxu0 0.0
  %1973 = vmatprep.subr.mxu0 0.0
  %1974 = vmatpush2.msra.mxu0 0.0
  %1975 = vmatprep.subr.mxu0 0.0
  %1976 = vmatpush2.msra.mxu0 0.0
  %1977 = vmatprep.subr.mxu0 0.0
  %1978 = vmatpush2.msra.mxu0 0.0
  %1979 = vmatprep.subr.mxu0 0.0
  %1980 = vmatpush2.msra.mxu0 0.0
  %1981 = vmatprep.subr.mxu0 0.0
  %1982 = vmatpush2.msra.mxu0 0.0
  %1983 = vmatprep.subr.mxu0 0.0
  %1984 = vmatpush2.msra.mxu0 0.0
  %1985 = vmatprep.subr.mxu0 0.0
  %1986 = vmatpush2.msra.mxu0 0.0
  %1987 = vmatprep.subr.mxu0 0.0
  %1988 = vmatpush2.msra.mxu0 0.0
  %1989 = vmatprep.subr.mxu0 0.0
  %1990 = vmatpush2.msra.mxu0 0.0
  %1991 = vmatprep.subr.mxu0 0.0
  %1992 = vmatpush2.msra.mxu0 0.0
  %1993 = vmatprep.subr.mxu0 0.0
  %1994 = vmatpush2.msra.mxu0 0.0
  %1995 = vmatprep.subr.mxu0 0.0
  %1996 = vmatpush2.msra.mxu0 0.0
  %1997 = vmatprep.subr.mxu0 0.0
  %1998 = vmatpush2.msra.mxu0 0.0
  %1999 = vmatprep.subr.mxu0 0.0
  %2000 = vmatpush2.msra.mxu0 0.0
  %2001 = vmatprep.mubr.f32.mxu0 0.0
  %v2002 = vand.u32 %v546, 4294901760
  %2003 = vmatmul.mubr.f32.gmra.mxu0 %v2002
  %v2004 = vpop.f32.mrf.mxu0
  %v2005 = vadd.f32 %v1894, %v2004
  %v2006 = vpop.f32.mrf.mxu0
  %v2007 = vadd.f32 %v1896, %v2006
  %2008 = vmatprep.mubr.f32.mxu0 0.0
  %v2009 = vand.u32 %v547, 4294901760
  %2010 = vmatmul.mubr.f32.gmra.mxu0 %v2009
  %v2011 = vpop.f32.mrf.mxu0
  %v2012 = vadd.f32 %v1901, %v2011
  %v2013 = vpop.f32.mrf.mxu0
  %v2014 = vadd.f32 %v1903, %v2013
  %2015 = vdwg.mxu0
  %v2016 = vld [vmem:[%s6] sm:$0x3]
  %v2018 = vlaneseq
  %v2019 = vshrl.u32 %v2018, 7
  %v2020 = vsub.s32 0, %v2019
  %v2021 = vrot.slane %v2016, %v2020
  %v2022 = vlaneseq
  %v2023 = vshrl.u32 %v2022, 7
  %v2024 = vsub.s32 1, %v2023
  %v2025 = vrot.slane %v2016, %v2024
  %v2028 = vadd.f32 %v2005, %v2021
  %v2029 = vadd.f32 %v2007, %v2025
  %v2030 = vadd.f32 %v2012, %v2021
  %v2031 = vadd.f32 %v2014, %v2025
  %2032 = vst [vmem:[%s7] sm:$0xff] %v2028
  %2033 = vst [vmem:[%s7 + $0x8] sm:$0xff] %v2029
  %2034 = vst [vmem:[%s7 + $0x10] sm:$0xff] %v2030
  %2035 = vst [vmem:[%s7 + $0x18] sm:$0xff] %v2031
  // Predicated region
  $region30: #{pi_conv_lstm_forward.7} parent=0 // pred_check
    _
  $region31: #{pi_conv_lstm_forward.7} parent=0 // pred_check_branch
    %2037 = sbr.rel (0) target = $region33
  $region32: #{pi_conv_lstm_forward.7} parent=0 // pred_region
    _
  $region33: #{pi_conv_lstm_forward.7} parent=0 // pred_fallthru
    _
  // Predicated region
  $region34: #{pi_conv_lstm_forward.7} parent=0 // pred_check
    _
  $region35: #{pi_conv_lstm_forward.7} parent=0 // pred_check_branch
    %2039 = sbr.rel (0) target = $region37
  $region36: #{pi_conv_lstm_forward.7} parent=0 // pred_region
    _
  $region37: #{pi_conv_lstm_forward.7} parent=0 // pred_fallthru
    _

// kernel: pi_conv_lstm_forward.8
$region0: #{pi_conv_lstm_forward.8}
  #allocation0 [shape = 'u32[]', space=smem, size = 0x4, offset = 0x4, fixed_abs, tag = 'smem constant byte address 0x4 - core index']
  #allocation1 [shape = 'u32[144,128]{1,0:T(1,128)}', space=vmem, size = 0x12000, scoped, tag = 'internal scratch']
  #allocation2 [shape = 'f32[2,64]{1,0:T(2,128)}', space=vmem, size = 0x400, scoped, tag = 'scratch operand']
  #allocation3 [shape = 'f32[2,64]{1,0:T(2,128)}', space=vmem, size = 0x400, scoped, tag = 'scratch operand']
  %s0 = inlined_call_operand.vmem [shape: f32[8,2,256], index: 0, kind: input, shape index: {}]
  %s1 = inlined_call_operand.vmem [shape: f32[64,256], index: 1, kind: input, shape index: {}]
  %s2 = inlined_call_operand.vmem [shape: f32[2,64], index: 2, kind: input, shape index: {}]
  %s3 = inlined_call_operand.vmem [shape: f32[2,64], index: 3, kind: input, shape index: {}]
  %s4 = inlined_call_operand.vmem [shape: f32[8,2,64], index: 4, kind: output, shape index: {0}]
  %s5 = inlined_call_operand.hbm [shape: f32[2,64], index: 5, kind: output, shape index: {1}]
  %s6 = inlined_call_operand.hbm [shape: f32[2,64], index: 6, kind: output, shape index: {2}]
  %7 = xla_tuple %s4, %s5, %s6
  %s8 = sld [smem:[#allocation0]]
  $region69: #{pi_conv_lstm_forward.8} parent=0
    _
  %s10 = ssub.s32 1, %s8
  %s11 = scalar_select 0, %s10, %s8
  $region1: #{pi_conv_lstm_forward.8} parent=0
    #allocation4 [shape = 'u8[1024]{0}', space=vmem, size = 0x400, scoped, tag = 'output window, operand 1, single buffered']
    #allocation5 [shape = 's32[2]{0}', space=sflag, size = 0x8, scoped, tag = 'scoped memory for pi_conv_lstm_forward.8']
    #allocation6 [shape = 'u8[1024]{0}', space=vmem, size = 0x400, scoped, tag = 'output window, operand 2, single buffered']
    #allocation7 [shape = 's32[1]{0}', space=sflag, size = 0x4, scoped, tag = 'scoped memory for pi_conv_lstm_forward.8']
    %12 = vsyncpa [#allocation5], 0
    %13 = vsyncpa [#allocation7], 0
    loop: start=0, step=1, limit=10
    $region2: #{pi_conv_lstm_forward.8} parent=1 // loop_pre_header
      _
    $region3: #{pi_conv_lstm_forward.8} parent=1 // loop_header
      %s15 = sphi 0, %s19
      %p16 = scmp.ge.s32.totalorder %s15, 10
      %s23 = sphi 0, %s23
      %s25 = sphi 0, %s23
      %s26 = sphi 0, %s25
      %s40 = sphi 0, %s26
      %s44 = sphi 0, %s44
      %s46 = sphi 0, %s44
      %s47 = sphi 0, %s46
      %s61 = sphi 0, %s47
      %s65 = sphi 0, %s65
      %s67 = sphi 0, %s65
      %s68 = sphi 0, %s67
      %s82 = sphi 0, %s68
      %s86 = sphi 0, %s86
      %s88 = sphi 0, %s86
      %s89 = sphi 0, %s88
      %s103 = sphi 0, %s89
      %s107 = sphi 0, %s107
      %s109 = sphi 0, %s107
      %s110 = sphi 0, %s109
      %s124 = sphi 0, %s110
      %s128 = sphi 0, %s128
      %s130 = sphi 0, %s128
      %s131 = sphi 0, %s130
      %s145 = sphi 0, %s131
      %s149 = sphi 0, %s149
      %s151 = sphi 0, %s149
      %s152 = sphi 0, %s151
      %s166 = sphi 0, %s152
    $region4: #{pi_conv_lstm_forward.8} parent=1 // loop_header_branch
      %18 = sbr.rel (%p16) target = $region8
    $region5: #{pi_conv_lstm_forward.8} parent=1 // loop_body
      %s20 = ssub.s32 %s15, 1
      %s21 = ssub.s32 %s15, 2
      %s22 = sadd.s32 %s15, 1
      %s24 = sadd.s32 %s23, 1
      %p27 = scmp.eq.s32.totalorder %s15, 7
      %p28 = scmp.ne.s32.totalorder %s23, %s25
      %p29 = scmp.eq.s32.totalorder %s15, 0
      %p30 = por %p28, %p29
      %p31 = scmp.ne.s32.totalorder %s23, %s25
      %p32 = scmp.eq.s32.totalorder %s20, 7
      %p33 = por %p31, %p32
      %p34 = scmp.ne.s32.totalorder %s25, %s26
      %p35 = scmp.eq.s32.totalorder %s20, 0
      %p36 = por %p34, %p35
      %p37 = scmp.ne.s32.totalorder %s25, %s26
      %p38 = scmp.eq.s32.totalorder %s21, 7
      %p39 = por %p37, %p38
      %p41 = scmp.ne.s32.totalorder %s26, %s40
      %p42 = scmp.eq.s32.totalorder %s21, 0
      %p43 = por %p41, %p42
      %s45 = sadd.s32 %s44, 1
      %p48 = scmp.eq.s32.totalorder %s15, 7
      %p49 = scmp.ne.s32.totalorder %s44, %s46
      %p50 = scmp.eq.s32.totalorder %s15, 0
      %p51 = por %p49, %p50
      %p52 = scmp.ne.s32.totalorder %s44, %s46
      %p53 = scmp.eq.s32.totalorder %s20, 7
      %p54 = por %p52, %p53
      %p55 = scmp.ne.s32.totalorder %s46, %s47
      %p56 = scmp.eq.s32.totalorder %s20, 0
      %p57 = por %p55, %p56
      %p58 = scmp.ne.s32.totalorder %s46, %s47
      %p59 = scmp.eq.s32.totalorder %s21, 7
      %p60 = por %p58, %p59
      %p62 = scmp.ne.s32.totalorder %s47, %s61
      %p63 = scmp.eq.s32.totalorder %s21, 0
      %p64 = por %p62, %p63
      %s66 = sadd.s32 %s65, 1
      %p69 = scmp.eq.s32.totalorder %s15, 7
      %p70 = scmp.ne.s32.totalorder %s65, %s67
      %p71 = scmp.eq.s32.totalorder %s15, 0
      %p72 = por %p70, %p71
      %p73 = scmp.ne.s32.totalorder %s65, %s67
      %p74 = scmp.eq.s32.totalorder %s20, 7
      %p75 = por %p73, %p74
      %p76 = scmp.ne.s32.totalorder %s67, %s68
      %p77 = scmp.eq.s32.totalorder %s20, 0
      %p78 = por %p76, %p77
      %p79 = scmp.ne.s32.totalorder %s67, %s68
      %p80 = scmp.eq.s32.totalorder %s21, 7
      %p81 = por %p79, %p80
      %p83 = scmp.ne.s32.totalorder %s68, %s82
      %p84 = scmp.eq.s32.totalorder %s21, 0
      %p85 = por %p83, %p84
      %s87 = sadd.s32 %s86, 1
      %p90 = scmp.eq.s32.totalorder %s15, 7
      %p91 = scmp.ne.s32.totalorder %s86, %s88
      %p92 = scmp.eq.s32.totalorder %s15, 0
      %p93 = por %p91, %p92
      %p94 = scmp.ne.s32.totalorder %s86, %s88
      %p95 = scmp.eq.s32.totalorder %s20, 7
      %p96 = por %p94, %p95
      %p97 = scmp.ne.s32.totalorder %s88, %s89
      %p98 = scmp.eq.s32.totalorder %s20, 0
      %p99 = por %p97, %p98
      %p100 = scmp.ne.s32.totalorder %s88, %s89
      %p101 = scmp.eq.s32.totalorder %s21, 7
      %p102 = por %p100, %p101
      %p104 = scmp.ne.s32.totalorder %s89, %s103
      %p105 = scmp.eq.s32.totalorder %s21, 0
      %p106 = por %p104, %p105
      %s108 = sadd.s32 %s107, 1
      %p111 = scmp.eq.s32.totalorder %s15, 7
      %p112 = scmp.ne.s32.totalorder %s107, %s109
      %p113 = scmp.eq.s32.totalorder %s15, 0
      %p114 = por %p112, %p113
      %p115 = scmp.ne.s32.totalorder %s107, %s109
      %p116 = scmp.eq.s32.totalorder %s20, 7
      %p117 = por %p115, %p116
      %p118 = scmp.ne.s32.totalorder %s109, %s110
      %p119 = scmp.eq.s32.totalorder %s20, 0
      %p120 = por %p118, %p119
      %p121 = scmp.ne.s32.totalorder %s109, %s110
      %p122 = scmp.eq.s32.totalorder %s21, 7
      %p123 = por %p121, %p122
      %p125 = scmp.ne.s32.totalorder %s110, %s124
      %p126 = scmp.eq.s32.totalorder %s21, 0
      %p127 = por %p125, %p126
      %s129 = sadd.s32 %s128, 1
      %p132 = scmp.eq.s32.totalorder %s15, 7
      %p133 = scmp.ne.s32.totalorder %s128, %s130
      %p134 = scmp.eq.s32.totalorder %s15, 0
      %p135 = por %p133, %p134
      %p136 = scmp.ne.s32.totalorder %s128, %s130
      %p137 = scmp.eq.s32.totalorder %s20, 7
      %p138 = por %p136, %p137
      %p139 = scmp.ne.s32.totalorder %s130, %s131
      %p140 = scmp.eq.s32.totalorder %s20, 0
      %p141 = por %p139, %p140
      %p142 = scmp.ne.s32.totalorder %s130, %s131
      %p143 = scmp.eq.s32.totalorder %s21, 7
      %p144 = por %p142, %p143
      %p146 = scmp.ne.s32.totalorder %s131, %s145
      %p147 = scmp.eq.s32.totalorder %s21, 0
      %p148 = por %p146, %p147
      %s150 = sadd.s32 %s149, 1
      %p153 = scmp.eq.s32.totalorder %s15, 7
      %p154 = scmp.ne.s32.totalorder %s149, %s151
      %p155 = scmp.eq.s32.totalorder %s15, 0
      %p156 = por %p154, %p155
      %p157 = scmp.ne.s32.totalorder %s149, %s151
      %p158 = scmp.eq.s32.totalorder %s20, 7
      %p159 = por %p157, %p158
      %p160 = scmp.ne.s32.totalorder %s151, %s152
      %p161 = scmp.eq.s32.totalorder %s20, 0
      %p162 = por %p160, %p161
      %p163 = scmp.ne.s32.totalorder %s151, %s152
      %p164 = scmp.eq.s32.totalorder %s21, 7
      %p165 = por %p163, %p164
      %p167 = scmp.ne.s32.totalorder %s152, %s166
      %p168 = scmp.eq.s32.totalorder %s21, 0
      %p169 = por %p167, %p168
      %p170 = scmp.le.s32.totalorder 1, %s15
      %p171 = scmp.lt.s32.totalorder %s15, 9
      %p172 = pnand %p170, %p171
      %p173 = pneg %p172
      // Predicated region
      $region9: #{pi_conv_lstm_forward.8} parent=5 // pred_check
        _
      $region10: #{pi_conv_lstm_forward.8} parent=5 // pred_check_branch
        %175 = sbr.rel (%p172) target = $region12
      $region11: #{pi_conv_lstm_forward.8} parent=5 // pred_region
        %s176 = ssub.s32 %s15, 1
        // Predicated region
        $region13: #{pi_conv_lstm_forward.8} parent=11 // pred_check
          %p177 = pneg %p36
        $region14: #{pi_conv_lstm_forward.8} parent=11 // pred_check_branch
          %179 = sbr.rel (%p177) target = $region16
        $region15: #{pi_conv_lstm_forward.8} parent=11 // pred_region
          _
        $region16: #{pi_conv_lstm_forward.8} parent=11 // pred_fallthru
          _
        // Predicated region
        $region17: #{pi_conv_lstm_forward.8} parent=11 // pred_check
          %p180 = pneg %p57
        $region18: #{pi_conv_lstm_forward.8} parent=11 // pred_check_branch
          %182 = sbr.rel (%p180) target = $region20
        $region19: #{pi_conv_lstm_forward.8} parent=11 // pred_region
          _
        $region20: #{pi_conv_lstm_forward.8} parent=11 // pred_fallthru
          _
        // Predicated region
        $region21: #{pi_conv_lstm_forward.8} parent=11 // pred_check
          %p183 = pneg %p78
        $region22: #{pi_conv_lstm_forward.8} parent=11 // pred_check_branch
          %185 = sbr.rel (%p183) target = $region24
        $region23: #{pi_conv_lstm_forward.8} parent=11 // pred_region
          _
        $region24: #{pi_conv_lstm_forward.8} parent=11 // pred_fallthru
          _
        // Predicated region
        $region25: #{pi_conv_lstm_forward.8} parent=11 // pred_check
          %p186 = pneg %p99
        $region26: #{pi_conv_lstm_forward.8} parent=11 // pred_check_branch
          %188 = sbr.rel (%p186) target = $region28
        $region27: #{pi_conv_lstm_forward.8} parent=11 // pred_region
          _
        $region28: #{pi_conv_lstm_forward.8} parent=11 // pred_fallthru
          _
      $region12: #{pi_conv_lstm_forward.8} parent=5 // pred_fallthru
        _
      %p189 = scmp.lt.s32.totalorder %s15, 8
      // Predicated region
      $region29: #{pi_conv_lstm_forward.8} parent=5 // pred_check
        %p190 = pneg %p189
      $region30: #{pi_conv_lstm_forward.8} parent=5 // pred_check_branch
        %192 = sbr.rel (%p190) target = $region32
      $region31: #{pi_conv_lstm_forward.8} parent=5 // pred_region
        _
      $region32: #{pi_conv_lstm_forward.8} parent=5 // pred_fallthru
        _
      %p193 = scmp.le.s32.totalorder 1, %s15
      %p194 = scmp.lt.s32.totalorder %s15, 9
      %p195 = pnand %p193, %p194
      %p196 = pneg %p195
      // Predicated region
      $region33: #{pi_conv_lstm_forward.8} parent=5 // pred_check
        _
      $region34: #{pi_conv_lstm_forward.8} parent=5 // pred_check_branch
        %198 = sbr.rel (%p195) target = $region36
      $region35: #{pi_conv_lstm_forward.8} parent=5 // pred_region
        %s199 = ssub.s32 %s15, 1
        %p200 = pneg %p36
        %p201 = pneg %p33
        %p202 = pneg %p57
        %p203 = pneg %p54
        %p204 = pneg %p78
        %p205 = pneg %p75
        %p206 = pneg %p99
        %p207 = pneg %p96
        %p208 = pneg %p120
        %p209 = pneg %p117
        %p210 = pneg %p141
        %p211 = pneg %p138
        %p212 = pneg %p162
        %p213 = pneg %p159
        %p214 = scmp.eq.s32.totalorder %s20, 0
        // Predicated region
        $region37: #{pi_conv_lstm_forward.8} parent=35 // pred_check
          %p215 = pneg %p214
        $region38: #{pi_conv_lstm_forward.8} parent=35 // pred_check_branch
          %217 = sbr.rel (%p215) target = $region40
        $region39: #{pi_conv_lstm_forward.8} parent=35 // pred_region
          %v218 = vld [vmem:[%s2] sm:$0x3]
          %vm219 = vcmask 517120
          %220 = vst.msk [vmem:[#allocation2] sm:$0x3] %vm219, %v218
          %v221 = vld [vmem:[%s3] sm:$0x3]
          %222 = vst.msk [vmem:[#allocation3] sm:$0x3] %vm219, %v221
        $region40: #{pi_conv_lstm_forward.8} parent=35 // pred_fallthru
          _
        %v223 = vld [vmem:[#allocation2] sm:$0x3]
        %v224 = vld [vmem:[#allocation3] sm:$0x3]
        %s225 = smul.u32 %s20, 2
        %s226 = smul.addr %s225, 2
        %s227 = scalar_lea.vmem %s0, %s226
        %v228 = vld [vmem:[%s227] sm:$0xf]
        %v229 = vld [vmem:[%s1] sm:$0xff]
        %v230 = vld [vmem:[%s1 + $0x8] sm:$0xff]
        %v231 = vld [vmem:[%s1 + $0x10] sm:$0xff]
        %v232 = vld [vmem:[%s1 + $0x18] sm:$0xff]
        %v233 = vld [vmem:[%s1 + $0x20] sm:$0xff]
        %v234 = vld [vmem:[%s1 + $0x28] sm:$0xff]
        %v235 = vld [vmem:[%s1 + $0x30] sm:$0xff]
        %v236 = vld [vmem:[%s1 + $0x38] sm:$0xff]
        %v237 = vld [vmem:[%s1 + $0x40] sm:$0xff]
        %v238 = vld [vmem:[%s1 + $0x48] sm:$0xff]
        %v239 = vld [vmem:[%s1 + $0x50] sm:$0xff]
        %v240 = vld [vmem:[%s1 + $0x58] sm:$0xff]
        %v241 = vld [vmem:[%s1 + $0x60] sm:$0xff]
        %v242 = vld [vmem:[%s1 + $0x68] sm:$0xff]
        %v243 = vld [vmem:[%s1 + $0x70] sm:$0xff]
        %v244 = vld [vmem:[%s1 + $0x78] sm:$0xff]
        %vm245 = vcmask 523264
        %v247 = vsel %vm245, %v223, 0
        %249 = vmatprep.subr.mxu0 0.0
        %250 = vmatpush1.msra.mxu0 0.0
        %251 = vmatprep.subr.mxu0 0.0
        %252 = vmatpush1.msra.mxu0 0.0
        %253 = vmatprep.subr.mxu0 0.0
        %254 = vmatpush1.msra.mxu0 0.0
        %255 = vmatprep.subr.mxu0 0.0
        %256 = vmatpush1.msra.mxu0 0.0
        %257 = vmatprep.subr.mxu0 0.0
        %258 = vmatpush1.msra.mxu0 0.0
        %259 = vmatprep.subr.mxu0 0.0
        %260 = vmatpush1.msra.mxu0 0.0
        %261 = vmatprep.subr.mxu0 0.0
        %262 = vmatpush1.msra.mxu0 0.0
        %263 = vmatprep.subr.mxu0 0.0
        %264 = vmatpush1.msra.mxu0 0.0
        %v265 = vand.u32 %v244, 4294901760
        %266 = vmatprep.subr.mxu0 %v265
        %v267 = vand.u32 %v243, 4294901760
        %268 = vmatpush1.msra.mxu0 %v267
        %v269 = vand.u32 %v242, 4294901760
        %270 = vmatprep.subr.mxu0 %v269
        %v271 = vand.u32 %v241, 4294901760
        %272 = vmatpush1.msra.mxu0 %v271
        %v273 = vand.u32 %v240, 4294901760
        %274 = vmatprep.subr.mxu0 %v273
        %v275 = vand.u32 %v239, 4294901760
        %276 = vmatpush1.msra.mxu0 %v275
        %v277 = vand.u32 %v238, 4294901760
        %278 = vmatprep.subr.mxu0 %v277
        %v279 = vand.u32 %v237, 4294901760
        %280 = vmatpush1.msra.mxu0 %v279
        %v281 = vand.u32 %v236, 4294901760
        %282 = vmatprep.subr.mxu0 %v281
        %v283 = vand.u32 %v235, 4294901760
        %284 = vmatpush1.msra.mxu0 %v283
        %v285 = vand.u32 %v234, 4294901760
        %286 = vmatprep.subr.mxu0 %v285
        %v287 = vand.u32 %v233, 4294901760
        %288 = vmatpush1.msra.mxu0 %v287
        %v289 = vand.u32 %v232, 4294901760
        %290 = vmatprep.subr.mxu0 %v289
        %v291 = vand.u32 %v231, 4294901760
        %292 = vmatpush1.msra.mxu0 %v291
        %v293 = vand.u32 %v230, 4294901760
        %294 = vmatprep.subr.mxu0 %v293
        %v295 = vand.u32 %v229, 4294901760
        %296 = vmatpush1.msra.mxu0 %v295
        %297 = vmatprep.subr.mxu0 0.0
        %298 = vmatpush2.msra.mxu0 0.0
        %299 = vmatprep.subr.mxu0 0.0
        %300 = vmatpush2.msra.mxu0 0.0
        %301 = vmatprep.subr.mxu0 0.0
        %302 = vmatpush2.msra.mxu0 0.0
        %303 = vmatprep.subr.mxu0 0.0
        %304 = vmatpush2.msra.mxu0 0.0
        %305 = vmatprep.subr.mxu0 0.0
        %306 = vmatpush2.msra.mxu0 0.0
        %307 = vmatprep.subr.mxu0 0.0
        %308 = vmatpush2.msra.mxu0 0.0
        %309 = vmatprep.subr.mxu0 0.0
        %310 = vmatpush2.msra.mxu0 0.0
        %311 = vmatprep.subr.mxu0 0.0
        %312 = vmatpush2.msra.mxu0 0.0
        %313 = vmatprep.subr.mxu0 0.0
        %314 = vmatpush2.msra.mxu0 0.0
        %315 = vmatprep.subr.mxu0 0.0
        %316 = vmatpush2.msra.mxu0 0.0
        %317 = vmatprep.subr.mxu0 0.0
        %318 = vmatpush2.msra.mxu0 0.0
        %319 = vmatprep.subr.mxu0 0.0
        %320 = vmatpush2.msra.mxu0 0.0
        %321 = vmatprep.subr.mxu0 0.0
        %322 = vmatpush2.msra.mxu0 0.0
        %323 = vmatprep.subr.mxu0 0.0
        %324 = vmatpush2.msra.mxu0 0.0
        %325 = vmatprep.subr.mxu0 0.0
        %326 = vmatpush2.msra.mxu0 0.0
        %327 = vmatprep.subr.mxu0 0.0
        %328 = vmatpush2.msra.mxu0 0.0
        %329 = vmatprep.mubr.f32.mxu0 0.0
        %v330 = vand.u32 %v247, 4294901760
        %v331 = vsub.f32 %v247, %v330
        %v332 = vand.u32 %v331, 4294901760
        %v333 = vsub.f32 %v331, %v332
        %v334 = vand.u32 %v333, 4294901760
        %335 = vmatmul.mubr.f32.gmra.mxu0 %v334
        %v336 = vpop.f32.mrf.mxu0
        %v337 = vadd.f32 0.0, %v336
        %v338 = vpop.f32.mrf.mxu0
        %v339 = vadd.f32 0.0, %v338
        %340 = vdwg.mxu0
        %341 = vmatprep.subr.mxu0 0.0
        %342 = vmatpush1.msra.mxu0 0.0
        %343 = vmatprep.subr.mxu0 0.0
        %344 = vmatpush1.msra.mxu0 0.0
        %345 = vmatprep.subr.mxu0 0.0
        %346 = vmatpush1.msra.mxu0 0.0
        %347 = vmatprep.subr.mxu0 0.0
        %348 = vmatpush1.msra.mxu0 0.0
        %349 = vmatprep.subr.mxu0 0.0
        %350 = vmatpush1.msra.mxu0 0.0
        %351 = vmatprep.subr.mxu0 0.0
        %352 = vmatpush1.msra.mxu0 0.0
        %353 = vmatprep.subr.mxu0 0.0
        %354 = vmatpush1.msra.mxu0 0.0
        %355 = vmatprep.subr.mxu0 0.0
        %356 = vmatpush1.msra.mxu0 0.0
        %v357 = vand.u32 %v244, 4294901760
        %v358 = vsub.f32 %v244, %v357
        %v359 = vand.u32 %v358, 4294901760
        %v360 = vsub.f32 %v358, %v359
        %v361 = vand.u32 %v360, 4294901760
        %362 = vmatprep.subr.mxu0 %v361
        %v363 = vand.u32 %v243, 4294901760
        %v364 = vsub.f32 %v243, %v363
        %v365 = vand.u32 %v364, 4294901760
        %v366 = vsub.f32 %v364, %v365
        %v367 = vand.u32 %v366, 4294901760
        %368 = vmatpush1.msra.mxu0 %v367
        %v369 = vand.u32 %v242, 4294901760
        %v370 = vsub.f32 %v242, %v369
        %v371 = vand.u32 %v370, 4294901760
        %v372 = vsub.f32 %v370, %v371
        %v373 = vand.u32 %v372, 4294901760
        %374 = vmatprep.subr.mxu0 %v373
        %v375 = vand.u32 %v241, 4294901760
        %v376 = vsub.f32 %v241, %v375
        %v377 = vand.u32 %v376, 4294901760
        %v378 = vsub.f32 %v376, %v377
        %v379 = vand.u32 %v378, 4294901760
        %380 = vmatpush1.msra.mxu0 %v379
        %v381 = vand.u32 %v240, 4294901760
        %v382 = vsub.f32 %v240, %v381
        %v383 = vand.u32 %v382, 4294901760
        %v384 = vsub.f32 %v382, %v383
        %v385 = vand.u32 %v384, 4294901760
        %386 = vmatprep.subr.mxu0 %v385
        %v387 = vand.u32 %v239, 4294901760
        %v388 = vsub.f32 %v239, %v387
        %v389 = vand.u32 %v388, 4294901760
        %v390 = vsub.f32 %v388, %v389
        %v391 = vand.u32 %v390, 4294901760
        %392 = vmatpush1.msra.mxu0 %v391
        %v393 = vand.u32 %v238, 4294901760
        %v394 = vsub.f32 %v238, %v393
        %v395 = vand.u32 %v394, 4294901760
        %v396 = vsub.f32 %v394, %v395
        %v397 = vand.u32 %v396, 4294901760
        %398 = vmatprep.subr.mxu0 %v397
        %v399 = vand.u32 %v237, 4294901760
        %v400 = vsub.f32 %v237, %v399
        %v401 = vand.u32 %v400, 4294901760
        %v402 = vsub.f32 %v400, %v401
        %v403 = vand.u32 %v402, 4294901760
        %404 = vmatpush1.msra.mxu0 %v403
        %v405 = vand.u32 %v236, 4294901760
        %v406 = vsub.f32 %v236, %v405
        %v407 = vand.u32 %v406, 4294901760
        %v408 = vsub.f32 %v406, %v407
        %v409 = vand.u32 %v408, 4294901760
        %410 = vmatprep.subr.mxu0 %v409
        %v411 = vand.u32 %v235, 4294901760
        %v412 = vsub.f32 %v235, %v411
        %v413 = vand.u32 %v412, 4294901760
        %v414 = vsub.f32 %v412, %v413
        %v415 = vand.u32 %v414, 4294901760
        %416 = vmatpush1.msra.mxu0 %v415
        %v417 = vand.u32 %v234, 4294901760
        %v418 = vsub.f32 %v234, %v417
        %v419 = vand.u32 %v418, 4294901760
        %v420 = vsub.f32 %v418, %v419
        %v421 = vand.u32 %v420, 4294901760
        %422 = vmatprep.subr.mxu0 %v421
        %v423 = vand.u32 %v233, 4294901760
        %v424 = vsub.f32 %v233, %v423
        %v425 = vand.u32 %v424, 4294901760
        %v426 = vsub.f32 %v424, %v425
        %v427 = vand.u32 %v426, 4294901760
        %428 = vmatpush1.msra.mxu0 %v427
        %v429 = vand.u32 %v232, 4294901760
        %v430 = vsub.f32 %v232, %v429
        %v431 = vand.u32 %v430, 4294901760
        %v432 = vsub.f32 %v430, %v431
        %v433 = vand.u32 %v432, 4294901760
        %434 = vmatprep.subr.mxu0 %v433
        %v435 = vand.u32 %v231, 4294901760
        %v436 = vsub.f32 %v231, %v435
        %v437 = vand.u32 %v436, 4294901760
        %v438 = vsub.f32 %v436, %v437
        %v439 = vand.u32 %v438, 4294901760
        %440 = vmatpush1.msra.mxu0 %v439
        %v441 = vand.u32 %v230, 4294901760
        %v442 = vsub.f32 %v230, %v441
        %v443 = vand.u32 %v442, 4294901760
        %v444 = vsub.f32 %v442, %v443
        %v445 = vand.u32 %v444, 4294901760
        %446 = vmatprep.subr.mxu0 %v445
        %v447 = vand.u32 %v229, 4294901760
        %v448 = vsub.f32 %v229, %v447
        %v449 = vand.u32 %v448, 4294901760
        %v450 = vsub.f32 %v448, %v449
        %v451 = vand.u32 %v450, 4294901760
        %452 = vmatpush1.msra.mxu0 %v451
        %453 = vmatprep.subr.mxu0 0.0
        %454 = vmatpush2.msra.mxu0 0.0
        %455 = vmatprep.subr.mxu0 0.0
        %456 = vmatpush2.msra.mxu0 0.0
        %457 = vmatprep.subr.mxu0 0.0
        %458 = vmatpush2.msra.mxu0 0.0
        %459 = vmatprep.subr.mxu0 0.0
        %460 = vmatpush2.msra.mxu0 0.0
        %461 = vmatprep.subr.mxu0 0.0
        %462 = vmatpush2.msra.mxu0 0.0
        %463 = vmatprep.subr.mxu0 0.0
        %464 = vmatpush2.msra.mxu0 0.0
        %465 = vmatprep.subr.mxu0 0.0
        %466 = vmatpush2.msra.mxu0 0.0
        %467 = vmatprep.subr.mxu0 0.0
        %468 = vmatpush2.msra.mxu0 0.0
        %469 = vmatprep.subr.mxu0 0.0
        %470 = vmatpush2.msra.mxu0 0.0
        %471 = vmatprep.subr.mxu0 0.0
        %472 = vmatpush2.msra.mxu0 0.0
        %473 = vmatprep.subr.mxu0 0.0
        %474 = vmatpush2.msra.mxu0 0.0
        %475 = vmatprep.subr.mxu0 0.0
        %476 = vmatpush2.msra.mxu0 0.0
        %477 = vmatprep.subr.mxu0 0.0
        %478 = vmatpush2.msra.mxu0 0.0
        %479 = vmatprep.subr.mxu0 0.0
        %480 = vmatpush2.msra.mxu0 0.0
        %481 = vmatprep.subr.mxu0 0.0
        %482 = vmatpush2.msra.mxu0 0.0
        %483 = vmatprep.subr.mxu0 0.0
        %484 = vmatpush2.msra.mxu0 0.0
        %485 = vmatprep.mubr.f32.mxu0 0.0
        %v486 = vand.u32 %v247, 4294901760
        %487 = vmatmul.mubr.f32.gmra.mxu0 %v486
        %v488 = vpop.f32.mrf.mxu0
        %v489 = vadd.f32 %v337, %v488
        %v490 = vpop.f32.mrf.mxu0
        %v491 = vadd.f32 %v339, %v490
        %492 = vdwg.mxu0
        %493 = vmatprep.subr.mxu0 0.0
        %494 = vmatpush1.msra.mxu0 0.0
        %495 = vmatprep.subr.mxu0 0.0
        %496 = vmatpush1.msra.mxu0 0.0
        %497 = vmatprep.subr.mxu0 0.0
        %498 = vmatpush1.msra.mxu0 0.0
        %499 = vmatprep.subr.mxu0 0.0
        %500 = vmatpush1.msra.mxu0 0.0
        %501 = vmatprep.subr.mxu0 0.0
        %502 = vmatpush1.msra.mxu0 0.0
        %503 = vmatprep.subr.mxu0 0.0
        %504 = vmatpush1.msra.mxu0 0.0
        %505 = vmatprep.subr.mxu0 0.0
        %506 = vmatpush1.msra.mxu0 0.0
        %507 = vmatprep.subr.mxu0 0.0
        %508 = vmatpush1.msra.mxu0 0.0
        %v509 = vand.u32 %v244, 4294901760
        %v510 = vsub.f32 %v244, %v509
        %511 = vmatprep.subr.mxu0 %v510
        %v512 = vand.u32 %v243, 4294901760
        %v513 = vsub.f32 %v243, %v512
        %514 = vmatpush1.msra.mxu0 %v513
        %v515 = vand.u32 %v242, 4294901760
        %v516 = vsub.f32 %v242, %v515
        %517 = vmatprep.subr.mxu0 %v516
        %v518 = vand.u32 %v241, 4294901760
        %v519 = vsub.f32 %v241, %v518
        %520 = vmatpush1.msra.mxu0 %v519
        %v521 = vand.u32 %v240, 4294901760
        %v522 = vsub.f32 %v240, %v521
        %523 = vmatprep.subr.mxu0 %v522
        %v524 = vand.u32 %v239, 4294901760
        %v525 = vsub.f32 %v239, %v524
        %526 = vmatpush1.msra.mxu0 %v525
        %v527 = vand.u32 %v238, 4294901760
        %v528 = vsub.f32 %v238, %v527
        %529 = vmatprep.subr.mxu0 %v528
        %v530 = vand.u32 %v237, 4294901760
        %v531 = vsub.f32 %v237, %v530
        %532 = vmatpush1.msra.mxu0 %v531
        %v533 = vand.u32 %v236, 4294901760
        %v534 = vsub.f32 %v236, %v533
        %535 = vmatprep.subr.mxu0 %v534
        %v536 = vand.u32 %v235, 4294901760
        %v537 = vsub.f32 %v235, %v536
        %538 = vmatpush1.msra.mxu0 %v537
        %v539 = vand.u32 %v234, 4294901760
        %v540 = vsub.f32 %v234, %v539
        %541 = vmatprep.subr.mxu0 %v540
        %v542 = vand.u32 %v233, 4294901760
        %v543 = vsub.f32 %v233, %v542
        %544 = vmatpush1.msra.mxu0 %v543
        %v545 = vand.u32 %v232, 4294901760
        %v546 = vsub.f32 %v232, %v545
        %547 = vmatprep.subr.mxu0 %v546
        %v548 = vand.u32 %v231, 4294901760
        %v549 = vsub.f32 %v231, %v548
        %550 = vmatpush1.msra.mxu0 %v549
        %v551 = vand.u32 %v230, 4294901760
        %v552 = vsub.f32 %v230, %v551
        %553 = vmatprep.subr.mxu0 %v552
        %v554 = vand.u32 %v229, 4294901760
        %v555 = vsub.f32 %v229, %v554
        %556 = vmatpush1.msra.mxu0 %v555
        %557 = vmatprep.subr.mxu0 0.0
        %558 = vmatpush2.msra.mxu0 0.0
        %559 = vmatprep.subr.mxu0 0.0
        %560 = vmatpush2.msra.mxu0 0.0
        %561 = vmatprep.subr.mxu0 0.0
        %562 = vmatpush2.msra.mxu0 0.0
        %563 = vmatprep.subr.mxu0 0.0
        %564 = vmatpush2.msra.mxu0 0.0
        %565 = vmatprep.subr.mxu0 0.0
        %566 = vmatpush2.msra.mxu0 0.0
        %567 = vmatprep.subr.mxu0 0.0
        %568 = vmatpush2.msra.mxu0 0.0
        %569 = vmatprep.subr.mxu0 0.0
        %570 = vmatpush2.msra.mxu0 0.0
        %571 = vmatprep.subr.mxu0 0.0
        %572 = vmatpush2.msra.mxu0 0.0
        %573 = vmatprep.subr.mxu0 0.0
        %574 = vmatpush2.msra.mxu0 0.0
        %575 = vmatprep.subr.mxu0 0.0
        %576 = vmatpush2.msra.mxu0 0.0
        %577 = vmatprep.subr.mxu0 0.0
        %578 = vmatpush2.msra.mxu0 0.0
        %579 = vmatprep.subr.mxu0 0.0
        %580 = vmatpush2.msra.mxu0 0.0
        %581 = vmatprep.subr.mxu0 0.0
        %582 = vmatpush2.msra.mxu0 0.0
        %583 = vmatprep.subr.mxu0 0.0
        %584 = vmatpush2.msra.mxu0 0.0
        %585 = vmatprep.subr.mxu0 0.0
        %586 = vmatpush2.msra.mxu0 0.0
        %587 = vmatprep.subr.mxu0 0.0
        %588 = vmatpush2.msra.mxu0 0.0
        %589 = vmatprep.mubr.f32.mxu0 0.0
        %v590 = vand.u32 %v247, 4294901760
        %v591 = vsub.f32 %v247, %v590
        %592 = vmatmul.mubr.f32.gmra.mxu0 %v591
        %v593 = vpop.f32.mrf.mxu0
        %v594 = vadd.f32 %v489, %v593
        %v595 = vpop.f32.mrf.mxu0
        %v596 = vadd.f32 %v491, %v595
        %597 = vdwg.mxu0
        %598 = vmatprep.subr.mxu0 0.0
        %599 = vmatpush1.msra.mxu0 0.0
        %600 = vmatprep.subr.mxu0 0.0
        %601 = vmatpush1.msra.mxu0 0.0
        %602 = vmatprep.subr.mxu0 0.0
        %603 = vmatpush1.msra.mxu0 0.0
        %604 = vmatprep.subr.mxu0 0.0
        %605 = vmatpush1.msra.mxu0 0.0
        %606 = vmatprep.subr.mxu0 0.0
        %607 = vmatpush1.msra.mxu0 0.0
        %608 = vmatprep.subr.mxu0 0.0
        %609 = vmatpush1.msra.mxu0 0.0
        %610 = vmatprep.subr.mxu0 0.0
        %611 = vmatpush1.msra.mxu0 0.0
        %612 = vmatprep.subr.mxu0 0.0
        %613 = vmatpush1.msra.mxu0 0.0
        %v614 = vand.u32 %v244, 4294901760
        %615 = vmatprep.subr.mxu0 %v614
        %v616 = vand.u32 %v243, 4294901760
        %617 = vmatpush1.msra.mxu0 %v616
        %v618 = vand.u32 %v242, 4294901760
        %619 = vmatprep.subr.mxu0 %v618
        %v620 = vand.u32 %v241, 4294901760
        %621 = vmatpush1.msra.mxu0 %v620
        %v622 = vand.u32 %v240, 4294901760
        %623 = vmatprep.subr.mxu0 %v622
        %v624 = vand.u32 %v239, 4294901760
        %625 = vmatpush1.msra.mxu0 %v624
        %v626 = vand.u32 %v238, 4294901760
        %627 = vmatprep.subr.mxu0 %v626
        %v628 = vand.u32 %v237, 4294901760
        %629 = vmatpush1.msra.mxu0 %v628
        %v630 = vand.u32 %v236, 4294901760
        %631 = vmatprep.subr.mxu0 %v630
        %v632 = vand.u32 %v235, 4294901760
        %633 = vmatpush1.msra.mxu0 %v632
        %v634 = vand.u32 %v234, 4294901760
        %635 = vmatprep.subr.mxu0 %v634
        %v636 = vand.u32 %v233, 4294901760
        %637 = vmatpush1.msra.mxu0 %v636
        %v638 = vand.u32 %v232, 4294901760
        %639 = vmatprep.subr.mxu0 %v638
        %v640 = vand.u32 %v231, 4294901760
        %641 = vmatpush1.msra.mxu0 %v640
        %v642 = vand.u32 %v230, 4294901760
        %643 = vmatprep.subr.mxu0 %v642
        %v644 = vand.u32 %v229, 4294901760
        %645 = vmatpush1.msra.mxu0 %v644
        %646 = vmatprep.subr.mxu0 0.0
        %647 = vmatpush2.msra.mxu0 0.0
        %648 = vmatprep.subr.mxu0 0.0
        %649 = vmatpush2.msra.mxu0 0.0
        %650 = vmatprep.subr.mxu0 0.0
        %651 = vmatpush2.msra.mxu0 0.0
        %652 = vmatprep.subr.mxu0 0.0
        %653 = vmatpush2.msra.mxu0 0.0
        %654 = vmatprep.subr.mxu0 0.0
        %655 = vmatpush2.msra.mxu0 0.0
        %656 = vmatprep.subr.mxu0 0.0
        %657 = vmatpush2.msra.mxu0 0.0
        %658 = vmatprep.subr.mxu0 0.0
        %659 = vmatpush2.msra.mxu0 0.0
        %660 = vmatprep.subr.mxu0 0.0
        %661 = vmatpush2.msra.mxu0 0.0
        %662 = vmatprep.subr.mxu0 0.0
        %663 = vmatpush2.msra.mxu0 0.0
        %664 = vmatprep.subr.mxu0 0.0
        %665 = vmatpush2.msra.mxu0 0.0
        %666 = vmatprep.subr.mxu0 0.0
        %667 = vmatpush2.msra.mxu0 0.0
        %668 = vmatprep.subr.mxu0 0.0
        %669 = vmatpush2.msra.mxu0 0.0
        %670 = vmatprep.subr.mxu0 0.0
        %671 = vmatpush2.msra.mxu0 0.0
        %672 = vmatprep.subr.mxu0 0.0
        %673 = vmatpush2.msra.mxu0 0.0
        %674 = vmatprep.subr.mxu0 0.0
        %675 = vmatpush2.msra.mxu0 0.0
        %676 = vmatprep.subr.mxu0 0.0
        %677 = vmatpush2.msra.mxu0 0.0
        %678 = vmatprep.mubr.f32.mxu0 0.0
        %v679 = vand.u32 %v247, 4294901760
        %v680 = vsub.f32 %v247, %v679
        %v681 = vand.u32 %v680, 4294901760
        %682 = vmatmul.mubr.f32.gmra.mxu0 %v681
        %v683 = vpop.f32.mrf.mxu0
        %v684 = vadd.f32 %v594, %v683
        %v685 = vpop.f32.mrf.mxu0
        %v686 = vadd.f32 %v596, %v685
        %687 = vdwg.mxu0
        %688 = vmatprep.subr.mxu0 0.0
        %689 = vmatpush1.msra.mxu0 0.0
        %690 = vmatprep.subr.mxu0 0.0
        %691 = vmatpush1.msra.mxu0 0.0
        %692 = vmatprep.subr.mxu0 0.0
        %693 = vmatpush1.msra.mxu0 0.0
        %694 = vmatprep.subr.mxu0 0.0
        %695 = vmatpush1.msra.mxu0 0.0
        %696 = vmatprep.subr.mxu0 0.0
        %697 = vmatpush1.msra.mxu0 0.0
        %698 = vmatprep.subr.mxu0 0.0
        %699 = vmatpush1.msra.mxu0 0.0
        %700 = vmatprep.subr.mxu0 0.0
        %701 = vmatpush1.msra.mxu0 0.0
        %702 = vmatprep.subr.mxu0 0.0
        %703 = vmatpush1.msra.mxu0 0.0
        %v704 = vand.u32 %v244, 4294901760
        %v705 = vsub.f32 %v244, %v704
        %v706 = vand.u32 %v705, 4294901760
        %707 = vmatprep.subr.mxu0 %v706
        %v708 = vand.u32 %v243, 4294901760
        %v709 = vsub.f32 %v243, %v708
        %v710 = vand.u32 %v709, 4294901760
        %711 = vmatpush1.msra.mxu0 %v710
        %v712 = vand.u32 %v242, 4294901760
        %v713 = vsub.f32 %v242, %v712
        %v714 = vand.u32 %v713, 4294901760
        %715 = vmatprep.subr.mxu0 %v714
        %v716 = vand.u32 %v241, 4294901760
        %v717 = vsub.f32 %v241, %v716
        %v718 = vand.u32 %v717, 4294901760
        %719 = vmatpush1.msra.mxu0 %v718
        %v720 = vand.u32 %v240, 4294901760
        %v721 = vsub.f32 %v240, %v720
        %v722 = vand.u32 %v721, 4294901760
        %723 = vmatprep.subr.mxu0 %v722
        %v724 = vand.u32 %v239, 4294901760
        %v725 = vsub.f32 %v239, %v724
        %v726 = vand.u32 %v725, 4294901760
        %727 = vmatpush1.msra.mxu0 %v726
        %v728 = vand.u32 %v238, 4294901760
        %v729 = vsub.f32 %v238, %v728
        %v730 = vand.u32 %v729, 4294901760
        %731 = vmatprep.subr.mxu0 %v730
        %v732 = vand.u32 %v237, 4294901760
        %v733 = vsub.f32 %v237, %v732
        %v734 = vand.u32 %v733, 4294901760
        %735 = vmatpush1.msra.mxu0 %v734
        %v736 = vand.u32 %v236, 4294901760
        %v737 = vsub.f32 %v236, %v736
        %v738 = vand.u32 %v737, 4294901760
        %739 = vmatprep.subr.mxu0 %v738
        %v740 = vand.u32 %v235, 4294901760
        %v741 = vsub.f32 %v235, %v740
        %v742 = vand.u32 %v741, 4294901760
        %743 = vmatpush1.msra.mxu0 %v742
        %v744 = vand.u32 %v234, 4294901760
        %v745 = vsub.f32 %v234, %v744
        %v746 = vand.u32 %v745, 4294901760
        %747 = vmatprep.subr.mxu0 %v746
        %v748 = vand.u32 %v233, 4294901760
        %v749 = vsub.f32 %v233, %v748
        %v750 = vand.u32 %v749, 4294901760
        %751 = vmatpush1.msra.mxu0 %v750
        %v752 = vand.u32 %v232, 4294901760
        %v753 = vsub.f32 %v232, %v752
        %v754 = vand.u32 %v753, 4294901760
        %755 = vmatprep.subr.mxu0 %v754
        %v756 = vand.u32 %v231, 4294901760
        %v757 = vsub.f32 %v231, %v756
        %v758 = vand.u32 %v757, 4294901760
        %759 = vmatpush1.msra.mxu0 %v758
        %v760 = vand.u32 %v230, 4294901760
        %v761 = vsub.f32 %v230, %v760
        %v762 = vand.u32 %v761, 4294901760
        %763 = vmatprep.subr.mxu0 %v762
        %v764 = vand.u32 %v229, 4294901760
        %v765 = vsub.f32 %v229, %v764
        %v766 = vand.u32 %v765, 4294901760
        %767 = vmatpush1.msra.mxu0 %v766
        %768 = vmatprep.subr.mxu0 0.0
        %769 = vmatpush2.msra.mxu0 0.0
        %770 = vmatprep.subr.mxu0 0.0
        %771 = vmatpush2.msra.mxu0 0.0
        %772 = vmatprep.subr.mxu0 0.0
        %773 = vmatpush2.msra.mxu0 0.0
        %774 = vmatprep.subr.mxu0 0.0
        %775 = vmatpush2.msra.mxu0 0.0
        %776 = vmatprep.subr.mxu0 0.0
        %777 = vmatpush2.msra.mxu0 0.0
        %778 = vmatprep.subr.mxu0 0.0
        %779 = vmatpush2.msra.mxu0 0.0
        %780 = vmatprep.subr.mxu0 0.0
        %781 = vmatpush2.msra.mxu0 0.0
        %782 = vmatprep.subr.mxu0 0.0
        %783 = vmatpush2.msra.mxu0 0.0
        %784 = vmatprep.subr.mxu0 0.0
        %785 = vmatpush2.msra.mxu0 0.0
        %786 = vmatprep.subr.mxu0 0.0
        %787 = vmatpush2.msra.mxu0 0.0
        %788 = vmatprep.subr.mxu0 0.0
        %789 = vmatpush2.msra.mxu0 0.0
        %790 = vmatprep.subr.mxu0 0.0
        %791 = vmatpush2.msra.mxu0 0.0
        %792 = vmatprep.subr.mxu0 0.0
        %793 = vmatpush2.msra.mxu0 0.0
        %794 = vmatprep.subr.mxu0 0.0
        %795 = vmatpush2.msra.mxu0 0.0
        %796 = vmatprep.subr.mxu0 0.0
        %797 = vmatpush2.msra.mxu0 0.0
        %798 = vmatprep.subr.mxu0 0.0
        %799 = vmatpush2.msra.mxu0 0.0
        %800 = vmatprep.mubr.f32.mxu0 0.0
        %v801 = vand.u32 %v247, 4294901760
        %802 = vmatmul.mubr.f32.gmra.mxu0 %v801
        %v803 = vpop.f32.mrf.mxu0
        %v804 = vadd.f32 %v684, %v803
        %v805 = vpop.f32.mrf.mxu0
        %v806 = vadd.f32 %v686, %v805
        %807 = vdwg.mxu0
        %808 = vmatprep.subr.mxu0 0.0
        %809 = vmatpush1.msra.mxu0 0.0
        %810 = vmatprep.subr.mxu0 0.0
        %811 = vmatpush1.msra.mxu0 0.0
        %812 = vmatprep.subr.mxu0 0.0
        %813 = vmatpush1.msra.mxu0 0.0
        %814 = vmatprep.subr.mxu0 0.0
        %815 = vmatpush1.msra.mxu0 0.0
        %816 = vmatprep.subr.mxu0 0.0
        %817 = vmatpush1.msra.mxu0 0.0
        %818 = vmatprep.subr.mxu0 0.0
        %819 = vmatpush1.msra.mxu0 0.0
        %820 = vmatprep.subr.mxu0 0.0
        %821 = vmatpush1.msra.mxu0 0.0
        %822 = vmatprep.subr.mxu0 0.0
        %823 = vmatpush1.msra.mxu0 0.0
        %v824 = vand.u32 %v244, 4294901760
        %825 = vmatprep.subr.mxu0 %v824
        %v826 = vand.u32 %v243, 4294901760
        %827 = vmatpush1.msra.mxu0 %v826
        %v828 = vand.u32 %v242, 4294901760
        %829 = vmatprep.subr.mxu0 %v828
        %v830 = vand.u32 %v241, 4294901760
        %831 = vmatpush1.msra.mxu0 %v830
        %v832 = vand.u32 %v240, 4294901760
        %833 = vmatprep.subr.mxu0 %v832
        %v834 = vand.u32 %v239, 4294901760
        %835 = vmatpush1.msra.mxu0 %v834
        %v836 = vand.u32 %v238, 4294901760
        %837 = vmatprep.subr.mxu0 %v836
        %v838 = vand.u32 %v237, 4294901760
        %839 = vmatpush1.msra.mxu0 %v838
        %v840 = vand.u32 %v236, 4294901760
        %841 = vmatprep.subr.mxu0 %v840
        %v842 = vand.u32 %v235, 4294901760
        %843 = vmatpush1.msra.mxu0 %v842
        %v844 = vand.u32 %v234, 4294901760
        %845 = vmatprep.subr.mxu0 %v844
        %v846 = vand.u32 %v233, 4294901760
        %847 = vmatpush1.msra.mxu0 %v846
        %v848 = vand.u32 %v232, 4294901760
        %849 = vmatprep.subr.mxu0 %v848
        %v850 = vand.u32 %v231, 4294901760
        %851 = vmatpush1.msra.mxu0 %v850
        %v852 = vand.u32 %v230, 4294901760
        %853 = vmatprep.subr.mxu0 %v852
        %v854 = vand.u32 %v229, 4294901760
        %855 = vmatpush1.msra.mxu0 %v854
        %856 = vmatprep.subr.mxu0 0.0
        %857 = vmatpush2.msra.mxu0 0.0
        %858 = vmatprep.subr.mxu0 0.0
        %859 = vmatpush2.msra.mxu0 0.0
        %860 = vmatprep.subr.mxu0 0.0
        %861 = vmatpush2.msra.mxu0 0.0
        %862 = vmatprep.subr.mxu0 0.0
        %863 = vmatpush2.msra.mxu0 0.0
        %864 = vmatprep.subr.mxu0 0.0
        %865 = vmatpush2.msra.mxu0 0.0
        %866 = vmatprep.subr.mxu0 0.0
        %867 = vmatpush2.msra.mxu0 0.0
        %868 = vmatprep.subr.mxu0 0.0
        %869 = vmatpush2.msra.mxu0 0.0
        %870 = vmatprep.subr.mxu0 0.0
        %871 = vmatpush2.msra.mxu0 0.0
        %872 = vmatprep.subr.mxu0 0.0
        %873 = vmatpush2.msra.mxu0 0.0
        %874 = vmatprep.subr.mxu0 0.0
        %875 = vmatpush2.msra.mxu0 0.0
        %876 = vmatprep.subr.mxu0 0.0
        %877 = vmatpush2.msra.mxu0 0.0
        %878 = vmatprep.subr.mxu0 0.0
        %879 = vmatpush2.msra.mxu0 0.0
        %880 = vmatprep.subr.mxu0 0.0
        %881 = vmatpush2.msra.mxu0 0.0
        %882 = vmatprep.subr.mxu0 0.0
        %883 = vmatpush2.msra.mxu0 0.0
        %884 = vmatprep.subr.mxu0 0.0
        %885 = vmatpush2.msra.mxu0 0.0
        %886 = vmatprep.subr.mxu0 0.0
        %887 = vmatpush2.msra.mxu0 0.0
        %888 = vmatprep.mubr.f32.mxu0 0.0
        %v889 = vand.u32 %v247, 4294901760
        %890 = vmatmul.mubr.f32.gmra.mxu0 %v889
        %v891 = vpop.f32.mrf.mxu0
        %v892 = vadd.f32 %v804, %v891
        %v893 = vpop.f32.mrf.mxu0
        %v894 = vadd.f32 %v806, %v893
        %895 = vdwg.mxu0
        %v898 = vcombine.low %v892, %v894
        %v900 = vunpack.c.l.s4 1983009808
        %v901 = vunpack.c.0.s8 %v900
        %v902 = vlaneseq
        %v903 = vshrl.u32 %v902, 7
        %v904 = vsub.s32 %v901, %v903
        %v905 = vrot.slane %v898, %v904
        %v907 = vadd.f32 %v228, %v905
        %v908 = vxor.u32 %v907, 2147483648
        %v909 = vmul.f32 %v908, 1.442695
        %v910 = vpow.pop %v909
        %v911 = vadd.f32 %v910, 1.0
        %v912 = vrcp.pop %v911
        %v913 = vmul.f32 1.0, %v912
        %v915 = vrot.slane %v907, 2
        %v917 = vtanh.pop %v915
        %918 = vrot.lane.b32.xlu0 %v907, 64
        %v919 = vpop.permute.xlu0 %918
        %v920 = vrot.slane %v919, 2
        %v922 = vxor.u32 %v920, 2147483648
        %v923 = vmul.f32 %v922, 1.442695
        %v924 = vpow.pop %v923
        %v925 = vadd.f32 %v924, 1.0
        %v926 = vrcp.pop %v925
        %v927 = vmul.f32 1.0, %v926
        %v930 = vunpack.c.l.s4 1983009808
        %v931 = vunpack.c.0.s8 %v930
        %v932 = vlaneseq
        %v933 = vshrl.u32 %v932, 7
        %v934 = vsub.s32 %v931, %v933
        %v935 = vrot.slane %v224, %v934
        %936 = vrot.lane.b32.xlu0 %v935, 64
        %v937 = vpop.permute.xlu0 %936
        %v939 = vmul.f32 %v913, %v937
        %v940 = vmul.f32 %v913, %v917
        %942 = vrot.lane.b32.xlu0 %v940, 64
        %v943 = vpop.permute.xlu0 %942
        %v945 = vadd.f32 %v939, %v943
        %v946 = vtanh.pop %v945
        %948 = vrot.lane.b32.xlu0 %v946, 64
        %v949 = vpop.permute.xlu0 %948
        %v951 = vmul.f32 %v927, %v949
        %vm952 = vcmask 517120
        %953 = vst.msk [vmem:[#allocation2] sm:$0x3] %vm952, %v951
        %v956 = vunpack.c.l.s4 1983009808
        %v957 = vunpack.c.0.s8 %v956
        %v958 = vlaneseq
        %v959 = vshrl.u32 %v958, 7
        %v960 = vsub.s32 %v957, %v959
        %v961 = vrot.slane %v945, %v960
        %962 = vrot.lane.b32.xlu0 %v961, 64
        %v963 = vpop.permute.xlu0 %962
        %965 = vst.msk [vmem:[#allocation3] sm:$0x3] %vm952, %v963
        %s966 = scalar_lea.vmem %s4, %s225
        %967 = vst.msk [vmem:[%s966] sm:$0x3] %vm952, %v951
        %968 = vst.msk [vmem:[#allocation4] sm:$0x3] %vm952, %v951
        %969 = vst.msk [vmem:[#allocation6] sm:$0x3] %vm952, %v963
        // Predicated region
        $region41: #{pi_conv_lstm_forward.8} parent=35 // pred_check
          %p970 = pneg %p117
        $region42: #{pi_conv_lstm_forward.8} parent=35 // pred_check_branch
          %972 = sbr.rel (%p970) target = $region44
        $region43: #{pi_conv_lstm_forward.8} parent=35 // pred_region
          _
        $region44: #{pi_conv_lstm_forward.8} parent=35 // pred_fallthru
          _
        // Predicated region
        $region45: #{pi_conv_lstm_forward.8} parent=35 // pred_check
          %p973 = pneg %p138
        $region46: #{pi_conv_lstm_forward.8} parent=35 // pred_check_branch
          %975 = sbr.rel (%p973) target = $region48
        $region47: #{pi_conv_lstm_forward.8} parent=35 // pred_region
          %s977 = ssub.s32 32, 32
          %978 = vsyncadd [#allocation5], %s977
          %s980 = sshll.u32 [#allocation4], 4
          %s981 = int_to_ptr.vmem [resolvable:$true] %s980
          %983 = dma.vmem_to_hbm [thread:$0]  %s981, 32, %s5, [#allocation5]
        $region48: #{pi_conv_lstm_forward.8} parent=35 // pred_fallthru
          _
        // Predicated region
        $region49: #{pi_conv_lstm_forward.8} parent=35 // pred_check
          %p984 = pneg %p159
        $region50: #{pi_conv_lstm_forward.8} parent=35 // pred_check_branch
          %986 = sbr.rel (%p984) target = $region52
        $region51: #{pi_conv_lstm_forward.8} parent=35 // pred_region
          %s988 = ssub.s32 32, 32
          %989 = vsyncadd [#allocation7], %s988
          %s991 = sshll.u32 [#allocation6], 4
          %s992 = int_to_ptr.vmem [resolvable:$true] %s991
          %994 = dma.vmem_to_hbm [thread:$0]  %s992, 32, %s6, [#allocation7]
        $region52: #{pi_conv_lstm_forward.8} parent=35 // pred_fallthru
          _
        // Predicated region
        $region53: #{pi_conv_lstm_forward.8} parent=35 // pred_check
          %p995 = pneg %p117
        $region54: #{pi_conv_lstm_forward.8} parent=35 // pred_check_branch
          %997 = sbr.rel (%p995) target = $region56
        $region55: #{pi_conv_lstm_forward.8} parent=35 // pred_region
          _
        $region56: #{pi_conv_lstm_forward.8} parent=35 // pred_fallthru
          _
        // Predicated region
        $region57: #{pi_conv_lstm_forward.8} parent=35 // pred_check
          %p998 = pneg %p138
        $region58: #{pi_conv_lstm_forward.8} parent=35 // pred_check_branch
          %1000 = sbr.rel (%p998) target = $region60
        $region59: #{pi_conv_lstm_forward.8} parent=35 // pred_region
          %1001 = dma.done [#allocation5], 32
        $region60: #{pi_conv_lstm_forward.8} parent=35 // pred_fallthru
          _
        // Predicated region
        $region61: #{pi_conv_lstm_forward.8} parent=35 // pred_check
          %p1002 = pneg %p159
        $region62: #{pi_conv_lstm_forward.8} parent=35 // pred_check_branch
          %1004 = sbr.rel (%p1002) target = $region64
        $region63: #{pi_conv_lstm_forward.8} parent=35 // pred_region
          %1005 = dma.done [#allocation7], 32
        $region64: #{pi_conv_lstm_forward.8} parent=35 // pred_fallthru
          _
      $region36: #{pi_conv_lstm_forward.8} parent=5 // pred_fallthru
        _
      %p1006 = scmp.le.s32.totalorder 2, %s15
      // Predicated region
      $region65: #{pi_conv_lstm_forward.8} parent=5 // pred_check
        %p1007 = pneg %p1006
      $region66: #{pi_conv_lstm_forward.8} parent=5 // pred_check_branch
        %1009 = sbr.rel (%p1007) target = $region68
      $region67: #{pi_conv_lstm_forward.8} parent=5 // pred_region
        %s1010 = ssub.s32 %s15, 2
      $region68: #{pi_conv_lstm_forward.8} parent=5 // pred_fallthru
        _
    $region6: #{pi_conv_lstm_forward.8} parent=1 // loop_footer
      %s19 = sadd.s32 1, %s15
    $region7: #{pi_conv_lstm_forward.8} parent=1 // loop_footer_branch
      %14 = sbr.rel target = $region3
    $region8: #{pi_conv_lstm_forward.8} parent=1 // loop_exit
      _
    %1011 = vsyncpa [#allocation5], 1
    %s1012 = scalar_lea.sflag [#allocation5], 1
    %1013 = vsyncpa %s1012, 1
    %1014 = vsyncpa [#allocation7], 1

// kernel: pi_conv_lstm_forward.9
$region0: #{pi_conv_lstm_forward.9}
  #allocation0 [shape = 'u32[]', space=smem, size = 0x4, offset = 0x4, fixed_abs, tag = 'smem constant byte address 0x4 - core index']
  #allocation1 [shape = 'u32[144,128]{1,0:T(1,128)}', space=vmem, size = 0x12000, scoped, tag = 'internal scratch']
  %s0 = inlined_call_operand.vmem [shape: f32[16,64], index: 0, kind: input, shape index: {}]
  %s1 = inlined_call_operand.vmem [shape: f32[64,64], index: 1, kind: input, shape index: {}]
  %s2 = inlined_call_operand.vmem [shape: f32[1,64], index: 2, kind: input, shape index: {}]
  %s3 = inlined_call_operand.vmem [shape: f32[64,64], index: 3, kind: input, shape index: {}]
  %s4 = inlined_call_operand.vmem [shape: f32[1,64], index: 4, kind: input, shape index: {}]
  %s5 = inlined_call_operand.vmem [shape: f32[64,8], index: 5, kind: input, shape index: {}]
  %s6 = inlined_call_operand.vmem [shape: f32[1,8], index: 6, kind: input, shape index: {}]
  %s7 = inlined_call_operand.vmem [shape: f32[16,8], index: 7, kind: output, shape index: {}]
  %s8 = sld [smem:[#allocation0]]
  $region38: #{pi_conv_lstm_forward.9} parent=0
    _
  %s10 = ssub.s32 1, %s8
  %s11 = scalar_select 0, %s10, %s8
  // Predicated region
  $region2: #{pi_conv_lstm_forward.9} parent=0 // pred_check
    _
  $region3: #{pi_conv_lstm_forward.9} parent=0 // pred_check_branch
    %13 = sbr.rel (0) target = $region5
  $region4: #{pi_conv_lstm_forward.9} parent=0 // pred_region
    _
  $region5: #{pi_conv_lstm_forward.9} parent=0 // pred_fallthru
    _
  // Predicated region
  $region6: #{pi_conv_lstm_forward.9} parent=0 // pred_check
    _
  $region7: #{pi_conv_lstm_forward.9} parent=0 // pred_check_branch
    %15 = sbr.rel (0) target = $region9
  $region8: #{pi_conv_lstm_forward.9} parent=0 // pred_region
    _
  $region9: #{pi_conv_lstm_forward.9} parent=0 // pred_fallthru
    _
  // Predicated region
  $region10: #{pi_conv_lstm_forward.9} parent=0 // pred_check
    _
  $region11: #{pi_conv_lstm_forward.9} parent=0 // pred_check_branch
    %17 = sbr.rel (0) target = $region13
  $region12: #{pi_conv_lstm_forward.9} parent=0 // pred_region
    _
  $region13: #{pi_conv_lstm_forward.9} parent=0 // pred_fallthru
    _
  // Predicated region
  $region14: #{pi_conv_lstm_forward.9} parent=0 // pred_check
    _
  $region15: #{pi_conv_lstm_forward.9} parent=0 // pred_check_branch
    %19 = sbr.rel (0) target = $region17
  $region16: #{pi_conv_lstm_forward.9} parent=0 // pred_region
    _
  $region17: #{pi_conv_lstm_forward.9} parent=0 // pred_fallthru
    _
  // Predicated region
  $region18: #{pi_conv_lstm_forward.9} parent=0 // pred_check
    _
  $region19: #{pi_conv_lstm_forward.9} parent=0 // pred_check_branch
    %21 = sbr.rel (0) target = $region21
  $region20: #{pi_conv_lstm_forward.9} parent=0 // pred_region
    _
  $region21: #{pi_conv_lstm_forward.9} parent=0 // pred_fallthru
    _
  // Predicated region
  $region22: #{pi_conv_lstm_forward.9} parent=0 // pred_check
    _
  $region23: #{pi_conv_lstm_forward.9} parent=0 // pred_check_branch
    %23 = sbr.rel (0) target = $region25
  $region24: #{pi_conv_lstm_forward.9} parent=0 // pred_region
    _
  $region25: #{pi_conv_lstm_forward.9} parent=0 // pred_fallthru
    _
  // Predicated region
  $region26: #{pi_conv_lstm_forward.9} parent=0 // pred_check
    _
  $region27: #{pi_conv_lstm_forward.9} parent=0 // pred_check_branch
    %25 = sbr.rel (0) target = $region29
  $region28: #{pi_conv_lstm_forward.9} parent=0 // pred_region
    _
  $region29: #{pi_conv_lstm_forward.9} parent=0 // pred_fallthru
    _
  %v26 = vld [vmem:[%s0] sm:$0xff]
  %v27 = vld [vmem:[%s0 + $0x8] sm:$0xff]
  %v28 = vld [vmem:[%s1] sm:$0xff]
  %v29 = vld [vmem:[%s1 + $0x8] sm:$0xff]
  %v30 = vld [vmem:[%s1 + $0x10] sm:$0xff]
  %v31 = vld [vmem:[%s1 + $0x18] sm:$0xff]
  %v32 = vld [vmem:[%s1 + $0x20] sm:$0xff]
  %v33 = vld [vmem:[%s1 + $0x28] sm:$0xff]
  %v34 = vld [vmem:[%s1 + $0x30] sm:$0xff]
  %v35 = vld [vmem:[%s1 + $0x38] sm:$0xff]
  %v36 = vld [vmem:[%s2] sm:$0x1]
  %v38 = vlaneseq
  %v39 = vshrl.u32 %v38, 7
  %v40 = vsub.s32 0, %v39
  %v41 = vrot.slane %v36, %v40
  %vm43 = vcmask 523264
  %v45 = vsel %vm43, %v26, 0
  %v48 = vsel %vm43, %v27, 0
  %50 = vmatprep.subr.mxu0 0.0
  %51 = vmatpush1.msra.mxu0 0.0
  %52 = vmatprep.subr.mxu0 0.0
  %53 = vmatpush1.msra.mxu0 0.0
  %54 = vmatprep.subr.mxu0 0.0
  %55 = vmatpush1.msra.mxu0 0.0
  %56 = vmatprep.subr.mxu0 0.0
  %57 = vmatpush1.msra.mxu0 0.0
  %58 = vmatprep.subr.mxu0 0.0
  %59 = vmatpush1.msra.mxu0 0.0
  %60 = vmatprep.subr.mxu0 0.0
  %61 = vmatpush1.msra.mxu0 0.0
  %62 = vmatprep.subr.mxu0 0.0
  %63 = vmatpush1.msra.mxu0 0.0
  %64 = vmatprep.subr.mxu0 0.0
  %65 = vmatpush1.msra.mxu0 0.0
  %66 = vmatprep.subr.mxu0 0.0
  %v67 = vand.u32 %v35, 4294901760
  %68 = vmatpush1.msra.mxu0 %v67
  %69 = vmatprep.subr.mxu0 0.0
  %v70 = vand.u32 %v34, 4294901760
  %71 = vmatpush1.msra.mxu0 %v70
  %72 = vmatprep.subr.mxu0 0.0
  %v73 = vand.u32 %v33, 4294901760
  %74 = vmatpush1.msra.mxu0 %v73
  %75 = vmatprep.subr.mxu0 0.0
  %v76 = vand.u32 %v32, 4294901760
  %77 = vmatpush1.msra.mxu0 %v76
  %78 = vmatprep.subr.mxu0 0.0
  %v79 = vand.u32 %v31, 4294901760
  %80 = vmatpush1.msra.mxu0 %v79
  %81 = vmatprep.subr.mxu0 0.0
  %v82 = vand.u32 %v30, 4294901760
  %83 = vmatpush1.msra.mxu0 %v82
  %84 = vmatprep.subr.mxu0 0.0
  %v85 = vand.u32 %v29, 4294901760
  %86 = vmatpush1.msra.mxu0 %v85
  %87 = vmatprep.subr.mxu0 0.0
  %v88 = vand.u32 %v28, 4294901760
  %89 = vmatpush1.msra.mxu0 %v88
  %90 = vmatprep.subr.mxu0 0.0
  %91 = vmatpush2.msra.mxu0 0.0
  %92 = vmatprep.subr.mxu0 0.0
  %93 = vmatpush2.msra.mxu0 0.0
  %94 = vmatprep.subr.mxu0 0.0
  %95 = vmatpush2.msra.mxu0 0.0
  %96 = vmatprep.subr.mxu0 0.0
  %97 = vmatpush2.msra.mxu0 0.0
  %98 = vmatprep.subr.mxu0 0.0
  %99 = vmatpush2.msra.mxu0 0.0
  %100 = vmatprep.subr.mxu0 0.0
  %101 = vmatpush2.msra.mxu0 0.0
  %102 = vmatprep.subr.mxu0 0.0
  %103 = vmatpush2.msra.mxu0 0.0
  %104 = vmatprep.subr.mxu0 0.0
  %105 = vmatpush2.msra.mxu0 0.0
  %106 = vmatprep.subr.mxu0 0.0
  %107 = vmatpush2.msra.mxu0 0.0
  %108 = vmatprep.subr.mxu0 0.0
  %109 = vmatpush2.msra.mxu0 0.0
  %110 = vmatprep.subr.mxu0 0.0
  %111 = vmatpush2.msra.mxu0 0.0
  %112 = vmatprep.subr.mxu0 0.0
  %113 = vmatpush2.msra.mxu0 0.0
  %114 = vmatprep.subr.mxu0 0.0
  %115 = vmatpush2.msra.mxu0 0.0
  %116 = vmatprep.subr.mxu0 0.0
  %117 = vmatpush2.msra.mxu0 0.0
  %118 = vmatprep.subr.mxu0 0.0
  %119 = vmatpush2.msra.mxu0 0.0
  %120 = vmatprep.subr.mxu0 0.0
  %121 = vmatpush2.msra.mxu0 0.0
  %122 = vmatprep.mubr.f32.mxu0 0.0
  %v123 = vand.u32 %v45, 4294901760
  %v124 = vsub.f32 %v45, %v123
  %v125 = vand.u32 %v124, 4294901760
  %v126 = vsub.f32 %v124, %v125
  %v127 = vand.u32 %v126, 4294901760
  %128 = vmatmul.mubr.f32.gmra.mxu0 %v127
  %v129 = vpop.f32.mrf.mxu0
  %v130 = vadd.f32 %v41, %v129
  %v131 = vpop.f32.mrf.mxu0
  %132 = vmatprep.mubr.f32.mxu0 0.0
  %v133 = vand.u32 %v48, 4294901760
  %v134 = vsub.f32 %v48, %v133
  %v135 = vand.u32 %v134, 4294901760
  %v136 = vsub.f32 %v134, %v135
  %v137 = vand.u32 %v136, 4294901760
  %138 = vmatmul.mubr.f32.gmra.mxu0 %v137
  %v139 = vpop.f32.mrf.mxu0
  %v140 = vadd.f32 %v41, %v139
  %v141 = vpop.f32.mrf.mxu0
  %142 = vdwg.mxu0
  %143 = vmatprep.subr.mxu0 0.0
  %144 = vmatpush1.msra.mxu0 0.0
  %145 = vmatprep.subr.mxu0 0.0
  %146 = vmatpush1.msra.mxu0 0.0
  %147 = vmatprep.subr.mxu0 0.0
  %148 = vmatpush1.msra.mxu0 0.0
  %149 = vmatprep.subr.mxu0 0.0
  %150 = vmatpush1.msra.mxu0 0.0
  %151 = vmatprep.subr.mxu0 0.0
  %152 = vmatpush1.msra.mxu0 0.0
  %153 = vmatprep.subr.mxu0 0.0
  %154 = vmatpush1.msra.mxu0 0.0
  %155 = vmatprep.subr.mxu0 0.0
  %156 = vmatpush1.msra.mxu0 0.0
  %157 = vmatprep.subr.mxu0 0.0
  %158 = vmatpush1.msra.mxu0 0.0
  %159 = vmatprep.subr.mxu0 0.0
  %v160 = vand.u32 %v35, 4294901760
  %v161 = vsub.f32 %v35, %v160
  %v162 = vand.u32 %v161, 4294901760
  %v163 = vsub.f32 %v161, %v162
  %v164 = vand.u32 %v163, 4294901760
  %165 = vmatpush1.msra.mxu0 %v164
  %166 = vmatprep.subr.mxu0 0.0
  %v167 = vand.u32 %v34, 4294901760
  %v168 = vsub.f32 %v34, %v167
  %v169 = vand.u32 %v168, 4294901760
  %v170 = vsub.f32 %v168, %v169
  %v171 = vand.u32 %v170, 4294901760
  %172 = vmatpush1.msra.mxu0 %v171
  %173 = vmatprep.subr.mxu0 0.0
  %v174 = vand.u32 %v33, 4294901760
  %v175 = vsub.f32 %v33, %v174
  %v176 = vand.u32 %v175, 4294901760
  %v177 = vsub.f32 %v175, %v176
  %v178 = vand.u32 %v177, 4294901760
  %179 = vmatpush1.msra.mxu0 %v178
  %180 = vmatprep.subr.mxu0 0.0
  %v181 = vand.u32 %v32, 4294901760
  %v182 = vsub.f32 %v32, %v181
  %v183 = vand.u32 %v182, 4294901760
  %v184 = vsub.f32 %v182, %v183
  %v185 = vand.u32 %v184, 4294901760
  %186 = vmatpush1.msra.mxu0 %v185
  %187 = vmatprep.subr.mxu0 0.0
  %v188 = vand.u32 %v31, 4294901760
  %v189 = vsub.f32 %v31, %v188
  %v190 = vand.u32 %v189, 4294901760
  %v191 = vsub.f32 %v189, %v190
  %v192 = vand.u32 %v191, 4294901760
  %193 = vmatpush1.msra.mxu0 %v192
  %194 = vmatprep.subr.mxu0 0.0
  %v195 = vand.u32 %v30, 4294901760
  %v196 = vsub.f32 %v30, %v195
  %v197 = vand.u32 %v196, 4294901760
  %v198 = vsub.f32 %v196, %v197
  %v199 = vand.u32 %v198, 4294901760
  %200 = vmatpush1.msra.mxu0 %v199
  %201 = vmatprep.subr.mxu0 0.0
  %v202 = vand.u32 %v29, 4294901760
  %v203 = vsub.f32 %v29, %v202
  %v204 = vand.u32 %v203, 4294901760
  %v205 = vsub.f32 %v203, %v204
  %v206 = vand.u32 %v205, 4294901760
  %207 = vmatpush1.msra.mxu0 %v206
  %208 = vmatprep.subr.mxu0 0.0
  %v209 = vand.u32 %v28, 4294901760
  %v210 = vsub.f32 %v28, %v209
  %v211 = vand.u32 %v210, 4294901760
  %v212 = vsub.f32 %v210, %v211
  %v213 = vand.u32 %v212, 4294901760
  %214 = vmatpush1.msra.mxu0 %v213
  %215 = vmatprep.subr.mxu0 0.0
  %216 = vmatpush2.msra.mxu0 0.0
  %217 = vmatprep.subr.mxu0 0.0
  %218 = vmatpush2.msra.mxu0 0.0
  %219 = vmatprep.subr.mxu0 0.0
  %220 = vmatpush2.msra.mxu0 0.0
  %221 = vmatprep.subr.mxu0 0.0
  %222 = vmatpush2.msra.mxu0 0.0
  %223 = vmatprep.subr.mxu0 0.0
  %224 = vmatpush2.msra.mxu0 0.0
  %225 = vmatprep.subr.mxu0 0.0
  %226 = vmatpush2.msra.mxu0 0.0
  %227 = vmatprep.subr.mxu0 0.0
  %228 = vmatpush2.msra.mxu0 0.0
  %229 = vmatprep.subr.mxu0 0.0
  %230 = vmatpush2.msra.mxu0 0.0
  %231 = vmatprep.subr.mxu0 0.0
  %232 = vmatpush2.msra.mxu0 0.0
  %233 = vmatprep.subr.mxu0 0.0
  %234 = vmatpush2.msra.mxu0 0.0
  %235 = vmatprep.subr.mxu0 0.0
  %236 = vmatpush2.msra.mxu0 0.0
  %237 = vmatprep.subr.mxu0 0.0
  %238 = vmatpush2.msra.mxu0 0.0
  %239 = vmatprep.subr.mxu0 0.0
  %240 = vmatpush2.msra.mxu0 0.0
  %241 = vmatprep.subr.mxu0 0.0
  %242 = vmatpush2.msra.mxu0 0.0
  %243 = vmatprep.subr.mxu0 0.0
  %244 = vmatpush2.msra.mxu0 0.0
  %245 = vmatprep.subr.mxu0 0.0
  %246 = vmatpush2.msra.mxu0 0.0
  %247 = vmatprep.mubr.f32.mxu0 0.0
  %v248 = vand.u32 %v45, 4294901760
  %249 = vmatmul.mubr.f32.gmra.mxu0 %v248
  %v250 = vpop.f32.mrf.mxu0
  %v251 = vadd.f32 %v130, %v250
  %v252 = vpop.f32.mrf.mxu0
  %253 = vmatprep.mubr.f32.mxu0 0.0
  %v254 = vand.u32 %v48, 4294901760
  %255 = vmatmul.mubr.f32.gmra.mxu0 %v254
  %v256 = vpop.f32.mrf.mxu0
  %v257 = vadd.f32 %v140, %v256
  %v258 = vpop.f32.mrf.mxu0
  %259 = vdwg.mxu0
  %260 = vmatprep.subr.mxu0 0.0
  %261 = vmatpush1.msra.mxu0 0.0
  %262 = vmatprep.subr.mxu0 0.0
  %263 = vmatpush1.msra.mxu0 0.0
  %264 = vmatprep.subr.mxu0 0.0
  %265 = vmatpush1.msra.mxu0 0.0
  %266 = vmatprep.subr.mxu0 0.0
  %267 = vmatpush1.msra.mxu0 0.0
  %268 = vmatprep.subr.mxu0 0.0
  %269 = vmatpush1.msra.mxu0 0.0
  %270 = vmatprep.subr.mxu0 0.0
  %271 = vmatpush1.msra.mxu0 0.0
  %272 = vmatprep.subr.mxu0 0.0
  %273 = vmatpush1.msra.mxu0 0.0
  %274 = vmatprep.subr.mxu0 0.0
  %275 = vmatpush1.msra.mxu0 0.0
  %276 = vmatprep.subr.mxu0 0.0
  %v277 = vand.u32 %v35, 4294901760
  %v278 = vsub.f32 %v35, %v277
  %279 = vmatpush1.msra.mxu0 %v278
  %280 = vmatprep.subr.mxu0 0.0
  %v281 = vand.u32 %v34, 4294901760
  %v282 = vsub.f32 %v34, %v281
  %283 = vmatpush1.msra.mxu0 %v282
  %284 = vmatprep.subr.mxu0 0.0
  %v285 = vand.u32 %v33, 4294901760
  %v286 = vsub.f32 %v33, %v285
  %287 = vmatpush1.msra.mxu0 %v286
  %288 = vmatprep.subr.mxu0 0.0
  %v289 = vand.u32 %v32, 4294901760
  %v290 = vsub.f32 %v32, %v289
  %291 = vmatpush1.msra.mxu0 %v290
  %292 = vmatprep.subr.mxu0 0.0
  %v293 = vand.u32 %v31, 4294901760
  %v294 = vsub.f32 %v31, %v293
  %295 = vmatpush1.msra.mxu0 %v294
  %296 = vmatprep.subr.mxu0 0.0
  %v297 = vand.u32 %v30, 4294901760
  %v298 = vsub.f32 %v30, %v297
  %299 = vmatpush1.msra.mxu0 %v298
  %300 = vmatprep.subr.mxu0 0.0
  %v301 = vand.u32 %v29, 4294901760
  %v302 = vsub.f32 %v29, %v301
  %303 = vmatpush1.msra.mxu0 %v302
  %304 = vmatprep.subr.mxu0 0.0
  %v305 = vand.u32 %v28, 4294901760
  %v306 = vsub.f32 %v28, %v305
  %307 = vmatpush1.msra.mxu0 %v306
  %308 = vmatprep.subr.mxu0 0.0
  %309 = vmatpush2.msra.mxu0 0.0
  %310 = vmatprep.subr.mxu0 0.0
  %311 = vmatpush2.msra.mxu0 0.0
  %312 = vmatprep.subr.mxu0 0.0
  %313 = vmatpush2.msra.mxu0 0.0
  %314 = vmatprep.subr.mxu0 0.0
  %315 = vmatpush2.msra.mxu0 0.0
  %316 = vmatprep.subr.mxu0 0.0
  %317 = vmatpush2.msra.mxu0 0.0
  %318 = vmatprep.subr.mxu0 0.0
  %319 = vmatpush2.msra.mxu0 0.0
  %320 = vmatprep.subr.mxu0 0.0
  %321 = vmatpush2.msra.mxu0 0.0
  %322 = vmatprep.subr.mxu0 0.0
  %323 = vmatpush2.msra.mxu0 0.0
  %324 = vmatprep.subr.mxu0 0.0
  %325 = vmatpush2.msra.mxu0 0.0
  %326 = vmatprep.subr.mxu0 0.0
  %327 = vmatpush2.msra.mxu0 0.0
  %328 = vmatprep.subr.mxu0 0.0
  %329 = vmatpush2.msra.mxu0 0.0
  %330 = vmatprep.subr.mxu0 0.0
  %331 = vmatpush2.msra.mxu0 0.0
  %332 = vmatprep.subr.mxu0 0.0
  %333 = vmatpush2.msra.mxu0 0.0
  %334 = vmatprep.subr.mxu0 0.0
  %335 = vmatpush2.msra.mxu0 0.0
  %336 = vmatprep.subr.mxu0 0.0
  %337 = vmatpush2.msra.mxu0 0.0
  %338 = vmatprep.subr.mxu0 0.0
  %339 = vmatpush2.msra.mxu0 0.0
  %340 = vmatprep.mubr.f32.mxu0 0.0
  %v341 = vand.u32 %v45, 4294901760
  %v342 = vsub.f32 %v45, %v341
  %343 = vmatmul.mubr.f32.gmra.mxu0 %v342
  %v344 = vpop.f32.mrf.mxu0
  %v345 = vadd.f32 %v251, %v344
  %v346 = vpop.f32.mrf.mxu0
  %347 = vmatprep.mubr.f32.mxu0 0.0
  %v348 = vand.u32 %v48, 4294901760
  %v349 = vsub.f32 %v48, %v348
  %350 = vmatmul.mubr.f32.gmra.mxu0 %v349
  %v351 = vpop.f32.mrf.mxu0
  %v352 = vadd.f32 %v257, %v351
  %v353 = vpop.f32.mrf.mxu0
  %354 = vdwg.mxu0
  %355 = vmatprep.subr.mxu0 0.0
  %356 = vmatpush1.msra.mxu0 0.0
  %357 = vmatprep.subr.mxu0 0.0
  %358 = vmatpush1.msra.mxu0 0.0
  %359 = vmatprep.subr.mxu0 0.0
  %360 = vmatpush1.msra.mxu0 0.0
  %361 = vmatprep.subr.mxu0 0.0
  %362 = vmatpush1.msra.mxu0 0.0
  %363 = vmatprep.subr.mxu0 0.0
  %364 = vmatpush1.msra.mxu0 0.0
  %365 = vmatprep.subr.mxu0 0.0
  %366 = vmatpush1.msra.mxu0 0.0
  %367 = vmatprep.subr.mxu0 0.0
  %368 = vmatpush1.msra.mxu0 0.0
  %369 = vmatprep.subr.mxu0 0.0
  %370 = vmatpush1.msra.mxu0 0.0
  %371 = vmatprep.subr.mxu0 0.0
  %v372 = vand.u32 %v35, 4294901760
  %373 = vmatpush1.msra.mxu0 %v372
  %374 = vmatprep.subr.mxu0 0.0
  %v375 = vand.u32 %v34, 4294901760
  %376 = vmatpush1.msra.mxu0 %v375
  %377 = vmatprep.subr.mxu0 0.0
  %v378 = vand.u32 %v33, 4294901760
  %379 = vmatpush1.msra.mxu0 %v378
  %380 = vmatprep.subr.mxu0 0.0
  %v381 = vand.u32 %v32, 4294901760
  %382 = vmatpush1.msra.mxu0 %v381
  %383 = vmatprep.subr.mxu0 0.0
  %v384 = vand.u32 %v31, 4294901760
  %385 = vmatpush1.msra.mxu0 %v384
  %386 = vmatprep.subr.mxu0 0.0
  %v387 = vand.u32 %v30, 4294901760
  %388 = vmatpush1.msra.mxu0 %v387
  %389 = vmatprep.subr.mxu0 0.0
  %v390 = vand.u32 %v29, 4294901760
  %391 = vmatpush1.msra.mxu0 %v390
  %392 = vmatprep.subr.mxu0 0.0
  %v393 = vand.u32 %v28, 4294901760
  %394 = vmatpush1.msra.mxu0 %v393
  %395 = vmatprep.subr.mxu0 0.0
  %396 = vmatpush2.msra.mxu0 0.0
  %397 = vmatprep.subr.mxu0 0.0
  %398 = vmatpush2.msra.mxu0 0.0
  %399 = vmatprep.subr.mxu0 0.0
  %400 = vmatpush2.msra.mxu0 0.0
  %401 = vmatprep.subr.mxu0 0.0
  %402 = vmatpush2.msra.mxu0 0.0
  %403 = vmatprep.subr.mxu0 0.0
  %404 = vmatpush2.msra.mxu0 0.0
  %405 = vmatprep.subr.mxu0 0.0
  %406 = vmatpush2.msra.mxu0 0.0
  %407 = vmatprep.subr.mxu0 0.0
  %408 = vmatpush2.msra.mxu0 0.0
  %409 = vmatprep.subr.mxu0 0.0
  %410 = vmatpush2.msra.mxu0 0.0
  %411 = vmatprep.subr.mxu0 0.0
  %412 = vmatpush2.msra.mxu0 0.0
  %413 = vmatprep.subr.mxu0 0.0
  %414 = vmatpush2.msra.mxu0 0.0
  %415 = vmatprep.subr.mxu0 0.0
  %416 = vmatpush2.msra.mxu0 0.0
  %417 = vmatprep.subr.mxu0 0.0
  %418 = vmatpush2.msra.mxu0 0.0
  %419 = vmatprep.subr.mxu0 0.0
  %420 = vmatpush2.msra.mxu0 0.0
  %421 = vmatprep.subr.mxu0 0.0
  %422 = vmatpush2.msra.mxu0 0.0
  %423 = vmatprep.subr.mxu0 0.0
  %424 = vmatpush2.msra.mxu0 0.0
  %425 = vmatprep.subr.mxu0 0.0
  %426 = vmatpush2.msra.mxu0 0.0
  %427 = vmatprep.mubr.f32.mxu0 0.0
  %v428 = vand.u32 %v45, 4294901760
  %v429 = vsub.f32 %v45, %v428
  %v430 = vand.u32 %v429, 4294901760
  %431 = vmatmul.mubr.f32.gmra.mxu0 %v430
  %v432 = vpop.f32.mrf.mxu0
  %v433 = vadd.f32 %v345, %v432
  %v434 = vpop.f32.mrf.mxu0
  %435 = vmatprep.mubr.f32.mxu0 0.0
  %v436 = vand.u32 %v48, 4294901760
  %v437 = vsub.f32 %v48, %v436
  %v438 = vand.u32 %v437, 4294901760
  %439 = vmatmul.mubr.f32.gmra.mxu0 %v438
  %v440 = vpop.f32.mrf.mxu0
  %v441 = vadd.f32 %v352, %v440
  %v442 = vpop.f32.mrf.mxu0
  %443 = vdwg.mxu0
  %444 = vmatprep.subr.mxu0 0.0
  %445 = vmatpush1.msra.mxu0 0.0
  %446 = vmatprep.subr.mxu0 0.0
  %447 = vmatpush1.msra.mxu0 0.0
  %448 = vmatprep.subr.mxu0 0.0
  %449 = vmatpush1.msra.mxu0 0.0
  %450 = vmatprep.subr.mxu0 0.0
  %451 = vmatpush1.msra.mxu0 0.0
  %452 = vmatprep.subr.mxu0 0.0
  %453 = vmatpush1.msra.mxu0 0.0
  %454 = vmatprep.subr.mxu0 0.0
  %455 = vmatpush1.msra.mxu0 0.0
  %456 = vmatprep.subr.mxu0 0.0
  %457 = vmatpush1.msra.mxu0 0.0
  %458 = vmatprep.subr.mxu0 0.0
  %459 = vmatpush1.msra.mxu0 0.0
  %460 = vmatprep.subr.mxu0 0.0
  %v461 = vand.u32 %v35, 4294901760
  %v462 = vsub.f32 %v35, %v461
  %v463 = vand.u32 %v462, 4294901760
  %464 = vmatpush1.msra.mxu0 %v463
  %465 = vmatprep.subr.mxu0 0.0
  %v466 = vand.u32 %v34, 4294901760
  %v467 = vsub.f32 %v34, %v466
  %v468 = vand.u32 %v467, 4294901760
  %469 = vmatpush1.msra.mxu0 %v468
  %470 = vmatprep.subr.mxu0 0.0
  %v471 = vand.u32 %v33, 4294901760
  %v472 = vsub.f32 %v33, %v471
  %v473 = vand.u32 %v472, 4294901760
  %474 = vmatpush1.msra.mxu0 %v473
  %475 = vmatprep.subr.mxu0 0.0
  %v476 = vand.u32 %v32, 4294901760
  %v477 = vsub.f32 %v32, %v476
  %v478 = vand.u32 %v477, 4294901760
  %479 = vmatpush1.msra.mxu0 %v478
  %480 = vmatprep.subr.mxu0 0.0
  %v481 = vand.u32 %v31, 4294901760
  %v482 = vsub.f32 %v31, %v481
  %v483 = vand.u32 %v482, 4294901760
  %484 = vmatpush1.msra.mxu0 %v483
  %485 = vmatprep.subr.mxu0 0.0
  %v486 = vand.u32 %v30, 4294901760
  %v487 = vsub.f32 %v30, %v486
  %v488 = vand.u32 %v487, 4294901760
  %489 = vmatpush1.msra.mxu0 %v488
  %490 = vmatprep.subr.mxu0 0.0
  %v491 = vand.u32 %v29, 4294901760
  %v492 = vsub.f32 %v29, %v491
  %v493 = vand.u32 %v492, 4294901760
  %494 = vmatpush1.msra.mxu0 %v493
  %495 = vmatprep.subr.mxu0 0.0
  %v496 = vand.u32 %v28, 4294901760
  %v497 = vsub.f32 %v28, %v496
  %v498 = vand.u32 %v497, 4294901760
  %499 = vmatpush1.msra.mxu0 %v498
  %500 = vmatprep.subr.mxu0 0.0
  %501 = vmatpush2.msra.mxu0 0.0
  %502 = vmatprep.subr.mxu0 0.0
  %503 = vmatpush2.msra.mxu0 0.0
  %504 = vmatprep.subr.mxu0 0.0
  %505 = vmatpush2.msra.mxu0 0.0
  %506 = vmatprep.subr.mxu0 0.0
  %507 = vmatpush2.msra.mxu0 0.0
  %508 = vmatprep.subr.mxu0 0.0
  %509 = vmatpush2.msra.mxu0 0.0
  %510 = vmatprep.subr.mxu0 0.0
  %511 = vmatpush2.msra.mxu0 0.0
  %512 = vmatprep.subr.mxu0 0.0
  %513 = vmatpush2.msra.mxu0 0.0
  %514 = vmatprep.subr.mxu0 0.0
  %515 = vmatpush2.msra.mxu0 0.0
  %516 = vmatprep.subr.mxu0 0.0
  %517 = vmatpush2.msra.mxu0 0.0
  %518 = vmatprep.subr.mxu0 0.0
  %519 = vmatpush2.msra.mxu0 0.0
  %520 = vmatprep.subr.mxu0 0.0
  %521 = vmatpush2.msra.mxu0 0.0
  %522 = vmatprep.subr.mxu0 0.0
  %523 = vmatpush2.msra.mxu0 0.0
  %524 = vmatprep.subr.mxu0 0.0
  %525 = vmatpush2.msra.mxu0 0.0
  %526 = vmatprep.subr.mxu0 0.0
  %527 = vmatpush2.msra.mxu0 0.0
  %528 = vmatprep.subr.mxu0 0.0
  %529 = vmatpush2.msra.mxu0 0.0
  %530 = vmatprep.subr.mxu0 0.0
  %531 = vmatpush2.msra.mxu0 0.0
  %532 = vmatprep.mubr.f32.mxu0 0.0
  %v533 = vand.u32 %v45, 4294901760
  %534 = vmatmul.mubr.f32.gmra.mxu0 %v533
  %v535 = vpop.f32.mrf.mxu0
  %v536 = vadd.f32 %v433, %v535
  %v537 = vpop.f32.mrf.mxu0
  %538 = vmatprep.mubr.f32.mxu0 0.0
  %v539 = vand.u32 %v48, 4294901760
  %540 = vmatmul.mubr.f32.gmra.mxu0 %v539
  %v541 = vpop.f32.mrf.mxu0
  %v542 = vadd.f32 %v441, %v541
  %v543 = vpop.f32.mrf.mxu0
  %544 = vdwg.mxu0
  %545 = vmatprep.subr.mxu0 0.0
  %546 = vmatpush1.msra.mxu0 0.0
  %547 = vmatprep.subr.mxu0 0.0
  %548 = vmatpush1.msra.mxu0 0.0
  %549 = vmatprep.subr.mxu0 0.0
  %550 = vmatpush1.msra.mxu0 0.0
  %551 = vmatprep.subr.mxu0 0.0
  %552 = vmatpush1.msra.mxu0 0.0
  %553 = vmatprep.subr.mxu0 0.0
  %554 = vmatpush1.msra.mxu0 0.0
  %555 = vmatprep.subr.mxu0 0.0
  %556 = vmatpush1.msra.mxu0 0.0
  %557 = vmatprep.subr.mxu0 0.0
  %558 = vmatpush1.msra.mxu0 0.0
  %559 = vmatprep.subr.mxu0 0.0
  %560 = vmatpush1.msra.mxu0 0.0
  %561 = vmatprep.subr.mxu0 0.0
  %v562 = vand.u32 %v35, 4294901760
  %563 = vmatpush1.msra.mxu0 %v562
  %564 = vmatprep.subr.mxu0 0.0
  %v565 = vand.u32 %v34, 4294901760
  %566 = vmatpush1.msra.mxu0 %v565
  %567 = vmatprep.subr.mxu0 0.0
  %v568 = vand.u32 %v33, 4294901760
  %569 = vmatpush1.msra.mxu0 %v568
  %570 = vmatprep.subr.mxu0 0.0
  %v571 = vand.u32 %v32, 4294901760
  %572 = vmatpush1.msra.mxu0 %v571
  %573 = vmatprep.subr.mxu0 0.0
  %v574 = vand.u32 %v31, 4294901760
  %575 = vmatpush1.msra.mxu0 %v574
  %576 = vmatprep.subr.mxu0 0.0
  %v577 = vand.u32 %v30, 4294901760
  %578 = vmatpush1.msra.mxu0 %v577
  %579 = vmatprep.subr.mxu0 0.0
  %v580 = vand.u32 %v29, 4294901760
  %581 = vmatpush1.msra.mxu0 %v580
  %582 = vmatprep.subr.mxu0 0.0
  %v583 = vand.u32 %v28, 4294901760
  %584 = vmatpush1.msra.mxu0 %v583
  %585 = vmatprep.subr.mxu0 0.0
  %586 = vmatpush2.msra.mxu0 0.0
  %587 = vmatprep.subr.mxu0 0.0
  %588 = vmatpush2.msra.mxu0 0.0
  %589 = vmatprep.subr.mxu0 0.0
  %590 = vmatpush2.msra.mxu0 0.0
  %591 = vmatprep.subr.mxu0 0.0
  %592 = vmatpush2.msra.mxu0 0.0
  %593 = vmatprep.subr.mxu0 0.0
  %594 = vmatpush2.msra.mxu0 0.0
  %595 = vmatprep.subr.mxu0 0.0
  %596 = vmatpush2.msra.mxu0 0.0
  %597 = vmatprep.subr.mxu0 0.0
  %598 = vmatpush2.msra.mxu0 0.0
  %599 = vmatprep.subr.mxu0 0.0
  %600 = vmatpush2.msra.mxu0 0.0
  %601 = vmatprep.subr.mxu0 0.0
  %602 = vmatpush2.msra.mxu0 0.0
  %603 = vmatprep.subr.mxu0 0.0
  %604 = vmatpush2.msra.mxu0 0.0
  %605 = vmatprep.subr.mxu0 0.0
  %606 = vmatpush2.msra.mxu0 0.0
  %607 = vmatprep.subr.mxu0 0.0
  %608 = vmatpush2.msra.mxu0 0.0
  %609 = vmatprep.subr.mxu0 0.0
  %610 = vmatpush2.msra.mxu0 0.0
  %611 = vmatprep.subr.mxu0 0.0
  %612 = vmatpush2.msra.mxu0 0.0
  %613 = vmatprep.subr.mxu0 0.0
  %614 = vmatpush2.msra.mxu0 0.0
  %615 = vmatprep.subr.mxu0 0.0
  %616 = vmatpush2.msra.mxu0 0.0
  %617 = vmatprep.mubr.f32.mxu0 0.0
  %v618 = vand.u32 %v45, 4294901760
  %619 = vmatmul.mubr.f32.gmra.mxu0 %v618
  %v620 = vpop.f32.mrf.mxu0
  %v621 = vadd.f32 %v536, %v620
  %v622 = vpop.f32.mrf.mxu0
  %623 = vmatprep.mubr.f32.mxu0 0.0
  %v624 = vand.u32 %v48, 4294901760
  %625 = vmatmul.mubr.f32.gmra.mxu0 %v624
  %v626 = vpop.f32.mrf.mxu0
  %v627 = vadd.f32 %v542, %v626
  %v628 = vpop.f32.mrf.mxu0
  %629 = vdwg.mxu0
  %v630 = vmax.f32 %v621, 0.0
  %v631 = vmax.f32 %v627, 0.0
  %v632 = vld [vmem:[%s3] sm:$0xff]
  %v633 = vld [vmem:[%s3 + $0x8] sm:$0xff]
  %v634 = vld [vmem:[%s3 + $0x10] sm:$0xff]
  %v635 = vld [vmem:[%s3 + $0x18] sm:$0xff]
  %v636 = vld [vmem:[%s3 + $0x20] sm:$0xff]
  %v637 = vld [vmem:[%s3 + $0x28] sm:$0xff]
  %v638 = vld [vmem:[%s3 + $0x30] sm:$0xff]
  %v639 = vld [vmem:[%s3 + $0x38] sm:$0xff]
  %v640 = vld [vmem:[%s4] sm:$0x1]
  %v642 = vlaneseq
  %v643 = vshrl.u32 %v642, 7
  %v644 = vsub.s32 0, %v643
  %v645 = vrot.slane %v640, %v644
  %v648 = vsel %vm43, %v630, 0
  %v651 = vsel %vm43, %v631, 0
  %653 = vmatprep.subr.mxu0 0.0
  %654 = vmatpush1.msra.mxu0 0.0
  %655 = vmatprep.subr.mxu0 0.0
  %656 = vmatpush1.msra.mxu0 0.0
  %657 = vmatprep.subr.mxu0 0.0
  %658 = vmatpush1.msra.mxu0 0.0
  %659 = vmatprep.subr.mxu0 0.0
  %660 = vmatpush1.msra.mxu0 0.0
  %661 = vmatprep.subr.mxu0 0.0
  %662 = vmatpush1.msra.mxu0 0.0
  %663 = vmatprep.subr.mxu0 0.0
  %664 = vmatpush1.msra.mxu0 0.0
  %665 = vmatprep.subr.mxu0 0.0
  %666 = vmatpush1.msra.mxu0 0.0
  %667 = vmatprep.subr.mxu0 0.0
  %668 = vmatpush1.msra.mxu0 0.0
  %669 = vmatprep.subr.mxu0 0.0
  %v670 = vand.u32 %v639, 4294901760
  %671 = vmatpush1.msra.mxu0 %v670
  %672 = vmatprep.subr.mxu0 0.0
  %v673 = vand.u32 %v638, 4294901760
  %674 = vmatpush1.msra.mxu0 %v673
  %675 = vmatprep.subr.mxu0 0.0
  %v676 = vand.u32 %v637, 4294901760
  %677 = vmatpush1.msra.mxu0 %v676
  %678 = vmatprep.subr.mxu0 0.0
  %v679 = vand.u32 %v636, 4294901760
  %680 = vmatpush1.msra.mxu0 %v679
  %681 = vmatprep.subr.mxu0 0.0
  %v682 = vand.u32 %v635, 4294901760
  %683 = vmatpush1.msra.mxu0 %v682
  %684 = vmatprep.subr.mxu0 0.0
  %v685 = vand.u32 %v634, 4294901760
  %686 = vmatpush1.msra.mxu0 %v685
  %687 = vmatprep.subr.mxu0 0.0
  %v688 = vand.u32 %v633, 4294901760
  %689 = vmatpush1.msra.mxu0 %v688
  %690 = vmatprep.subr.mxu0 0.0
  %v691 = vand.u32 %v632, 4294901760
  %692 = vmatpush1.msra.mxu0 %v691
  %693 = vmatprep.subr.mxu0 0.0
  %694 = vmatpush2.msra.mxu0 0.0
  %695 = vmatprep.subr.mxu0 0.0
  %696 = vmatpush2.msra.mxu0 0.0
  %697 = vmatprep.subr.mxu0 0.0
  %698 = vmatpush2.msra.mxu0 0.0
  %699 = vmatprep.subr.mxu0 0.0
  %700 = vmatpush2.msra.mxu0 0.0
  %701 = vmatprep.subr.mxu0 0.0
  %702 = vmatpush2.msra.mxu0 0.0
  %703 = vmatprep.subr.mxu0 0.0
  %704 = vmatpush2.msra.mxu0 0.0
  %705 = vmatprep.subr.mxu0 0.0
  %706 = vmatpush2.msra.mxu0 0.0
  %707 = vmatprep.subr.mxu0 0.0
  %708 = vmatpush2.msra.mxu0 0.0
  %709 = vmatprep.subr.mxu0 0.0
  %710 = vmatpush2.msra.mxu0 0.0
  %711 = vmatprep.subr.mxu0 0.0
  %712 = vmatpush2.msra.mxu0 0.0
  %713 = vmatprep.subr.mxu0 0.0
  %714 = vmatpush2.msra.mxu0 0.0
  %715 = vmatprep.subr.mxu0 0.0
  %716 = vmatpush2.msra.mxu0 0.0
  %717 = vmatprep.subr.mxu0 0.0
  %718 = vmatpush2.msra.mxu0 0.0
  %719 = vmatprep.subr.mxu0 0.0
  %720 = vmatpush2.msra.mxu0 0.0
  %721 = vmatprep.subr.mxu0 0.0
  %722 = vmatpush2.msra.mxu0 0.0
  %723 = vmatprep.subr.mxu0 0.0
  %724 = vmatpush2.msra.mxu0 0.0
  %725 = vmatprep.mubr.f32.mxu0 0.0
  %v726 = vand.u32 %v648, 4294901760
  %v727 = vsub.f32 %v648, %v726
  %v728 = vand.u32 %v727, 4294901760
  %v729 = vsub.f32 %v727, %v728
  %v730 = vand.u32 %v729, 4294901760
  %731 = vmatmul.mubr.f32.gmra.mxu0 %v730
  %v732 = vpop.f32.mrf.mxu0
  %v733 = vadd.f32 %v645, %v732
  %v734 = vpop.f32.mrf.mxu0
  %735 = vmatprep.mubr.f32.mxu0 0.0
  %v736 = vand.u32 %v651, 4294901760
  %v737 = vsub.f32 %v651, %v736
  %v738 = vand.u32 %v737, 4294901760
  %v739 = vsub.f32 %v737, %v738
  %v740 = vand.u32 %v739, 4294901760
  %741 = vmatmul.mubr.f32.gmra.mxu0 %v740
  %v742 = vpop.f32.mrf.mxu0
  %v743 = vadd.f32 %v645, %v742
  %v744 = vpop.f32.mrf.mxu0
  %745 = vdwg.mxu0
  %746 = vmatprep.subr.mxu0 0.0
  %747 = vmatpush1.msra.mxu0 0.0
  %748 = vmatprep.subr.mxu0 0.0
  %749 = vmatpush1.msra.mxu0 0.0
  %750 = vmatprep.subr.mxu0 0.0
  %751 = vmatpush1.msra.mxu0 0.0
  %752 = vmatprep.subr.mxu0 0.0
  %753 = vmatpush1.msra.mxu0 0.0
  %754 = vmatprep.subr.mxu0 0.0
  %755 = vmatpush1.msra.mxu0 0.0
  %756 = vmatprep.subr.mxu0 0.0
  %757 = vmatpush1.msra.mxu0 0.0
  %758 = vmatprep.subr.mxu0 0.0
  %759 = vmatpush1.msra.mxu0 0.0
  %760 = vmatprep.subr.mxu0 0.0
  %761 = vmatpush1.msra.mxu0 0.0
  %762 = vmatprep.subr.mxu0 0.0
  %v763 = vand.u32 %v639, 4294901760
  %v764 = vsub.f32 %v639, %v763
  %v765 = vand.u32 %v764, 4294901760
  %v766 = vsub.f32 %v764, %v765
  %v767 = vand.u32 %v766, 4294901760
  %768 = vmatpush1.msra.mxu0 %v767
  %769 = vmatprep.subr.mxu0 0.0
  %v770 = vand.u32 %v638, 4294901760
  %v771 = vsub.f32 %v638, %v770
  %v772 = vand.u32 %v771, 4294901760
  %v773 = vsub.f32 %v771, %v772
  %v774 = vand.u32 %v773, 4294901760
  %775 = vmatpush1.msra.mxu0 %v774
  %776 = vmatprep.subr.mxu0 0.0
  %v777 = vand.u32 %v637, 4294901760
  %v778 = vsub.f32 %v637, %v777
  %v779 = vand.u32 %v778, 4294901760
  %v780 = vsub.f32 %v778, %v779
  %v781 = vand.u32 %v780, 4294901760
  %782 = vmatpush1.msra.mxu0 %v781
  %783 = vmatprep.subr.mxu0 0.0
  %v784 = vand.u32 %v636, 4294901760
  %v785 = vsub.f32 %v636, %v784
  %v786 = vand.u32 %v785, 4294901760
  %v787 = vsub.f32 %v785, %v786
  %v788 = vand.u32 %v787, 4294901760
  %789 = vmatpush1.msra.mxu0 %v788
  %790 = vmatprep.subr.mxu0 0.0
  %v791 = vand.u32 %v635, 4294901760
  %v792 = vsub.f32 %v635, %v791
  %v793 = vand.u32 %v792, 4294901760
  %v794 = vsub.f32 %v792, %v793
  %v795 = vand.u32 %v794, 4294901760
  %796 = vmatpush1.msra.mxu0 %v795
  %797 = vmatprep.subr.mxu0 0.0
  %v798 = vand.u32 %v634, 4294901760
  %v799 = vsub.f32 %v634, %v798
  %v800 = vand.u32 %v799, 4294901760
  %v801 = vsub.f32 %v799, %v800
  %v802 = vand.u32 %v801, 4294901760
  %803 = vmatpush1.msra.mxu0 %v802
  %804 = vmatprep.subr.mxu0 0.0
  %v805 = vand.u32 %v633, 4294901760
  %v806 = vsub.f32 %v633, %v805
  %v807 = vand.u32 %v806, 4294901760
  %v808 = vsub.f32 %v806, %v807
  %v809 = vand.u32 %v808, 4294901760
  %810 = vmatpush1.msra.mxu0 %v809
  %811 = vmatprep.subr.mxu0 0.0
  %v812 = vand.u32 %v632, 4294901760
  %v813 = vsub.f32 %v632, %v812
  %v814 = vand.u32 %v813, 4294901760
  %v815 = vsub.f32 %v813, %v814
  %v816 = vand.u32 %v815, 4294901760
  %817 = vmatpush1.msra.mxu0 %v816
  %818 = vmatprep.subr.mxu0 0.0
  %819 = vmatpush2.msra.mxu0 0.0
  %820 = vmatprep.subr.mxu0 0.0
  %821 = vmatpush2.msra.mxu0 0.0
  %822 = vmatprep.subr.mxu0 0.0
  %823 = vmatpush2.msra.mxu0 0.0
  %824 = vmatprep.subr.mxu0 0.0
  %825 = vmatpush2.msra.mxu0 0.0
  %826 = vmatprep.subr.mxu0 0.0
  %827 = vmatpush2.msra.mxu0 0.0
  %828 = vmatprep.subr.mxu0 0.0
  %829 = vmatpush2.msra.mxu0 0.0
  %830 = vmatprep.subr.mxu0 0.0
  %831 = vmatpush2.msra.mxu0 0.0
  %832 = vmatprep.subr.mxu0 0.0
  %833 = vmatpush2.msra.mxu0 0.0
  %834 = vmatprep.subr.mxu0 0.0
  %835 = vmatpush2.msra.mxu0 0.0
  %836 = vmatprep.subr.mxu0 0.0
  %837 = vmatpush2.msra.mxu0 0.0
  %838 = vmatprep.subr.mxu0 0.0
  %839 = vmatpush2.msra.mxu0 0.0
  %840 = vmatprep.subr.mxu0 0.0
  %841 = vmatpush2.msra.mxu0 0.0
  %842 = vmatprep.subr.mxu0 0.0
  %843 = vmatpush2.msra.mxu0 0.0
  %844 = vmatprep.subr.mxu0 0.0
  %845 = vmatpush2.msra.mxu0 0.0
  %846 = vmatprep.subr.mxu0 0.0
  %847 = vmatpush2.msra.mxu0 0.0
  %848 = vmatprep.subr.mxu0 0.0
  %849 = vmatpush2.msra.mxu0 0.0
  %850 = vmatprep.mubr.f32.mxu0 0.0
  %v851 = vand.u32 %v648, 4294901760
  %852 = vmatmul.mubr.f32.gmra.mxu0 %v851
  %v853 = vpop.f32.mrf.mxu0
  %v854 = vadd.f32 %v733, %v853
  %v855 = vpop.f32.mrf.mxu0
  %856 = vmatprep.mubr.f32.mxu0 0.0
  %v857 = vand.u32 %v651, 4294901760
  %858 = vmatmul.mubr.f32.gmra.mxu0 %v857
  %v859 = vpop.f32.mrf.mxu0
  %v860 = vadd.f32 %v743, %v859
  %v861 = vpop.f32.mrf.mxu0
  %862 = vdwg.mxu0
  %863 = vmatprep.subr.mxu0 0.0
  %864 = vmatpush1.msra.mxu0 0.0
  %865 = vmatprep.subr.mxu0 0.0
  %866 = vmatpush1.msra.mxu0 0.0
  %867 = vmatprep.subr.mxu0 0.0
  %868 = vmatpush1.msra.mxu0 0.0
  %869 = vmatprep.subr.mxu0 0.0
  %870 = vmatpush1.msra.mxu0 0.0
  %871 = vmatprep.subr.mxu0 0.0
  %872 = vmatpush1.msra.mxu0 0.0
  %873 = vmatprep.subr.mxu0 0.0
  %874 = vmatpush1.msra.mxu0 0.0
  %875 = vmatprep.subr.mxu0 0.0
  %876 = vmatpush1.msra.mxu0 0.0
  %877 = vmatprep.subr.mxu0 0.0
  %878 = vmatpush1.msra.mxu0 0.0
  %879 = vmatprep.subr.mxu0 0.0
  %v880 = vand.u32 %v639, 4294901760
  %v881 = vsub.f32 %v639, %v880
  %882 = vmatpush1.msra.mxu0 %v881
  %883 = vmatprep.subr.mxu0 0.0
  %v884 = vand.u32 %v638, 4294901760
  %v885 = vsub.f32 %v638, %v884
  %886 = vmatpush1.msra.mxu0 %v885
  %887 = vmatprep.subr.mxu0 0.0
  %v888 = vand.u32 %v637, 4294901760
  %v889 = vsub.f32 %v637, %v888
  %890 = vmatpush1.msra.mxu0 %v889
  %891 = vmatprep.subr.mxu0 0.0
  %v892 = vand.u32 %v636, 4294901760
  %v893 = vsub.f32 %v636, %v892
  %894 = vmatpush1.msra.mxu0 %v893
  %895 = vmatprep.subr.mxu0 0.0
  %v896 = vand.u32 %v635, 4294901760
  %v897 = vsub.f32 %v635, %v896
  %898 = vmatpush1.msra.mxu0 %v897
  %899 = vmatprep.subr.mxu0 0.0
  %v900 = vand.u32 %v634, 4294901760
  %v901 = vsub.f32 %v634, %v900
  %902 = vmatpush1.msra.mxu0 %v901
  %903 = vmatprep.subr.mxu0 0.0
  %v904 = vand.u32 %v633, 4294901760
  %v905 = vsub.f32 %v633, %v904
  %906 = vmatpush1.msra.mxu0 %v905
  %907 = vmatprep.subr.mxu0 0.0
  %v908 = vand.u32 %v632, 4294901760
  %v909 = vsub.f32 %v632, %v908
  %910 = vmatpush1.msra.mxu0 %v909
  %911 = vmatprep.subr.mxu0 0.0
  %912 = vmatpush2.msra.mxu0 0.0
  %913 = vmatprep.subr.mxu0 0.0
  %914 = vmatpush2.msra.mxu0 0.0
  %915 = vmatprep.subr.mxu0 0.0
  %916 = vmatpush2.msra.mxu0 0.0
  %917 = vmatprep.subr.mxu0 0.0
  %918 = vmatpush2.msra.mxu0 0.0
  %919 = vmatprep.subr.mxu0 0.0
  %920 = vmatpush2.msra.mxu0 0.0
  %921 = vmatprep.subr.mxu0 0.0
  %922 = vmatpush2.msra.mxu0 0.0
  %923 = vmatprep.subr.mxu0 0.0
  %924 = vmatpush2.msra.mxu0 0.0
  %925 = vmatprep.subr.mxu0 0.0
  %926 = vmatpush2.msra.mxu0 0.0
  %927 = vmatprep.subr.mxu0 0.0
  %928 = vmatpush2.msra.mxu0 0.0
  %929 = vmatprep.subr.mxu0 0.0
  %930 = vmatpush2.msra.mxu0 0.0
  %931 = vmatprep.subr.mxu0 0.0
  %932 = vmatpush2.msra.mxu0 0.0
  %933 = vmatprep.subr.mxu0 0.0
  %934 = vmatpush2.msra.mxu0 0.0
  %935 = vmatprep.subr.mxu0 0.0
  %936 = vmatpush2.msra.mxu0 0.0
  %937 = vmatprep.subr.mxu0 0.0
  %938 = vmatpush2.msra.mxu0 0.0
  %939 = vmatprep.subr.mxu0 0.0
  %940 = vmatpush2.msra.mxu0 0.0
  %941 = vmatprep.subr.mxu0 0.0
  %942 = vmatpush2.msra.mxu0 0.0
  %943 = vmatprep.mubr.f32.mxu0 0.0
  %v944 = vand.u32 %v648, 4294901760
  %v945 = vsub.f32 %v648, %v944
  %946 = vmatmul.mubr.f32.gmra.mxu0 %v945
  %v947 = vpop.f32.mrf.mxu0
  %v948 = vadd.f32 %v854, %v947
  %v949 = vpop.f32.mrf.mxu0
  %950 = vmatprep.mubr.f32.mxu0 0.0
  %v951 = vand.u32 %v651, 4294901760
  %v952 = vsub.f32 %v651, %v951
  %953 = vmatmul.mubr.f32.gmra.mxu0 %v952
  %v954 = vpop.f32.mrf.mxu0
  %v955 = vadd.f32 %v860, %v954
  %v956 = vpop.f32.mrf.mxu0
  %957 = vdwg.mxu0
  %958 = vmatprep.subr.mxu0 0.0
  %959 = vmatpush1.msra.mxu0 0.0
  %960 = vmatprep.subr.mxu0 0.0
  %961 = vmatpush1.msra.mxu0 0.0
  %962 = vmatprep.subr.mxu0 0.0
  %963 = vmatpush1.msra.mxu0 0.0
  %964 = vmatprep.subr.mxu0 0.0
  %965 = vmatpush1.msra.mxu0 0.0
  %966 = vmatprep.subr.mxu0 0.0
  %967 = vmatpush1.msra.mxu0 0.0
  %968 = vmatprep.subr.mxu0 0.0
  %969 = vmatpush1.msra.mxu0 0.0
  %970 = vmatprep.subr.mxu0 0.0
  %971 = vmatpush1.msra.mxu0 0.0
  %972 = vmatprep.subr.mxu0 0.0
  %973 = vmatpush1.msra.mxu0 0.0
  %974 = vmatprep.subr.mxu0 0.0
  %v975 = vand.u32 %v639, 4294901760
  %976 = vmatpush1.msra.mxu0 %v975
  %977 = vmatprep.subr.mxu0 0.0
  %v978 = vand.u32 %v638, 4294901760
  %979 = vmatpush1.msra.mxu0 %v978
  %980 = vmatprep.subr.mxu0 0.0
  %v981 = vand.u32 %v637, 4294901760
  %982 = vmatpush1.msra.mxu0 %v981
  %983 = vmatprep.subr.mxu0 0.0
  %v984 = vand.u32 %v636, 4294901760
  %985 = vmatpush1.msra.mxu0 %v984
  %986 = vmatprep.subr.mxu0 0.0
  %v987 = vand.u32 %v635, 4294901760
  %988 = vmatpush1.msra.mxu0 %v987
  %989 = vmatprep.subr.mxu0 0.0
  %v990 = vand.u32 %v634, 4294901760
  %991 = vmatpush1.msra.mxu0 %v990
  %992 = vmatprep.subr.mxu0 0.0
  %v993 = vand.u32 %v633, 4294901760
  %994 = vmatpush1.msra.mxu0 %v993
  %995 = vmatprep.subr.mxu0 0.0
  %v996 = vand.u32 %v632, 4294901760
  %997 = vmatpush1.msra.mxu0 %v996
  %998 = vmatprep.subr.mxu0 0.0
  %999 = vmatpush2.msra.mxu0 0.0
  %1000 = vmatprep.subr.mxu0 0.0
  %1001 = vmatpush2.msra.mxu0 0.0
  %1002 = vmatprep.subr.mxu0 0.0
  %1003 = vmatpush2.msra.mxu0 0.0
  %1004 = vmatprep.subr.mxu0 0.0
  %1005 = vmatpush2.msra.mxu0 0.0
  %1006 = vmatprep.subr.mxu0 0.0
  %1007 = vmatpush2.msra.mxu0 0.0
  %1008 = vmatprep.subr.mxu0 0.0
  %1009 = vmatpush2.msra.mxu0 0.0
  %1010 = vmatprep.subr.mxu0 0.0
  %1011 = vmatpush2.msra.mxu0 0.0
  %1012 = vmatprep.subr.mxu0 0.0
  %1013 = vmatpush2.msra.mxu0 0.0
  %1014 = vmatprep.subr.mxu0 0.0
  %1015 = vmatpush2.msra.mxu0 0.0
  %1016 = vmatprep.subr.mxu0 0.0
  %1017 = vmatpush2.msra.mxu0 0.0
  %1018 = vmatprep.subr.mxu0 0.0
  %1019 = vmatpush2.msra.mxu0 0.0
  %1020 = vmatprep.subr.mxu0 0.0
  %1021 = vmatpush2.msra.mxu0 0.0
  %1022 = vmatprep.subr.mxu0 0.0
  %1023 = vmatpush2.msra.mxu0 0.0
  %1024 = vmatprep.subr.mxu0 0.0
  %1025 = vmatpush2.msra.mxu0 0.0
  %1026 = vmatprep.subr.mxu0 0.0
  %1027 = vmatpush2.msra.mxu0 0.0
  %1028 = vmatprep.subr.mxu0 0.0
  %1029 = vmatpush2.msra.mxu0 0.0
  %1030 = vmatprep.mubr.f32.mxu0 0.0
  %v1031 = vand.u32 %v648, 4294901760
  %v1032 = vsub.f32 %v648, %v1031
  %v1033 = vand.u32 %v1032, 4294901760
  %1034 = vmatmul.mubr.f32.gmra.mxu0 %v1033
  %v1035 = vpop.f32.mrf.mxu0
  %v1036 = vadd.f32 %v948, %v1035
  %v1037 = vpop.f32.mrf.mxu0
  %1038 = vmatprep.mubr.f32.mxu0 0.0
  %v1039 = vand.u32 %v651, 4294901760
  %v1040 = vsub.f32 %v651, %v1039
  %v1041 = vand.u32 %v1040, 4294901760
  %1042 = vmatmul.mubr.f32.gmra.mxu0 %v1041
  %v1043 = vpop.f32.mrf.mxu0
  %v1044 = vadd.f32 %v955, %v1043
  %v1045 = vpop.f32.mrf.mxu0
  %1046 = vdwg.mxu0
  %1047 = vmatprep.subr.mxu0 0.0
  %1048 = vmatpush1.msra.mxu0 0.0
  %1049 = vmatprep.subr.mxu0 0.0
  %1050 = vmatpush1.msra.mxu0 0.0
  %1051 = vmatprep.subr.mxu0 0.0
  %1052 = vmatpush1.msra.mxu0 0.0
  %1053 = vmatprep.subr.mxu0 0.0
  %1054 = vmatpush1.msra.mxu0 0.0
  %1055 = vmatprep.subr.mxu0 0.0
  %1056 = vmatpush1.msra.mxu0 0.0
  %1057 = vmatprep.subr.mxu0 0.0
  %1058 = vmatpush1.msra.mxu0 0.0
  %1059 = vmatprep.subr.mxu0 0.0
  %1060 = vmatpush1.msra.mxu0 0.0
  %1061 = vmatprep.subr.mxu0 0.0
  %1062 = vmatpush1.msra.mxu0 0.0
  %1063 = vmatprep.subr.mxu0 0.0
  %v1064 = vand.u32 %v639, 4294901760
  %v1065 = vsub.f32 %v639, %v1064
  %v1066 = vand.u32 %v1065, 4294901760
  %1067 = vmatpush1.msra.mxu0 %v1066
  %1068 = vmatprep.subr.mxu0 0.0
  %v1069 = vand.u32 %v638, 4294901760
  %v1070 = vsub.f32 %v638, %v1069
  %v1071 = vand.u32 %v1070, 4294901760
  %1072 = vmatpush1.msra.mxu0 %v1071
  %1073 = vmatprep.subr.mxu0 0.0
  %v1074 = vand.u32 %v637, 4294901760
  %v1075 = vsub.f32 %v637, %v1074
  %v1076 = vand.u32 %v1075, 4294901760
  %1077 = vmatpush1.msra.mxu0 %v1076
  %1078 = vmatprep.subr.mxu0 0.0
  %v1079 = vand.u32 %v636, 4294901760
  %v1080 = vsub.f32 %v636, %v1079
  %v1081 = vand.u32 %v1080, 4294901760
  %1082 = vmatpush1.msra.mxu0 %v1081
  %1083 = vmatprep.subr.mxu0 0.0
  %v1084 = vand.u32 %v635, 4294901760
  %v1085 = vsub.f32 %v635, %v1084
  %v1086 = vand.u32 %v1085, 4294901760
  %1087 = vmatpush1.msra.mxu0 %v1086
  %1088 = vmatprep.subr.mxu0 0.0
  %v1089 = vand.u32 %v634, 4294901760
  %v1090 = vsub.f32 %v634, %v1089
  %v1091 = vand.u32 %v1090, 4294901760
  %1092 = vmatpush1.msra.mxu0 %v1091
  %1093 = vmatprep.subr.mxu0 0.0
  %v1094 = vand.u32 %v633, 4294901760
  %v1095 = vsub.f32 %v633, %v1094
  %v1096 = vand.u32 %v1095, 4294901760
  %1097 = vmatpush1.msra.mxu0 %v1096
  %1098 = vmatprep.subr.mxu0 0.0
  %v1099 = vand.u32 %v632, 4294901760
  %v1100 = vsub.f32 %v632, %v1099
  %v1101 = vand.u32 %v1100, 4294901760
  %1102 = vmatpush1.msra.mxu0 %v1101
  %1103 = vmatprep.subr.mxu0 0.0
  %1104 = vmatpush2.msra.mxu0 0.0
  %1105 = vmatprep.subr.mxu0 0.0
  %1106 = vmatpush2.msra.mxu0 0.0
  %1107 = vmatprep.subr.mxu0 0.0
  %1108 = vmatpush2.msra.mxu0 0.0
  %1109 = vmatprep.subr.mxu0 0.0
  %1110 = vmatpush2.msra.mxu0 0.0
  %1111 = vmatprep.subr.mxu0 0.0
  %1112 = vmatpush2.msra.mxu0 0.0
  %1113 = vmatprep.subr.mxu0 0.0
  %1114 = vmatpush2.msra.mxu0 0.0
  %1115 = vmatprep.subr.mxu0 0.0
  %1116 = vmatpush2.msra.mxu0 0.0
  %1117 = vmatprep.subr.mxu0 0.0
  %1118 = vmatpush2.msra.mxu0 0.0
  %1119 = vmatprep.subr.mxu0 0.0
  %1120 = vmatpush2.msra.mxu0 0.0
  %1121 = vmatprep.subr.mxu0 0.0
  %1122 = vmatpush2.msra.mxu0 0.0
  %1123 = vmatprep.subr.mxu0 0.0
  %1124 = vmatpush2.msra.mxu0 0.0
  %1125 = vmatprep.subr.mxu0 0.0
  %1126 = vmatpush2.msra.mxu0 0.0
  %1127 = vmatprep.subr.mxu0 0.0
  %1128 = vmatpush2.msra.mxu0 0.0
  %1129 = vmatprep.subr.mxu0 0.0
  %1130 = vmatpush2.msra.mxu0 0.0
  %1131 = vmatprep.subr.mxu0 0.0
  %1132 = vmatpush2.msra.mxu0 0.0
  %1133 = vmatprep.subr.mxu0 0.0
  %1134 = vmatpush2.msra.mxu0 0.0
  %1135 = vmatprep.mubr.f32.mxu0 0.0
  %v1136 = vand.u32 %v648, 4294901760
  %1137 = vmatmul.mubr.f32.gmra.mxu0 %v1136
  %v1138 = vpop.f32.mrf.mxu0
  %v1139 = vadd.f32 %v1036, %v1138
  %v1140 = vpop.f32.mrf.mxu0
  %1141 = vmatprep.mubr.f32.mxu0 0.0
  %v1142 = vand.u32 %v651, 4294901760
  %1143 = vmatmul.mubr.f32.gmra.mxu0 %v1142
  %v1144 = vpop.f32.mrf.mxu0
  %v1145 = vadd.f32 %v1044, %v1144
  %v1146 = vpop.f32.mrf.mxu0
  %1147 = vdwg.mxu0
  %1148 = vmatprep.subr.mxu0 0.0
  %1149 = vmatpush1.msra.mxu0 0.0
  %1150 = vmatprep.subr.mxu0 0.0
  %1151 = vmatpush1.msra.mxu0 0.0
  %1152 = vmatprep.subr.mxu0 0.0
  %1153 = vmatpush1.msra.mxu0 0.0
  %1154 = vmatprep.subr.mxu0 0.0
  %1155 = vmatpush1.msra.mxu0 0.0
  %1156 = vmatprep.subr.mxu0 0.0
  %1157 = vmatpush1.msra.mxu0 0.0
  %1158 = vmatprep.subr.mxu0 0.0
  %1159 = vmatpush1.msra.mxu0 0.0
  %1160 = vmatprep.subr.mxu0 0.0
  %1161 = vmatpush1.msra.mxu0 0.0
  %1162 = vmatprep.subr.mxu0 0.0
  %1163 = vmatpush1.msra.mxu0 0.0
  %1164 = vmatprep.subr.mxu0 0.0
  %v1165 = vand.u32 %v639, 4294901760
  %1166 = vmatpush1.msra.mxu0 %v1165
  %1167 = vmatprep.subr.mxu0 0.0
  %v1168 = vand.u32 %v638, 4294901760
  %1169 = vmatpush1.msra.mxu0 %v1168
  %1170 = vmatprep.subr.mxu0 0.0
  %v1171 = vand.u32 %v637, 4294901760
  %1172 = vmatpush1.msra.mxu0 %v1171
  %1173 = vmatprep.subr.mxu0 0.0
  %v1174 = vand.u32 %v636, 4294901760
  %1175 = vmatpush1.msra.mxu0 %v1174
  %1176 = vmatprep.subr.mxu0 0.0
  %v1177 = vand.u32 %v635, 4294901760
  %1178 = vmatpush1.msra.mxu0 %v1177
  %1179 = vmatprep.subr.mxu0 0.0
  %v1180 = vand.u32 %v634, 4294901760
  %1181 = vmatpush1.msra.mxu0 %v1180
  %1182 = vmatprep.subr.mxu0 0.0
  %v1183 = vand.u32 %v633, 4294901760
  %1184 = vmatpush1.msra.mxu0 %v1183
  %1185 = vmatprep.subr.mxu0 0.0
  %v1186 = vand.u32 %v632, 4294901760
  %1187 = vmatpush1.msra.mxu0 %v1186
  %1188 = vmatprep.subr.mxu0 0.0
  %1189 = vmatpush2.msra.mxu0 0.0
  %1190 = vmatprep.subr.mxu0 0.0
  %1191 = vmatpush2.msra.mxu0 0.0
  %1192 = vmatprep.subr.mxu0 0.0
  %1193 = vmatpush2.msra.mxu0 0.0
  %1194 = vmatprep.subr.mxu0 0.0
  %1195 = vmatpush2.msra.mxu0 0.0
  %1196 = vmatprep.subr.mxu0 0.0
  %1197 = vmatpush2.msra.mxu0 0.0
  %1198 = vmatprep.subr.mxu0 0.0
  %1199 = vmatpush2.msra.mxu0 0.0
  %1200 = vmatprep.subr.mxu0 0.0
  %1201 = vmatpush2.msra.mxu0 0.0
  %1202 = vmatprep.subr.mxu0 0.0
  %1203 = vmatpush2.msra.mxu0 0.0
  %1204 = vmatprep.subr.mxu0 0.0
  %1205 = vmatpush2.msra.mxu0 0.0
  %1206 = vmatprep.subr.mxu0 0.0
  %1207 = vmatpush2.msra.mxu0 0.0
  %1208 = vmatprep.subr.mxu0 0.0
  %1209 = vmatpush2.msra.mxu0 0.0
  %1210 = vmatprep.subr.mxu0 0.0
  %1211 = vmatpush2.msra.mxu0 0.0
  %1212 = vmatprep.subr.mxu0 0.0
  %1213 = vmatpush2.msra.mxu0 0.0
  %1214 = vmatprep.subr.mxu0 0.0
  %1215 = vmatpush2.msra.mxu0 0.0
  %1216 = vmatprep.subr.mxu0 0.0
  %1217 = vmatpush2.msra.mxu0 0.0
  %1218 = vmatprep.subr.mxu0 0.0
  %1219 = vmatpush2.msra.mxu0 0.0
  %1220 = vmatprep.mubr.f32.mxu0 0.0
  %v1221 = vand.u32 %v648, 4294901760
  %1222 = vmatmul.mubr.f32.gmra.mxu0 %v1221
  %v1223 = vpop.f32.mrf.mxu0
  %v1224 = vadd.f32 %v1139, %v1223
  %v1225 = vpop.f32.mrf.mxu0
  %1226 = vmatprep.mubr.f32.mxu0 0.0
  %v1227 = vand.u32 %v651, 4294901760
  %1228 = vmatmul.mubr.f32.gmra.mxu0 %v1227
  %v1229 = vpop.f32.mrf.mxu0
  %v1230 = vadd.f32 %v1145, %v1229
  %v1231 = vpop.f32.mrf.mxu0
  %1232 = vdwg.mxu0
  %v1233 = vmax.f32 %v1224, 0.0
  %v1234 = vmax.f32 %v1230, 0.0
  %v1235 = vld [vmem:[%s5] sm:$0xff]
  %v1236 = vld [vmem:[%s5 + $0x8] sm:$0xff]
  %v1237 = vld [vmem:[%s5 + $0x10] sm:$0xff]
  %v1238 = vld [vmem:[%s5 + $0x18] sm:$0xff]
  %v1239 = vld [vmem:[%s5 + $0x20] sm:$0xff]
  %v1240 = vld [vmem:[%s5 + $0x28] sm:$0xff]
  %v1241 = vld [vmem:[%s5 + $0x30] sm:$0xff]
  %v1242 = vld [vmem:[%s5 + $0x38] sm:$0xff]
  %v1243 = vld [vmem:[%s6] sm:$0x1]
  %v1245 = vlaneseq
  %v1246 = vshrl.u32 %v1245, 7
  %v1247 = vsub.s32 0, %v1246
  %v1248 = vrot.slane %v1243, %v1247
  %v1251 = vsel %vm43, %v1233, 0
  %v1254 = vsel %vm43, %v1234, 0
  %1256 = vmatprep.subr.mxu0 0.0
  %1257 = vmatpush1.msra.mxu0 0.0
  %1258 = vmatprep.subr.mxu0 0.0
  %1259 = vmatpush1.msra.mxu0 0.0
  %1260 = vmatprep.subr.mxu0 0.0
  %1261 = vmatpush1.msra.mxu0 0.0
  %1262 = vmatprep.subr.mxu0 0.0
  %1263 = vmatpush1.msra.mxu0 0.0
  %1264 = vmatprep.subr.mxu0 0.0
  %1265 = vmatpush1.msra.mxu0 0.0
  %1266 = vmatprep.subr.mxu0 0.0
  %1267 = vmatpush1.msra.mxu0 0.0
  %1268 = vmatprep.subr.mxu0 0.0
  %1269 = vmatpush1.msra.mxu0 0.0
  %1270 = vmatprep.subr.mxu0 0.0
  %1271 = vmatpush1.msra.mxu0 0.0
  %1272 = vmatprep.subr.mxu0 0.0
  %v1273 = vand.u32 %v1242, 4294901760
  %1274 = vmatpush1.msra.mxu0 %v1273
  %1275 = vmatprep.subr.mxu0 0.0
  %v1276 = vand.u32 %v1241, 4294901760
  %1277 = vmatpush1.msra.mxu0 %v1276
  %1278 = vmatprep.subr.mxu0 0.0
  %v1279 = vand.u32 %v1240, 4294901760
  %1280 = vmatpush1.msra.mxu0 %v1279
  %1281 = vmatprep.subr.mxu0 0.0
  %v1282 = vand.u32 %v1239, 4294901760
  %1283 = vmatpush1.msra.mxu0 %v1282
  %1284 = vmatprep.subr.mxu0 0.0
  %v1285 = vand.u32 %v1238, 4294901760
  %1286 = vmatpush1.msra.mxu0 %v1285
  %1287 = vmatprep.subr.mxu0 0.0
  %v1288 = vand.u32 %v1237, 4294901760
  %1289 = vmatpush1.msra.mxu0 %v1288
  %1290 = vmatprep.subr.mxu0 0.0
  %v1291 = vand.u32 %v1236, 4294901760
  %1292 = vmatpush1.msra.mxu0 %v1291
  %1293 = vmatprep.subr.mxu0 0.0
  %v1294 = vand.u32 %v1235, 4294901760
  %1295 = vmatpush1.msra.mxu0 %v1294
  %1296 = vmatprep.subr.mxu0 0.0
  %1297 = vmatpush2.msra.mxu0 0.0
  %1298 = vmatprep.subr.mxu0 0.0
  %1299 = vmatpush2.msra.mxu0 0.0
  %1300 = vmatprep.subr.mxu0 0.0
  %1301 = vmatpush2.msra.mxu0 0.0
  %1302 = vmatprep.subr.mxu0 0.0
  %1303 = vmatpush2.msra.mxu0 0.0
  %1304 = vmatprep.subr.mxu0 0.0
  %1305 = vmatpush2.msra.mxu0 0.0
  %1306 = vmatprep.subr.mxu0 0.0
  %1307 = vmatpush2.msra.mxu0 0.0
  %1308 = vmatprep.subr.mxu0 0.0
  %1309 = vmatpush2.msra.mxu0 0.0
  %1310 = vmatprep.subr.mxu0 0.0
  %1311 = vmatpush2.msra.mxu0 0.0
  %1312 = vmatprep.subr.mxu0 0.0
  %1313 = vmatpush2.msra.mxu0 0.0
  %1314 = vmatprep.subr.mxu0 0.0
  %1315 = vmatpush2.msra.mxu0 0.0
  %1316 = vmatprep.subr.mxu0 0.0
  %1317 = vmatpush2.msra.mxu0 0.0
  %1318 = vmatprep.subr.mxu0 0.0
  %1319 = vmatpush2.msra.mxu0 0.0
  %1320 = vmatprep.subr.mxu0 0.0
  %1321 = vmatpush2.msra.mxu0 0.0
  %1322 = vmatprep.subr.mxu0 0.0
  %1323 = vmatpush2.msra.mxu0 0.0
  %1324 = vmatprep.subr.mxu0 0.0
  %1325 = vmatpush2.msra.mxu0 0.0
  %1326 = vmatprep.subr.mxu0 0.0
  %1327 = vmatpush2.msra.mxu0 0.0
  %1328 = vmatprep.mubr.f32.mxu0 0.0
  %v1329 = vand.u32 %v1251, 4294901760
  %v1330 = vsub.f32 %v1251, %v1329
  %v1331 = vand.u32 %v1330, 4294901760
  %v1332 = vsub.f32 %v1330, %v1331
  %v1333 = vand.u32 %v1332, 4294901760
  %1334 = vmatmul.mubr.f32.gmra.mxu0 %v1333
  %v1335 = vpop.f32.mrf.mxu0
  %v1336 = vadd.f32 %v1248, %v1335
  %v1337 = vpop.f32.mrf.mxu0
  %1338 = vmatprep.mubr.f32.mxu0 0.0
  %v1339 = vand.u32 %v1254, 4294901760
  %v1340 = vsub.f32 %v1254, %v1339
  %v1341 = vand.u32 %v1340, 4294901760
  %v1342 = vsub.f32 %v1340, %v1341
  %v1343 = vand.u32 %v1342, 4294901760
  %1344 = vmatmul.mubr.f32.gmra.mxu0 %v1343
  %v1345 = vpop.f32.mrf.mxu0
  %v1346 = vadd.f32 %v1248, %v1345
  %v1347 = vpop.f32.mrf.mxu0
  %1348 = vdwg.mxu0
  %1349 = vmatprep.subr.mxu0 0.0
  %1350 = vmatpush1.msra.mxu0 0.0
  %1351 = vmatprep.subr.mxu0 0.0
  %1352 = vmatpush1.msra.mxu0 0.0
  %1353 = vmatprep.subr.mxu0 0.0
  %1354 = vmatpush1.msra.mxu0 0.0
  %1355 = vmatprep.subr.mxu0 0.0
  %1356 = vmatpush1.msra.mxu0 0.0
  %1357 = vmatprep.subr.mxu0 0.0
  %1358 = vmatpush1.msra.mxu0 0.0
  %1359 = vmatprep.subr.mxu0 0.0
  %1360 = vmatpush1.msra.mxu0 0.0
  %1361 = vmatprep.subr.mxu0 0.0
  %1362 = vmatpush1.msra.mxu0 0.0
  %1363 = vmatprep.subr.mxu0 0.0
  %1364 = vmatpush1.msra.mxu0 0.0
  %1365 = vmatprep.subr.mxu0 0.0
  %v1366 = vand.u32 %v1242, 4294901760
  %v1367 = vsub.f32 %v1242, %v1366
  %v1368 = vand.u32 %v1367, 4294901760
  %v1369 = vsub.f32 %v1367, %v1368
  %v1370 = vand.u32 %v1369, 4294901760
  %1371 = vmatpush1.msra.mxu0 %v1370
  %1372 = vmatprep.subr.mxu0 0.0
  %v1373 = vand.u32 %v1241, 4294901760
  %v1374 = vsub.f32 %v1241, %v1373
  %v1375 = vand.u32 %v1374, 4294901760
  %v1376 = vsub.f32 %v1374, %v1375
  %v1377 = vand.u32 %v1376, 4294901760
  %1378 = vmatpush1.msra.mxu0 %v1377
  %1379 = vmatprep.subr.mxu0 0.0
  %v1380 = vand.u32 %v1240, 4294901760
  %v1381 = vsub.f32 %v1240, %v1380
  %v1382 = vand.u32 %v1381, 4294901760
  %v1383 = vsub.f32 %v1381, %v1382
  %v1384 = vand.u32 %v1383, 4294901760
  %1385 = vmatpush1.msra.mxu0 %v1384
  %1386 = vmatprep.subr.mxu0 0.0
  %v1387 = vand.u32 %v1239, 4294901760
  %v1388 = vsub.f32 %v1239, %v1387
  %v1389 = vand.u32 %v1388, 4294901760
  %v1390 = vsub.f32 %v1388, %v1389
  %v1391 = vand.u32 %v1390, 4294901760
  %1392 = vmatpush1.msra.mxu0 %v1391
  %1393 = vmatprep.subr.mxu0 0.0
  %v1394 = vand.u32 %v1238, 4294901760
  %v1395 = vsub.f32 %v1238, %v1394
  %v1396 = vand.u32 %v1395, 4294901760
  %v1397 = vsub.f32 %v1395, %v1396
  %v1398 = vand.u32 %v1397, 4294901760
  %1399 = vmatpush1.msra.mxu0 %v1398
  %1400 = vmatprep.subr.mxu0 0.0
  %v1401 = vand.u32 %v1237, 4294901760
  %v1402 = vsub.f32 %v1237, %v1401
  %v1403 = vand.u32 %v1402, 4294901760
  %v1404 = vsub.f32 %v1402, %v1403
  %v1405 = vand.u32 %v1404, 4294901760
  %1406 = vmatpush1.msra.mxu0 %v1405
  %1407 = vmatprep.subr.mxu0 0.0
  %v1408 = vand.u32 %v1236, 4294901760
  %v1409 = vsub.f32 %v1236, %v1408
  %v1410 = vand.u32 %v1409, 4294901760
  %v1411 = vsub.f32 %v1409, %v1410
  %v1412 = vand.u32 %v1411, 4294901760
  %1413 = vmatpush1.msra.mxu0 %v1412
  %1414 = vmatprep.subr.mxu0 0.0
  %v1415 = vand.u32 %v1235, 4294901760
  %v1416 = vsub.f32 %v1235, %v1415
  %v1417 = vand.u32 %v1416, 4294901760
  %v1418 = vsub.f32 %v1416, %v1417
  %v1419 = vand.u32 %v1418, 4294901760
  %1420 = vmatpush1.msra.mxu0 %v1419
  %1421 = vmatprep.subr.mxu0 0.0
  %1422 = vmatpush2.msra.mxu0 0.0
  %1423 = vmatprep.subr.mxu0 0.0
  %1424 = vmatpush2.msra.mxu0 0.0
  %1425 = vmatprep.subr.mxu0 0.0
  %1426 = vmatpush2.msra.mxu0 0.0
  %1427 = vmatprep.subr.mxu0 0.0
  %1428 = vmatpush2.msra.mxu0 0.0
  %1429 = vmatprep.subr.mxu0 0.0
  %1430 = vmatpush2.msra.mxu0 0.0
  %1431 = vmatprep.subr.mxu0 0.0
  %1432 = vmatpush2.msra.mxu0 0.0
  %1433 = vmatprep.subr.mxu0 0.0
  %1434 = vmatpush2.msra.mxu0 0.0
  %1435 = vmatprep.subr.mxu0 0.0
  %1436 = vmatpush2.msra.mxu0 0.0
  %1437 = vmatprep.subr.mxu0 0.0
  %1438 = vmatpush2.msra.mxu0 0.0
  %1439 = vmatprep.subr.mxu0 0.0
  %1440 = vmatpush2.msra.mxu0 0.0
  %1441 = vmatprep.subr.mxu0 0.0
  %1442 = vmatpush2.msra.mxu0 0.0
  %1443 = vmatprep.subr.mxu0 0.0
  %1444 = vmatpush2.msra.mxu0 0.0
  %1445 = vmatprep.subr.mxu0 0.0
  %1446 = vmatpush2.msra.mxu0 0.0
  %1447 = vmatprep.subr.mxu0 0.0
  %1448 = vmatpush2.msra.mxu0 0.0
  %1449 = vmatprep.subr.mxu0 0.0
  %1450 = vmatpush2.msra.mxu0 0.0
  %1451 = vmatprep.subr.mxu0 0.0
  %1452 = vmatpush2.msra.mxu0 0.0
  %1453 = vmatprep.mubr.f32.mxu0 0.0
  %v1454 = vand.u32 %v1251, 4294901760
  %1455 = vmatmul.mubr.f32.gmra.mxu0 %v1454
  %v1456 = vpop.f32.mrf.mxu0
  %v1457 = vadd.f32 %v1336, %v1456
  %v1458 = vpop.f32.mrf.mxu0
  %1459 = vmatprep.mubr.f32.mxu0 0.0
  %v1460 = vand.u32 %v1254, 4294901760
  %1461 = vmatmul.mubr.f32.gmra.mxu0 %v1460
  %v1462 = vpop.f32.mrf.mxu0
  %v1463 = vadd.f32 %v1346, %v1462
  %v1464 = vpop.f32.mrf.mxu0
  %1465 = vdwg.mxu0
  %1466 = vmatprep.subr.mxu0 0.0
  %1467 = vmatpush1.msra.mxu0 0.0
  %1468 = vmatprep.subr.mxu0 0.0
  %1469 = vmatpush1.msra.mxu0 0.0
  %1470 = vmatprep.subr.mxu0 0.0
  %1471 = vmatpush1.msra.mxu0 0.0
  %1472 = vmatprep.subr.mxu0 0.0
  %1473 = vmatpush1.msra.mxu0 0.0
  %1474 = vmatprep.subr.mxu0 0.0
  %1475 = vmatpush1.msra.mxu0 0.0
  %1476 = vmatprep.subr.mxu0 0.0
  %1477 = vmatpush1.msra.mxu0 0.0
  %1478 = vmatprep.subr.mxu0 0.0
  %1479 = vmatpush1.msra.mxu0 0.0
  %1480 = vmatprep.subr.mxu0 0.0
  %1481 = vmatpush1.msra.mxu0 0.0
  %1482 = vmatprep.subr.mxu0 0.0
  %v1483 = vand.u32 %v1242, 4294901760
  %v1484 = vsub.f32 %v1242, %v1483
  %1485 = vmatpush1.msra.mxu0 %v1484
  %1486 = vmatprep.subr.mxu0 0.0
  %v1487 = vand.u32 %v1241, 4294901760
  %v1488 = vsub.f32 %v1241, %v1487
  %1489 = vmatpush1.msra.mxu0 %v1488
  %1490 = vmatprep.subr.mxu0 0.0
  %v1491 = vand.u32 %v1240, 4294901760
  %v1492 = vsub.f32 %v1240, %v1491
  %1493 = vmatpush1.msra.mxu0 %v1492
  %1494 = vmatprep.subr.mxu0 0.0
  %v1495 = vand.u32 %v1239, 4294901760
  %v1496 = vsub.f32 %v1239, %v1495
  %1497 = vmatpush1.msra.mxu0 %v1496
  %1498 = vmatprep.subr.mxu0 0.0
  %v1499 = vand.u32 %v1238, 4294901760
  %v1500 = vsub.f32 %v1238, %v1499
  %1501 = vmatpush1.msra.mxu0 %v1500
  %1502 = vmatprep.subr.mxu0 0.0
  %v1503 = vand.u32 %v1237, 4294901760
  %v1504 = vsub.f32 %v1237, %v1503
  %1505 = vmatpush1.msra.mxu0 %v1504
  %1506 = vmatprep.subr.mxu0 0.0
  %v1507 = vand.u32 %v1236, 4294901760
  %v1508 = vsub.f32 %v1236, %v1507
  %1509 = vmatpush1.msra.mxu0 %v1508
  %1510 = vmatprep.subr.mxu0 0.0
  %v1511 = vand.u32 %v1235, 4294901760
  %v1512 = vsub.f32 %v1235, %v1511
  %1513 = vmatpush1.msra.mxu0 %v1512
  %1514 = vmatprep.subr.mxu0 0.0
  %1515 = vmatpush2.msra.mxu0 0.0
  %1516 = vmatprep.subr.mxu0 0.0
  %1517 = vmatpush2.msra.mxu0 0.0
  %1518 = vmatprep.subr.mxu0 0.0
  %1519 = vmatpush2.msra.mxu0 0.0
  %1520 = vmatprep.subr.mxu0 0.0
  %1521 = vmatpush2.msra.mxu0 0.0
  %1522 = vmatprep.subr.mxu0 0.0
  %1523 = vmatpush2.msra.mxu0 0.0
  %1524 = vmatprep.subr.mxu0 0.0
  %1525 = vmatpush2.msra.mxu0 0.0
  %1526 = vmatprep.subr.mxu0 0.0
  %1527 = vmatpush2.msra.mxu0 0.0
  %1528 = vmatprep.subr.mxu0 0.0
  %1529 = vmatpush2.msra.mxu0 0.0
  %1530 = vmatprep.subr.mxu0 0.0
  %1531 = vmatpush2.msra.mxu0 0.0
  %1532 = vmatprep.subr.mxu0 0.0
  %1533 = vmatpush2.msra.mxu0 0.0
  %1534 = vmatprep.subr.mxu0 0.0
  %1535 = vmatpush2.msra.mxu0 0.0
  %1536 = vmatprep.subr.mxu0 0.0
  %1537 = vmatpush2.msra.mxu0 0.0
  %1538 = vmatprep.subr.mxu0 0.0
  %1539 = vmatpush2.msra.mxu0 0.0
  %1540 = vmatprep.subr.mxu0 0.0
  %1541 = vmatpush2.msra.mxu0 0.0
  %1542 = vmatprep.subr.mxu0 0.0
  %1543 = vmatpush2.msra.mxu0 0.0
  %1544 = vmatprep.subr.mxu0 0.0
  %1545 = vmatpush2.msra.mxu0 0.0
  %1546 = vmatprep.mubr.f32.mxu0 0.0
  %v1547 = vand.u32 %v1251, 4294901760
  %v1548 = vsub.f32 %v1251, %v1547
  %1549 = vmatmul.mubr.f32.gmra.mxu0 %v1548
  %v1550 = vpop.f32.mrf.mxu0
  %v1551 = vadd.f32 %v1457, %v1550
  %v1552 = vpop.f32.mrf.mxu0
  %1553 = vmatprep.mubr.f32.mxu0 0.0
  %v1554 = vand.u32 %v1254, 4294901760
  %v1555 = vsub.f32 %v1254, %v1554
  %1556 = vmatmul.mubr.f32.gmra.mxu0 %v1555
  %v1557 = vpop.f32.mrf.mxu0
  %v1558 = vadd.f32 %v1463, %v1557
  %v1559 = vpop.f32.mrf.mxu0
  %1560 = vdwg.mxu0
  %1561 = vmatprep.subr.mxu0 0.0
  %1562 = vmatpush1.msra.mxu0 0.0
  %1563 = vmatprep.subr.mxu0 0.0
  %1564 = vmatpush1.msra.mxu0 0.0
  %1565 = vmatprep.subr.mxu0 0.0
  %1566 = vmatpush1.msra.mxu0 0.0
  %1567 = vmatprep.subr.mxu0 0.0
  %1568 = vmatpush1.msra.mxu0 0.0
  %1569 = vmatprep.subr.mxu0 0.0
  %1570 = vmatpush1.msra.mxu0 0.0
  %1571 = vmatprep.subr.mxu0 0.0
  %1572 = vmatpush1.msra.mxu0 0.0
  %1573 = vmatprep.subr.mxu0 0.0
  %1574 = vmatpush1.msra.mxu0 0.0
  %1575 = vmatprep.subr.mxu0 0.0
  %1576 = vmatpush1.msra.mxu0 0.0
  %1577 = vmatprep.subr.mxu0 0.0
  %v1578 = vand.u32 %v1242, 4294901760
  %1579 = vmatpush1.msra.mxu0 %v1578
  %1580 = vmatprep.subr.mxu0 0.0
  %v1581 = vand.u32 %v1241, 4294901760
  %1582 = vmatpush1.msra.mxu0 %v1581
  %1583 = vmatprep.subr.mxu0 0.0
  %v1584 = vand.u32 %v1240, 4294901760
  %1585 = vmatpush1.msra.mxu0 %v1584
  %1586 = vmatprep.subr.mxu0 0.0
  %v1587 = vand.u32 %v1239, 4294901760
  %1588 = vmatpush1.msra.mxu0 %v1587
  %1589 = vmatprep.subr.mxu0 0.0
  %v1590 = vand.u32 %v1238, 4294901760
  %1591 = vmatpush1.msra.mxu0 %v1590
  %1592 = vmatprep.subr.mxu0 0.0
  %v1593 = vand.u32 %v1237, 4294901760
  %1594 = vmatpush1.msra.mxu0 %v1593
  %1595 = vmatprep.subr.mxu0 0.0
  %v1596 = vand.u32 %v1236, 4294901760
  %1597 = vmatpush1.msra.mxu0 %v1596
  %1598 = vmatprep.subr.mxu0 0.0
  %v1599 = vand.u32 %v1235, 4294901760
  %1600 = vmatpush1.msra.mxu0 %v1599
  %1601 = vmatprep.subr.mxu0 0.0
  %1602 = vmatpush2.msra.mxu0 0.0
  %1603 = vmatprep.subr.mxu0 0.0
  %1604 = vmatpush2.msra.mxu0 0.0
  %1605 = vmatprep.subr.mxu0 0.0
  %1606 = vmatpush2.msra.mxu0 0.0
  %1607 = vmatprep.subr.mxu0 0.0
  %1608 = vmatpush2.msra.mxu0 0.0
  %1609 = vmatprep.subr.mxu0 0.0
  %1610 = vmatpush2.msra.mxu0 0.0
  %1611 = vmatprep.subr.mxu0 0.0
  %1612 = vmatpush2.msra.mxu0 0.0
  %1613 = vmatprep.subr.mxu0 0.0
  %1614 = vmatpush2.msra.mxu0 0.0
  %1615 = vmatprep.subr.mxu0 0.0
  %1616 = vmatpush2.msra.mxu0 0.0
  %1617 = vmatprep.subr.mxu0 0.0
  %1618 = vmatpush2.msra.mxu0 0.0
  %1619 = vmatprep.subr.mxu0 0.0
  %1620 = vmatpush2.msra.mxu0 0.0
  %1621 = vmatprep.subr.mxu0 0.0
  %1622 = vmatpush2.msra.mxu0 0.0
  %1623 = vmatprep.subr.mxu0 0.0
  %1624 = vmatpush2.msra.mxu0 0.0
  %1625 = vmatprep.subr.mxu0 0.0
  %1626 = vmatpush2.msra.mxu0 0.0
  %1627 = vmatprep.subr.mxu0 0.0
  %1628 = vmatpush2.msra.mxu0 0.0
  %1629 = vmatprep.subr.mxu0 0.0
  %1630 = vmatpush2.msra.mxu0 0.0
  %1631 = vmatprep.subr.mxu0 0.0
  %1632 = vmatpush2.msra.mxu0 0.0
  %1633 = vmatprep.mubr.f32.mxu0 0.0
  %v1634 = vand.u32 %v1251, 4294901760
  %v1635 = vsub.f32 %v1251, %v1634
  %v1636 = vand.u32 %v1635, 4294901760
  %1637 = vmatmul.mubr.f32.gmra.mxu0 %v1636
  %v1638 = vpop.f32.mrf.mxu0
  %v1639 = vadd.f32 %v1551, %v1638
  %v1640 = vpop.f32.mrf.mxu0
  %1641 = vmatprep.mubr.f32.mxu0 0.0
  %v1642 = vand.u32 %v1254, 4294901760
  %v1643 = vsub.f32 %v1254, %v1642
  %v1644 = vand.u32 %v1643, 4294901760
  %1645 = vmatmul.mubr.f32.gmra.mxu0 %v1644
  %v1646 = vpop.f32.mrf.mxu0
  %v1647 = vadd.f32 %v1558, %v1646
  %v1648 = vpop.f32.mrf.mxu0
  %1649 = vdwg.mxu0
  %1650 = vmatprep.subr.mxu0 0.0
  %1651 = vmatpush1.msra.mxu0 0.0
  %1652 = vmatprep.subr.mxu0 0.0
  %1653 = vmatpush1.msra.mxu0 0.0
  %1654 = vmatprep.subr.mxu0 0.0
  %1655 = vmatpush1.msra.mxu0 0.0
  %1656 = vmatprep.subr.mxu0 0.0
  %1657 = vmatpush1.msra.mxu0 0.0
  %1658 = vmatprep.subr.mxu0 0.0
  %1659 = vmatpush1.msra.mxu0 0.0
  %1660 = vmatprep.subr.mxu0 0.0
  %1661 = vmatpush1.msra.mxu0 0.0
  %1662 = vmatprep.subr.mxu0 0.0
  %1663 = vmatpush1.msra.mxu0 0.0
  %1664 = vmatprep.subr.mxu0 0.0
  %1665 = vmatpush1.msra.mxu0 0.0
  %1666 = vmatprep.subr.mxu0 0.0
  %v1667 = vand.u32 %v1242, 4294901760
  %v1668 = vsub.f32 %v1242, %v1667
  %v1669 = vand.u32 %v1668, 4294901760
  %1670 = vmatpush1.msra.mxu0 %v1669
  %1671 = vmatprep.subr.mxu0 0.0
  %v1672 = vand.u32 %v1241, 4294901760
  %v1673 = vsub.f32 %v1241, %v1672
  %v1674 = vand.u32 %v1673, 4294901760
  %1675 = vmatpush1.msra.mxu0 %v1674
  %1676 = vmatprep.subr.mxu0 0.0
  %v1677 = vand.u32 %v1240, 4294901760
  %v1678 = vsub.f32 %v1240, %v1677
  %v1679 = vand.u32 %v1678, 4294901760
  %1680 = vmatpush1.msra.mxu0 %v1679
  %1681 = vmatprep.subr.mxu0 0.0
  %v1682 = vand.u32 %v1239, 4294901760
  %v1683 = vsub.f32 %v1239, %v1682
  %v1684 = vand.u32 %v1683, 4294901760
  %1685 = vmatpush1.msra.mxu0 %v1684
  %1686 = vmatprep.subr.mxu0 0.0
  %v1687 = vand.u32 %v1238, 4294901760
  %v1688 = vsub.f32 %v1238, %v1687
  %v1689 = vand.u32 %v1688, 4294901760
  %1690 = vmatpush1.msra.mxu0 %v1689
  %1691 = vmatprep.subr.mxu0 0.0
  %v1692 = vand.u32 %v1237, 4294901760
  %v1693 = vsub.f32 %v1237, %v1692
  %v1694 = vand.u32 %v1693, 4294901760
  %1695 = vmatpush1.msra.mxu0 %v1694
  %1696 = vmatprep.subr.mxu0 0.0
  %v1697 = vand.u32 %v1236, 4294901760
  %v1698 = vsub.f32 %v1236, %v1697
  %v1699 = vand.u32 %v1698, 4294901760
  %1700 = vmatpush1.msra.mxu0 %v1699
  %1701 = vmatprep.subr.mxu0 0.0
  %v1702 = vand.u32 %v1235, 4294901760
  %v1703 = vsub.f32 %v1235, %v1702
  %v1704 = vand.u32 %v1703, 4294901760
  %1705 = vmatpush1.msra.mxu0 %v1704
  %1706 = vmatprep.subr.mxu0 0.0
  %1707 = vmatpush2.msra.mxu0 0.0
  %1708 = vmatprep.subr.mxu0 0.0
  %1709 = vmatpush2.msra.mxu0 0.0
  %1710 = vmatprep.subr.mxu0 0.0
  %1711 = vmatpush2.msra.mxu0 0.0
  %1712 = vmatprep.subr.mxu0 0.0
  %1713 = vmatpush2.msra.mxu0 0.0
  %1714 = vmatprep.subr.mxu0 0.0
  %1715 = vmatpush2.msra.mxu0 0.0
  %1716 = vmatprep.subr.mxu0 0.0
  %1717 = vmatpush2.msra.mxu0 0.0
  %1718 = vmatprep.subr.mxu0 0.0
  %1719 = vmatpush2.msra.mxu0 0.0
  %1720 = vmatprep.subr.mxu0 0.0
  %1721 = vmatpush2.msra.mxu0 0.0
  %1722 = vmatprep.subr.mxu0 0.0
  %1723 = vmatpush2.msra.mxu0 0.0
  %1724 = vmatprep.subr.mxu0 0.0
  %1725 = vmatpush2.msra.mxu0 0.0
  %1726 = vmatprep.subr.mxu0 0.0
  %1727 = vmatpush2.msra.mxu0 0.0
  %1728 = vmatprep.subr.mxu0 0.0
  %1729 = vmatpush2.msra.mxu0 0.0
  %1730 = vmatprep.subr.mxu0 0.0
  %1731 = vmatpush2.msra.mxu0 0.0
  %1732 = vmatprep.subr.mxu0 0.0
  %1733 = vmatpush2.msra.mxu0 0.0
  %1734 = vmatprep.subr.mxu0 0.0
  %1735 = vmatpush2.msra.mxu0 0.0
  %1736 = vmatprep.subr.mxu0 0.0
  %1737 = vmatpush2.msra.mxu0 0.0
  %1738 = vmatprep.mubr.f32.mxu0 0.0
  %v1739 = vand.u32 %v1251, 4294901760
  %1740 = vmatmul.mubr.f32.gmra.mxu0 %v1739
  %v1741 = vpop.f32.mrf.mxu0
  %v1742 = vadd.f32 %v1639, %v1741
  %v1743 = vpop.f32.mrf.mxu0
  %1744 = vmatprep.mubr.f32.mxu0 0.0
  %v1745 = vand.u32 %v1254, 4294901760
  %1746 = vmatmul.mubr.f32.gmra.mxu0 %v1745
  %v1747 = vpop.f32.mrf.mxu0
  %v1748 = vadd.f32 %v1647, %v1747
  %v1749 = vpop.f32.mrf.mxu0
  %1750 = vdwg.mxu0
  %1751 = vmatprep.subr.mxu0 0.0
  %1752 = vmatpush1.msra.mxu0 0.0
  %1753 = vmatprep.subr.mxu0 0.0
  %1754 = vmatpush1.msra.mxu0 0.0
  %1755 = vmatprep.subr.mxu0 0.0
  %1756 = vmatpush1.msra.mxu0 0.0
  %1757 = vmatprep.subr.mxu0 0.0
  %1758 = vmatpush1.msra.mxu0 0.0
  %1759 = vmatprep.subr.mxu0 0.0
  %1760 = vmatpush1.msra.mxu0 0.0
  %1761 = vmatprep.subr.mxu0 0.0
  %1762 = vmatpush1.msra.mxu0 0.0
  %1763 = vmatprep.subr.mxu0 0.0
  %1764 = vmatpush1.msra.mxu0 0.0
  %1765 = vmatprep.subr.mxu0 0.0
  %1766 = vmatpush1.msra.mxu0 0.0
  %1767 = vmatprep.subr.mxu0 0.0
  %v1768 = vand.u32 %v1242, 4294901760
  %1769 = vmatpush1.msra.mxu0 %v1768
  %1770 = vmatprep.subr.mxu0 0.0
  %v1771 = vand.u32 %v1241, 4294901760
  %1772 = vmatpush1.msra.mxu0 %v1771
  %1773 = vmatprep.subr.mxu0 0.0
  %v1774 = vand.u32 %v1240, 4294901760
  %1775 = vmatpush1.msra.mxu0 %v1774
  %1776 = vmatprep.subr.mxu0 0.0
  %v1777 = vand.u32 %v1239, 4294901760
  %1778 = vmatpush1.msra.mxu0 %v1777
  %1779 = vmatprep.subr.mxu0 0.0
  %v1780 = vand.u32 %v1238, 4294901760
  %1781 = vmatpush1.msra.mxu0 %v1780
  %1782 = vmatprep.subr.mxu0 0.0
  %v1783 = vand.u32 %v1237, 4294901760
  %1784 = vmatpush1.msra.mxu0 %v1783
  %1785 = vmatprep.subr.mxu0 0.0
  %v1786 = vand.u32 %v1236, 4294901760
  %1787 = vmatpush1.msra.mxu0 %v1786
  %1788 = vmatprep.subr.mxu0 0.0
  %v1789 = vand.u32 %v1235, 4294901760
  %1790 = vmatpush1.msra.mxu0 %v1789
  %1791 = vmatprep.subr.mxu0 0.0
  %1792 = vmatpush2.msra.mxu0 0.0
  %1793 = vmatprep.subr.mxu0 0.0
  %1794 = vmatpush2.msra.mxu0 0.0
  %1795 = vmatprep.subr.mxu0 0.0
  %1796 = vmatpush2.msra.mxu0 0.0
  %1797 = vmatprep.subr.mxu0 0.0
  %1798 = vmatpush2.msra.mxu0 0.0
  %1799 = vmatprep.subr.mxu0 0.0
  %1800 = vmatpush2.msra.mxu0 0.0
  %1801 = vmatprep.subr.mxu0 0.0
  %1802 = vmatpush2.msra.mxu0 0.0
  %1803 = vmatprep.subr.mxu0 0.0
  %1804 = vmatpush2.msra.mxu0 0.0
  %1805 = vmatprep.subr.mxu0 0.0
  %1806 = vmatpush2.msra.mxu0 0.0
  %1807 = vmatprep.subr.mxu0 0.0
  %1808 = vmatpush2.msra.mxu0 0.0
  %1809 = vmatprep.subr.mxu0 0.0
  %1810 = vmatpush2.msra.mxu0 0.0
  %1811 = vmatprep.subr.mxu0 0.0
  %1812 = vmatpush2.msra.mxu0 0.0
  %1813 = vmatprep.subr.mxu0 0.0
  %1814 = vmatpush2.msra.mxu0 0.0
  %1815 = vmatprep.subr.mxu0 0.0
  %1816 = vmatpush2.msra.mxu0 0.0
  %1817 = vmatprep.subr.mxu0 0.0
  %1818 = vmatpush2.msra.mxu0 0.0
  %1819 = vmatprep.subr.mxu0 0.0
  %1820 = vmatpush2.msra.mxu0 0.0
  %1821 = vmatprep.subr.mxu0 0.0
  %1822 = vmatpush2.msra.mxu0 0.0
  %1823 = vmatprep.mubr.f32.mxu0 0.0
  %v1824 = vand.u32 %v1251, 4294901760
  %1825 = vmatmul.mubr.f32.gmra.mxu0 %v1824
  %v1826 = vpop.f32.mrf.mxu0
  %v1827 = vadd.f32 %v1742, %v1826
  %v1828 = vpop.f32.mrf.mxu0
  %1829 = vmatprep.mubr.f32.mxu0 0.0
  %v1830 = vand.u32 %v1254, 4294901760
  %1831 = vmatmul.mubr.f32.gmra.mxu0 %v1830
  %v1832 = vpop.f32.mrf.mxu0
  %v1833 = vadd.f32 %v1748, %v1832
  %v1834 = vpop.f32.mrf.mxu0
  %1835 = vdwg.mxu0
  %vm1836 = vcmask 64512
  %1837 = vst.msk [vmem:[%s7] sm:$0xff] %vm1836, %v1827
  %1838 = vst.msk [vmem:[%s7 + $0x8] sm:$0xff] %vm1836, %v1833
  // Predicated region
  $region30: #{pi_conv_lstm_forward.9} parent=0 // pred_check
    _
  $region31: #{pi_conv_lstm_forward.9} parent=0 // pred_check_branch
    %1840 = sbr.rel (0) target = $region33
  $region32: #{pi_conv_lstm_forward.9} parent=0 // pred_region
    _
  $region33: #{pi_conv_lstm_forward.9} parent=0 // pred_fallthru
    _
  // Predicated region
  $region34: #{pi_conv_lstm_forward.9} parent=0 // pred_check
    _
  $region35: #{pi_conv_lstm_forward.9} parent=0 // pred_check_branch
    %1842 = sbr.rel (0) target = $region37
  $region36: #{pi_conv_lstm_forward.9} parent=0 // pred_region
    _
  $region37: #{pi_conv_lstm_forward.9} parent=0 // pred_fallthru
    _

</llo_original>
